<compile_context>
chip_gen: v6e
topology: v6e:2x2x1
jax: 0.10.0
libtpu: 0.0.40
codegen_flags: <defaults>
</compile_context>

<pallas_src>
import functools
import math

import jax
import jax.numpy as jnp
from jax import lax
from jax.experimental import pallas as pl
from jax.experimental.pallas import tpu as pltpu

EPS = 1e-5


def _round_up(x, m):
    return (x + m - 1) // m * m


def _vmem_limit_bytes(block_shapes_dtypes, scratch_bytes):
    """Scoped-VMEM budget from actual block + scratch bytes (x2 for the
    double-buffered auto pipeline) plus headroom, capped well inside v7x's
    64 MiB physical VMEM."""
    blocks = sum(math.prod(s) * jnp.dtype(d).itemsize
                 for s, d in block_shapes_dtypes)
    return int(min(2 * blocks + scratch_bytes + (8 << 20), 32 << 20))


# ---------------------------------------------------------------------------
# Kernel 1: fused conv3x3 block
#   [optional BN-apply+ReLU of previous layer] -> halo write (r==0 only)
#   -> 9 accumulating bf16 MXU matmuls straight from the halo
#   -> bias -> fused BN partial-stat epilogue -> (optionally channel-major) h.
# ---------------------------------------------------------------------------
def _conv3x3_bn_block_kernel(x_ref, scale_ref, shift_ref, w_ref, b_ref,
                             h_ref, psum_ref, psq_ref, yp_ref,
                             *, preact, transpose_out, rows_per_tile):
    H, W, c_in = x_ref.shape[1], x_ref.shape[2], x_ref.shape[3]
    th = rows_per_tile
    w_pad = yp_ref.shape[1]
    r = pl.program_id(1)

    @pl.when(r == 0)
    def _prologue():
        x = x_ref[0]                                   # (H, W, c_in) bf16
        if preact:
            # BN-apply + ReLU of the previous conv layer fused into this
            # layer's prologue.  Elementwise math in f32, MXU operands bf16.
            y = x.astype(jnp.float32) * scale_ref[...] + shift_ref[...]
            y = jnp.maximum(y, 0.0).astype(jnp.bfloat16)
        else:
            y = x
        # Interior of the padded halo (always rewritten per image).
        yp_ref[pl.ds(1, H), pl.ds(1, W), :] = y
        # Only the halo *border* needs zeroing (scratch persists; the
        # alignment-pad columns >= W+2 are never read).
        zrow = jnp.zeros((1, w_pad, c_in), jnp.bfloat16)
        zcol = jnp.zeros((H, 1, c_in), jnp.bfloat16)
        yp_ref[pl.ds(0, 1), :, :] = zrow               # top halo row
        yp_ref[pl.ds(H + 1, 1), :, :] = zrow           # bottom halo row
        yp_ref[pl.ds(1, H), pl.ds(0, 1), :] = zcol     # left halo col
        yp_ref[pl.ds(1, H), pl.ds(W + 1, 1), :] = zcol  # right halo col

    row0 = pl.multiple_of(r * th, th)

    def tap(t):
        dh, dw = divmod(t, 3)
        sl = yp_ref[pl.ds(row0 + dh, th), pl.ds(dw, W), :]
        return sl.reshape(th * W, c_in)                # layout-free (W % 8 == 0)

    if transpose_out:
        # w_ref: (9, c_out, c_in).  Accumulate channel-major (c_out, th*W)
        # with MXU-native "A @ B.T" dimension numbers -> lane-dense store,
        # no in-kernel transpose/relayout.
        nt = (((1,), (1,)), ((), ()))
        acc = lax.dot_general(w_ref[0], tap(0), nt,
                              preferred_element_type=jnp.float32)
        for t in range(1, 9):
            acc = acc + lax.dot_general(w_ref[t], tap(t), nt,
                                        preferred_element_type=jnp.float32)
        acc = acc + b_ref[...]                          # (c_out, 1)
        stat_axis = 1
    else:
        # w_ref: (9, c_in, c_out).  Accumulate pixel-major (th*W, c_out).
        acc = jnp.dot(tap(0), w_ref[0], preferred_element_type=jnp.float32)
        for t in range(1, 9):
            acc = acc + jnp.dot(tap(t), w_ref[t],
                                preferred_element_type=jnp.float32)
        acc = acc + b_ref[...]                          # (1, c_out)
        stat_axis = 0

    # BN batch statistics fused into the conv epilogue: per-image partial
    # sums accumulated across row tiles in a resident f32 output block.
    @pl.when(r == 0)
    def _init_stats():
        psum_ref[...] = jnp.zeros_like(psum_ref)
        psq_ref[...] = jnp.zeros_like(psq_ref)

    psum_ref[0] += jnp.sum(acc, axis=stat_axis, keepdims=True)
    psq_ref[0] += jnp.sum(acc * acc, axis=stat_axis, keepdims=True)

    # Intermediate activation stored in bf16 (halves HBM write+read traffic).
    if transpose_out:
        h_ref[0] = acc.astype(h_ref.dtype)              # (c_out, th*W)
    else:
        c_out = acc.shape[1]
        h_ref[0] = acc.reshape(th, W, c_out).astype(h_ref.dtype)


def conv3x3_bn_block(x, scale, shift, w, b, *, preact, transpose_out,
                     rows_per_tile):
    """x: (N,H,W,Cin) bf16 raw output of the previous conv (or the input).
    scale/shift: (1,Cin) f32 BN-apply of the previous layer (ignored unless
    preact).  w: (9,Cin,Cout) bf16 tap-major, b: (1,Cout) f32.
    Returns (h, psum, psq):
      h:    (N,H,W,Cout) bf16                 if not transpose_out
            (N,Cout,H*W) bf16 channel-major   if transpose_out
      psum/psq: (N,Cout) f32 per-image partial sums for BatchNorm stats.
    """
    N, H, W, c_in = x.shape
    c_out = w.shape[-1]
    th = rows_per_tile
    assert H % th == 0 and W % 8 == 0, "row-tile / lane-layout assumptions"
    n_row_tiles = H // th
    w_pad = _round_up(W + 2, 8)                 # sublane-aligned halo rows

    if transpose_out:
        w = jnp.transpose(w, (0, 2, 1))                   # (9, Cout, Cin)
        b = b.reshape(c_out, 1)
        w_spec = pl.BlockSpec((9, c_out, c_in), lambda n, r: (0, 0, 0))
        b_spec = pl.BlockSpec((c_out, 1), lambda n, r: (0, 0))
        h_shape = (N, c_out, H * W)
        h_block = (1, c_out, th * W)                      # lane-dense columns
        h_spec = pl.BlockSpec(h_block, lambda n, r: (n, 0, r))
        stat_shape, stat_block = (N, c_out, 1), (1, c_out, 1)
    else:
        w_spec = pl.BlockSpec((9, c_in, c_out), lambda n, r: (0, 0, 0))
        b_spec = pl.BlockSpec((1, c_out), lambda n, r: (0, 0))
        h_shape = (N, H, W, c_out)
        h_block = (1, th, W, c_out)
        h_spec = pl.BlockSpec(h_block, lambda n, r: (n, r, 0, 0))
        stat_shape, stat_block = (N, 1, c_out), (1, 1, c_out)

    blocks = [((1, H, W, c_in), jnp.bfloat16),
              ((1, c_in), jnp.float32), ((1, c_in), jnp.float32),
              (tuple(w.shape), jnp.bfloat16), (tuple(b.shape), jnp.float32),
              (h_block, jnp.bfloat16),
              (stat_block, jnp.float32), (stat_block, jnp.float32)]
    scratch_bytes = (H + 2) * w_pad * c_in * 2

    kern = functools.partial(_conv3x3_bn_block_kernel, preact=preact,
                             transpose_out=transpose_out, rows_per_tile=th)
    h, psum, psq = pl.pallas_call(
        kern,
        out_shape=(jax.ShapeDtypeStruct(h_shape, jnp.bfloat16),
                   jax.ShapeDtypeStruct(stat_shape, jnp.float32),
                   jax.ShapeDtypeStruct(stat_shape, jnp.float32)),
        grid_spec=pltpu.PrefetchScalarGridSpec(
            num_scalar_prefetch=0,
            grid=(N, n_row_tiles),
            in_specs=[
                # Whole image; block index invariant along r -> one DMA/image.
                pl.BlockSpec((1, H, W, c_in), lambda n, r: (n, 0, 0, 0)),
                pl.BlockSpec((1, c_in), lambda n, r: (0, 0)),
                pl.BlockSpec((1, c_in), lambda n, r: (0, 0)),
                # Weight/bias block indices are grid-invariant -> fetched once.
                w_spec,
                b_spec,
            ],
            out_specs=(
                h_spec,
                # BN partial sums stay resident across the row-tile axis.
                pl.BlockSpec(stat_block, lambda n, r: (n, 0, 0)),
                pl.BlockSpec(stat_block, lambda n, r: (n, 0, 0)),
            ),
            scratch_shapes=[
                pltpu.VMEM((H + 2, w_pad, c_in), jnp.bfloat16),  # padded halo
            ]),
        compiler_params=pltpu.CompilerParams(
            dimension_semantics=("parallel", "arbitrary"),
            vmem_limit_bytes=_vmem_limit_bytes(blocks, scratch_bytes)),
    )(x, scale, shift, w, b)
    return h, psum.reshape(N, c_out), psq.reshape(N, c_out)


# ---------------------------------------------------------------------------
# Kernel 2: fused [BN-apply + ReLU of layer 3] + both 1x1-conv heads.
# h3 arrives channel-major (C, H*W), both head weights are concatenated into
# one (2L, C) matrix, and the single (2L, tile) output is lane-dense.
# ---------------------------------------------------------------------------
def _bn_relu_heads_kernel(h_ref, scale_ref, shift_ref, w_ref, b_ref, out_ref):
    y = h_ref[0].astype(jnp.float32) * scale_ref[...] + shift_ref[...]
    y = jnp.maximum(y, 0.0).astype(jnp.bfloat16)         # (C, tile)
    acc = jnp.dot(w_ref[...], y, preferred_element_type=jnp.float32)
    out_ref[0] = acc + b_ref[...]                         # (2L, tile)


def bn_relu_heads(h_t, scale, shift, w_mu, b_mu, w_lv, b_lv, H, W):
    """h_t: (N,C,H*W) bf16 channel-major raw conv3 output; scale/shift: (C,1)
    f32 layer-3 BN-apply.  Returns (mu, logvar) in NCHW f32."""
    N, c, hw = h_t.shape
    L = w_mu.shape[-1]
    w = jnp.concatenate([w_mu, w_lv], axis=-1).T.astype(jnp.bfloat16)  # (2L,C)
    b = jnp.concatenate([b_mu, b_lv]).reshape(2 * L, 1).astype(jnp.float32)
    tile = 128 if hw % 128 == 0 else hw

    blocks = [((1, c, tile), jnp.bfloat16), ((c, 1), jnp.float32),
              ((c, 1), jnp.float32), ((2 * L, c), jnp.bfloat16),
              ((2 * L, 1), jnp.float32), ((1, 2 * L, tile), jnp.float32)]

    out = pl.pallas_call(
        _bn_relu_heads_kernel,
        out_shape=jax.ShapeDtypeStruct((N, 2 * L, hw), jnp.float32),
        grid_spec=pltpu.PrefetchScalarGridSpec(
            num_scalar_prefetch=0,
            grid=(N, hw // tile),
            in_specs=[
                pl.BlockSpec((1, c, tile), lambda n, j: (n, 0, j)),
                pl.BlockSpec((c, 1), lambda n, j: (0, 0)),
                pl.BlockSpec((c, 1), lambda n, j: (0, 0)),
                pl.BlockSpec((2 * L, c), lambda n, j: (0, 0)),
                pl.BlockSpec((2 * L, 1), lambda n, j: (0, 0)),
            ],
            out_specs=pl.BlockSpec((1, 2 * L, tile), lambda n, j: (n, 0, j))),
        compiler_params=pltpu.CompilerParams(
            dimension_semantics=("parallel", "parallel"),
            vmem_limit_bytes=_vmem_limit_bytes(blocks, 0)),
    )(h_t, scale, shift, w, b)

    # Channel-major output is already NCHW after a free reshape.
    mu = out[:, :L, :].reshape(N, L, H, W)
    logvar = out[:, L:, :].reshape(N, L, H, W)
    return mu, logvar


# ---------------------------------------------------------------------------
# Glue: BN stat reduction, parameter setup, forward pass.
# ---------------------------------------------------------------------------
def _bn_scale_shift(psum, psq, gamma, beta, count):
    s = jnp.sum(psum, axis=0)
    sq = jnp.sum(psq, axis=0)
    mean = s / count
    # E[x^2] - E[x]^2 can go marginally negative in f32 -> clamp before sqrt.
    var = jnp.maximum(sq / count - mean * mean, 0.0)
    scale = gamma / jnp.sqrt(var + EPS)
    shift = beta - mean * scale
    return scale, shift                                   # (C,), (C,)


def init_params(key, in_ch, hidden_ch, latent_dim):
    ks = jax.random.split(key, 10)

    def conv_w(k, kh, kw, cin, cout):
        fan_in = kh * kw * cin
        return jax.random.normal(k, (kh, kw, cin, cout), jnp.float32) \
            * (2.0 / fan_in) ** 0.5

    def bias(k, cout):
        return 0.05 * jax.random.normal(k, (cout,), jnp.float32)

    return {
        "w1": conv_w(ks[0], 3, 3, in_ch, 128), "b1": bias(ks[1], 128),
        "g1": jnp.ones((128,), jnp.float32),
        "be1": jnp.zeros((128,), jnp.float32),
        "w2": conv_w(ks[2], 3, 3, 128, 256), "b2": bias(ks[3], 256),
        "g2": jnp.ones((256,), jnp.float32),
        "be2": jnp.zeros((256,), jnp.float32),
        "w3": conv_w(ks[4], 3, 3, 256, hidden_ch), "b3": bias(ks[5], hidden_ch),
        "g3": jnp.ones((hidden_ch,), jnp.float32),
        "be3": jnp.zeros((hidden_ch,), jnp.float32),
        "w_mu": conv_w(ks[6], 1, 1, hidden_ch, latent_dim).reshape(
            hidden_ch, latent_dim),
        "b_mu": bias(ks[7], latent_dim),
        "w_lv": conv_w(ks[8], 1, 1, hidden_ch, latent_dim).reshape(
            hidden_ch, latent_dim),
        "b_lv": bias(ks[9], latent_dim),
    }


def conv_vencoder_forward(x_nchw, p):
    """Pallas forward.  NCHW in -> (mu, logvar) NCHW out.
    BatchNorm uses training-mode batch statistics (module forward of a freshly
    constructed nn.BatchNorm2d)."""
    x = jnp.transpose(x_nchw, (0, 2, 3, 1)).astype(jnp.bfloat16)   # NHWC bf16
    N, H, W, in_ch = x.shape
    count = N * H * W

    def prep_w(w):        # (3,3,Cin,Cout) -> (9,Cin,Cout) bf16 tap-major slab
        kh, kw, ci, co = w.shape
        return w.reshape(kh * kw, ci, co).astype(jnp.bfloat16)

    def prep_b(b):
        return b.reshape(1, -1).astype(jnp.float32)

    one = lambda c: jnp.ones((1, c), jnp.float32)
    zero = lambda c: jnp.zeros((1, c), jnp.float32)

    # Row tiles: 4 rows/step for the NHWC layers (8 grid steps at N=2); for
    # the channel-major layer-3 output, the smallest row tile whose flattened
    # width is a 128-lane multiple (falls back to whole image).
    th12 = 4 if H % 4 == 0 else H
    th3 = H
    for cand in (1, 2, 4, 8):
        if H % cand == 0 and ((H // cand) * W) % 128 == 0:
            th3 = H // cand

    # conv1 (no pre-activation on the raw input).
    # NOTE: K = 9*in_ch is tiny for layer 1; acceptable at this size (v7x).
    h1, s1, q1 = conv3x3_bn_block(x, one(in_ch), zero(in_ch),
                                  prep_w(p["w1"]), prep_b(p["b1"]),
                                  preact=False, transpose_out=False,
                                  rows_per_tile=th12)
    sc1, sh1 = _bn_scale_shift(s1, q1, p["g1"], p["be1"], count)
    # conv2 (BN1 + ReLU fused into its prologue).
    h2, s2, q2 = conv3x3_bn_block(h1, sc1.reshape(1, -1), sh1.reshape(1, -1),
                                  prep_w(p["w2"]), prep_b(p["b2"]),
                                  preact=True, transpose_out=False,
                                  rows_per_tile=th12)
    sc2, sh2 = _bn_scale_shift(s2, q2, p["g2"], p["be2"], count)
    # conv3 (BN2 + ReLU fused; channel-major lane-dense output).
    h3, s3, q3 = conv3x3_bn_block(h2, sc2.reshape(1, -1), sh2.reshape(1, -1),
                                  prep_w(p["w3"]), prep_b(p["b3"]),
                                  preact=True, transpose_out=True,
                                  rows_per_tile=th3)
    sc3, sh3 = _bn_scale_shift(s3, q3, p["g3"], p["be3"], count)
    # heads (BN3 + ReLU + both 1x1 convs fused in one lane-dense kernel).
    return bn_relu_heads(h3, sc3.reshape(-1, 1), sh3.reshape(-1, 1),
                         p["w_mu"], p["b_mu"], p["w_lv"], p["b_lv"], H, W)


def reference_forward(x_nchw, p):
    """Pure-JAX reference mirroring the kernel's precision choices
    (bf16 MXU operands / f32 accumulation, bf16-stored intermediates)."""
    x = jnp.transpose(x_nchw, (0, 2, 3, 1)).astype(jnp.float32)

    def conv3x3(y, w, b):
        out = lax.conv_general_dilated(
            y.astype(jnp.bfloat16), w.astype(jnp.bfloat16), (1, 1), "SAME",
            dimension_numbers=("NHWC", "HWIO", "NHWC"),
            preferred_element_type=jnp.float32)
        return out + b

    def bn_relu(h, g, be):
        mean = jnp.mean(h, axis=(0, 1, 2))
        var = jnp.maximum(jnp.mean(h * h, axis=(0, 1, 2)) - mean * mean, 0.0)
        scale = g / jnp.sqrt(var + EPS)
        shift = be - mean * scale
        hq = h.astype(jnp.bfloat16).astype(jnp.float32)  # kernel stores h bf16
        return jnp.maximum(hq * scale + shift, 0.0)

    h = bn_relu(conv3x3(x, p["w1"], p["b1"]), p["g1"], p["be1"])
    h = bn_relu(conv3x3(h, p["w2"], p["b2"]), p["g2"], p["be2"])
    h = bn_relu(conv3x3(h, p["w3"], p["b3"]), p["g3"], p["be3"])

    hq = h.astype(jnp.bfloat16)

    def head(w, b):
        return jnp.einsum("nhwc,cl->nhwl", hq, w.astype(jnp.bfloat16),
                          preferred_element_type=jnp.float32) + b

    mu = head(p["w_mu"], p["b_mu"])
    lv = head(p["w_lv"], p["b_lv"])
    to_nchw = lambda t: jnp.transpose(t, (0, 3, 1, 2))
    return to_nchw(mu), to_nchw(lv)


if __name__ == "__main__":
    key = jax.random.PRNGKey(0)
    k_x, k_p = jax.random.split(key)

    in_ch, hidden_ch, latent_dim = 3, 32, 4
    N, H, W = 2, 16, 16

    x = jax.random.normal(k_x, (N, in_ch, H, W), jnp.float32)       # NCHW
    params = init_params(k_p, in_ch, hidden_ch, latent_dim)

    mu, logvar = jax.jit(conv_vencoder_forward)(x, params)
    jax.block_until_ready((mu, logvar))
    assert mu.shape == (N, latent_dim, H, W)
    assert logvar.shape == (N, latent_dim, H, W)

    mu_r, lv_r = jax.block_until_ready(jax.jit(reference_forward)(x, params))
    err = max(float(jnp.max(jnp.abs(mu - mu_r))),
              float(jnp.max(jnp.abs(logvar - lv_r))))
    assert jnp.allclose(mu, mu_r, atol=2e-2, rtol=2e-2) and \
        jnp.allclose(logvar, lv_r, atol=2e-2, rtol=2e-2), \
        f"max abs err {err}"

    print("KERNEL_OK")
</pallas_src>

<mosaic_0001>
module attributes {stable_mosaic.version = 11 : i64} {
  func.func @_conv3x3_bn_block_kernel(%arg0: i32, %arg1: i32, %arg2: memref<1x16x16x3xbf16, #tpu.memory_space<vmem>>, %arg3: memref<1x3xf32, #tpu.memory_space<vmem>>, %arg4: memref<1x3xf32, #tpu.memory_space<vmem>>, %arg5: memref<9x3x128xbf16, #tpu.memory_space<vmem>>, %arg6: memref<1x128xf32, #tpu.memory_space<vmem>>, %arg7: memref<1x4x16x128xbf16, #tpu.memory_space<vmem>>, %arg8: memref<1x1x128xf32, #tpu.memory_space<vmem>>, %arg9: memref<1x1x128xf32, #tpu.memory_space<vmem>>, %arg10: memref<18x24x3xbf16, #tpu.memory_space<vmem>>) attributes {dimension_semantics = [#tpu.dimension_semantics<parallel>, #tpu.dimension_semantics<arbitrary>], iteration_bounds = array<i64: 2, 4>, scalar_prefetch = 0 : i64, scratch_operands = 1 : i64, tpu.core_type = #tpu.core_type<tc>, window_params = [{transform_indices = @transform_0, window_bounds = array<i64: 1, 16, 16, 3>}, {pipeline_mode = #tpu.pipeline_mode<synchronous>, transform_indices = @transform_1, window_bounds = array<i64: 1, 3>}, {pipeline_mode = #tpu.pipeline_mode<synchronous>, transform_indices = @transform_2, window_bounds = array<i64: 1, 3>}, {pipeline_mode = #tpu.pipeline_mode<synchronous>, transform_indices = @transform_3, window_bounds = array<i64: 9, 3, 128>}, {pipeline_mode = #tpu.pipeline_mode<synchronous>, transform_indices = @transform_4, window_bounds = array<i64: 1, 128>}, {transform_indices = @transform_5, window_bounds = array<i64: 1, 4, 16, 128>}, {transform_indices = @transform_6, window_bounds = array<i64: 1, 1, 128>}, {transform_indices = @transform_7, window_bounds = array<i64: 1, 1, 128>}]} {
    %c0_i32 = arith.constant 0 : i32
    %0 = arith.cmpi eq, %arg1, %c0_i32 : i32
    %1 = arith.extui %0 : i1 to i32
    %c0_i32_0 = arith.constant 0 : i32
    %2 = arith.cmpi ne, %1, %c0_i32_0 : i32
    scf.if %2 {
      %c0_74 = arith.constant 0 : index
      %c0_75 = arith.constant 0 : index
      %c0_76 = arith.constant 0 : index
      %c0_77 = arith.constant 0 : index
      %104 = vector.load %arg2[%c0_74, %c0_75, %c0_76, %c0_77] : memref<1x16x16x3xbf16, #tpu.memory_space<vmem>>, vector<1x16x16x3xbf16>
      %105 = vector.shape_cast %104 : vector<1x16x16x3xbf16> to vector<16x16x3xbf16>
      %c1_78 = arith.constant 1 : index
      %c1_79 = arith.constant 1 : index
      %c0_80 = arith.constant 0 : index
      %106 = vector.load %arg10[%c1_78, %c1_79, %c0_80] : memref<18x24x3xbf16, #tpu.memory_space<vmem>>, vector<16x16x3xbf16>
      tpu.vector_store %arg10[%c1_78, %c1_79, %c0_80], %105 {strides = array<i32>} : memref<18x24x3xbf16, #tpu.memory_space<vmem>>, vector<16x16x3xbf16>,
      %cst_81 = arith.constant 0.000000e+00 : bf16
      %107 = vector.broadcast %cst_81 : bf16 to vector<1x24x3xbf16>
      %cst_82 = arith.constant 0.000000e+00 : bf16
      %108 = vector.broadcast %cst_82 : bf16 to vector<16x1x3xbf16>
      %c0_83 = arith.constant 0 : index
      %c0_84 = arith.constant 0 : index
      %c0_85 = arith.constant 0 : index
      %109 = vector.load %arg10[%c0_83, %c0_84, %c0_85] : memref<18x24x3xbf16, #tpu.memory_space<vmem>>, vector<1x24x3xbf16>
      tpu.vector_store %arg10[%c0_83, %c0_84, %c0_85], %107 {strides = array<i32>} : memref<18x24x3xbf16, #tpu.memory_space<vmem>>, vector<1x24x3xbf16>,
      %c17 = arith.constant 17 : index
      %c0_86 = arith.constant 0 : index
      %c0_87 = arith.constant 0 : index
      %110 = vector.load %arg10[%c17, %c0_86, %c0_87] : memref<18x24x3xbf16, #tpu.memory_space<vmem>>, vector<1x24x3xbf16>
      tpu.vector_store %arg10[%c17, %c0_86, %c0_87], %107 {strides = array<i32>} : memref<18x24x3xbf16, #tpu.memory_space<vmem>>, vector<1x24x3xbf16>,
      %c1_88 = arith.constant 1 : index
      %c0_89 = arith.constant 0 : index
      %c0_90 = arith.constant 0 : index
      %111 = vector.load %arg10[%c1_88, %c0_89, %c0_90] : memref<18x24x3xbf16, #tpu.memory_space<vmem>>, vector<16x1x3xbf16>
      tpu.vector_store %arg10[%c1_88, %c0_89, %c0_90], %108 {strides = array<i32>} : memref<18x24x3xbf16, #tpu.memory_space<vmem>>, vector<16x1x3xbf16>,
      %c1_91 = arith.constant 1 : index
      %c17_92 = arith.constant 17 : index
      %c0_93 = arith.constant 0 : index
      %112 = vector.load %arg10[%c1_91, %c17_92, %c0_93] : memref<18x24x3xbf16, #tpu.memory_space<vmem>>, vector<16x1x3xbf16>
      tpu.vector_store %arg10[%c1_91, %c17_92, %c0_93], %108 {strides = array<i32>} : memref<18x24x3xbf16, #tpu.memory_space<vmem>>, vector<16x1x3xbf16>,
    } else {
    }
    %c4_i32 = arith.constant 4 : i32
    %3 = arith.muli %arg1, %c4_i32 : i32
    %4 = tpu.assume_multiple %3, 4 : i32
    %c0_i32_1 = arith.constant 0 : i32
    %5 = arith.addi %4, %c0_i32_1 : i32
    %6 = arith.index_cast %5 : i32 to index
    %c0 = arith.constant 0 : index
    %c0_2 = arith.constant 0 : index
    %7 = vector.load %arg10[%6, %c0, %c0_2] : memref<18x24x3xbf16, #tpu.memory_space<vmem>>, vector<4x16x3xbf16>
    %8 = vector.shape_cast %7 : vector<4x16x3xbf16> to vector<64x3xbf16>
    %c0_3 = arith.constant 0 : index
    %c0_4 = arith.constant 0 : index
    %c0_5 = arith.constant 0 : index
    %9 = vector.load %arg5[%c0_3, %c0_4, %c0_5] : memref<9x3x128xbf16, #tpu.memory_space<vmem>>, vector<1x3x128xbf16>
    %10 = vector.shape_cast %9 : vector<1x3x128xbf16> to vector<3x128xbf16>
    %cst = arith.constant dense<0.000000e+00> : vector<64x128xf32>
    %11 = tpu.matmul %8, %10, %cst {dimension_numbers = #tpu.dot_dimension_numbers<[1], [0], [0], [1], [0, 0, 1, 1], [], []>} : vector<64x3xbf16>, vector<3x128xbf16>, vector<64x128xf32> -> vector<64x128xf32>
    %c0_i32_6 = arith.constant 0 : i32
    %12 = arith.addi %4, %c0_i32_6 : i32
    %13 = arith.index_cast %12 : i32 to index
    %c1 = arith.constant 1 : index
    %c0_7 = arith.constant 0 : index
    %14 = vector.load %arg10[%13, %c1, %c0_7] : memref<18x24x3xbf16, #tpu.memory_space<vmem>>, vector<4x16x3xbf16>
    %15 = vector.shape_cast %14 : vector<4x16x3xbf16> to vector<64x3xbf16>
    %c1_8 = arith.constant 1 : index
    %c0_9 = arith.constant 0 : index
    %c0_10 = arith.constant 0 : index
    %16 = vector.load %arg5[%c1_8, %c0_9, %c0_10] : memref<9x3x128xbf16, #tpu.memory_space<vmem>>, vector<1x3x128xbf16>
    %17 = vector.shape_cast %16 : vector<1x3x128xbf16> to vector<3x128xbf16>
    %cst_11 = arith.constant dense<0.000000e+00> : vector<64x128xf32>
    %18 = tpu.matmul %15, %17, %cst_11 {dimension_numbers = #tpu.dot_dimension_numbers<[1], [0], [0], [1], [0, 0, 1, 1], [], []>} : vector<64x3xbf16>, vector<3x128xbf16>, vector<64x128xf32> -> vector<64x128xf32>
    %19 = arith.addf %11, %18 : vector<64x128xf32>
    %c0_i32_12 = arith.constant 0 : i32
    %20 = arith.addi %4, %c0_i32_12 : i32
    %21 = arith.index_cast %20 : i32 to index
    %c2 = arith.constant 2 : index
    %c0_13 = arith.constant 0 : index
    %22 = vector.load %arg10[%21, %c2, %c0_13] : memref<18x24x3xbf16, #tpu.memory_space<vmem>>, vector<4x16x3xbf16>
    %23 = vector.shape_cast %22 : vector<4x16x3xbf16> to vector<64x3xbf16>
    %c2_14 = arith.constant 2 : index
    %c0_15 = arith.constant 0 : index
    %c0_16 = arith.constant 0 : index
    %24 = vector.load %arg5[%c2_14, %c0_15, %c0_16] : memref<9x3x128xbf16, #tpu.memory_space<vmem>>, vector<1x3x128xbf16>
    %25 = vector.shape_cast %24 : vector<1x3x128xbf16> to vector<3x128xbf16>
    %cst_17 = arith.constant dense<0.000000e+00> : vector<64x128xf32>
    %26 = tpu.matmul %23, %25, %cst_17 {dimension_numbers = #tpu.dot_dimension_numbers<[1], [0], [0], [1], [0, 0, 1, 1], [], []>} : vector<64x3xbf16>, vector<3x128xbf16>, vector<64x128xf32> -> vector<64x128xf32>
    %27 = arith.addf %19, %26 : vector<64x128xf32>
    %c1_i32 = arith.constant 1 : i32
    %28 = arith.addi %4, %c1_i32 : i32
    %29 = arith.index_cast %28 : i32 to index
    %c0_18 = arith.constant 0 : index
    %c0_19 = arith.constant 0 : index
    %30 = vector.load %arg10[%29, %c0_18, %c0_19] : memref<18x24x3xbf16, #tpu.memory_space<vmem>>, vector<4x16x3xbf16>
    %31 = vector.shape_cast %30 : vector<4x16x3xbf16> to vector<64x3xbf16>
    %c3 = arith.constant 3 : index
    %c0_20 = arith.constant 0 : index
    %c0_21 = arith.constant 0 : index
    %32 = vector.load %arg5[%c3, %c0_20, %c0_21] : memref<9x3x128xbf16, #tpu.memory_space<vmem>>, vector<1x3x128xbf16>
    %33 = vector.shape_cast %32 : vector<1x3x128xbf16> to vector<3x128xbf16>
    %cst_22 = arith.constant dense<0.000000e+00> : vector<64x128xf32>
    %34 = tpu.matmul %31, %33, %cst_22 {dimension_numbers = #tpu.dot_dimension_numbers<[1], [0], [0], [1], [0, 0, 1, 1], [], []>} : vector<64x3xbf16>, vector<3x128xbf16>, vector<64x128xf32> -> vector<64x128xf32>
    %35 = arith.addf %27, %34 : vector<64x128xf32>
    %c1_i32_23 = arith.constant 1 : i32
    %36 = arith.addi %4, %c1_i32_23 : i32
    %37 = arith.index_cast %36 : i32 to index
    %c1_24 = arith.constant 1 : index
    %c0_25 = arith.constant 0 : index
    %38 = vector.load %arg10[%37, %c1_24, %c0_25] : memref<18x24x3xbf16, #tpu.memory_space<vmem>>, vector<4x16x3xbf16>
    %39 = vector.shape_cast %38 : vector<4x16x3xbf16> to vector<64x3xbf16>
    %c4 = arith.constant 4 : index
    %c0_26 = arith.constant 0 : index
    %c0_27 = arith.constant 0 : index
    %40 = vector.load %arg5[%c4, %c0_26, %c0_27] : memref<9x3x128xbf16, #tpu.memory_space<vmem>>, vector<1x3x128xbf16>
    %41 = vector.shape_cast %40 : vector<1x3x128xbf16> to vector<3x128xbf16>
    %cst_28 = arith.constant dense<0.000000e+00> : vector<64x128xf32>
    %42 = tpu.matmul %39, %41, %cst_28 {dimension_numbers = #tpu.dot_dimension_numbers<[1], [0], [0], [1], [0, 0, 1, 1], [], []>} : vector<64x3xbf16>, vector<3x128xbf16>, vector<64x128xf32> -> vector<64x128xf32>
    %43 = arith.addf %35, %42 : vector<64x128xf32>
    %c1_i32_29 = arith.constant 1 : i32
    %44 = arith.addi %4, %c1_i32_29 : i32
    %45 = arith.index_cast %44 : i32 to index
    %c2_30 = arith.constant 2 : index
    %c0_31 = arith.constant 0 : index
    %46 = vector.load %arg10[%45, %c2_30, %c0_31] : memref<18x24x3xbf16, #tpu.memory_space<vmem>>, vector<4x16x3xbf16>
    %47 = vector.shape_cast %46 : vector<4x16x3xbf16> to vector<64x3xbf16>
    %c5 = arith.constant 5 : index
    %c0_32 = arith.constant 0 : index
    %c0_33 = arith.constant 0 : index
    %48 = vector.load %arg5[%c5, %c0_32, %c0_33] : memref<9x3x128xbf16, #tpu.memory_space<vmem>>, vector<1x3x128xbf16>
    %49 = vector.shape_cast %48 : vector<1x3x128xbf16> to vector<3x128xbf16>
    %cst_34 = arith.constant dense<0.000000e+00> : vector<64x128xf32>
    %50 = tpu.matmul %47, %49, %cst_34 {dimension_numbers = #tpu.dot_dimension_numbers<[1], [0], [0], [1], [0, 0, 1, 1], [], []>} : vector<64x3xbf16>, vector<3x128xbf16>, vector<64x128xf32> -> vector<64x128xf32>
    %51 = arith.addf %43, %50 : vector<64x128xf32>
    %c2_i32 = arith.constant 2 : i32
    %52 = arith.addi %4, %c2_i32 : i32
    %53 = arith.index_cast %52 : i32 to index
    %c0_35 = arith.constant 0 : index
    %c0_36 = arith.constant 0 : index
    %54 = vector.load %arg10[%53, %c0_35, %c0_36] : memref<18x24x3xbf16, #tpu.memory_space<vmem>>, vector<4x16x3xbf16>
    %55 = vector.shape_cast %54 : vector<4x16x3xbf16> to vector<64x3xbf16>
    %c6 = arith.constant 6 : index
    %c0_37 = arith.constant 0 : index
    %c0_38 = arith.constant 0 : index
    %56 = vector.load %arg5[%c6, %c0_37, %c0_38] : memref<9x3x128xbf16, #tpu.memory_space<vmem>>, vector<1x3x128xbf16>
    %57 = vector.shape_cast %56 : vector<1x3x128xbf16> to vector<3x128xbf16>
    %cst_39 = arith.constant dense<0.000000e+00> : vector<64x128xf32>
    %58 = tpu.matmul %55, %57, %cst_39 {dimension_numbers = #tpu.dot_dimension_numbers<[1], [0], [0], [1], [0, 0, 1, 1], [], []>} : vector<64x3xbf16>, vector<3x128xbf16>, vector<64x128xf32> -> vector<64x128xf32>
    %59 = arith.addf %51, %58 : vector<64x128xf32>
    %c2_i32_40 = arith.constant 2 : i32
    %60 = arith.addi %4, %c2_i32_40 : i32
    %61 = arith.index_cast %60 : i32 to index
    %c1_41 = arith.constant 1 : index
    %c0_42 = arith.constant 0 : index
    %62 = vector.load %arg10[%61, %c1_41, %c0_42] : memref<18x24x3xbf16, #tpu.memory_space<vmem>>, vector<4x16x3xbf16>
    %63 = vector.shape_cast %62 : vector<4x16x3xbf16> to vector<64x3xbf16>
    %c7 = arith.constant 7 : index
    %c0_43 = arith.constant 0 : index
    %c0_44 = arith.constant 0 : index
    %64 = vector.load %arg5[%c7, %c0_43, %c0_44] : memref<9x3x128xbf16, #tpu.memory_space<vmem>>, vector<1x3x128xbf16>
    %65 = vector.shape_cast %64 : vector<1x3x128xbf16> to vector<3x128xbf16>
    %cst_45 = arith.constant dense<0.000000e+00> : vector<64x128xf32>
    %66 = tpu.matmul %63, %65, %cst_45 {dimension_numbers = #tpu.dot_dimension_numbers<[1], [0], [0], [1], [0, 0, 1, 1], [], []>} : vector<64x3xbf16>, vector<3x128xbf16>, vector<64x128xf32> -> vector<64x128xf32>
    %67 = arith.addf %59, %66 : vector<64x128xf32>
    %c2_i32_46 = arith.constant 2 : i32
    %68 = arith.addi %4, %c2_i32_46 : i32
    %69 = arith.index_cast %68 : i32 to index
    %c2_47 = arith.constant 2 : index
    %c0_48 = arith.constant 0 : index
    %70 = vector.load %arg10[%69, %c2_47, %c0_48] : memref<18x24x3xbf16, #tpu.memory_space<vmem>>, vector<4x16x3xbf16>
    %71 = vector.shape_cast %70 : vector<4x16x3xbf16> to vector<64x3xbf16>
    %c8 = arith.constant 8 : index
    %c0_49 = arith.constant 0 : index
    %c0_50 = arith.constant 0 : index
    %72 = vector.load %arg5[%c8, %c0_49, %c0_50] : memref<9x3x128xbf16, #tpu.memory_space<vmem>>, vector<1x3x128xbf16>
    %73 = vector.shape_cast %72 : vector<1x3x128xbf16> to vector<3x128xbf16>
    %cst_51 = arith.constant dense<0.000000e+00> : vector<64x128xf32>
    %74 = tpu.matmul %71, %73, %cst_51 {dimension_numbers = #tpu.dot_dimension_numbers<[1], [0], [0], [1], [0, 0, 1, 1], [], []>} : vector<64x3xbf16>, vector<3x128xbf16>, vector<64x128xf32> -> vector<64x128xf32>
    %75 = arith.addf %67, %74 : vector<64x128xf32>
    %c0_52 = arith.constant 0 : index
    %c0_53 = arith.constant 0 : index
    %76 = vector.load %arg6[%c0_52, %c0_53] : memref<1x128xf32, #tpu.memory_space<vmem>>, vector<1x128xf32>
    %77 = vector.broadcast %76 : vector<1x128xf32> to vector<64x128xf32>
    %78 = arith.addf %75, %77 : vector<64x128xf32>
    %c0_i32_54 = arith.constant 0 : i32
    %79 = arith.cmpi eq, %arg1, %c0_i32_54 : i32
    %80 = arith.extui %79 : i1 to i32
    %c0_i32_55 = arith.constant 0 : i32
    %81 = arith.cmpi ne, %80, %c0_i32_55 : i32
    scf.if %81 {
      %cst_74 = arith.constant 0.000000e+00 : f32
      %104 = vector.broadcast %cst_74 : f32 to vector<1x1x128xf32>
      %c0_75 = arith.constant 0 : index
      %c0_76 = arith.constant 0 : index
      %c0_77 = arith.constant 0 : index
      %105 = vector.load %arg8[%c0_75, %c0_76, %c0_77] : memref<1x1x128xf32, #tpu.memory_space<vmem>>, vector<1x1x128xf32>
      tpu.vector_store %arg8[%c0_75, %c0_76, %c0_77], %104 {strides = array<i32>} : memref<1x1x128xf32, #tpu.memory_space<vmem>>, vector<1x1x128xf32>,
      %cst_78 = arith.constant 0.000000e+00 : f32
      %106 = vector.broadcast %cst_78 : f32 to vector<1x1x128xf32>
      %c0_79 = arith.constant 0 : index
      %c0_80 = arith.constant 0 : index
      %c0_81 = arith.constant 0 : index
      %107 = vector.load %arg9[%c0_79, %c0_80, %c0_81] : memref<1x1x128xf32, #tpu.memory_space<vmem>>, vector<1x1x128xf32>
      tpu.vector_store %arg9[%c0_79, %c0_80, %c0_81], %106 {strides = array<i32>} : memref<1x1x128xf32, #tpu.memory_space<vmem>>, vector<1x1x128xf32>,
    } else {
    }
    %c0_56 = arith.constant 0 : index
    %c0_57 = arith.constant 0 : index
    %c0_58 = arith.constant 0 : index
    %82 = vector.load %arg8[%c0_56, %c0_57, %c0_58] : memref<1x1x128xf32, #tpu.memory_space<vmem>>, vector<1x1x128xf32>
    %83 = vector.shape_cast %82 : vector<1x1x128xf32> to vector<1x128xf32>
    %cst_59 = arith.constant dense<0.000000e+00> : vector<128xf32>
    %84 = vector.multi_reduction <add>, %78, %cst_59 [0] : vector<64x128xf32> to vector<128xf32>
    %85 = vector.shape_cast %84 : vector<128xf32> to vector<1x128xf32>
    %86 = arith.addf %83, %85 : vector<1x128xf32>
    %c0_60 = arith.constant 0 : index
    %c0_61 = arith.constant 0 : index
    %c0_62 = arith.constant 0 : index
    %87 = vector.load %arg8[%c0_60, %c0_61, %c0_62] : memref<1x1x128xf32, #tpu.memory_space<vmem>>, vector<1x1x128xf32>
    %88 = vector.shape_cast %87 : vector<1x1x128xf32> to vector<1x128xf32>
    %89 = vector.shape_cast %86 : vector<1x128xf32> to vector<1x1x128xf32>
    tpu.vector_store %arg8[%c0_60, %c0_61, %c0_62], %89 {strides = array<i32>} : memref<1x1x128xf32, #tpu.memory_space<vmem>>, vector<1x1x128xf32>,
    %c0_63 = arith.constant 0 : index
    %c0_64 = arith.constant 0 : index
    %c0_65 = arith.constant 0 : index
    %90 = vector.load %arg9[%c0_63, %c0_64, %c0_65] : memref<1x1x128xf32, #tpu.memory_space<vmem>>, vector<1x1x128xf32>
    %91 = vector.shape_cast %90 : vector<1x1x128xf32> to vector<1x128xf32>
    %92 = arith.mulf %78, %78 : vector<64x128xf32>
    %cst_66 = arith.constant dense<0.000000e+00> : vector<128xf32>
    %93 = vector.multi_reduction <add>, %92, %cst_66 [0] : vector<64x128xf32> to vector<128xf32>
    %94 = vector.shape_cast %93 : vector<128xf32> to vector<1x128xf32>
    %95 = arith.addf %91, %94 : vector<1x128xf32>
    %c0_67 = arith.constant 0 : index
    %c0_68 = arith.constant 0 : index
    %c0_69 = arith.constant 0 : index
    %96 = vector.load %arg9[%c0_67, %c0_68, %c0_69] : memref<1x1x128xf32, #tpu.memory_space<vmem>>, vector<1x1x128xf32>
    %97 = vector.shape_cast %96 : vector<1x1x128xf32> to vector<1x128xf32>
    %98 = vector.shape_cast %95 : vector<1x128xf32> to vector<1x1x128xf32>
    tpu.vector_store %arg9[%c0_67, %c0_68, %c0_69], %98 {strides = array<i32>} : memref<1x1x128xf32, #tpu.memory_space<vmem>>, vector<1x1x128xf32>,
    %99 = vector.shape_cast %78 : vector<64x128xf32> to vector<4x16x128xf32>
    %100 = arith.truncf %99 : vector<4x16x128xf32> to vector<4x16x128xbf16>
    %c0_70 = arith.constant 0 : index
    %c0_71 = arith.constant 0 : index
    %c0_72 = arith.constant 0 : index
    %c0_73 = arith.constant 0 : index
    %101 = vector.load %arg7[%c0_70, %c0_71, %c0_72, %c0_73] : memref<1x4x16x128xbf16, #tpu.memory_space<vmem>>, vector<1x4x16x128xbf16>
    %102 = vector.shape_cast %101 : vector<1x4x16x128xbf16> to vector<4x16x128xbf16>
    %103 = vector.shape_cast %100 : vector<4x16x128xbf16> to vector<1x4x16x128xbf16>
    tpu.vector_store %arg7[%c0_70, %c0_71, %c0_72, %c0_73], %103 {strides = array<i32>} : memref<1x4x16x128xbf16, #tpu.memory_space<vmem>>, vector<1x4x16x128xbf16>,
    return
  }
  func.func @transform_0(%arg0: i32, %arg1: i32) -> (i32, i32, i32, i32) {
    %c0_i32 = arith.constant 0 : i32
    %c0_i32_0 = arith.constant 0 : i32
    %c0_i32_1 = arith.constant 0 : i32
    %c0_i32_2 = arith.constant 0 : i32
    return %arg0, %c0_i32, %c0_i32_0, %c0_i32_1 : i32, i32, i32, i32
  }
  func.func @transform_1(%arg0: i32, %arg1: i32) -> (i32, i32) {
    %c0_i32 = arith.constant 0 : i32
    %c0_i32_0 = arith.constant 0 : i32
    %c0_i32_1 = arith.constant 0 : i32
    return %c0_i32, %c0_i32_0 : i32, i32
  }
  func.func @transform_2(%arg0: i32, %arg1: i32) -> (i32, i32) {
    %c0_i32 = arith.constant 0 : i32
    %c0_i32_0 = arith.constant 0 : i32
    %c0_i32_1 = arith.constant 0 : i32
    return %c0_i32, %c0_i32_0 : i32, i32
  }
  func.func @transform_3(%arg0: i32, %arg1: i32) -> (i32, i32, i32) {
    %c0_i32 = arith.constant 0 : i32
    %c0_i32_0 = arith.constant 0 : i32
    %c0_i32_1 = arith.constant 0 : i32
    %c0_i32_2 = arith.constant 0 : i32
    return %c0_i32, %c0_i32_0, %c0_i32_1 : i32, i32, i32
  }
  func.func @transform_4(%arg0: i32, %arg1: i32) -> (i32, i32) {
    %c0_i32 = arith.constant 0 : i32
    %c0_i32_0 = arith.constant 0 : i32
    %c0_i32_1 = arith.constant 0 : i32
    return %c0_i32, %c0_i32_0 : i32, i32
  }
  func.func @transform_5(%arg0: i32, %arg1: i32) -> (i32, i32, i32, i32) {
    %c0_i32 = arith.constant 0 : i32
    %c0_i32_0 = arith.constant 0 : i32
    %c0_i32_1 = arith.constant 0 : i32
    return %arg0, %arg1, %c0_i32, %c0_i32_0 : i32, i32, i32, i32
  }
  func.func @transform_6(%arg0: i32, %arg1: i32) -> (i32, i32, i32) {
    %c0_i32 = arith.constant 0 : i32
    %c0_i32_0 = arith.constant 0 : i32
    %c0_i32_1 = arith.constant 0 : i32
    return %arg0, %c0_i32, %c0_i32_0 : i32, i32, i32
  }
  func.func @transform_7(%arg0: i32, %arg1: i32) -> (i32, i32, i32) {
    %c0_i32 = arith.constant 0 : i32
    %c0_i32_0 = arith.constant 0 : i32
    %c0_i32_1 = arith.constant 0 : i32
    return %arg0, %c0_i32, %c0_i32_0 : i32, i32, i32
  }
}

module attributes {stable_mosaic.version = 11 : i64} {
  func.func @_conv3x3_bn_block_kernel(%arg0: i32, %arg1: i32, %arg2: memref<1x16x16x128xbf16, #tpu.memory_space<vmem>>, %arg3: memref<1x128xf32, #tpu.memory_space<vmem>>, %arg4: memref<1x128xf32, #tpu.memory_space<vmem>>, %arg5: memref<9x128x256xbf16, #tpu.memory_space<vmem>>, %arg6: memref<1x256xf32, #tpu.memory_space<vmem>>, %arg7: memref<1x4x16x256xbf16, #tpu.memory_space<vmem>>, %arg8: memref<1x1x256xf32, #tpu.memory_space<vmem>>, %arg9: memref<1x1x256xf32, #tpu.memory_space<vmem>>, %arg10: memref<18x24x128xbf16, #tpu.memory_space<vmem>>) attributes {dimension_semantics = [#tpu.dimension_semantics<parallel>, #tpu.dimension_semantics<arbitrary>], iteration_bounds = array<i64: 2, 4>, scalar_prefetch = 0 : i64, scratch_operands = 1 : i64, tpu.core_type = #tpu.core_type<tc>, window_params = [{transform_indices = @transform_0, window_bounds = array<i64: 1, 16, 16, 128>}, {pipeline_mode = #tpu.pipeline_mode<synchronous>, transform_indices = @transform_1, window_bounds = array<i64: 1, 128>}, {pipeline_mode = #tpu.pipeline_mode<synchronous>, transform_indices = @transform_2, window_bounds = array<i64: 1, 128>}, {pipeline_mode = #tpu.pipeline_mode<synchronous>, transform_indices = @transform_3, window_bounds = array<i64: 9, 128, 256>}, {pipeline_mode = #tpu.pipeline_mode<synchronous>, transform_indices = @transform_4, window_bounds = array<i64: 1, 256>}, {transform_indices = @transform_5, window_bounds = array<i64: 1, 4, 16, 256>}, {transform_indices = @transform_6, window_bounds = array<i64: 1, 1, 256>}, {transform_indices = @transform_7, window_bounds = array<i64: 1, 1, 256>}]} {
    %c0_i32 = arith.constant 0 : i32
    %0 = arith.cmpi eq, %arg1, %c0_i32 : i32
    %1 = arith.extui %0 : i1 to i32
    %c0_i32_0 = arith.constant 0 : i32
    %2 = arith.cmpi ne, %1, %c0_i32_0 : i32
    scf.if %2 {
      %c0_74 = arith.constant 0 : index
      %c0_75 = arith.constant 0 : index
      %c0_76 = arith.constant 0 : index
      %c0_77 = arith.constant 0 : index
      %104 = vector.load %arg2[%c0_74, %c0_75, %c0_76, %c0_77] : memref<1x16x16x128xbf16, #tpu.memory_space<vmem>>, vector<1x16x16x128xbf16>
      %105 = vector.shape_cast %104 : vector<1x16x16x128xbf16> to vector<16x16x128xbf16>
      %106 = arith.extf %105 : vector<16x16x128xbf16> to vector<16x16x128xf32>
      %c0_78 = arith.constant 0 : index
      %c0_79 = arith.constant 0 : index
      %107 = vector.load %arg3[%c0_78, %c0_79] : memref<1x128xf32, #tpu.memory_space<vmem>>, vector<1x128xf32>
      %108 = vector.shape_cast %107 : vector<1x128xf32> to vector<1x1x128xf32>
      %109 = vector.broadcast %108 : vector<1x1x128xf32> to vector<16x16x128xf32>
      %110 = arith.mulf %106, %109 : vector<16x16x128xf32>
      %c0_80 = arith.constant 0 : index
      %c0_81 = arith.constant 0 : index
      %111 = vector.load %arg4[%c0_80, %c0_81] : memref<1x128xf32, #tpu.memory_space<vmem>>, vector<1x128xf32>
      %112 = vector.shape_cast %111 : vector<1x128xf32> to vector<1x1x128xf32>
      %113 = vector.broadcast %112 : vector<1x1x128xf32> to vector<16x16x128xf32>
      %114 = arith.addf %110, %113 : vector<16x16x128xf32>
      %cst_82 = arith.constant 0.000000e+00 : f32
      %115 = vector.broadcast %cst_82 : f32 to vector<16x16x128xf32>
      %116 = arith.maximumf %114, %115 : vector<16x16x128xf32>
      %117 = arith.truncf %116 : vector<16x16x128xf32> to vector<16x16x128xbf16>
      %c1_83 = arith.constant 1 : index
      %c1_84 = arith.constant 1 : index
      %c0_85 = arith.constant 0 : index
      %118 = vector.load %arg10[%c1_83, %c1_84, %c0_85] : memref<18x24x128xbf16, #tpu.memory_space<vmem>>, vector<16x16x128xbf16>
      tpu.vector_store %arg10[%c1_83, %c1_84, %c0_85], %117 {strides = array<i32>} : memref<18x24x128xbf16, #tpu.memory_space<vmem>>, vector<16x16x128xbf16>,
      %cst_86 = arith.constant 0.000000e+00 : bf16
      %119 = vector.broadcast %cst_86 : bf16 to vector<1x24x128xbf16>
      %cst_87 = arith.constant 0.000000e+00 : bf16
      %120 = vector.broadcast %cst_87 : bf16 to vector<16x1x128xbf16>
      %c0_88 = arith.constant 0 : index
      %c0_89 = arith.constant 0 : index
      %c0_90 = arith.constant 0 : index
      %121 = vector.load %arg10[%c0_88, %c0_89, %c0_90] : memref<18x24x128xbf16, #tpu.memory_space<vmem>>, vector<1x24x128xbf16>
      tpu.vector_store %arg10[%c0_88, %c0_89, %c0_90], %119 {strides = array<i32>} : memref<18x24x128xbf16, #tpu.memory_space<vmem>>, vector<1x24x128xbf16>,
      %c17 = arith.constant 17 : index
      %c0_91 = arith.constant 0 : index
      %c0_92 = arith.constant 0 : index
      %122 = vector.load %arg10[%c17, %c0_91, %c0_92] : memref<18x24x128xbf16, #tpu.memory_space<vmem>>, vector<1x24x128xbf16>
      tpu.vector_store %arg10[%c17, %c0_91, %c0_92], %119 {strides = array<i32>} : memref<18x24x128xbf16, #tpu.memory_space<vmem>>, vector<1x24x128xbf16>,
      %c1_93 = arith.constant 1 : index
      %c0_94 = arith.constant 0 : index
      %c0_95 = arith.constant 0 : index
      %123 = vector.load %arg10[%c1_93, %c0_94, %c0_95] : memref<18x24x128xbf16, #tpu.memory_space<vmem>>, vector<16x1x128xbf16>
      tpu.vector_store %arg10[%c1_93, %c0_94, %c0_95], %120 {strides = array<i32>} : memref<18x24x128xbf16, #tpu.memory_space<vmem>>, vector<16x1x128xbf16>,
      %c1_96 = arith.constant 1 : index
      %c17_97 = arith.constant 17 : index
      %c0_98 = arith.constant 0 : index
      %124 = vector.load %arg10[%c1_96, %c17_97, %c0_98] : memref<18x24x128xbf16, #tpu.memory_space<vmem>>, vector<16x1x128xbf16>
      tpu.vector_store %arg10[%c1_96, %c17_97, %c0_98], %120 {strides = array<i32>} : memref<18x24x128xbf16, #tpu.memory_space<vmem>>, vector<16x1x128xbf16>,
    } else {
    }
    %c4_i32 = arith.constant 4 : i32
    %3 = arith.muli %arg1, %c4_i32 : i32
    %4 = tpu.assume_multiple %3, 4 : i32
    %c0_i32_1 = arith.constant 0 : i32
    %5 = arith.addi %4, %c0_i32_1 : i32
    %6 = arith.index_cast %5 : i32 to index
    %c0 = arith.constant 0 : index
    %c0_2 = arith.constant 0 : index
    %7 = vector.load %arg10[%6, %c0, %c0_2] : memref<18x24x128xbf16, #tpu.memory_space<vmem>>, vector<4x16x128xbf16>
    %8 = vector.shape_cast %7 : vector<4x16x128xbf16> to vector<64x128xbf16>
    %c0_3 = arith.constant 0 : index
    %c0_4 = arith.constant 0 : index
    %c0_5 = arith.constant 0 : index
    %9 = vector.load %arg5[%c0_3, %c0_4, %c0_5] : memref<9x128x256xbf16, #tpu.memory_space<vmem>>, vector<1x128x256xbf16>
    %10 = vector.shape_cast %9 : vector<1x128x256xbf16> to vector<128x256xbf16>
    %cst = arith.constant dense<0.000000e+00> : vector<64x256xf32>
    %11 = tpu.matmul %8, %10, %cst {dimension_numbers = #tpu.dot_dimension_numbers<[1], [0], [0], [1], [0, 0, 1, 1], [], []>} : vector<64x128xbf16>, vector<128x256xbf16>, vector<64x256xf32> -> vector<64x256xf32>
    %c0_i32_6 = arith.constant 0 : i32
    %12 = arith.addi %4, %c0_i32_6 : i32
    %13 = arith.index_cast %12 : i32 to index
    %c1 = arith.constant 1 : index
    %c0_7 = arith.constant 0 : index
    %14 = vector.load %arg10[%13, %c1, %c0_7] : memref<18x24x128xbf16, #tpu.memory_space<vmem>>, vector<4x16x128xbf16>
    %15 = vector.shape_cast %14 : vector<4x16x128xbf16> to vector<64x128xbf16>
    %c1_8 = arith.constant 1 : index
    %c0_9 = arith.constant 0 : index
    %c0_10 = arith.constant 0 : index
    %16 = vector.load %arg5[%c1_8, %c0_9, %c0_10] : memref<9x128x256xbf16, #tpu.memory_space<vmem>>, vector<1x128x256xbf16>
    %17 = vector.shape_cast %16 : vector<1x128x256xbf16> to vector<128x256xbf16>
    %cst_11 = arith.constant dense<0.000000e+00> : vector<64x256xf32>
    %18 = tpu.matmul %15, %17, %cst_11 {dimension_numbers = #tpu.dot_dimension_numbers<[1], [0], [0], [1], [0, 0, 1, 1], [], []>} : vector<64x128xbf16>, vector<128x256xbf16>, vector<64x256xf32> -> vector<64x256xf32>
    %19 = arith.addf %11, %18 : vector<64x256xf32>
    %c0_i32_12 = arith.constant 0 : i32
    %20 = arith.addi %4, %c0_i32_12 : i32
    %21 = arith.index_cast %20 : i32 to index
    %c2 = arith.constant 2 : index
    %c0_13 = arith.constant 0 : index
    %22 = vector.load %arg10[%21, %c2, %c0_13] : memref<18x24x128xbf16, #tpu.memory_space<vmem>>, vector<4x16x128xbf16>
    %23 = vector.shape_cast %22 : vector<4x16x128xbf16> to vector<64x128xbf16>
    %c2_14 = arith.constant 2 : index
    %c0_15 = arith.constant 0 : index
    %c0_16 = arith.constant 0 : index
    %24 = vector.load %arg5[%c2_14, %c0_15, %c0_16] : memref<9x128x256xbf16, #tpu.memory_space<vmem>>, vector<1x128x256xbf16>
    %25 = vector.shape_cast %24 : vector<1x128x256xbf16> to vector<128x256xbf16>
    %cst_17 = arith.constant dense<0.000000e+00> : vector<64x256xf32>
    %26 = tpu.matmul %23, %25, %cst_17 {dimension_numbers = #tpu.dot_dimension_numbers<[1], [0], [0], [1], [0, 0, 1, 1], [], []>} : vector<64x128xbf16>, vector<128x256xbf16>, vector<64x256xf32> -> vector<64x256xf32>
    %27 = arith.addf %19, %26 : vector<64x256xf32>
    %c1_i32 = arith.constant 1 : i32
    %28 = arith.addi %4, %c1_i32 : i32
    %29 = arith.index_cast %28 : i32 to index
    %c0_18 = arith.constant 0 : index
    %c0_19 = arith.constant 0 : index
    %30 = vector.load %arg10[%29, %c0_18, %c0_19] : memref<18x24x128xbf16, #tpu.memory_space<vmem>>, vector<4x16x128xbf16>
    %31 = vector.shape_cast %30 : vector<4x16x128xbf16> to vector<64x128xbf16>
    %c3 = arith.constant 3 : index
    %c0_20 = arith.constant 0 : index
    %c0_21 = arith.constant 0 : index
    %32 = vector.load %arg5[%c3, %c0_20, %c0_21] : memref<9x128x256xbf16, #tpu.memory_space<vmem>>, vector<1x128x256xbf16>
    %33 = vector.shape_cast %32 : vector<1x128x256xbf16> to vector<128x256xbf16>
    %cst_22 = arith.constant dense<0.000000e+00> : vector<64x256xf32>
    %34 = tpu.matmul %31, %33, %cst_22 {dimension_numbers = #tpu.dot_dimension_numbers<[1], [0], [0], [1], [0, 0, 1, 1], [], []>} : vector<64x128xbf16>, vector<128x256xbf16>, vector<64x256xf32> -> vector<64x256xf32>
    %35 = arith.addf %27, %34 : vector<64x256xf32>
    %c1_i32_23 = arith.constant 1 : i32
    %36 = arith.addi %4, %c1_i32_23 : i32
    %37 = arith.index_cast %36 : i32 to index
    %c1_24 = arith.constant 1 : index
    %c0_25 = arith.constant 0 : index
    %38 = vector.load %arg10[%37, %c1_24, %c0_25] : memref<18x24x128xbf16, #tpu.memory_space<vmem>>, vector<4x16x128xbf16>
    %39 = vector.shape_cast %38 : vector<4x16x128xbf16> to vector<64x128xbf16>
    %c4 = arith.constant 4 : index
    %c0_26 = arith.constant 0 : index
    %c0_27 = arith.constant 0 : index
    %40 = vector.load %arg5[%c4, %c0_26, %c0_27] : memref<9x128x256xbf16, #tpu.memory_space<vmem>>, vector<1x128x256xbf16>
    %41 = vector.shape_cast %40 : vector<1x128x256xbf16> to vector<128x256xbf16>
    %cst_28 = arith.constant dense<0.000000e+00> : vector<64x256xf32>
    %42 = tpu.matmul %39, %41, %cst_28 {dimension_numbers = #tpu.dot_dimension_numbers<[1], [0], [0], [1], [0, 0, 1, 1], [], []>} : vector<64x128xbf16>, vector<128x256xbf16>, vector<64x256xf32> -> vector<64x256xf32>
    %43 = arith.addf %35, %42 : vector<64x256xf32>
    %c1_i32_29 = arith.constant 1 : i32
    %44 = arith.addi %4, %c1_i32_29 : i32
    %45 = arith.index_cast %44 : i32 to index
    %c2_30 = arith.constant 2 : index
    %c0_31 = arith.constant 0 : index
    %46 = vector.load %arg10[%45, %c2_30, %c0_31] : memref<18x24x128xbf16, #tpu.memory_space<vmem>>, vector<4x16x128xbf16>
    %47 = vector.shape_cast %46 : vector<4x16x128xbf16> to vector<64x128xbf16>
    %c5 = arith.constant 5 : index
    %c0_32 = arith.constant 0 : index
    %c0_33 = arith.constant 0 : index
    %48 = vector.load %arg5[%c5, %c0_32, %c0_33] : memref<9x128x256xbf16, #tpu.memory_space<vmem>>, vector<1x128x256xbf16>
    %49 = vector.shape_cast %48 : vector<1x128x256xbf16> to vector<128x256xbf16>
    %cst_34 = arith.constant dense<0.000000e+00> : vector<64x256xf32>
    %50 = tpu.matmul %47, %49, %cst_34 {dimension_numbers = #tpu.dot_dimension_numbers<[1], [0], [0], [1], [0, 0, 1, 1], [], []>} : vector<64x128xbf16>, vector<128x256xbf16>, vector<64x256xf32> -> vector<64x256xf32>
    %51 = arith.addf %43, %50 : vector<64x256xf32>
    %c2_i32 = arith.constant 2 : i32
    %52 = arith.addi %4, %c2_i32 : i32
    %53 = arith.index_cast %52 : i32 to index
    %c0_35 = arith.constant 0 : index
    %c0_36 = arith.constant 0 : index
    %54 = vector.load %arg10[%53, %c0_35, %c0_36] : memref<18x24x128xbf16, #tpu.memory_space<vmem>>, vector<4x16x128xbf16>
    %55 = vector.shape_cast %54 : vector<4x16x128xbf16> to vector<64x128xbf16>
    %c6 = arith.constant 6 : index
    %c0_37 = arith.constant 0 : index
    %c0_38 = arith.constant 0 : index
    %56 = vector.load %arg5[%c6, %c0_37, %c0_38] : memref<9x128x256xbf16, #tpu.memory_space<vmem>>, vector<1x128x256xbf16>
    %57 = vector.shape_cast %56 : vector<1x128x256xbf16> to vector<128x256xbf16>
    %cst_39 = arith.constant dense<0.000000e+00> : vector<64x256xf32>
    %58 = tpu.matmul %55, %57, %cst_39 {dimension_numbers = #tpu.dot_dimension_numbers<[1], [0], [0], [1], [0, 0, 1, 1], [], []>} : vector<64x128xbf16>, vector<128x256xbf16>, vector<64x256xf32> -> vector<64x256xf32>
    %59 = arith.addf %51, %58 : vector<64x256xf32>
    %c2_i32_40 = arith.constant 2 : i32
    %60 = arith.addi %4, %c2_i32_40 : i32
    %61 = arith.index_cast %60 : i32 to index
    %c1_41 = arith.constant 1 : index
    %c0_42 = arith.constant 0 : index
    %62 = vector.load %arg10[%61, %c1_41, %c0_42] : memref<18x24x128xbf16, #tpu.memory_space<vmem>>, vector<4x16x128xbf16>
    %63 = vector.shape_cast %62 : vector<4x16x128xbf16> to vector<64x128xbf16>
    %c7 = arith.constant 7 : index
    %c0_43 = arith.constant 0 : index
    %c0_44 = arith.constant 0 : index
    %64 = vector.load %arg5[%c7, %c0_43, %c0_44] : memref<9x128x256xbf16, #tpu.memory_space<vmem>>, vector<1x128x256xbf16>
    %65 = vector.shape_cast %64 : vector<1x128x256xbf16> to vector<128x256xbf16>
    %cst_45 = arith.constant dense<0.000000e+00> : vector<64x256xf32>
    %66 = tpu.matmul %63, %65, %cst_45 {dimension_numbers = #tpu.dot_dimension_numbers<[1], [0], [0], [1], [0, 0, 1, 1], [], []>} : vector<64x128xbf16>, vector<128x256xbf16>, vector<64x256xf32> -> vector<64x256xf32>
    %67 = arith.addf %59, %66 : vector<64x256xf32>
    %c2_i32_46 = arith.constant 2 : i32
    %68 = arith.addi %4, %c2_i32_46 : i32
    %69 = arith.index_cast %68 : i32 to index
    %c2_47 = arith.constant 2 : index
    %c0_48 = arith.constant 0 : index
    %70 = vector.load %arg10[%69, %c2_47, %c0_48] : memref<18x24x128xbf16, #tpu.memory_space<vmem>>, vector<4x16x128xbf16>
    %71 = vector.shape_cast %70 : vector<4x16x128xbf16> to vector<64x128xbf16>
    %c8 = arith.constant 8 : index
    %c0_49 = arith.constant 0 : index
    %c0_50 = arith.constant 0 : index
    %72 = vector.load %arg5[%c8, %c0_49, %c0_50] : memref<9x128x256xbf16, #tpu.memory_space<vmem>>, vector<1x128x256xbf16>
    %73 = vector.shape_cast %72 : vector<1x128x256xbf16> to vector<128x256xbf16>
    %cst_51 = arith.constant dense<0.000000e+00> : vector<64x256xf32>
    %74 = tpu.matmul %71, %73, %cst_51 {dimension_numbers = #tpu.dot_dimension_numbers<[1], [0], [0], [1], [0, 0, 1, 1], [], []>} : vector<64x128xbf16>, vector<128x256xbf16>, vector<64x256xf32> -> vector<64x256xf32>
    %75 = arith.addf %67, %74 : vector<64x256xf32>
    %c0_52 = arith.constant 0 : index
    %c0_53 = arith.constant 0 : index
    %76 = vector.load %arg6[%c0_52, %c0_53] : memref<1x256xf32, #tpu.memory_space<vmem>>, vector<1x256xf32>
    %77 = vector.broadcast %76 : vector<1x256xf32> to vector<64x256xf32>
    %78 = arith.addf %75, %77 : vector<64x256xf32>
    %c0_i32_54 = arith.constant 0 : i32
    %79 = arith.cmpi eq, %arg1, %c0_i32_54 : i32
    %80 = arith.extui %79 : i1 to i32
    %c0_i32_55 = arith.constant 0 : i32
    %81 = arith.cmpi ne, %80, %c0_i32_55 : i32
    scf.if %81 {
      %cst_74 = arith.constant 0.000000e+00 : f32
      %104 = vector.broadcast %cst_74 : f32 to vector<1x1x256xf32>
      %c0_75 = arith.constant 0 : index
      %c0_76 = arith.constant 0 : index
      %c0_77 = arith.constant 0 : index
      %105 = vector.load %arg8[%c0_75, %c0_76, %c0_77] : memref<1x1x256xf32, #tpu.memory_space<vmem>>, vector<1x1x256xf32>
      tpu.vector_store %arg8[%c0_75, %c0_76, %c0_77], %104 {strides = array<i32>} : memref<1x1x256xf32, #tpu.memory_space<vmem>>, vector<1x1x256xf32>,
      %cst_78 = arith.constant 0.000000e+00 : f32
      %106 = vector.broadcast %cst_78 : f32 to vector<1x1x256xf32>
      %c0_79 = arith.constant 0 : index
      %c0_80 = arith.constant 0 : index
      %c0_81 = arith.constant 0 : index
      %107 = vector.load %arg9[%c0_79, %c0_80, %c0_81] : memref<1x1x256xf32, #tpu.memory_space<vmem>>, vector<1x1x256xf32>
      tpu.vector_store %arg9[%c0_79, %c0_80, %c0_81], %106 {strides = array<i32>} : memref<1x1x256xf32, #tpu.memory_space<vmem>>, vector<1x1x256xf32>,
    } else {
    }
    %c0_56 = arith.constant 0 : index
    %c0_57 = arith.constant 0 : index
    %c0_58 = arith.constant 0 : index
    %82 = vector.load %arg8[%c0_56, %c0_57, %c0_58] : memref<1x1x256xf32, #tpu.memory_space<vmem>>, vector<1x1x256xf32>
    %83 = vector.shape_cast %82 : vector<1x1x256xf32> to vector<1x256xf32>
    %cst_59 = arith.constant dense<0.000000e+00> : vector<256xf32>
    %84 = vector.multi_reduction <add>, %78, %cst_59 [0] : vector<64x256xf32> to vector<256xf32>
    %85 = vector.shape_cast %84 : vector<256xf32> to vector<1x256xf32>
    %86 = arith.addf %83, %85 : vector<1x256xf32>
    %c0_60 = arith.constant 0 : index
    %c0_61 = arith.constant 0 : index
    %c0_62 = arith.constant 0 : index
    %87 = vector.load %arg8[%c0_60, %c0_61, %c0_62] : memref<1x1x256xf32, #tpu.memory_space<vmem>>, vector<1x1x256xf32>
    %88 = vector.shape_cast %87 : vector<1x1x256xf32> to vector<1x256xf32>
    %89 = vector.shape_cast %86 : vector<1x256xf32> to vector<1x1x256xf32>
    tpu.vector_store %arg8[%c0_60, %c0_61, %c0_62], %89 {strides = array<i32>} : memref<1x1x256xf32, #tpu.memory_space<vmem>>, vector<1x1x256xf32>,
    %c0_63 = arith.constant 0 : index
    %c0_64 = arith.constant 0 : index
    %c0_65 = arith.constant 0 : index
    %90 = vector.load %arg9[%c0_63, %c0_64, %c0_65] : memref<1x1x256xf32, #tpu.memory_space<vmem>>, vector<1x1x256xf32>
    %91 = vector.shape_cast %90 : vector<1x1x256xf32> to vector<1x256xf32>
    %92 = arith.mulf %78, %78 : vector<64x256xf32>
    %cst_66 = arith.constant dense<0.000000e+00> : vector<256xf32>
    %93 = vector.multi_reduction <add>, %92, %cst_66 [0] : vector<64x256xf32> to vector<256xf32>
    %94 = vector.shape_cast %93 : vector<256xf32> to vector<1x256xf32>
    %95 = arith.addf %91, %94 : vector<1x256xf32>
    %c0_67 = arith.constant 0 : index
    %c0_68 = arith.constant 0 : index
    %c0_69 = arith.constant 0 : index
    %96 = vector.load %arg9[%c0_67, %c0_68, %c0_69] : memref<1x1x256xf32, #tpu.memory_space<vmem>>, vector<1x1x256xf32>
    %97 = vector.shape_cast %96 : vector<1x1x256xf32> to vector<1x256xf32>
    %98 = vector.shape_cast %95 : vector<1x256xf32> to vector<1x1x256xf32>
    tpu.vector_store %arg9[%c0_67, %c0_68, %c0_69], %98 {strides = array<i32>} : memref<1x1x256xf32, #tpu.memory_space<vmem>>, vector<1x1x256xf32>,
    %99 = vector.shape_cast %78 : vector<64x256xf32> to vector<4x16x256xf32>
    %100 = arith.truncf %99 : vector<4x16x256xf32> to vector<4x16x256xbf16>
    %c0_70 = arith.constant 0 : index
    %c0_71 = arith.constant 0 : index
    %c0_72 = arith.constant 0 : index
    %c0_73 = arith.constant 0 : index
    %101 = vector.load %arg7[%c0_70, %c0_71, %c0_72, %c0_73] : memref<1x4x16x256xbf16, #tpu.memory_space<vmem>>, vector<1x4x16x256xbf16>
    %102 = vector.shape_cast %101 : vector<1x4x16x256xbf16> to vector<4x16x256xbf16>
    %103 = vector.shape_cast %100 : vector<4x16x256xbf16> to vector<1x4x16x256xbf16>
    tpu.vector_store %arg7[%c0_70, %c0_71, %c0_72, %c0_73], %103 {strides = array<i32>} : memref<1x4x16x256xbf16, #tpu.memory_space<vmem>>, vector<1x4x16x256xbf16>,
    return
  }
  func.func @transform_0(%arg0: i32, %arg1: i32) -> (i32, i32, i32, i32) {
    %c0_i32 = arith.constant 0 : i32
    %c0_i32_0 = arith.constant 0 : i32
    %c0_i32_1 = arith.constant 0 : i32
    %c0_i32_2 = arith.constant 0 : i32
    return %arg0, %c0_i32, %c0_i32_0, %c0_i32_1 : i32, i32, i32, i32
  }
  func.func @transform_1(%arg0: i32, %arg1: i32) -> (i32, i32) {
    %c0_i32 = arith.constant 0 : i32
    %c0_i32_0 = arith.constant 0 : i32
    %c0_i32_1 = arith.constant 0 : i32
    return %c0_i32, %c0_i32_0 : i32, i32
  }
  func.func @transform_2(%arg0: i32, %arg1: i32) -> (i32, i32) {
    %c0_i32 = arith.constant 0 : i32
    %c0_i32_0 = arith.constant 0 : i32
    %c0_i32_1 = arith.constant 0 : i32
    return %c0_i32, %c0_i32_0 : i32, i32
  }
  func.func @transform_3(%arg0: i32, %arg1: i32) -> (i32, i32, i32) {
    %c0_i32 = arith.constant 0 : i32
    %c0_i32_0 = arith.constant 0 : i32
    %c0_i32_1 = arith.constant 0 : i32
    %c0_i32_2 = arith.constant 0 : i32
    return %c0_i32, %c0_i32_0, %c0_i32_1 : i32, i32, i32
  }
  func.func @transform_4(%arg0: i32, %arg1: i32) -> (i32, i32) {
    %c0_i32 = arith.constant 0 : i32
    %c0_i32_0 = arith.constant 0 : i32
    %c0_i32_1 = arith.constant 0 : i32
    return %c0_i32, %c0_i32_0 : i32, i32
  }
  func.func @transform_5(%arg0: i32, %arg1: i32) -> (i32, i32, i32, i32) {
    %c0_i32 = arith.constant 0 : i32
    %c0_i32_0 = arith.constant 0 : i32
    %c0_i32_1 = arith.constant 0 : i32
    return %arg0, %arg1, %c0_i32, %c0_i32_0 : i32, i32, i32, i32
  }
  func.func @transform_6(%arg0: i32, %arg1: i32) -> (i32, i32, i32) {
    %c0_i32 = arith.constant 0 : i32
    %c0_i32_0 = arith.constant 0 : i32
    %c0_i32_1 = arith.constant 0 : i32
    return %arg0, %c0_i32, %c0_i32_0 : i32, i32, i32
  }
  func.func @transform_7(%arg0: i32, %arg1: i32) -> (i32, i32, i32) {
    %c0_i32 = arith.constant 0 : i32
    %c0_i32_0 = arith.constant 0 : i32
    %c0_i32_1 = arith.constant 0 : i32
    return %arg0, %c0_i32, %c0_i32_0 : i32, i32, i32
  }
}

module attributes {stable_mosaic.version = 11 : i64} {
  func.func @_conv3x3_bn_block_kernel(%arg0: i32, %arg1: i32, %arg2: memref<1x16x16x256xbf16, #tpu.memory_space<vmem>>, %arg3: memref<1x256xf32, #tpu.memory_space<vmem>>, %arg4: memref<1x256xf32, #tpu.memory_space<vmem>>, %arg5: memref<9x32x256xbf16, #tpu.memory_space<vmem>>, %arg6: memref<32x1xf32, #tpu.memory_space<vmem>>, %arg7: memref<1x32x128xbf16, #tpu.memory_space<vmem>>, %arg8: memref<1x32x1xf32, #tpu.memory_space<vmem>>, %arg9: memref<1x32x1xf32, #tpu.memory_space<vmem>>, %arg10: memref<18x24x256xbf16, #tpu.memory_space<vmem>>) attributes {dimension_semantics = [#tpu.dimension_semantics<parallel>, #tpu.dimension_semantics<arbitrary>], iteration_bounds = array<i64: 2, 2>, scalar_prefetch = 0 : i64, scratch_operands = 1 : i64, tpu.core_type = #tpu.core_type<tc>, window_params = [{transform_indices = @transform_0, window_bounds = array<i64: 1, 16, 16, 256>}, {pipeline_mode = #tpu.pipeline_mode<synchronous>, transform_indices = @transform_1, window_bounds = array<i64: 1, 256>}, {pipeline_mode = #tpu.pipeline_mode<synchronous>, transform_indices = @transform_2, window_bounds = array<i64: 1, 256>}, {pipeline_mode = #tpu.pipeline_mode<synchronous>, transform_indices = @transform_3, window_bounds = array<i64: 9, 32, 256>}, {pipeline_mode = #tpu.pipeline_mode<synchronous>, transform_indices = @transform_4, window_bounds = array<i64: 32, 1>}, {transform_indices = @transform_5, window_bounds = array<i64: 1, 32, 128>}, {transform_indices = @transform_6, window_bounds = array<i64: 1, 32, 1>}, {transform_indices = @transform_7, window_bounds = array<i64: 1, 32, 1>}]} {
    %c0_i32 = arith.constant 0 : i32
    %0 = arith.cmpi eq, %arg1, %c0_i32 : i32
    %1 = arith.extui %0 : i1 to i32
    %c0_i32_0 = arith.constant 0 : i32
    %2 = arith.cmpi ne, %1, %c0_i32_0 : i32
    scf.if %2 {
      %c0_73 = arith.constant 0 : index
      %c0_74 = arith.constant 0 : index
      %c0_75 = arith.constant 0 : index
      %c0_76 = arith.constant 0 : index
      %103 = vector.load %arg2[%c0_73, %c0_74, %c0_75, %c0_76] : memref<1x16x16x256xbf16, #tpu.memory_space<vmem>>, vector<1x16x16x256xbf16>
      %104 = vector.shape_cast %103 : vector<1x16x16x256xbf16> to vector<16x16x256xbf16>
      %105 = arith.extf %104 : vector<16x16x256xbf16> to vector<16x16x256xf32>
      %c0_77 = arith.constant 0 : index
      %c0_78 = arith.constant 0 : index
      %106 = vector.load %arg3[%c0_77, %c0_78] : memref<1x256xf32, #tpu.memory_space<vmem>>, vector<1x256xf32>
      %107 = vector.shape_cast %106 : vector<1x256xf32> to vector<1x1x256xf32>
      %108 = vector.broadcast %107 : vector<1x1x256xf32> to vector<16x16x256xf32>
      %109 = arith.mulf %105, %108 : vector<16x16x256xf32>
      %c0_79 = arith.constant 0 : index
      %c0_80 = arith.constant 0 : index
      %110 = vector.load %arg4[%c0_79, %c0_80] : memref<1x256xf32, #tpu.memory_space<vmem>>, vector<1x256xf32>
      %111 = vector.shape_cast %110 : vector<1x256xf32> to vector<1x1x256xf32>
      %112 = vector.broadcast %111 : vector<1x1x256xf32> to vector<16x16x256xf32>
      %113 = arith.addf %109, %112 : vector<16x16x256xf32>
      %cst_81 = arith.constant 0.000000e+00 : f32
      %114 = vector.broadcast %cst_81 : f32 to vector<16x16x256xf32>
      %115 = arith.maximumf %113, %114 : vector<16x16x256xf32>
      %116 = arith.truncf %115 : vector<16x16x256xf32> to vector<16x16x256xbf16>
      %c1_82 = arith.constant 1 : index
      %c1_83 = arith.constant 1 : index
      %c0_84 = arith.constant 0 : index
      %117 = vector.load %arg10[%c1_82, %c1_83, %c0_84] : memref<18x24x256xbf16, #tpu.memory_space<vmem>>, vector<16x16x256xbf16>
      tpu.vector_store %arg10[%c1_82, %c1_83, %c0_84], %116 {strides = array<i32>} : memref<18x24x256xbf16, #tpu.memory_space<vmem>>, vector<16x16x256xbf16>,
      %cst_85 = arith.constant 0.000000e+00 : bf16
      %118 = vector.broadcast %cst_85 : bf16 to vector<1x24x256xbf16>
      %cst_86 = arith.constant 0.000000e+00 : bf16
      %119 = vector.broadcast %cst_86 : bf16 to vector<16x1x256xbf16>
      %c0_87 = arith.constant 0 : index
      %c0_88 = arith.constant 0 : index
      %c0_89 = arith.constant 0 : index
      %120 = vector.load %arg10[%c0_87, %c0_88, %c0_89] : memref<18x24x256xbf16, #tpu.memory_space<vmem>>, vector<1x24x256xbf16>
      tpu.vector_store %arg10[%c0_87, %c0_88, %c0_89], %118 {strides = array<i32>} : memref<18x24x256xbf16, #tpu.memory_space<vmem>>, vector<1x24x256xbf16>,
      %c17 = arith.constant 17 : index
      %c0_90 = arith.constant 0 : index
      %c0_91 = arith.constant 0 : index
      %121 = vector.load %arg10[%c17, %c0_90, %c0_91] : memref<18x24x256xbf16, #tpu.memory_space<vmem>>, vector<1x24x256xbf16>
      tpu.vector_store %arg10[%c17, %c0_90, %c0_91], %118 {strides = array<i32>} : memref<18x24x256xbf16, #tpu.memory_space<vmem>>, vector<1x24x256xbf16>,
      %c1_92 = arith.constant 1 : index
      %c0_93 = arith.constant 0 : index
      %c0_94 = arith.constant 0 : index
      %122 = vector.load %arg10[%c1_92, %c0_93, %c0_94] : memref<18x24x256xbf16, #tpu.memory_space<vmem>>, vector<16x1x256xbf16>
      tpu.vector_store %arg10[%c1_92, %c0_93, %c0_94], %119 {strides = array<i32>} : memref<18x24x256xbf16, #tpu.memory_space<vmem>>, vector<16x1x256xbf16>,
      %c1_95 = arith.constant 1 : index
      %c17_96 = arith.constant 17 : index
      %c0_97 = arith.constant 0 : index
      %123 = vector.load %arg10[%c1_95, %c17_96, %c0_97] : memref<18x24x256xbf16, #tpu.memory_space<vmem>>, vector<16x1x256xbf16>
      tpu.vector_store %arg10[%c1_95, %c17_96, %c0_97], %119 {strides = array<i32>} : memref<18x24x256xbf16, #tpu.memory_space<vmem>>, vector<16x1x256xbf16>,
    } else {
    }
    %c8_i32 = arith.constant 8 : i32
    %3 = arith.muli %arg1, %c8_i32 : i32
    %4 = tpu.assume_multiple %3, 8 : i32
    %c0 = arith.constant 0 : index
    %c0_1 = arith.constant 0 : index
    %c0_2 = arith.constant 0 : index
    %5 = vector.load %arg5[%c0, %c0_1, %c0_2] : memref<9x32x256xbf16, #tpu.memory_space<vmem>>, vector<1x32x256xbf16>
    %6 = vector.shape_cast %5 : vector<1x32x256xbf16> to vector<32x256xbf16>
    %c0_i32_3 = arith.constant 0 : i32
    %7 = arith.addi %4, %c0_i32_3 : i32
    %8 = arith.index_cast %7 : i32 to index
    %c0_4 = arith.constant 0 : index
    %c0_5 = arith.constant 0 : index
    %9 = vector.load %arg10[%8, %c0_4, %c0_5] : memref<18x24x256xbf16, #tpu.memory_space<vmem>>, vector<8x16x256xbf16>
    %10 = vector.shape_cast %9 : vector<8x16x256xbf16> to vector<128x256xbf16>
    %cst = arith.constant dense<0.000000e+00> : vector<32x128xf32>
    %11 = tpu.matmul %6, %10, %cst {dimension_numbers = #tpu.dot_dimension_numbers<[1], [1], [0], [0], [0, 0, 1, 0], [], []>} : vector<32x256xbf16>, vector<128x256xbf16>, vector<32x128xf32> -> vector<32x128xf32>
    %c1 = arith.constant 1 : index
    %c0_6 = arith.constant 0 : index
    %c0_7 = arith.constant 0 : index
    %12 = vector.load %arg5[%c1, %c0_6, %c0_7] : memref<9x32x256xbf16, #tpu.memory_space<vmem>>, vector<1x32x256xbf16>
    %13 = vector.shape_cast %12 : vector<1x32x256xbf16> to vector<32x256xbf16>
    %c0_i32_8 = arith.constant 0 : i32
    %14 = arith.addi %4, %c0_i32_8 : i32
    %15 = arith.index_cast %14 : i32 to index
    %c1_9 = arith.constant 1 : index
    %c0_10 = arith.constant 0 : index
    %16 = vector.load %arg10[%15, %c1_9, %c0_10] : memref<18x24x256xbf16, #tpu.memory_space<vmem>>, vector<8x16x256xbf16>
    %17 = vector.shape_cast %16 : vector<8x16x256xbf16> to vector<128x256xbf16>
    %cst_11 = arith.constant dense<0.000000e+00> : vector<32x128xf32>
    %18 = tpu.matmul %13, %17, %cst_11 {dimension_numbers = #tpu.dot_dimension_numbers<[1], [1], [0], [0], [0, 0, 1, 0], [], []>} : vector<32x256xbf16>, vector<128x256xbf16>, vector<32x128xf32> -> vector<32x128xf32>
    %19 = arith.addf %11, %18 : vector<32x128xf32>
    %c2 = arith.constant 2 : index
    %c0_12 = arith.constant 0 : index
    %c0_13 = arith.constant 0 : index
    %20 = vector.load %arg5[%c2, %c0_12, %c0_13] : memref<9x32x256xbf16, #tpu.memory_space<vmem>>, vector<1x32x256xbf16>
    %21 = vector.shape_cast %20 : vector<1x32x256xbf16> to vector<32x256xbf16>
    %c0_i32_14 = arith.constant 0 : i32
    %22 = arith.addi %4, %c0_i32_14 : i32
    %23 = arith.index_cast %22 : i32 to index
    %c2_15 = arith.constant 2 : index
    %c0_16 = arith.constant 0 : index
    %24 = vector.load %arg10[%23, %c2_15, %c0_16] : memref<18x24x256xbf16, #tpu.memory_space<vmem>>, vector<8x16x256xbf16>
    %25 = vector.shape_cast %24 : vector<8x16x256xbf16> to vector<128x256xbf16>
    %cst_17 = arith.constant dense<0.000000e+00> : vector<32x128xf32>
    %26 = tpu.matmul %21, %25, %cst_17 {dimension_numbers = #tpu.dot_dimension_numbers<[1], [1], [0], [0], [0, 0, 1, 0], [], []>} : vector<32x256xbf16>, vector<128x256xbf16>, vector<32x128xf32> -> vector<32x128xf32>
    %27 = arith.addf %19, %26 : vector<32x128xf32>
    %c3 = arith.constant 3 : index
    %c0_18 = arith.constant 0 : index
    %c0_19 = arith.constant 0 : index
    %28 = vector.load %arg5[%c3, %c0_18, %c0_19] : memref<9x32x256xbf16, #tpu.memory_space<vmem>>, vector<1x32x256xbf16>
    %29 = vector.shape_cast %28 : vector<1x32x256xbf16> to vector<32x256xbf16>
    %c1_i32 = arith.constant 1 : i32
    %30 = arith.addi %4, %c1_i32 : i32
    %31 = arith.index_cast %30 : i32 to index
    %c0_20 = arith.constant 0 : index
    %c0_21 = arith.constant 0 : index
    %32 = vector.load %arg10[%31, %c0_20, %c0_21] : memref<18x24x256xbf16, #tpu.memory_space<vmem>>, vector<8x16x256xbf16>
    %33 = vector.shape_cast %32 : vector<8x16x256xbf16> to vector<128x256xbf16>
    %cst_22 = arith.constant dense<0.000000e+00> : vector<32x128xf32>
    %34 = tpu.matmul %29, %33, %cst_22 {dimension_numbers = #tpu.dot_dimension_numbers<[1], [1], [0], [0], [0, 0, 1, 0], [], []>} : vector<32x256xbf16>, vector<128x256xbf16>, vector<32x128xf32> -> vector<32x128xf32>
    %35 = arith.addf %27, %34 : vector<32x128xf32>
    %c4 = arith.constant 4 : index
    %c0_23 = arith.constant 0 : index
    %c0_24 = arith.constant 0 : index
    %36 = vector.load %arg5[%c4, %c0_23, %c0_24] : memref<9x32x256xbf16, #tpu.memory_space<vmem>>, vector<1x32x256xbf16>
    %37 = vector.shape_cast %36 : vector<1x32x256xbf16> to vector<32x256xbf16>
    %c1_i32_25 = arith.constant 1 : i32
    %38 = arith.addi %4, %c1_i32_25 : i32
    %39 = arith.index_cast %38 : i32 to index
    %c1_26 = arith.constant 1 : index
    %c0_27 = arith.constant 0 : index
    %40 = vector.load %arg10[%39, %c1_26, %c0_27] : memref<18x24x256xbf16, #tpu.memory_space<vmem>>, vector<8x16x256xbf16>
    %41 = vector.shape_cast %40 : vector<8x16x256xbf16> to vector<128x256xbf16>
    %cst_28 = arith.constant dense<0.000000e+00> : vector<32x128xf32>
    %42 = tpu.matmul %37, %41, %cst_28 {dimension_numbers = #tpu.dot_dimension_numbers<[1], [1], [0], [0], [0, 0, 1, 0], [], []>} : vector<32x256xbf16>, vector<128x256xbf16>, vector<32x128xf32> -> vector<32x128xf32>
    %43 = arith.addf %35, %42 : vector<32x128xf32>
    %c5 = arith.constant 5 : index
    %c0_29 = arith.constant 0 : index
    %c0_30 = arith.constant 0 : index
    %44 = vector.load %arg5[%c5, %c0_29, %c0_30] : memref<9x32x256xbf16, #tpu.memory_space<vmem>>, vector<1x32x256xbf16>
    %45 = vector.shape_cast %44 : vector<1x32x256xbf16> to vector<32x256xbf16>
    %c1_i32_31 = arith.constant 1 : i32
    %46 = arith.addi %4, %c1_i32_31 : i32
    %47 = arith.index_cast %46 : i32 to index
    %c2_32 = arith.constant 2 : index
    %c0_33 = arith.constant 0 : index
    %48 = vector.load %arg10[%47, %c2_32, %c0_33] : memref<18x24x256xbf16, #tpu.memory_space<vmem>>, vector<8x16x256xbf16>
    %49 = vector.shape_cast %48 : vector<8x16x256xbf16> to vector<128x256xbf16>
    %cst_34 = arith.constant dense<0.000000e+00> : vector<32x128xf32>
    %50 = tpu.matmul %45, %49, %cst_34 {dimension_numbers = #tpu.dot_dimension_numbers<[1], [1], [0], [0], [0, 0, 1, 0], [], []>} : vector<32x256xbf16>, vector<128x256xbf16>, vector<32x128xf32> -> vector<32x128xf32>
    %51 = arith.addf %43, %50 : vector<32x128xf32>
    %c6 = arith.constant 6 : index
    %c0_35 = arith.constant 0 : index
    %c0_36 = arith.constant 0 : index
    %52 = vector.load %arg5[%c6, %c0_35, %c0_36] : memref<9x32x256xbf16, #tpu.memory_space<vmem>>, vector<1x32x256xbf16>
    %53 = vector.shape_cast %52 : vector<1x32x256xbf16> to vector<32x256xbf16>
    %c2_i32 = arith.constant 2 : i32
    %54 = arith.addi %4, %c2_i32 : i32
    %55 = arith.index_cast %54 : i32 to index
    %c0_37 = arith.constant 0 : index
    %c0_38 = arith.constant 0 : index
    %56 = vector.load %arg10[%55, %c0_37, %c0_38] : memref<18x24x256xbf16, #tpu.memory_space<vmem>>, vector<8x16x256xbf16>
    %57 = vector.shape_cast %56 : vector<8x16x256xbf16> to vector<128x256xbf16>
    %cst_39 = arith.constant dense<0.000000e+00> : vector<32x128xf32>
    %58 = tpu.matmul %53, %57, %cst_39 {dimension_numbers = #tpu.dot_dimension_numbers<[1], [1], [0], [0], [0, 0, 1, 0], [], []>} : vector<32x256xbf16>, vector<128x256xbf16>, vector<32x128xf32> -> vector<32x128xf32>
    %59 = arith.addf %51, %58 : vector<32x128xf32>
    %c7 = arith.constant 7 : index
    %c0_40 = arith.constant 0 : index
    %c0_41 = arith.constant 0 : index
    %60 = vector.load %arg5[%c7, %c0_40, %c0_41] : memref<9x32x256xbf16, #tpu.memory_space<vmem>>, vector<1x32x256xbf16>
    %61 = vector.shape_cast %60 : vector<1x32x256xbf16> to vector<32x256xbf16>
    %c2_i32_42 = arith.constant 2 : i32
    %62 = arith.addi %4, %c2_i32_42 : i32
    %63 = arith.index_cast %62 : i32 to index
    %c1_43 = arith.constant 1 : index
    %c0_44 = arith.constant 0 : index
    %64 = vector.load %arg10[%63, %c1_43, %c0_44] : memref<18x24x256xbf16, #tpu.memory_space<vmem>>, vector<8x16x256xbf16>
    %65 = vector.shape_cast %64 : vector<8x16x256xbf16> to vector<128x256xbf16>
    %cst_45 = arith.constant dense<0.000000e+00> : vector<32x128xf32>
    %66 = tpu.matmul %61, %65, %cst_45 {dimension_numbers = #tpu.dot_dimension_numbers<[1], [1], [0], [0], [0, 0, 1, 0], [], []>} : vector<32x256xbf16>, vector<128x256xbf16>, vector<32x128xf32> -> vector<32x128xf32>
    %67 = arith.addf %59, %66 : vector<32x128xf32>
    %c8 = arith.constant 8 : index
    %c0_46 = arith.constant 0 : index
    %c0_47 = arith.constant 0 : index
    %68 = vector.load %arg5[%c8, %c0_46, %c0_47] : memref<9x32x256xbf16, #tpu.memory_space<vmem>>, vector<1x32x256xbf16>
    %69 = vector.shape_cast %68 : vector<1x32x256xbf16> to vector<32x256xbf16>
    %c2_i32_48 = arith.constant 2 : i32
    %70 = arith.addi %4, %c2_i32_48 : i32
    %71 = arith.index_cast %70 : i32 to index
    %c2_49 = arith.constant 2 : index
    %c0_50 = arith.constant 0 : index
    %72 = vector.load %arg10[%71, %c2_49, %c0_50] : memref<18x24x256xbf16, #tpu.memory_space<vmem>>, vector<8x16x256xbf16>
    %73 = vector.shape_cast %72 : vector<8x16x256xbf16> to vector<128x256xbf16>
    %cst_51 = arith.constant dense<0.000000e+00> : vector<32x128xf32>
    %74 = tpu.matmul %69, %73, %cst_51 {dimension_numbers = #tpu.dot_dimension_numbers<[1], [1], [0], [0], [0, 0, 1, 0], [], []>} : vector<32x256xbf16>, vector<128x256xbf16>, vector<32x128xf32> -> vector<32x128xf32>
    %75 = arith.addf %67, %74 : vector<32x128xf32>
    %c0_52 = arith.constant 0 : index
    %c0_53 = arith.constant 0 : index
    %76 = vector.load %arg6[%c0_52, %c0_53] : memref<32x1xf32, #tpu.memory_space<vmem>>, vector<32x1xf32>
    %77 = vector.broadcast %76 : vector<32x1xf32> to vector<32x128xf32>
    %78 = arith.addf %75, %77 : vector<32x128xf32>
    %c0_i32_54 = arith.constant 0 : i32
    %79 = arith.cmpi eq, %arg1, %c0_i32_54 : i32
    %80 = arith.extui %79 : i1 to i32
    %c0_i32_55 = arith.constant 0 : i32
    %81 = arith.cmpi ne, %80, %c0_i32_55 : i32
    scf.if %81 {
      %cst_73 = arith.constant 0.000000e+00 : f32
      %103 = vector.broadcast %cst_73 : f32 to vector<1x32x1xf32>
      %c0_74 = arith.constant 0 : index
      %c0_75 = arith.constant 0 : index
      %c0_76 = arith.constant 0 : index
      %104 = vector.load %arg8[%c0_74, %c0_75, %c0_76] : memref<1x32x1xf32, #tpu.memory_space<vmem>>, vector<1x32x1xf32>
      tpu.vector_store %arg8[%c0_74, %c0_75, %c0_76], %103 {strides = array<i32>} : memref<1x32x1xf32, #tpu.memory_space<vmem>>, vector<1x32x1xf32>,
      %cst_77 = arith.constant 0.000000e+00 : f32
      %105 = vector.broadcast %cst_77 : f32 to vector<1x32x1xf32>
      %c0_78 = arith.constant 0 : index
      %c0_79 = arith.constant 0 : index
      %c0_80 = arith.constant 0 : index
      %106 = vector.load %arg9[%c0_78, %c0_79, %c0_80] : memref<1x32x1xf32, #tpu.memory_space<vmem>>, vector<1x32x1xf32>
      tpu.vector_store %arg9[%c0_78, %c0_79, %c0_80], %105 {strides = array<i32>} : memref<1x32x1xf32, #tpu.memory_space<vmem>>, vector<1x32x1xf32>,
    } else {
    }
    %c0_56 = arith.constant 0 : index
    %c0_57 = arith.constant 0 : index
    %c0_58 = arith.constant 0 : index
    %82 = vector.load %arg8[%c0_56, %c0_57, %c0_58] : memref<1x32x1xf32, #tpu.memory_space<vmem>>, vector<1x32x1xf32>
    %83 = vector.shape_cast %82 : vector<1x32x1xf32> to vector<32x1xf32>
    %cst_59 = arith.constant dense<0.000000e+00> : vector<32xf32>
    %84 = vector.multi_reduction <add>, %78, %cst_59 [1] : vector<32x128xf32> to vector<32xf32>
    %85 = vector.shape_cast %84 : vector<32xf32> to vector<32x1xf32>
    %86 = arith.addf %83, %85 : vector<32x1xf32>
    %c0_60 = arith.constant 0 : index
    %c0_61 = arith.constant 0 : index
    %c0_62 = arith.constant 0 : index
    %87 = vector.load %arg8[%c0_60, %c0_61, %c0_62] : memref<1x32x1xf32, #tpu.memory_space<vmem>>, vector<1x32x1xf32>
    %88 = vector.shape_cast %87 : vector<1x32x1xf32> to vector<32x1xf32>
    %89 = vector.shape_cast %86 : vector<32x1xf32> to vector<1x32x1xf32>
    tpu.vector_store %arg8[%c0_60, %c0_61, %c0_62], %89 {strides = array<i32>} : memref<1x32x1xf32, #tpu.memory_space<vmem>>, vector<1x32x1xf32>,
    %c0_63 = arith.constant 0 : index
    %c0_64 = arith.constant 0 : index
    %c0_65 = arith.constant 0 : index
    %90 = vector.load %arg9[%c0_63, %c0_64, %c0_65] : memref<1x32x1xf32, #tpu.memory_space<vmem>>, vector<1x32x1xf32>
    %91 = vector.shape_cast %90 : vector<1x32x1xf32> to vector<32x1xf32>
    %92 = arith.mulf %78, %78 : vector<32x128xf32>
    %cst_66 = arith.constant dense<0.000000e+00> : vector<32xf32>
    %93 = vector.multi_reduction <add>, %92, %cst_66 [1] : vector<32x128xf32> to vector<32xf32>
    %94 = vector.shape_cast %93 : vector<32xf32> to vector<32x1xf32>
    %95 = arith.addf %91, %94 : vector<32x1xf32>
    %c0_67 = arith.constant 0 : index
    %c0_68 = arith.constant 0 : index
    %c0_69 = arith.constant 0 : index
    %96 = vector.load %arg9[%c0_67, %c0_68, %c0_69] : memref<1x32x1xf32, #tpu.memory_space<vmem>>, vector<1x32x1xf32>
    %97 = vector.shape_cast %96 : vector<1x32x1xf32> to vector<32x1xf32>
    %98 = vector.shape_cast %95 : vector<32x1xf32> to vector<1x32x1xf32>
    tpu.vector_store %arg9[%c0_67, %c0_68, %c0_69], %98 {strides = array<i32>} : memref<1x32x1xf32, #tpu.memory_space<vmem>>, vector<1x32x1xf32>,
    %99 = arith.truncf %78 : vector<32x128xf32> to vector<32x128xbf16>
    %c0_70 = arith.constant 0 : index
    %c0_71 = arith.constant 0 : index
    %c0_72 = arith.constant 0 : index
    %100 = vector.load %arg7[%c0_70, %c0_71, %c0_72] : memref<1x32x128xbf16, #tpu.memory_space<vmem>>, vector<1x32x128xbf16>
    %101 = vector.shape_cast %100 : vector<1x32x128xbf16> to vector<32x128xbf16>
    %102 = vector.shape_cast %99 : vector<32x128xbf16> to vector<1x32x128xbf16>
    tpu.vector_store %arg7[%c0_70, %c0_71, %c0_72], %102 {strides = array<i32>} : memref<1x32x128xbf16, #tpu.memory_space<vmem>>, vector<1x32x128xbf16>,
    return
  }
  func.func @transform_0(%arg0: i32, %arg1: i32) -> (i32, i32, i32, i32) {
    %c0_i32 = arith.constant 0 : i32
    %c0_i32_0 = arith.constant 0 : i32
    %c0_i32_1 = arith.constant 0 : i32
    %c0_i32_2 = arith.constant 0 : i32
    return %arg0, %c0_i32, %c0_i32_0, %c0_i32_1 : i32, i32, i32, i32
  }
  func.func @transform_1(%arg0: i32, %arg1: i32) -> (i32, i32) {
    %c0_i32 = arith.constant 0 : i32
    %c0_i32_0 = arith.constant 0 : i32
    %c0_i32_1 = arith.constant 0 : i32
    return %c0_i32, %c0_i32_0 : i32, i32
  }
  func.func @transform_2(%arg0: i32, %arg1: i32) -> (i32, i32) {
    %c0_i32 = arith.constant 0 : i32
    %c0_i32_0 = arith.constant 0 : i32
    %c0_i32_1 = arith.constant 0 : i32
    return %c0_i32, %c0_i32_0 : i32, i32
  }
  func.func @transform_3(%arg0: i32, %arg1: i32) -> (i32, i32, i32) {
    %c0_i32 = arith.constant 0 : i32
    %c0_i32_0 = arith.constant 0 : i32
    %c0_i32_1 = arith.constant 0 : i32
    %c0_i32_2 = arith.constant 0 : i32
    return %c0_i32, %c0_i32_0, %c0_i32_1 : i32, i32, i32
  }
  func.func @transform_4(%arg0: i32, %arg1: i32) -> (i32, i32) {
    %c0_i32 = arith.constant 0 : i32
    %c0_i32_0 = arith.constant 0 : i32
    %c0_i32_1 = arith.constant 0 : i32
    return %c0_i32, %c0_i32_0 : i32, i32
  }
  func.func @transform_5(%arg0: i32, %arg1: i32) -> (i32, i32, i32) {
    %c0_i32 = arith.constant 0 : i32
    %c0_i32_0 = arith.constant 0 : i32
    return %arg0, %c0_i32, %arg1 : i32, i32, i32
  }
  func.func @transform_6(%arg0: i32, %arg1: i32) -> (i32, i32, i32) {
    %c0_i32 = arith.constant 0 : i32
    %c0_i32_0 = arith.constant 0 : i32
    %c0_i32_1 = arith.constant 0 : i32
    return %arg0, %c0_i32, %c0_i32_0 : i32, i32, i32
  }
  func.func @transform_7(%arg0: i32, %arg1: i32) -> (i32, i32, i32) {
    %c0_i32 = arith.constant 0 : i32
    %c0_i32_0 = arith.constant 0 : i32
    %c0_i32_1 = arith.constant 0 : i32
    return %arg0, %c0_i32, %c0_i32_0 : i32, i32, i32
  }
}

module attributes {stable_mosaic.version = 11 : i64} {
  func.func @_bn_relu_heads_kernel(%arg0: i32, %arg1: i32, %arg2: memref<1x32x128xbf16, #tpu.memory_space<vmem>>, %arg3: memref<32x1xf32, #tpu.memory_space<vmem>>, %arg4: memref<32x1xf32, #tpu.memory_space<vmem>>, %arg5: memref<8x32xbf16, #tpu.memory_space<vmem>>, %arg6: memref<8x1xf32, #tpu.memory_space<vmem>>, %arg7: memref<1x8x128xf32, #tpu.memory_space<vmem>>) attributes {dimension_semantics = [#tpu.dimension_semantics<parallel>, #tpu.dimension_semantics<parallel>], iteration_bounds = array<i64: 2, 2>, scalar_prefetch = 0 : i64, scratch_operands = 0 : i64, tpu.core_type = #tpu.core_type<tc>, window_params = [{transform_indices = @transform_0, window_bounds = array<i64: 1, 32, 128>}, {pipeline_mode = #tpu.pipeline_mode<synchronous>, transform_indices = @transform_1, window_bounds = array<i64: 32, 1>}, {pipeline_mode = #tpu.pipeline_mode<synchronous>, transform_indices = @transform_2, window_bounds = array<i64: 32, 1>}, {pipeline_mode = #tpu.pipeline_mode<synchronous>, transform_indices = @transform_3, window_bounds = array<i64: 8, 32>}, {pipeline_mode = #tpu.pipeline_mode<synchronous>, transform_indices = @transform_4, window_bounds = array<i64: 8, 1>}, {transform_indices = @transform_5, window_bounds = array<i64: 1, 8, 128>}]} {
    %c0 = arith.constant 0 : index
    %c0_0 = arith.constant 0 : index
    %c0_1 = arith.constant 0 : index
    %0 = vector.load %arg2[%c0, %c0_0, %c0_1] : memref<1x32x128xbf16, #tpu.memory_space<vmem>>, vector<1x32x128xbf16>
    %1 = vector.shape_cast %0 : vector<1x32x128xbf16> to vector<32x128xbf16>
    %2 = arith.extf %1 : vector<32x128xbf16> to vector<32x128xf32>
    %c0_2 = arith.constant 0 : index
    %c0_3 = arith.constant 0 : index
    %3 = vector.load %arg3[%c0_2, %c0_3] : memref<32x1xf32, #tpu.memory_space<vmem>>, vector<32x1xf32>
    %4 = vector.broadcast %3 : vector<32x1xf32> to vector<32x128xf32>
    %5 = arith.mulf %2, %4 : vector<32x128xf32>
    %c0_4 = arith.constant 0 : index
    %c0_5 = arith.constant 0 : index
    %6 = vector.load %arg4[%c0_4, %c0_5] : memref<32x1xf32, #tpu.memory_space<vmem>>, vector<32x1xf32>
    %7 = vector.broadcast %6 : vector<32x1xf32> to vector<32x128xf32>
    %8 = arith.addf %5, %7 : vector<32x128xf32>
    %cst = arith.constant 0.000000e+00 : f32
    %9 = vector.broadcast %cst : f32 to vector<32x128xf32>
    %10 = arith.maximumf %8, %9 : vector<32x128xf32>
    %11 = arith.truncf %10 : vector<32x128xf32> to vector<32x128xbf16>
    %c0_6 = arith.constant 0 : index
    %c0_7 = arith.constant 0 : index
    %12 = vector.load %arg5[%c0_6, %c0_7] : memref<8x32xbf16, #tpu.memory_space<vmem>>, vector<8x32xbf16>
    %cst_8 = arith.constant dense<0.000000e+00> : vector<8x128xf32>
    %13 = tpu.matmul %12, %11, %cst_8 {dimension_numbers = #tpu.dot_dimension_numbers<[1], [0], [0], [1], [0, 0, 1, 1], [], []>} : vector<8x32xbf16>, vector<32x128xbf16>, vector<8x128xf32> -> vector<8x128xf32>
    %c0_9 = arith.constant 0 : index
    %c0_10 = arith.constant 0 : index
    %14 = vector.load %arg6[%c0_9, %c0_10] : memref<8x1xf32, #tpu.memory_space<vmem>>, vector<8x1xf32>
    %15 = vector.broadcast %14 : vector<8x1xf32> to vector<8x128xf32>
    %16 = arith.addf %13, %15 : vector<8x128xf32>
    %c0_11 = arith.constant 0 : index
    %c0_12 = arith.constant 0 : index
    %c0_13 = arith.constant 0 : index
    %17 = vector.load %arg7[%c0_11, %c0_12, %c0_13] : memref<1x8x128xf32, #tpu.memory_space<vmem>>, vector<1x8x128xf32>
    %18 = vector.shape_cast %17 : vector<1x8x128xf32> to vector<8x128xf32>
    %19 = vector.shape_cast %16 : vector<8x128xf32> to vector<1x8x128xf32>
    tpu.vector_store %arg7[%c0_11, %c0_12, %c0_13], %19 {strides = array<i32>} : memref<1x8x128xf32, #tpu.memory_space<vmem>>, vector<1x8x128xf32>,
    return
  }
  func.func @transform_0(%arg0: i32, %arg1: i32) -> (i32, i32, i32) {
    %c0_i32 = arith.constant 0 : i32
    %c0_i32_0 = arith.constant 0 : i32
    return %arg0, %c0_i32, %arg1 : i32, i32, i32
  }
  func.func @transform_1(%arg0: i32, %arg1: i32) -> (i32, i32) {
    %c0_i32 = arith.constant 0 : i32
    %c0_i32_0 = arith.constant 0 : i32
    %c0_i32_1 = arith.constant 0 : i32
    return %c0_i32, %c0_i32_0 : i32, i32
  }
  func.func @transform_2(%arg0: i32, %arg1: i32) -> (i32, i32) {
    %c0_i32 = arith.constant 0 : i32
    %c0_i32_0 = arith.constant 0 : i32
    %c0_i32_1 = arith.constant 0 : i32
    return %c0_i32, %c0_i32_0 : i32, i32
  }
  func.func @transform_3(%arg0: i32, %arg1: i32) -> (i32, i32) {
    %c0_i32 = arith.constant 0 : i32
    %c0_i32_0 = arith.constant 0 : i32
    %c0_i32_1 = arith.constant 0 : i32
    return %c0_i32, %c0_i32_0 : i32, i32
  }
  func.func @transform_4(%arg0: i32, %arg1: i32) -> (i32, i32) {
    %c0_i32 = arith.constant 0 : i32
    %c0_i32_0 = arith.constant 0 : i32
    %c0_i32_1 = arith.constant 0 : i32
    return %c0_i32, %c0_i32_0 : i32, i32
  }
  func.func @transform_5(%arg0: i32, %arg1: i32) -> (i32, i32, i32) {
    %c0_i32 = arith.constant 0 : i32
    %c0_i32_0 = arith.constant 0 : i32
    return %arg0, %c0_i32, %arg1 : i32, i32, i32
  }
}

</mosaic_0001>

<llo_original>
// kernel: conv_vencoder_forward.7
$region0: #{conv_vencoder_forward.7}
  #allocation0 [shape = 'u32[]', space=smem, size = 0x4, offset = 0x4, fixed_abs, tag = 'smem constant byte address 0x4 - core index']
  #allocation1 [shape = 'u32[144,128]{1,0:T(1,128)}', space=vmem, size = 0x12000, scoped, tag = 'internal scratch']
  %s0 = inlined_call_operand.vmem [shape: bf16[2,32,256], index: 0, kind: input, shape index: {}]
  %s1 = inlined_call_operand.vmem [shape: f32[32,1], index: 1, kind: input, shape index: {}]
  %s2 = inlined_call_operand.vmem [shape: f32[32,1], index: 2, kind: input, shape index: {}]
  %s3 = inlined_call_operand.vmem [shape: bf16[8,32], index: 3, kind: input, shape index: {}]
  %s4 = inlined_call_operand.vmem [shape: f32[8,1], index: 4, kind: input, shape index: {}]
  %s5 = inlined_call_operand.vmem [shape: f32[2,8,256], index: 5, kind: output, shape index: {}]
  %s6 = sld [smem:[#allocation0]]
  $region94: #{conv_vencoder_forward.7} parent=0
    _
  %s8 = ssub.s32 1, %s6
  %s9 = scalar_select 0, %s8, %s6
  $region1: #{conv_vencoder_forward.7} parent=0
    #allocation2 [shape = 'u8[16384]{0}', space=vmem, size = 0x4000, scoped, tag = 'input window, operand 0']
    loop: start=0, step=1, limit=6
    $region2: #{conv_vencoder_forward.7} parent=1 // loop_pre_header
      _
    $region3: #{conv_vencoder_forward.7} parent=1 // loop_header
      %s11 = sphi 0, %s15
      %p12 = scmp.ge.s32.totalorder %s11, 6
      %s18 = sphi 0, %s30
      %s19 = sphi 0, %s26
      %s20 = sphi 0, %s18
      %s21 = sphi 0, %s19
      %s22 = sphi 0, %s20
      %s23 = sphi 0, %s21
      %s35 = sphi 0, %s37
      %s38 = sphi 0, %s35
      %s39 = sphi 0, %s38
      %s55 = sphi 0, %s39
      %s59 = sphi 0, %s59
      %s61 = sphi 0, %s59
      %s62 = sphi 0, %s61
      %s76 = sphi 0, %s62
      %s80 = sphi 0, %s80
      %s82 = sphi 0, %s80
      %s83 = sphi 0, %s82
      %s97 = sphi 0, %s83
      %s101 = sphi 0, %s101
      %s103 = sphi 0, %s101
      %s104 = sphi 0, %s103
      %s118 = sphi 0, %s104
      %s122 = sphi 0, %s122
      %s124 = sphi 0, %s122
      %s125 = sphi 0, %s124
      %s139 = sphi 0, %s125
      %s147 = sphi 0, %s149
      %s150 = sphi 0, %s147
      %s151 = sphi 0, %s150
      %s167 = sphi 0, %s151
    $region4: #{conv_vencoder_forward.7} parent=1 // loop_header_branch
      %14 = sbr.rel (%p12) target = $region8
    $region5: #{conv_vencoder_forward.7} parent=1 // loop_body
      %s16 = ssub.s32 %s11, 1
      %s17 = ssub.s32 %s11, 2
      %s24 = sadd.s32 1, %s19
      %p25 = scmp.ge.s32.totalorder %s24, 2
      %s26 = scalar_select %p25, 0, %s24
      %s27 = sadd.s32 1, %s18
      %s28 = scalar_select %p25, %s27, %s18
      %p29 = scmp.ge.s32.totalorder %s28, 2
      %s30 = scalar_select %p29, 0, %s28
      %s31 = ssub.s32 %s18, %s30
      %s32 = ssub.s32 %s19, %s26
      %s33 = sor.u32 %s31, %s32
      %p34 = scmp.eq.s32.totalorder %s33, 0
      %s36 = sadd.s32 %s35, 1
      %s37 = scalar_select %p34, %s35, %s36
      %p40 = pneg %p34
      %p41 = scmp.eq.s32.totalorder %s11, 3
      %p42 = por %p40, %p41
      %p43 = scmp.ne.s32.totalorder %s35, %s38
      %p44 = scmp.eq.s32.totalorder %s11, 0
      %p45 = por %p43, %p44
      %p46 = scmp.ne.s32.totalorder %s35, %s38
      %p47 = scmp.eq.s32.totalorder %s16, 3
      %p48 = por %p46, %p47
      %p49 = scmp.ne.s32.totalorder %s38, %s39
      %p50 = scmp.eq.s32.totalorder %s16, 0
      %p51 = por %p49, %p50
      %p52 = scmp.ne.s32.totalorder %s38, %s39
      %p53 = scmp.eq.s32.totalorder %s17, 3
      %p54 = por %p52, %p53
      %p56 = scmp.ne.s32.totalorder %s39, %s55
      %p57 = scmp.eq.s32.totalorder %s17, 0
      %p58 = por %p56, %p57
      %s60 = sadd.s32 %s59, 1
      %p63 = scmp.eq.s32.totalorder %s11, 3
      %p64 = scmp.ne.s32.totalorder %s59, %s61
      %p65 = scmp.eq.s32.totalorder %s11, 0
      %p66 = por %p64, %p65
      %p67 = scmp.ne.s32.totalorder %s59, %s61
      %p68 = scmp.eq.s32.totalorder %s16, 3
      %p69 = por %p67, %p68
      %p70 = scmp.ne.s32.totalorder %s61, %s62
      %p71 = scmp.eq.s32.totalorder %s16, 0
      %p72 = por %p70, %p71
      %p73 = scmp.ne.s32.totalorder %s61, %s62
      %p74 = scmp.eq.s32.totalorder %s17, 3
      %p75 = por %p73, %p74
      %p77 = scmp.ne.s32.totalorder %s62, %s76
      %p78 = scmp.eq.s32.totalorder %s17, 0
      %p79 = por %p77, %p78
      %s81 = sadd.s32 %s80, 1
      %p84 = scmp.eq.s32.totalorder %s11, 3
      %p85 = scmp.ne.s32.totalorder %s80, %s82
      %p86 = scmp.eq.s32.totalorder %s11, 0
      %p87 = por %p85, %p86
      %p88 = scmp.ne.s32.totalorder %s80, %s82
      %p89 = scmp.eq.s32.totalorder %s16, 3
      %p90 = por %p88, %p89
      %p91 = scmp.ne.s32.totalorder %s82, %s83
      %p92 = scmp.eq.s32.totalorder %s16, 0
      %p93 = por %p91, %p92
      %p94 = scmp.ne.s32.totalorder %s82, %s83
      %p95 = scmp.eq.s32.totalorder %s17, 3
      %p96 = por %p94, %p95
      %p98 = scmp.ne.s32.totalorder %s83, %s97
      %p99 = scmp.eq.s32.totalorder %s17, 0
      %p100 = por %p98, %p99
      %s102 = sadd.s32 %s101, 1
      %p105 = scmp.eq.s32.totalorder %s11, 3
      %p106 = scmp.ne.s32.totalorder %s101, %s103
      %p107 = scmp.eq.s32.totalorder %s11, 0
      %p108 = por %p106, %p107
      %p109 = scmp.ne.s32.totalorder %s101, %s103
      %p110 = scmp.eq.s32.totalorder %s16, 3
      %p111 = por %p109, %p110
      %p112 = scmp.ne.s32.totalorder %s103, %s104
      %p113 = scmp.eq.s32.totalorder %s16, 0
      %p114 = por %p112, %p113
      %p115 = scmp.ne.s32.totalorder %s103, %s104
      %p116 = scmp.eq.s32.totalorder %s17, 3
      %p117 = por %p115, %p116
      %p119 = scmp.ne.s32.totalorder %s104, %s118
      %p120 = scmp.eq.s32.totalorder %s17, 0
      %p121 = por %p119, %p120
      %s123 = sadd.s32 %s122, 1
      %p126 = scmp.eq.s32.totalorder %s11, 3
      %p127 = scmp.ne.s32.totalorder %s122, %s124
      %p128 = scmp.eq.s32.totalorder %s11, 0
      %p129 = por %p127, %p128
      %p130 = scmp.ne.s32.totalorder %s122, %s124
      %p131 = scmp.eq.s32.totalorder %s16, 3
      %p132 = por %p130, %p131
      %p133 = scmp.ne.s32.totalorder %s124, %s125
      %p134 = scmp.eq.s32.totalorder %s16, 0
      %p135 = por %p133, %p134
      %p136 = scmp.ne.s32.totalorder %s124, %s125
      %p137 = scmp.eq.s32.totalorder %s17, 3
      %p138 = por %p136, %p137
      %p140 = scmp.ne.s32.totalorder %s125, %s139
      %p141 = scmp.eq.s32.totalorder %s17, 0
      %p142 = por %p140, %p141
      %s143 = ssub.s32 %s18, %s30
      %s144 = ssub.s32 %s19, %s26
      %s145 = sor.u32 %s143, %s144
      %p146 = scmp.eq.s32.totalorder %s145, 0
      %s148 = sadd.s32 %s147, 1
      %s149 = scalar_select %p146, %s147, %s148
      %p152 = pneg %p146
      %p153 = scmp.eq.s32.totalorder %s11, 3
      %p154 = por %p152, %p153
      %p155 = scmp.ne.s32.totalorder %s147, %s150
      %p156 = scmp.eq.s32.totalorder %s11, 0
      %p157 = por %p155, %p156
      %p158 = scmp.ne.s32.totalorder %s147, %s150
      %p159 = scmp.eq.s32.totalorder %s16, 3
      %p160 = por %p158, %p159
      %p161 = scmp.ne.s32.totalorder %s150, %s151
      %p162 = scmp.eq.s32.totalorder %s16, 0
      %p163 = por %p161, %p162
      %p164 = scmp.ne.s32.totalorder %s150, %s151
      %p165 = scmp.eq.s32.totalorder %s17, 3
      %p166 = por %p164, %p165
      %p168 = scmp.ne.s32.totalorder %s151, %s167
      %p169 = scmp.eq.s32.totalorder %s17, 0
      %p170 = por %p168, %p169
      %p171 = scmp.le.s32.totalorder 1, %s11
      %p172 = scmp.lt.s32.totalorder %s11, 5
      %p173 = pnand %p171, %p172
      %p174 = pneg %p173
      // Predicated region
      $region9: #{conv_vencoder_forward.7} parent=5 // pred_check
        _
      $region10: #{conv_vencoder_forward.7} parent=5 // pred_check_branch
        %176 = sbr.rel (%p173) target = $region12
      $region11: #{conv_vencoder_forward.7} parent=5 // pred_region
        %s177 = ssub.s32 %s11, 1
        // Predicated region
        $region13: #{conv_vencoder_forward.7} parent=11 // pred_check
          %p178 = pneg %p72
        $region14: #{conv_vencoder_forward.7} parent=11 // pred_check_branch
          %180 = sbr.rel (%p178) target = $region16
        $region15: #{conv_vencoder_forward.7} parent=11 // pred_region
          _
        $region16: #{conv_vencoder_forward.7} parent=11 // pred_fallthru
          _
        // Predicated region
        $region17: #{conv_vencoder_forward.7} parent=11 // pred_check
          %p181 = pneg %p93
        $region18: #{conv_vencoder_forward.7} parent=11 // pred_check_branch
          %183 = sbr.rel (%p181) target = $region20
        $region19: #{conv_vencoder_forward.7} parent=11 // pred_region
          _
        $region20: #{conv_vencoder_forward.7} parent=11 // pred_fallthru
          _
        // Predicated region
        $region21: #{conv_vencoder_forward.7} parent=11 // pred_check
          %p184 = pneg %p114
        $region22: #{conv_vencoder_forward.7} parent=11 // pred_check_branch
          %186 = sbr.rel (%p184) target = $region24
        $region23: #{conv_vencoder_forward.7} parent=11 // pred_region
          _
        $region24: #{conv_vencoder_forward.7} parent=11 // pred_fallthru
          _
        // Predicated region
        $region25: #{conv_vencoder_forward.7} parent=11 // pred_check
          %p187 = pneg %p135
        $region26: #{conv_vencoder_forward.7} parent=11 // pred_check_branch
          %189 = sbr.rel (%p187) target = $region28
        $region27: #{conv_vencoder_forward.7} parent=11 // pred_region
          _
        $region28: #{conv_vencoder_forward.7} parent=11 // pred_fallthru
          _
      $region12: #{conv_vencoder_forward.7} parent=5 // pred_fallthru
        _
      %p190 = scmp.lt.s32.totalorder %s11, 4
      // Predicated region
      $region29: #{conv_vencoder_forward.7} parent=5 // pred_check
        %p191 = pneg %p190
      $region30: #{conv_vencoder_forward.7} parent=5 // pred_check_branch
        %193 = sbr.rel (%p191) target = $region32
      $region31: #{conv_vencoder_forward.7} parent=5 // pred_region
        // Predicated region
        $region33: #{conv_vencoder_forward.7} parent=31 // pred_check
          %p194 = pneg %p45
        $region34: #{conv_vencoder_forward.7} parent=31 // pred_check_branch
          %196 = sbr.rel (%p194) target = $region36
        $region35: #{conv_vencoder_forward.7} parent=31 // pred_region
          %s197 = sand.u32 %s35, 1
          %s198 = sand.u32 %s35, 1
          %s199 = smul.addr %s198, 16
          %s200 = scalar_lea.vmem [#allocation2], %s199
          %s201 = smul.addr %s18, 8
          %s202 = sadd.s32 %s19, %s201
          %s203 = smul.addr %s202, 4
          %s204 = scalar_lea.vmem %s0, %s203
          // Predicated region
          $region37: #{conv_vencoder_forward.7} parent=35 // pred_check
            _
          $region38: #{conv_vencoder_forward.7} parent=35 // pred_check_branch
            %206 = sbr.rel (0) target = $region40
          $region39: #{conv_vencoder_forward.7} parent=35 // pred_region
            // Predicated region
            $region41: #{conv_vencoder_forward.7} parent=39 // pred_check
              _
            $region42: #{conv_vencoder_forward.7} parent=39 // pred_check_branch
              %208 = sbr.rel target = $region44
            $region43: #{conv_vencoder_forward.7} parent=39 // pred_region
              // Predicated region
              $region56: #{conv_vencoder_forward.7} parent=43 // pred_check
                _
              $region57: #{conv_vencoder_forward.7} parent=43 // pred_check_branch
                %230 = sbr.rel (0) target = $region59
              $region58: #{conv_vencoder_forward.7} parent=43 // pred_region
                loop: start=0, step=1, limit=1
                $region60: #{conv_vencoder_forward.7} parent=58 // loop_pre_header
                  _
                $region61: #{conv_vencoder_forward.7} parent=58 // loop_header
                  %s232 = sphi 0, %s236
                  %p233 = scmp.ge.s32.totalorder %s232, 1
                  %s237 = sphi %s204, %s204
                  %s238 = sphi %s200, %s200
                $region62: #{conv_vencoder_forward.7} parent=58 // loop_header_branch
                  %235 = sbr.rel (%p233) target = $region66
                $region63: #{conv_vencoder_forward.7} parent=58 // loop_body
                  _
                $region64: #{conv_vencoder_forward.7} parent=58 // loop_footer
                  %s236 = sadd.s32 1, %s232
                $region65: #{conv_vencoder_forward.7} parent=58 // loop_footer_branch
                  %231 = sbr.rel target = $region61
                $region66: #{conv_vencoder_forward.7} parent=58 // loop_exit
                  _
                %s240 = ssub.s32 16, 1
                loop: start=0, step=1, limit=1
                $region67: #{conv_vencoder_forward.7} parent=58 // loop_pre_header
                  _
                $region68: #{conv_vencoder_forward.7} parent=58 // loop_header
                  %s242 = sphi 0, %s246
                  %p243 = scmp.ge.s32.totalorder %s242, 1
                  %s247 = sphi %s204, %s204
                  %s248 = sphi %s200, %s200
                $region69: #{conv_vencoder_forward.7} parent=58 // loop_header_branch
                  %245 = sbr.rel (%p243) target = $region73
                $region70: #{conv_vencoder_forward.7} parent=58 // loop_body
                  %v249 = vld [vmem:[%s247] sm:%s240]
                  %250 = vst [vmem:[%s248] sm:%s240] %v249
                  %v251 = vld [vmem:[%s247 + $0x8] sm:%s240]
                  %252 = vst [vmem:[%s248 + $0x4] sm:%s240] %v251
                  %v253 = vld [vmem:[%s247 + $0x10] sm:%s240]
                  %254 = vst [vmem:[%s248 + $0x8] sm:%s240] %v253
                  %v255 = vld [vmem:[%s247 + $0x18] sm:%s240]
                  %256 = vst [vmem:[%s248 + $0xc] sm:%s240] %v255
                $region71: #{conv_vencoder_forward.7} parent=58 // loop_footer
                  %s246 = sadd.s32 1, %s242
                $region72: #{conv_vencoder_forward.7} parent=58 // loop_footer_branch
                  %241 = sbr.rel target = $region68
                $region73: #{conv_vencoder_forward.7} parent=58 // loop_exit
                  _
              $region59: #{conv_vencoder_forward.7} parent=43 // pred_fallthru
                _
            $region44: #{conv_vencoder_forward.7} parent=39 // pred_fallthru
              _
            // Predicated region
            $region45: #{conv_vencoder_forward.7} parent=39 // pred_check
              _
            $region46: #{conv_vencoder_forward.7} parent=39 // pred_check_branch
              %210 = sbr.rel (0) target = $region48
            $region47: #{conv_vencoder_forward.7} parent=39 // pred_region
              %s212 = ssub.s32 16, 1
              loop: start=0, step=1, limit=1
              $region49: #{conv_vencoder_forward.7} parent=47 // loop_pre_header
                _
              $region50: #{conv_vencoder_forward.7} parent=47 // loop_header
                %s214 = sphi 0, %s218
                %p215 = scmp.ge.s32.totalorder %s214, 1
                %s219 = sphi %s204, %s204
                %s220 = sphi %s200, %s200
              $region51: #{conv_vencoder_forward.7} parent=47 // loop_header_branch
                %217 = sbr.rel (%p215) target = $region55
              $region52: #{conv_vencoder_forward.7} parent=47 // loop_body
                %v221 = vld [vmem:[%s219] sm:%s212]
                %222 = vst [vmem:[%s220] sm:%s212] %v221
                %v223 = vld [vmem:[%s219 + $0x8] sm:%s212]
                %224 = vst [vmem:[%s220 + $0x4] sm:%s212] %v223
                %v225 = vld [vmem:[%s219 + $0x10] sm:%s212]
                %226 = vst [vmem:[%s220 + $0x8] sm:%s212] %v225
                %v227 = vld [vmem:[%s219 + $0x18] sm:%s212]
                %228 = vst [vmem:[%s220 + $0xc] sm:%s212] %v227
              $region53: #{conv_vencoder_forward.7} parent=47 // loop_footer
                %s218 = sadd.s32 1, %s214
              $region54: #{conv_vencoder_forward.7} parent=47 // loop_footer_branch
                %213 = sbr.rel target = $region50
              $region55: #{conv_vencoder_forward.7} parent=47 // loop_exit
                _
            $region48: #{conv_vencoder_forward.7} parent=39 // pred_fallthru
              _
          $region40: #{conv_vencoder_forward.7} parent=35 // pred_fallthru
            _
          %257 = vnop
        $region36: #{conv_vencoder_forward.7} parent=31 // pred_fallthru
          _
      $region32: #{conv_vencoder_forward.7} parent=5 // pred_fallthru
        _
      %p258 = scmp.le.s32.totalorder 1, %s11
      %p259 = scmp.lt.s32.totalorder %s11, 5
      %p260 = pnand %p258, %p259
      %p261 = pneg %p260
      // Predicated region
      $region74: #{conv_vencoder_forward.7} parent=5 // pred_check
        _
      $region75: #{conv_vencoder_forward.7} parent=5 // pred_check_branch
        %263 = sbr.rel (%p260) target = $region77
      $region76: #{conv_vencoder_forward.7} parent=5 // pred_region
        %s264 = ssub.s32 %s11, 1
        %s265 = sand.u32 %s38, 1
        %s266 = sand.u32 %s38, 1
        %s267 = smul.addr %s266, 16
        %s268 = scalar_lea.vmem [#allocation2], %s267
        // Predicated region
        $region78: #{conv_vencoder_forward.7} parent=76 // pred_check
          %p269 = pneg %p51
        $region79: #{conv_vencoder_forward.7} parent=76 // pred_check_branch
          %271 = sbr.rel (%p269) target = $region81
        $region80: #{conv_vencoder_forward.7} parent=76 // pred_region
          _
        $region81: #{conv_vencoder_forward.7} parent=76 // pred_fallthru
          _
        %s272 = sand.u32 %s38, 1
        %s273 = sand.u32 %s38, 1
        %s274 = smul.addr %s273, 16
        %s275 = scalar_lea.vmem [#allocation2], %s274
        %p276 = pneg %p51
        %p277 = pneg %p48
        %p278 = pneg %p72
        %p279 = pneg %p69
        %p280 = pneg %p93
        %p281 = pneg %p90
        %p282 = pneg %p114
        %p283 = pneg %p111
        %p284 = pneg %p135
        %p285 = pneg %p132
        %p286 = pneg %p163
        %p287 = pneg %p160
        %p288 = scmp.lt.s32.totalorder %s20, 1
        %s289 = scalar_select %p288, %s20, 1
        %p290 = scmp.lt.s32.totalorder %s21, 1
        %s291 = scalar_select %p290, %s21, 1
        %s292 = smul.addr %s289, 2
        %s293 = sadd.s32 %s291, %s292
        %s294 = smul.addr %s293, 8
        %s295 = scalar_lea.vmem %s5, %s294
        %p296 = scmp.lt.s32.totalorder %s20, 1
        %s297 = scalar_select %p296, %s20, 1
        %p298 = scmp.lt.s32.totalorder %s21, 1
        %s299 = scalar_select %p298, %s21, 1
        %s300 = smul.addr %s297, 2
        %s301 = sadd.s32 %s299, %s300
        %s302 = smul.addr %s301, 8
        %s303 = scalar_lea.vmem %s5, %s302
        %v305 = vld [vmem:[%s268] sm:$0xf]
        %v306 = vld [vmem:[%s268 + $0x4] sm:$0xf]
        %v307 = vld [vmem:[%s268 + $0x8] sm:$0xf]
        %v308 = vld [vmem:[%s268 + $0xc] sm:$0xf]
        %v309 = vunpack.c.l.bf16 %v305
        %v310 = vunpack.c.l.bf16 %v306
        %v311 = vunpack.c.l.bf16 %v307
        %v312 = vunpack.c.l.bf16 %v308
        %v313 = vld [vmem:[%s1] sm:$0xff]
        %v314 = vld [vmem:[%s1 + $0x8] sm:$0xff]
        %v315 = vld [vmem:[%s1 + $0x10] sm:$0xff]
        %v316 = vld [vmem:[%s1 + $0x18] sm:$0xff]
        %318 = vset.pattern.permute.xlu0 0
        %319 = vperm.xlu0 %318, %v313
        %v320 = vpop.permute.xlu0 %319
        %323 = vset.pattern.permute.xlu0 0
        %324 = vperm.xlu0 %323, %v314
        %v325 = vpop.permute.xlu0 %324
        %328 = vset.pattern.permute.xlu0 0
        %329 = vperm.xlu0 %328, %v315
        %v330 = vpop.permute.xlu0 %329
        %333 = vset.pattern.permute.xlu0 0
        %334 = vperm.xlu0 %333, %v316
        %v335 = vpop.permute.xlu0 %334
        %v337 = vmul.f32 %v309, %v320
        %v338 = vmul.f32 %v310, %v325
        %v339 = vmul.f32 %v311, %v330
        %v340 = vmul.f32 %v312, %v335
        %v341 = vld [vmem:[%s2] sm:$0xff]
        %v342 = vld [vmem:[%s2 + $0x8] sm:$0xff]
        %v343 = vld [vmem:[%s2 + $0x10] sm:$0xff]
        %v344 = vld [vmem:[%s2 + $0x18] sm:$0xff]
        %346 = vset.pattern.permute.xlu0 0
        %347 = vperm.xlu0 %346, %v341
        %v348 = vpop.permute.xlu0 %347
        %351 = vset.pattern.permute.xlu0 0
        %352 = vperm.xlu0 %351, %v342
        %v353 = vpop.permute.xlu0 %352
        %356 = vset.pattern.permute.xlu0 0
        %357 = vperm.xlu0 %356, %v343
        %v358 = vpop.permute.xlu0 %357
        %361 = vset.pattern.permute.xlu0 0
        %362 = vperm.xlu0 %361, %v344
        %v363 = vpop.permute.xlu0 %362
        %v365 = vadd.f32 %v337, %v348
        %v366 = vadd.f32 %v338, %v353
        %v367 = vadd.f32 %v339, %v358
        %v368 = vadd.f32 %v340, %v363
        %v369 = vmax.f32 %v365, 0.0
        %v370 = vmax.f32 %v366, 0.0
        %v371 = vmax.f32 %v367, 0.0
        %v372 = vmax.f32 %v368, 0.0
        %v373 = vpack.c.bf16 %v370, %v369
        %v374 = vpack.c.bf16 %v372, %v371
        %v375 = vld [vmem:[%s3] sm:$0xf]
        %v376 = vld [vmem:[%s4] sm:$0xff]
        %378 = vset.pattern.permute.xlu0 0
        %379 = vperm.xlu0 %378, %v376
        %v380 = vpop.permute.xlu0 %379
        %vm382 = vcmask 261120
        %v384 = vsel %vm382, %v375, 0
        %386 = vmatprep.subr.bf16.mxu0 0
        %387 = vmatpush1.bf16.msra.mxu0 0
        %388 = vmatprep.subr.bf16.mxu0 0
        %389 = vmatpush1.bf16.msra.mxu0 0
        %390 = vmatprep.subr.bf16.mxu0 0
        %391 = vmatpush1.bf16.msra.mxu0 0
        %392 = vmatprep.subr.bf16.mxu0 0
        %393 = vmatpush1.bf16.msra.mxu0 0
        %394 = vmatprep.subr.bf16.mxu0 0
        %395 = vmatpush1.bf16.msra.mxu0 0
        %396 = vmatprep.subr.bf16.mxu0 0
        %397 = vmatpush1.bf16.msra.mxu0 0
        %398 = vmatprep.subr.bf16.mxu0 0
        %399 = vmatpush1.bf16.msra.mxu0 %v374
        %400 = vmatprep.subr.bf16.mxu0 0
        %401 = vmatpush1.bf16.msra.mxu0 %v373
        %402 = vmatprep.subr.bf16.mxu0 0
        %403 = vmatpush2.bf16.msra.mxu0 0
        %404 = vmatprep.subr.bf16.mxu0 0
        %405 = vmatpush2.bf16.msra.mxu0 0
        %406 = vmatprep.subr.bf16.mxu0 0
        %407 = vmatpush2.bf16.msra.mxu0 0
        %408 = vmatprep.subr.bf16.mxu0 0
        %409 = vmatpush2.bf16.msra.mxu0 0
        %410 = vmatprep.subr.bf16.mxu0 0
        %411 = vmatpush2.bf16.msra.mxu0 0
        %412 = vmatprep.subr.bf16.mxu0 0
        %413 = vmatpush2.bf16.msra.mxu0 0
        %414 = vmatprep.subr.bf16.mxu0 0
        %415 = vmatpush2.bf16.msra.mxu0 0
        %416 = vmatprep.subr.bf16.mxu0 0
        %417 = vmatpush2.bf16.msra.mxu0 0
        %418 = vmatprep.mubr.bf16.mxu0 0
        %419 = vmatmul.mubr.bf16.gmra.mxu0 %v384
        %v420 = vpop.f32.mrf.mxu0
        %v421 = vadd.f32 %v380, %v420
        %v422 = vpop.f32.mrf.mxu0
        %v423 = vpop.f32.mrf.mxu0
        %v424 = vpop.f32.mrf.mxu0
        %425 = vdwg.mxu0
        %426 = vst [vmem:[%s303] sm:$0xff] %v421
        %p427 = scmp.lt.s32.totalorder %s20, 1
        %s428 = scalar_select %p427, %s20, 1
        %p429 = scmp.lt.s32.totalorder %s21, 1
        %s430 = scalar_select %p429, %s21, 1
        %s431 = smul.addr %s428, 2
        %s432 = sadd.s32 %s430, %s431
        %s433 = smul.addr %s432, 8
        %s434 = scalar_lea.vmem %s5, %s433
        // Predicated region
        $region82: #{conv_vencoder_forward.7} parent=76 // pred_check
          %p435 = pneg %p160
        $region83: #{conv_vencoder_forward.7} parent=76 // pred_check_branch
          %437 = sbr.rel (%p435) target = $region85
        $region84: #{conv_vencoder_forward.7} parent=76 // pred_region
          _
        $region85: #{conv_vencoder_forward.7} parent=76 // pred_fallthru
          _
      $region77: #{conv_vencoder_forward.7} parent=5 // pred_fallthru
        _
      %p438 = scmp.le.s32.totalorder 2, %s11
      // Predicated region
      $region86: #{conv_vencoder_forward.7} parent=5 // pred_check
        %p439 = pneg %p438
      $region87: #{conv_vencoder_forward.7} parent=5 // pred_check_branch
        %441 = sbr.rel (%p439) target = $region89
      $region88: #{conv_vencoder_forward.7} parent=5 // pred_region
        %s442 = ssub.s32 %s11, 2
        // Predicated region
        $region90: #{conv_vencoder_forward.7} parent=88 // pred_check
          %p443 = pneg %p166
        $region91: #{conv_vencoder_forward.7} parent=88 // pred_check_branch
          %445 = sbr.rel (%p443) target = $region93
        $region92: #{conv_vencoder_forward.7} parent=88 // pred_region
          %p446 = scmp.lt.s32.totalorder %s22, 1
          %s447 = scalar_select %p446, %s22, 1
          %p448 = scmp.lt.s32.totalorder %s23, 1
          %s449 = scalar_select %p448, %s23, 1
          %s450 = smul.addr %s447, 2
          %s451 = sadd.s32 %s449, %s450
          %s452 = smul.addr %s451, 8
          %s453 = scalar_lea.vmem %s5, %s452
        $region93: #{conv_vencoder_forward.7} parent=88 // pred_fallthru
          _
      $region89: #{conv_vencoder_forward.7} parent=5 // pred_fallthru
        _
    $region6: #{conv_vencoder_forward.7} parent=1 // loop_footer
      %s15 = sadd.s32 1, %s11
    $region7: #{conv_vencoder_forward.7} parent=1 // loop_footer_branch
      %10 = sbr.rel target = $region3
    $region8: #{conv_vencoder_forward.7} parent=1 // loop_exit
      _

// kernel: conv_vencoder_forward.4
$region0: #{conv_vencoder_forward.4}
  #allocation0 [shape = 'u32[]', space=smem, size = 0x4, offset = 0x4, fixed_abs, tag = 'smem constant byte address 0x4 - core index']
  #allocation1 [shape = 'u32[144,128]{1,0:T(1,128)}', space=vmem, size = 0x12000, scoped, tag = 'internal scratch']
  #allocation2 [shape = 'bf16[18,24,3]{2,1,0:T(8,128)(2,1)}', space=vmem, size = 0x1b000, scoped, tag = 'scratch operand']
  %s0 = inlined_call_operand.vmem [shape: bf16[2,16,16,3], index: 0, kind: input, shape index: {}]
  %s1 = inlined_call_operand.vmem [shape: f32[1,3], index: 1, kind: input, shape index: {}]
  %s2 = inlined_call_operand.vmem [shape: f32[1,3], index: 2, kind: input, shape index: {}]
  %s3 = inlined_call_operand.vmem [shape: bf16[9,3,128], index: 3, kind: input, shape index: {}]
  %s4 = inlined_call_operand.hbm [shape: f32[1,128], index: 4, kind: input, shape index: {}]
  %s5 = inlined_call_operand.vmem [shape: bf16[2,16,16,128], index: 5, kind: output, shape index: {0}]
  %s6 = inlined_call_operand.vmem [shape: f32[2,1,128], index: 6, kind: output, shape index: {1}]
  %s7 = inlined_call_operand.vmem [shape: f32[2,1,128], index: 7, kind: output, shape index: {2}]
  %8 = xla_tuple %s5, %s6, %s7
  %s9 = sld [smem:[#allocation0]]
  $region81: #{conv_vencoder_forward.4} parent=0
    _
  %s11 = ssub.s32 1, %s9
  %s12 = scalar_select 0, %s11, %s9
  $region1: #{conv_vencoder_forward.4} parent=0
    #allocation3 [shape = 'u8[512]{0}', space=vmem, size = 0x400, scoped, tag = 'input window, operand 4, single buffered']
    #allocation4 [shape = 's32[2]{0}', space=sflag, size = 0x8, scoped, tag = 'scoped memory for conv_vencoder_forward.4']
    %13 = vsyncpa [#allocation4], 0
    loop: start=0, step=1, limit=10
    $region2: #{conv_vencoder_forward.4} parent=1 // loop_pre_header
      _
    $region3: #{conv_vencoder_forward.4} parent=1 // loop_header
      %s15 = sphi 0, %s19
      %p16 = scmp.ge.s32.totalorder %s15, 10
      %s22 = sphi 0, %s34
      %s23 = sphi 0, %s30
      %s24 = sphi 0, %s22
      %s25 = sphi 0, %s23
      %s26 = sphi 0, %s24
      %s27 = sphi 0, %s25
      %s37 = sphi 0, %s39
      %s40 = sphi 0, %s37
      %s41 = sphi 0, %s40
      %s57 = sphi 0, %s41
      %s61 = sphi 0, %s61
      %s63 = sphi 0, %s61
      %s64 = sphi 0, %s63
      %s78 = sphi 0, %s64
      %s82 = sphi 0, %s82
      %s84 = sphi 0, %s82
      %s85 = sphi 0, %s84
      %s99 = sphi 0, %s85
      %s103 = sphi 0, %s103
      %s105 = sphi 0, %s103
      %s106 = sphi 0, %s105
      %s120 = sphi 0, %s106
      %s124 = sphi 0, %s124
      %s126 = sphi 0, %s124
      %s127 = sphi 0, %s126
      %s141 = sphi 0, %s127
      %s149 = sphi 0, %s151
      %s152 = sphi 0, %s149
      %s153 = sphi 0, %s152
      %s169 = sphi 0, %s153
      %s175 = sphi 0, %s177
      %s178 = sphi 0, %s175
      %s179 = sphi 0, %s178
      %s195 = sphi 0, %s179
      %s201 = sphi 0, %s203
      %s204 = sphi 0, %s201
      %s205 = sphi 0, %s204
      %s221 = sphi 0, %s205
    $region4: #{conv_vencoder_forward.4} parent=1 // loop_header_branch
      %18 = sbr.rel (%p16) target = $region8
    $region5: #{conv_vencoder_forward.4} parent=1 // loop_body
      %s20 = ssub.s32 %s15, 1
      %s21 = ssub.s32 %s15, 2
      %s28 = sadd.s32 1, %s23
      %p29 = scmp.ge.s32.totalorder %s28, 4
      %s30 = scalar_select %p29, 0, %s28
      %s31 = sadd.s32 1, %s22
      %s32 = scalar_select %p29, %s31, %s22
      %p33 = scmp.ge.s32.totalorder %s32, 2
      %s34 = scalar_select %p33, 0, %s32
      %s35 = ssub.s32 %s22, %s34
      %p36 = scmp.eq.s32.totalorder %s35, 0
      %s38 = sadd.s32 %s37, 1
      %s39 = scalar_select %p36, %s37, %s38
      %p42 = pneg %p36
      %p43 = scmp.eq.s32.totalorder %s15, 7
      %p44 = por %p42, %p43
      %p45 = scmp.ne.s32.totalorder %s37, %s40
      %p46 = scmp.eq.s32.totalorder %s15, 0
      %p47 = por %p45, %p46
      %p48 = scmp.ne.s32.totalorder %s37, %s40
      %p49 = scmp.eq.s32.totalorder %s20, 7
      %p50 = por %p48, %p49
      %p51 = scmp.ne.s32.totalorder %s40, %s41
      %p52 = scmp.eq.s32.totalorder %s20, 0
      %p53 = por %p51, %p52
      %p54 = scmp.ne.s32.totalorder %s40, %s41
      %p55 = scmp.eq.s32.totalorder %s21, 7
      %p56 = por %p54, %p55
      %p58 = scmp.ne.s32.totalorder %s41, %s57
      %p59 = scmp.eq.s32.totalorder %s21, 0
      %p60 = por %p58, %p59
      %s62 = sadd.s32 %s61, 1
      %p65 = scmp.eq.s32.totalorder %s15, 7
      %p66 = scmp.ne.s32.totalorder %s61, %s63
      %p67 = scmp.eq.s32.totalorder %s15, 0
      %p68 = por %p66, %p67
      %p69 = scmp.ne.s32.totalorder %s61, %s63
      %p70 = scmp.eq.s32.totalorder %s20, 7
      %p71 = por %p69, %p70
      %p72 = scmp.ne.s32.totalorder %s63, %s64
      %p73 = scmp.eq.s32.totalorder %s20, 0
      %p74 = por %p72, %p73
      %p75 = scmp.ne.s32.totalorder %s63, %s64
      %p76 = scmp.eq.s32.totalorder %s21, 7
      %p77 = por %p75, %p76
      %p79 = scmp.ne.s32.totalorder %s64, %s78
      %p80 = scmp.eq.s32.totalorder %s21, 0
      %p81 = por %p79, %p80
      %s83 = sadd.s32 %s82, 1
      %p86 = scmp.eq.s32.totalorder %s15, 7
      %p87 = scmp.ne.s32.totalorder %s82, %s84
      %p88 = scmp.eq.s32.totalorder %s15, 0
      %p89 = por %p87, %p88
      %p90 = scmp.ne.s32.totalorder %s82, %s84
      %p91 = scmp.eq.s32.totalorder %s20, 7
      %p92 = por %p90, %p91
      %p93 = scmp.ne.s32.totalorder %s84, %s85
      %p94 = scmp.eq.s32.totalorder %s20, 0
      %p95 = por %p93, %p94
      %p96 = scmp.ne.s32.totalorder %s84, %s85
      %p97 = scmp.eq.s32.totalorder %s21, 7
      %p98 = por %p96, %p97
      %p100 = scmp.ne.s32.totalorder %s85, %s99
      %p101 = scmp.eq.s32.totalorder %s21, 0
      %p102 = por %p100, %p101
      %s104 = sadd.s32 %s103, 1
      %p107 = scmp.eq.s32.totalorder %s15, 7
      %p108 = scmp.ne.s32.totalorder %s103, %s105
      %p109 = scmp.eq.s32.totalorder %s15, 0
      %p110 = por %p108, %p109
      %p111 = scmp.ne.s32.totalorder %s103, %s105
      %p112 = scmp.eq.s32.totalorder %s20, 7
      %p113 = por %p111, %p112
      %p114 = scmp.ne.s32.totalorder %s105, %s106
      %p115 = scmp.eq.s32.totalorder %s20, 0
      %p116 = por %p114, %p115
      %p117 = scmp.ne.s32.totalorder %s105, %s106
      %p118 = scmp.eq.s32.totalorder %s21, 7
      %p119 = por %p117, %p118
      %p121 = scmp.ne.s32.totalorder %s106, %s120
      %p122 = scmp.eq.s32.totalorder %s21, 0
      %p123 = por %p121, %p122
      %s125 = sadd.s32 %s124, 1
      %p128 = scmp.eq.s32.totalorder %s15, 7
      %p129 = scmp.ne.s32.totalorder %s124, %s126
      %p130 = scmp.eq.s32.totalorder %s15, 0
      %p131 = por %p129, %p130
      %p132 = scmp.ne.s32.totalorder %s124, %s126
      %p133 = scmp.eq.s32.totalorder %s20, 7
      %p134 = por %p132, %p133
      %p135 = scmp.ne.s32.totalorder %s126, %s127
      %p136 = scmp.eq.s32.totalorder %s20, 0
      %p137 = por %p135, %p136
      %p138 = scmp.ne.s32.totalorder %s126, %s127
      %p139 = scmp.eq.s32.totalorder %s21, 7
      %p140 = por %p138, %p139
      %p142 = scmp.ne.s32.totalorder %s127, %s141
      %p143 = scmp.eq.s32.totalorder %s21, 0
      %p144 = por %p142, %p143
      %s145 = ssub.s32 %s22, %s34
      %s146 = ssub.s32 %s23, %s30
      %s147 = sor.u32 %s145, %s146
      %p148 = scmp.eq.s32.totalorder %s147, 0
      %s150 = sadd.s32 %s149, 1
      %s151 = scalar_select %p148, %s149, %s150
      %p154 = pneg %p148
      %p155 = scmp.eq.s32.totalorder %s15, 7
      %p156 = por %p154, %p155
      %p157 = scmp.ne.s32.totalorder %s149, %s152
      %p158 = scmp.eq.s32.totalorder %s15, 0
      %p159 = por %p157, %p158
      %p160 = scmp.ne.s32.totalorder %s149, %s152
      %p161 = scmp.eq.s32.totalorder %s20, 7
      %p162 = por %p160, %p161
      %p163 = scmp.ne.s32.totalorder %s152, %s153
      %p164 = scmp.eq.s32.totalorder %s20, 0
      %p165 = por %p163, %p164
      %p166 = scmp.ne.s32.totalorder %s152, %s153
      %p167 = scmp.eq.s32.totalorder %s21, 7
      %p168 = por %p166, %p167
      %p170 = scmp.ne.s32.totalorder %s153, %s169
      %p171 = scmp.eq.s32.totalorder %s21, 0
      %p172 = por %p170, %p171
      %s173 = ssub.s32 %s22, %s34
      %p174 = scmp.eq.s32.totalorder %s173, 0
      %s176 = sadd.s32 %s175, 1
      %s177 = scalar_select %p174, %s175, %s176
      %p180 = pneg %p174
      %p181 = scmp.eq.s32.totalorder %s15, 7
      %p182 = por %p180, %p181
      %p183 = scmp.ne.s32.totalorder %s175, %s178
      %p184 = scmp.eq.s32.totalorder %s15, 0
      %p185 = por %p183, %p184
      %p186 = scmp.ne.s32.totalorder %s175, %s178
      %p187 = scmp.eq.s32.totalorder %s20, 7
      %p188 = por %p186, %p187
      %p189 = scmp.ne.s32.totalorder %s178, %s179
      %p190 = scmp.eq.s32.totalorder %s20, 0
      %p191 = por %p189, %p190
      %p192 = scmp.ne.s32.totalorder %s178, %s179
      %p193 = scmp.eq.s32.totalorder %s21, 7
      %p194 = por %p192, %p193
      %p196 = scmp.ne.s32.totalorder %s179, %s195
      %p197 = scmp.eq.s32.totalorder %s21, 0
      %p198 = por %p196, %p197
      %s199 = ssub.s32 %s22, %s34
      %p200 = scmp.eq.s32.totalorder %s199, 0
      %s202 = sadd.s32 %s201, 1
      %s203 = scalar_select %p200, %s201, %s202
      %p206 = pneg %p200
      %p207 = scmp.eq.s32.totalorder %s15, 7
      %p208 = por %p206, %p207
      %p209 = scmp.ne.s32.totalorder %s201, %s204
      %p210 = scmp.eq.s32.totalorder %s15, 0
      %p211 = por %p209, %p210
      %p212 = scmp.ne.s32.totalorder %s201, %s204
      %p213 = scmp.eq.s32.totalorder %s20, 7
      %p214 = por %p212, %p213
      %p215 = scmp.ne.s32.totalorder %s204, %s205
      %p216 = scmp.eq.s32.totalorder %s20, 0
      %p217 = por %p215, %p216
      %p218 = scmp.ne.s32.totalorder %s204, %s205
      %p219 = scmp.eq.s32.totalorder %s21, 7
      %p220 = por %p218, %p219
      %p222 = scmp.ne.s32.totalorder %s205, %s221
      %p223 = scmp.eq.s32.totalorder %s21, 0
      %p224 = por %p222, %p223
      %p225 = scmp.le.s32.totalorder 1, %s15
      %p226 = scmp.lt.s32.totalorder %s15, 9
      %p227 = pnand %p225, %p226
      %p228 = pneg %p227
      // Predicated region
      $region9: #{conv_vencoder_forward.4} parent=5 // pred_check
        _
      $region10: #{conv_vencoder_forward.4} parent=5 // pred_check_branch
        %230 = sbr.rel (%p227) target = $region12
      $region11: #{conv_vencoder_forward.4} parent=5 // pred_region
        %s231 = ssub.s32 %s15, 1
        // Predicated region
        $region13: #{conv_vencoder_forward.4} parent=11 // pred_check
          %p232 = pneg %p74
        $region14: #{conv_vencoder_forward.4} parent=11 // pred_check_branch
          %234 = sbr.rel (%p232) target = $region16
        $region15: #{conv_vencoder_forward.4} parent=11 // pred_region
          _
        $region16: #{conv_vencoder_forward.4} parent=11 // pred_fallthru
          _
        // Predicated region
        $region17: #{conv_vencoder_forward.4} parent=11 // pred_check
          %p235 = pneg %p95
        $region18: #{conv_vencoder_forward.4} parent=11 // pred_check_branch
          %237 = sbr.rel (%p235) target = $region20
        $region19: #{conv_vencoder_forward.4} parent=11 // pred_region
          _
        $region20: #{conv_vencoder_forward.4} parent=11 // pred_fallthru
          _
        // Predicated region
        $region21: #{conv_vencoder_forward.4} parent=11 // pred_check
          %p238 = pneg %p116
        $region22: #{conv_vencoder_forward.4} parent=11 // pred_check_branch
          %240 = sbr.rel (%p238) target = $region24
        $region23: #{conv_vencoder_forward.4} parent=11 // pred_region
          _
        $region24: #{conv_vencoder_forward.4} parent=11 // pred_fallthru
          _
        // Predicated region
        $region25: #{conv_vencoder_forward.4} parent=11 // pred_check
          %p241 = pneg %p137
        $region26: #{conv_vencoder_forward.4} parent=11 // pred_check_branch
          %243 = sbr.rel (%p241) target = $region28
        $region27: #{conv_vencoder_forward.4} parent=11 // pred_region
          %s245 = ssub.s32 16, 16
          %246 = vsyncadd [#allocation4], %s245
          %s248 = sshll.u32 [#allocation3], 4
          %s249 = int_to_ptr.vmem [resolvable:$true] %s248
          %251 = dma.hbm_to_vmem [thread:$0]  %s4, 16, %s249, [#allocation4]
        $region28: #{conv_vencoder_forward.4} parent=11 // pred_fallthru
          _
      $region12: #{conv_vencoder_forward.4} parent=5 // pred_fallthru
        _
      %p252 = scmp.lt.s32.totalorder %s15, 8
      // Predicated region
      $region29: #{conv_vencoder_forward.4} parent=5 // pred_check
        %p253 = pneg %p252
      $region30: #{conv_vencoder_forward.4} parent=5 // pred_check_branch
        %255 = sbr.rel (%p253) target = $region32
      $region31: #{conv_vencoder_forward.4} parent=5 // pred_region
        // Predicated region
        $region33: #{conv_vencoder_forward.4} parent=31 // pred_check
          %p256 = pneg %p47
        $region34: #{conv_vencoder_forward.4} parent=31 // pred_check_branch
          %258 = sbr.rel (%p256) target = $region36
        $region35: #{conv_vencoder_forward.4} parent=31 // pred_region
          %p259 = scmp.lt.s32.totalorder %s22, 1
          %s260 = scalar_select %p259, %s22, 1
          %s261 = smul.addr %s260, 32
          %s262 = smul.addr %s261, 4
          %s263 = scalar_lea.vmem %s0, %s262
        $region36: #{conv_vencoder_forward.4} parent=31 // pred_fallthru
          _
      $region32: #{conv_vencoder_forward.4} parent=5 // pred_fallthru
        _
      %p264 = scmp.le.s32.totalorder 1, %s15
      %p265 = scmp.lt.s32.totalorder %s15, 9
      %p266 = pnand %p264, %p265
      %p267 = pneg %p266
      // Predicated region
      $region37: #{conv_vencoder_forward.4} parent=5 // pred_check
        _
      $region38: #{conv_vencoder_forward.4} parent=5 // pred_check_branch
        %269 = sbr.rel (%p266) target = $region40
      $region39: #{conv_vencoder_forward.4} parent=5 // pred_region
        %s270 = ssub.s32 %s15, 1
        // Predicated region
        $region41: #{conv_vencoder_forward.4} parent=39 // pred_check
          %p271 = pneg %p137
        $region42: #{conv_vencoder_forward.4} parent=39 // pred_check_branch
          %273 = sbr.rel (%p271) target = $region44
        $region43: #{conv_vencoder_forward.4} parent=39 // pred_region
          %274 = dma.done [#allocation4], 16
        $region44: #{conv_vencoder_forward.4} parent=39 // pred_fallthru
          _
        %p275 = scmp.lt.s32.totalorder %s24, 1
        %s276 = scalar_select %p275, %s24, 1
        %s277 = smul.addr %s276, 32
        %s278 = smul.addr %s277, 4
        %s279 = scalar_lea.vmem %s0, %s278
        %p280 = pneg %p53
        %p281 = pneg %p50
        %p282 = pneg %p74
        %p283 = pneg %p71
        %p284 = pneg %p95
        %p285 = pneg %p92
        %p286 = pneg %p116
        %p287 = pneg %p113
        %p288 = pneg %p137
        %p289 = pneg %p134
        %p290 = pneg %p165
        %p291 = pneg %p162
        %s292 = smul.u32 4, %s25
        %p293 = scmp.lt.s32.totalorder %s24, 1
        %s294 = scalar_select %p293, %s24, 1
        %p295 = scmp.lt.s32.totalorder %s292, 15
        %s296 = scalar_select %p295, %s292, 15
        %s297 = smul.addr %s296, 2
        %s298 = smul.addr %s294, 32
        %s299 = sadd.s32 %s297, %s298
        %s300 = smul.addr %s299, 4
        %s301 = scalar_lea.vmem %s5, %s300
        %p302 = pneg %p191
        %p303 = pneg %p188
        %p304 = scmp.lt.s32.totalorder %s24, 1
        %s305 = scalar_select %p304, %s24, 1
        %s306 = scalar_lea.vmem %s6, %s305
        %p307 = pneg %p217
        %p308 = pneg %p214
        %p309 = scmp.lt.s32.totalorder %s24, 1
        %s310 = scalar_select %p309, %s24, 1
        %s311 = scalar_lea.vmem %s7, %s310
        %p312 = scmp.lt.s32.totalorder %s24, 1
        %s313 = scalar_select %p312, %s24, 1
        %s314 = smul.addr %s313, 32
        %s315 = smul.addr %s314, 4
        %s316 = scalar_lea.vmem %s0, %s315
        %s317 = smul.u32 4, %s25
        %p318 = scmp.lt.s32.totalorder %s24, 1
        %s319 = scalar_select %p318, %s24, 1
        %p320 = scmp.lt.s32.totalorder %s317, 15
        %s321 = scalar_select %p320, %s317, 15
        %s322 = smul.addr %s321, 2
        %s323 = smul.addr %s319, 32
        %s324 = sadd.s32 %s322, %s323
        %s325 = smul.addr %s324, 4
        %s326 = scalar_lea.vmem %s5, %s325
        %s327 = smul.u32 4, %s25
        %p328 = scmp.lt.s32.totalorder %s24, 1
        %s329 = scalar_select %p328, %s24, 1
        %s330 = scalar_lea.vmem %s6, %s329
        %p331 = scmp.lt.s32.totalorder %s24, 1
        %s332 = scalar_select %p331, %s24, 1
        %s333 = scalar_lea.vmem %s7, %s332
        %p335 = scmp.eq.s32.totalorder %s25, 0
        // Predicated region
        $region45: #{conv_vencoder_forward.4} parent=39 // pred_check
          %p336 = pneg %p335
        $region46: #{conv_vencoder_forward.4} parent=39 // pred_check_branch
          %338 = sbr.rel (%p336) target = $region48
        $region47: #{conv_vencoder_forward.4} parent=39 // pred_region
          %v339 = vld [vmem:[%s316] sm:$0xf]
          %v340 = vld [vmem:[%s316 + $0x4] sm:$0xf]
          %v341 = vld [vmem:[%s316 + $0x8] sm:$0xf]
          %v342 = vld [vmem:[%s316 + $0xc] sm:$0xf]
          %v343 = vld [vmem:[%s316 + $0x10] sm:$0xf]
          %v344 = vld [vmem:[%s316 + $0x14] sm:$0xf]
          %v345 = vld [vmem:[%s316 + $0x18] sm:$0xf]
          %v346 = vld [vmem:[%s316 + $0x1c] sm:$0xf]
          %v347 = vld [vmem:[%s316 + $0x20] sm:$0xf]
          %v348 = vld [vmem:[%s316 + $0x24] sm:$0xf]
          %v349 = vld [vmem:[%s316 + $0x28] sm:$0xf]
          %v350 = vld [vmem:[%s316 + $0x2c] sm:$0xf]
          %v351 = vld [vmem:[%s316 + $0x30] sm:$0xf]
          %v352 = vld [vmem:[%s316 + $0x34] sm:$0xf]
          %v353 = vld [vmem:[%s316 + $0x38] sm:$0xf]
          %v354 = vld [vmem:[%s316 + $0x3c] sm:$0xf]
          %v355 = vld [vmem:[%s316 + $0x40] sm:$0xf]
          %v356 = vld [vmem:[%s316 + $0x44] sm:$0xf]
          %v357 = vld [vmem:[%s316 + $0x48] sm:$0xf]
          %v358 = vld [vmem:[%s316 + $0x4c] sm:$0xf]
          %v359 = vld [vmem:[%s316 + $0x50] sm:$0xf]
          %v360 = vld [vmem:[%s316 + $0x54] sm:$0xf]
          %v361 = vld [vmem:[%s316 + $0x58] sm:$0xf]
          %v362 = vld [vmem:[%s316 + $0x5c] sm:$0xf]
          %v363 = vld [vmem:[%s316 + $0x60] sm:$0xf]
          %v364 = vld [vmem:[%s316 + $0x64] sm:$0xf]
          %v365 = vld [vmem:[%s316 + $0x68] sm:$0xf]
          %v366 = vld [vmem:[%s316 + $0x6c] sm:$0xf]
          %v367 = vld [vmem:[%s316 + $0x70] sm:$0xf]
          %v368 = vld [vmem:[%s316 + $0x74] sm:$0xf]
          %v369 = vld [vmem:[%s316 + $0x78] sm:$0xf]
          %v370 = vld [vmem:[%s316 + $0x7c] sm:$0xf]
          %vm371 = vsmask.f32 256
          %vm372 = vsmask.f32 4368
          %vm373 = vmor %vm371, %vm372
          %v375 = vshrl.u32 %v339, 16
          %v377 = vrot.slane %v375, 7
          %v378 = vshll.u32 %v339, 16
          %v380 = vor.u32 %v377, %v378
          %v381 = vrot.slane %v377, 4
          %v383 = vshrl.u32 %v340, 16
          %v385 = vrot.slane %v383, 7
          %v386 = vshll.u32 %v340, 16
          %v388 = vor.u32 %v385, %v386
          %v389 = vsel %vm373, %v381, %v388
          %v390 = vrot.slane %v385, 4
          %v392 = vshrl.u32 %v341, 16
          %v394 = vrot.slane %v392, 7
          %v395 = vshll.u32 %v341, 16
          %v397 = vor.u32 %v394, %v395
          %v398 = vrot.slane %v394, 4
          %v400 = vshrl.u32 %v342, 16
          %v402 = vrot.slane %v400, 7
          %v403 = vshll.u32 %v342, 16
          %v405 = vor.u32 %v402, %v403
          %v406 = vsel %vm373, %v398, %v405
          %v407 = vrot.slane %v402, 4
          %v409 = vshrl.u32 %v343, 16
          %v411 = vrot.slane %v409, 7
          %v412 = vshll.u32 %v343, 16
          %v414 = vor.u32 %v411, %v412
          %v415 = vrot.slane %v411, 4
          %v417 = vshrl.u32 %v344, 16
          %v419 = vrot.slane %v417, 7
          %v420 = vshll.u32 %v344, 16
          %v422 = vor.u32 %v419, %v420
          %v423 = vsel %vm373, %v415, %v422
          %v424 = vrot.slane %v419, 4
          %v426 = vshrl.u32 %v345, 16
          %v428 = vrot.slane %v426, 7
          %v429 = vshll.u32 %v345, 16
          %v431 = vor.u32 %v428, %v429
          %v432 = vrot.slane %v428, 4
          %v434 = vshrl.u32 %v346, 16
          %v436 = vrot.slane %v434, 7
          %v437 = vshll.u32 %v346, 16
          %v439 = vor.u32 %v436, %v437
          %v440 = vsel %vm373, %v432, %v439
          %v441 = vrot.slane %v436, 4
          %v443 = vshrl.u32 %v347, 16
          %v445 = vrot.slane %v443, 7
          %v446 = vshll.u32 %v347, 16
          %v448 = vor.u32 %v445, %v446
          %v449 = vrot.slane %v445, 4
          %v451 = vshrl.u32 %v348, 16
          %v453 = vrot.slane %v451, 7
          %v454 = vshll.u32 %v348, 16
          %v456 = vor.u32 %v453, %v454
          %v457 = vsel %vm373, %v449, %v456
          %v458 = vrot.slane %v453, 4
          %v460 = vshrl.u32 %v349, 16
          %v462 = vrot.slane %v460, 7
          %v463 = vshll.u32 %v349, 16
          %v465 = vor.u32 %v462, %v463
          %v466 = vrot.slane %v462, 4
          %v468 = vshrl.u32 %v350, 16
          %v470 = vrot.slane %v468, 7
          %v471 = vshll.u32 %v350, 16
          %v473 = vor.u32 %v470, %v471
          %v474 = vsel %vm373, %v466, %v473
          %v475 = vrot.slane %v470, 4
          %v477 = vshrl.u32 %v351, 16
          %v479 = vrot.slane %v477, 7
          %v480 = vshll.u32 %v351, 16
          %v482 = vor.u32 %v479, %v480
          %v483 = vrot.slane %v479, 4
          %v485 = vshrl.u32 %v352, 16
          %v487 = vrot.slane %v485, 7
          %v488 = vshll.u32 %v352, 16
          %v490 = vor.u32 %v487, %v488
          %v491 = vsel %vm373, %v483, %v490
          %v492 = vrot.slane %v487, 4
          %v494 = vshrl.u32 %v353, 16
          %v496 = vrot.slane %v494, 7
          %v497 = vshll.u32 %v353, 16
          %v499 = vor.u32 %v496, %v497
          %v500 = vrot.slane %v496, 4
          %v502 = vshrl.u32 %v354, 16
          %v504 = vrot.slane %v502, 7
          %v505 = vshll.u32 %v354, 16
          %v507 = vor.u32 %v504, %v505
          %v508 = vsel %vm373, %v500, %v507
          %v509 = vrot.slane %v504, 4
          %v511 = vshrl.u32 %v355, 16
          %v513 = vrot.slane %v511, 7
          %v514 = vshll.u32 %v355, 16
          %v516 = vor.u32 %v513, %v514
          %v517 = vrot.slane %v513, 4
          %v519 = vshrl.u32 %v356, 16
          %v521 = vrot.slane %v519, 7
          %v522 = vshll.u32 %v356, 16
          %v524 = vor.u32 %v521, %v522
          %v525 = vsel %vm373, %v517, %v524
          %v526 = vrot.slane %v521, 4
          %v528 = vshrl.u32 %v357, 16
          %v530 = vrot.slane %v528, 7
          %v531 = vshll.u32 %v357, 16
          %v533 = vor.u32 %v530, %v531
          %v534 = vrot.slane %v530, 4
          %v536 = vshrl.u32 %v358, 16
          %v538 = vrot.slane %v536, 7
          %v539 = vshll.u32 %v358, 16
          %v541 = vor.u32 %v538, %v539
          %v542 = vsel %vm373, %v534, %v541
          %v543 = vrot.slane %v538, 4
          %v545 = vshrl.u32 %v359, 16
          %v547 = vrot.slane %v545, 7
          %v548 = vshll.u32 %v359, 16
          %v550 = vor.u32 %v547, %v548
          %v551 = vrot.slane %v547, 4
          %v553 = vshrl.u32 %v360, 16
          %v555 = vrot.slane %v553, 7
          %v556 = vshll.u32 %v360, 16
          %v558 = vor.u32 %v555, %v556
          %v559 = vsel %vm373, %v551, %v558
          %v560 = vrot.slane %v555, 4
          %v562 = vshrl.u32 %v361, 16
          %v564 = vrot.slane %v562, 7
          %v565 = vshll.u32 %v361, 16
          %v567 = vor.u32 %v564, %v565
          %v568 = vrot.slane %v564, 4
          %v570 = vshrl.u32 %v362, 16
          %v572 = vrot.slane %v570, 7
          %v573 = vshll.u32 %v362, 16
          %v575 = vor.u32 %v572, %v573
          %v576 = vsel %vm373, %v568, %v575
          %v577 = vrot.slane %v572, 4
          %v579 = vshrl.u32 %v363, 16
          %v581 = vrot.slane %v579, 7
          %v582 = vshll.u32 %v363, 16
          %v584 = vor.u32 %v581, %v582
          %v585 = vrot.slane %v581, 4
          %v587 = vshrl.u32 %v364, 16
          %v589 = vrot.slane %v587, 7
          %v590 = vshll.u32 %v364, 16
          %v592 = vor.u32 %v589, %v590
          %v593 = vsel %vm373, %v585, %v592
          %v594 = vrot.slane %v589, 4
          %v596 = vshrl.u32 %v365, 16
          %v598 = vrot.slane %v596, 7
          %v599 = vshll.u32 %v365, 16
          %v601 = vor.u32 %v598, %v599
          %v602 = vrot.slane %v598, 4
          %v604 = vshrl.u32 %v366, 16
          %v606 = vrot.slane %v604, 7
          %v607 = vshll.u32 %v366, 16
          %v609 = vor.u32 %v606, %v607
          %v610 = vsel %vm373, %v602, %v609
          %v611 = vrot.slane %v606, 4
          %v613 = vshrl.u32 %v367, 16
          %v615 = vrot.slane %v613, 7
          %v616 = vshll.u32 %v367, 16
          %v618 = vor.u32 %v615, %v616
          %v619 = vrot.slane %v615, 4
          %v621 = vshrl.u32 %v368, 16
          %v623 = vrot.slane %v621, 7
          %v624 = vshll.u32 %v368, 16
          %v626 = vor.u32 %v623, %v624
          %v627 = vsel %vm373, %v619, %v626
          %v628 = vrot.slane %v623, 4
          %v630 = vshrl.u32 %v369, 16
          %v632 = vrot.slane %v630, 7
          %v633 = vshll.u32 %v369, 16
          %v635 = vor.u32 %v632, %v633
          %v636 = vrot.slane %v632, 4
          %v638 = vshrl.u32 %v370, 16
          %v640 = vrot.slane %v638, 7
          %v641 = vshll.u32 %v370, 16
          %v643 = vor.u32 %v640, %v641
          %v644 = vsel %vm373, %v636, %v643
          %v645 = vrot.slane %v640, 4
          %s694 = scalar_lea.vmem [#allocation2], 12
          %vm695 = vcmask 19456
          %vm696 = vsmask.f32 7938
          %vm697 = vmand %vm695, %vm696
          %v698 = vld [vmem:[%s694] sm:$0xf]
          %v699 = vsel %vm697, %v380, %v698
          %700 = vst [vmem:[%s694] sm:$0xf] %v699
          %vm701 = vcmask 19456
          %702 = vst.msk [vmem:[%s694 + $0x4] sm:$0xf] %vm701, %v389
          %vm703 = vcmask 16384
          %vm704 = vmand %vm703, %vm371
          %v705 = vld [vmem:[%s694 + $0x8] sm:$0x1]
          %v706 = vsel %vm704, %v390, %v705
          %707 = vst [vmem:[%s694 + $0x8] sm:$0x1] %v706
          %v708 = vld [vmem:[%s694 + $0xc] sm:$0xf]
          %v709 = vsel %vm697, %v397, %v708
          %710 = vst [vmem:[%s694 + $0xc] sm:$0xf] %v709
          %711 = vst.msk [vmem:[%s694 + $0x10] sm:$0xf] %vm701, %v406
          %v712 = vld [vmem:[%s694 + $0x14] sm:$0x1]
          %v713 = vsel %vm704, %v407, %v712
          %714 = vst [vmem:[%s694 + $0x14] sm:$0x1] %v713
          %v715 = vld [vmem:[%s694 + $0x18] sm:$0xf]
          %v716 = vsel %vm697, %v414, %v715
          %717 = vst [vmem:[%s694 + $0x18] sm:$0xf] %v716
          %718 = vst.msk [vmem:[%s694 + $0x1c] sm:$0xf] %vm701, %v423
          %v719 = vld [vmem:[%s694 + $0x20] sm:$0x1]
          %v720 = vsel %vm704, %v424, %v719
          %721 = vst [vmem:[%s694 + $0x20] sm:$0x1] %v720
          %v722 = vld [vmem:[%s694 + $0x24] sm:$0xf]
          %v723 = vsel %vm697, %v431, %v722
          %724 = vst [vmem:[%s694 + $0x24] sm:$0xf] %v723
          %725 = vst.msk [vmem:[%s694 + $0x28] sm:$0xf] %vm701, %v440
          %v726 = vld [vmem:[%s694 + $0x2c] sm:$0x1]
          %v727 = vsel %vm704, %v441, %v726
          %728 = vst [vmem:[%s694 + $0x2c] sm:$0x1] %v727
          %v729 = vld [vmem:[%s694 + $0x30] sm:$0xf]
          %v730 = vsel %vm697, %v448, %v729
          %731 = vst [vmem:[%s694 + $0x30] sm:$0xf] %v730
          %732 = vst.msk [vmem:[%s694 + $0x34] sm:$0xf] %vm701, %v457
          %v733 = vld [vmem:[%s694 + $0x38] sm:$0x1]
          %v734 = vsel %vm704, %v458, %v733
          %735 = vst [vmem:[%s694 + $0x38] sm:$0x1] %v734
          %v736 = vld [vmem:[%s694 + $0x3c] sm:$0xf]
          %v737 = vsel %vm697, %v465, %v736
          %738 = vst [vmem:[%s694 + $0x3c] sm:$0xf] %v737
          %739 = vst.msk [vmem:[%s694 + $0x40] sm:$0xf] %vm701, %v474
          %v740 = vld [vmem:[%s694 + $0x44] sm:$0x1]
          %v741 = vsel %vm704, %v475, %v740
          %742 = vst [vmem:[%s694 + $0x44] sm:$0x1] %v741
          %v743 = vld [vmem:[%s694 + $0x48] sm:$0xf]
          %v744 = vsel %vm697, %v482, %v743
          %745 = vst [vmem:[%s694 + $0x48] sm:$0xf] %v744
          %746 = vst.msk [vmem:[%s694 + $0x4c] sm:$0xf] %vm701, %v491
          %v747 = vld [vmem:[%s694 + $0x50] sm:$0x1]
          %v748 = vsel %vm704, %v492, %v747
          %749 = vst [vmem:[%s694 + $0x50] sm:$0x1] %v748
          %v750 = vld [vmem:[%s694 + $0x54] sm:$0xf]
          %v751 = vsel %vm697, %v499, %v750
          %752 = vst [vmem:[%s694 + $0x54] sm:$0xf] %v751
          %753 = vst.msk [vmem:[%s694 + $0x58] sm:$0xf] %vm701, %v508
          %v754 = vld [vmem:[%s694 + $0x5c] sm:$0x1]
          %v755 = vsel %vm704, %v509, %v754
          %756 = vst [vmem:[%s694 + $0x5c] sm:$0x1] %v755
          %v757 = vld [vmem:[%s694 + $0x60] sm:$0xf]
          %v758 = vsel %vm697, %v516, %v757
          %759 = vst [vmem:[%s694 + $0x60] sm:$0xf] %v758
          %760 = vst.msk [vmem:[%s694 + $0x64] sm:$0xf] %vm701, %v525
          %v761 = vld [vmem:[%s694 + $0x68] sm:$0x1]
          %v762 = vsel %vm704, %v526, %v761
          %763 = vst [vmem:[%s694 + $0x68] sm:$0x1] %v762
          %v764 = vld [vmem:[%s694 + $0x6c] sm:$0xf]
          %v765 = vsel %vm697, %v533, %v764
          %766 = vst [vmem:[%s694 + $0x6c] sm:$0xf] %v765
          %767 = vst.msk [vmem:[%s694 + $0x70] sm:$0xf] %vm701, %v542
          %v768 = vld [vmem:[%s694 + $0x74] sm:$0x1]
          %v769 = vsel %vm704, %v543, %v768
          %770 = vst [vmem:[%s694 + $0x74] sm:$0x1] %v769
          %v771 = vld [vmem:[%s694 + $0x78] sm:$0xf]
          %v772 = vsel %vm697, %v550, %v771
          %773 = vst [vmem:[%s694 + $0x78] sm:$0xf] %v772
          %774 = vst.msk [vmem:[%s694 + $0x7c] sm:$0xf] %vm701, %v559
          %v775 = vld [vmem:[%s694 + $0x80] sm:$0x1]
          %v776 = vsel %vm704, %v560, %v775
          %777 = vst [vmem:[%s694 + $0x80] sm:$0x1] %v776
          %v778 = vld [vmem:[%s694 + $0x84] sm:$0xf]
          %v779 = vsel %vm697, %v567, %v778
          %780 = vst [vmem:[%s694 + $0x84] sm:$0xf] %v779
          %781 = vst.msk [vmem:[%s694 + $0x88] sm:$0xf] %vm701, %v576
          %v782 = vld [vmem:[%s694 + $0x8c] sm:$0x1]
          %v783 = vsel %vm704, %v577, %v782
          %784 = vst [vmem:[%s694 + $0x8c] sm:$0x1] %v783
          %v785 = vld [vmem:[%s694 + $0x90] sm:$0xf]
          %v786 = vsel %vm697, %v584, %v785
          %787 = vst [vmem:[%s694 + $0x90] sm:$0xf] %v786
          %788 = vst.msk [vmem:[%s694 + $0x94] sm:$0xf] %vm701, %v593
          %v789 = vld [vmem:[%s694 + $0x98] sm:$0x1]
          %v790 = vsel %vm704, %v594, %v789
          %791 = vst [vmem:[%s694 + $0x98] sm:$0x1] %v790
          %v792 = vld [vmem:[%s694 + $0x9c] sm:$0xf]
          %v793 = vsel %vm697, %v601, %v792
          %794 = vst [vmem:[%s694 + $0x9c] sm:$0xf] %v793
          %795 = vst.msk [vmem:[%s694 + $0xa0] sm:$0xf] %vm701, %v610
          %v796 = vld [vmem:[%s694 + $0xa4] sm:$0x1]
          %v797 = vsel %vm704, %v611, %v796
          %798 = vst [vmem:[%s694 + $0xa4] sm:$0x1] %v797
          %v799 = vld [vmem:[%s694 + $0xa8] sm:$0xf]
          %v800 = vsel %vm697, %v618, %v799
          %801 = vst [vmem:[%s694 + $0xa8] sm:$0xf] %v800
          %802 = vst.msk [vmem:[%s694 + $0xac] sm:$0xf] %vm701, %v627
          %v803 = vld [vmem:[%s694 + $0xb0] sm:$0x1]
          %v804 = vsel %vm704, %v628, %v803
          %805 = vst [vmem:[%s694 + $0xb0] sm:$0x1] %v804
          %v806 = vld [vmem:[%s694 + $0xb4] sm:$0xf]
          %v807 = vsel %vm697, %v635, %v806
          %808 = vst [vmem:[%s694 + $0xb4] sm:$0xf] %v807
          %809 = vst.msk [vmem:[%s694 + $0xb8] sm:$0xf] %vm701, %v644
          %v810 = vld [vmem:[%s694 + $0xbc] sm:$0x1]
          %v811 = vsel %vm704, %v645, %v810
          %812 = vst [vmem:[%s694 + $0xbc] sm:$0x1] %v811
          %813 = vst.msk [vmem:[#allocation2] sm:$0xf] %vm701, 0
          %814 = vst.msk [vmem:[#allocation2 + $0x4] sm:$0xf] %vm701, 0
          %815 = vst.msk [vmem:[#allocation2 + $0x8] sm:$0xf] %vm701, 0
          %s816 = scalar_lea.vmem [#allocation2], 204
          %817 = vst.msk [vmem:[%s816] sm:$0xf] %vm701, 0
          %818 = vst.msk [vmem:[%s816 + $0x4] sm:$0xf] %vm701, 0
          %819 = vst.msk [vmem:[%s816 + $0x8] sm:$0xf] %vm701, 0
          %v820 = vld [vmem:[%s694] sm:$0x1]
          %v821 = vsel %vm704, 0, %v820
          %822 = vst [vmem:[%s694] sm:$0x1] %v821
          %v823 = vld [vmem:[%s694 + $0xc] sm:$0x1]
          %v824 = vsel %vm704, 0, %v823
          %825 = vst [vmem:[%s694 + $0xc] sm:$0x1] %v824
          %v826 = vld [vmem:[%s694 + $0x18] sm:$0x1]
          %v827 = vsel %vm704, 0, %v826
          %828 = vst [vmem:[%s694 + $0x18] sm:$0x1] %v827
          %v829 = vld [vmem:[%s694 + $0x24] sm:$0x1]
          %v830 = vsel %vm704, 0, %v829
          %831 = vst [vmem:[%s694 + $0x24] sm:$0x1] %v830
          %v832 = vld [vmem:[%s694 + $0x30] sm:$0x1]
          %v833 = vsel %vm704, 0, %v832
          %834 = vst [vmem:[%s694 + $0x30] sm:$0x1] %v833
          %v835 = vld [vmem:[%s694 + $0x3c] sm:$0x1]
          %v836 = vsel %vm704, 0, %v835
          %837 = vst [vmem:[%s694 + $0x3c] sm:$0x1] %v836
          %v838 = vld [vmem:[%s694 + $0x48] sm:$0x1]
          %v839 = vsel %vm704, 0, %v838
          %840 = vst [vmem:[%s694 + $0x48] sm:$0x1] %v839
          %v841 = vld [vmem:[%s694 + $0x54] sm:$0x1]
          %v842 = vsel %vm704, 0, %v841
          %843 = vst [vmem:[%s694 + $0x54] sm:$0x1] %v842
          %v844 = vld [vmem:[%s694 + $0x60] sm:$0x1]
          %v845 = vsel %vm704, 0, %v844
          %846 = vst [vmem:[%s694 + $0x60] sm:$0x1] %v845
          %v847 = vld [vmem:[%s694 + $0x6c] sm:$0x1]
          %v848 = vsel %vm704, 0, %v847
          %849 = vst [vmem:[%s694 + $0x6c] sm:$0x1] %v848
          %v850 = vld [vmem:[%s694 + $0x78] sm:$0x1]
          %v851 = vsel %vm704, 0, %v850
          %852 = vst [vmem:[%s694 + $0x78] sm:$0x1] %v851
          %v853 = vld [vmem:[%s694 + $0x84] sm:$0x1]
          %v854 = vsel %vm704, 0, %v853
          %855 = vst [vmem:[%s694 + $0x84] sm:$0x1] %v854
          %v856 = vld [vmem:[%s694 + $0x90] sm:$0x1]
          %v857 = vsel %vm704, 0, %v856
          %858 = vst [vmem:[%s694 + $0x90] sm:$0x1] %v857
          %v859 = vld [vmem:[%s694 + $0x9c] sm:$0x1]
          %v860 = vsel %vm704, 0, %v859
          %861 = vst [vmem:[%s694 + $0x9c] sm:$0x1] %v860
          %v862 = vld [vmem:[%s694 + $0xa8] sm:$0x1]
          %v863 = vsel %vm704, 0, %v862
          %864 = vst [vmem:[%s694 + $0xa8] sm:$0x1] %v863
          %v865 = vld [vmem:[%s694 + $0xb4] sm:$0x1]
          %v866 = vsel %vm704, 0, %v865
          %867 = vst [vmem:[%s694 + $0xb4] sm:$0x1] %v866
          %vm868 = vmand %vm703, %vm696
          %v869 = vld [vmem:[%s694 + $0x8] sm:$0x1]
          %v870 = vsel %vm868, 0, %v869
          %871 = vst [vmem:[%s694 + $0x8] sm:$0x1] %v870
          %v872 = vld [vmem:[%s694 + $0x14] sm:$0x1]
          %v873 = vsel %vm868, 0, %v872
          %874 = vst [vmem:[%s694 + $0x14] sm:$0x1] %v873
          %v875 = vld [vmem:[%s694 + $0x20] sm:$0x1]
          %v876 = vsel %vm868, 0, %v875
          %877 = vst [vmem:[%s694 + $0x20] sm:$0x1] %v876
          %v878 = vld [vmem:[%s694 + $0x2c] sm:$0x1]
          %v879 = vsel %vm868, 0, %v878
          %880 = vst [vmem:[%s694 + $0x2c] sm:$0x1] %v879
          %v881 = vld [vmem:[%s694 + $0x38] sm:$0x1]
          %v882 = vsel %vm868, 0, %v881
          %883 = vst [vmem:[%s694 + $0x38] sm:$0x1] %v882
          %v884 = vld [vmem:[%s694 + $0x44] sm:$0x1]
          %v885 = vsel %vm868, 0, %v884
          %886 = vst [vmem:[%s694 + $0x44] sm:$0x1] %v885
          %v887 = vld [vmem:[%s694 + $0x50] sm:$0x1]
          %v888 = vsel %vm868, 0, %v887
          %889 = vst [vmem:[%s694 + $0x50] sm:$0x1] %v888
          %v890 = vld [vmem:[%s694 + $0x5c] sm:$0x1]
          %v891 = vsel %vm868, 0, %v890
          %892 = vst [vmem:[%s694 + $0x5c] sm:$0x1] %v891
          %v893 = vld [vmem:[%s694 + $0x68] sm:$0x1]
          %v894 = vsel %vm868, 0, %v893
          %895 = vst [vmem:[%s694 + $0x68] sm:$0x1] %v894
          %v896 = vld [vmem:[%s694 + $0x74] sm:$0x1]
          %v897 = vsel %vm868, 0, %v896
          %898 = vst [vmem:[%s694 + $0x74] sm:$0x1] %v897
          %v899 = vld [vmem:[%s694 + $0x80] sm:$0x1]
          %v900 = vsel %vm868, 0, %v899
          %901 = vst [vmem:[%s694 + $0x80] sm:$0x1] %v900
          %v902 = vld [vmem:[%s694 + $0x8c] sm:$0x1]
          %v903 = vsel %vm868, 0, %v902
          %904 = vst [vmem:[%s694 + $0x8c] sm:$0x1] %v903
          %v905 = vld [vmem:[%s694 + $0x98] sm:$0x1]
          %v906 = vsel %vm868, 0, %v905
          %907 = vst [vmem:[%s694 + $0x98] sm:$0x1] %v906
          %v908 = vld [vmem:[%s694 + $0xa4] sm:$0x1]
          %v909 = vsel %vm868, 0, %v908
          %910 = vst [vmem:[%s694 + $0xa4] sm:$0x1] %v909
          %v911 = vld [vmem:[%s694 + $0xb0] sm:$0x1]
          %v912 = vsel %vm868, 0, %v911
          %913 = vst [vmem:[%s694 + $0xb0] sm:$0x1] %v912
          %v914 = vld [vmem:[%s694 + $0xbc] sm:$0x1]
          %v915 = vsel %vm868, 0, %v914
          %916 = vst [vmem:[%s694 + $0xbc] sm:$0x1] %v915
        $region48: #{conv_vencoder_forward.4} parent=39 // pred_fallthru
          _
        %s917 = smul.u32 %s25, 4
        %s918 = smul.u32 %s917, 3
        %s919 = smul.addr %s918, 4
        %s920 = scalar_lea.vmem [#allocation2], %s919
        %v921 = vld [vmem:[%s920] sm:$0xf]
        %v922 = vld [vmem:[%s920 + $0x4] sm:$0xf]
        %v923 = vld [vmem:[%s920 + $0xc] sm:$0xf]
        %v924 = vld [vmem:[%s920 + $0x10] sm:$0xf]
        %v925 = vld [vmem:[%s920 + $0x18] sm:$0xf]
        %v926 = vld [vmem:[%s920 + $0x1c] sm:$0xf]
        %v927 = vld [vmem:[%s920 + $0x24] sm:$0xf]
        %v928 = vld [vmem:[%s920 + $0x28] sm:$0xf]
        %v929 = vld [vmem:[%s3] sm:$0x3]
        %v930 = vld [vmem:[%s920 + $0x8] sm:$0x1]
        %v931 = vld [vmem:[%s920 + $0x14] sm:$0x1]
        %v932 = vld [vmem:[%s920 + $0x20] sm:$0x1]
        %v933 = vld [vmem:[%s920 + $0x2c] sm:$0x1]
        %vm934 = vsmask.f32 3328
        %vm935 = vsmask.f32 7440
        %vm936 = vmor %vm934, %vm935
        %v938 = vshrl.u32 %v921, 16
        %v940 = vrot.slane %v938, 4
        %v941 = vshll.u32 %v921, 16
        %v943 = vrot.slane %v941, 5
        %v944 = vor.u32 %v940, %v943
        %v945 = vrot.slane %v944, 4
        %v947 = vshll.u32 %v922, 16
        %v949 = vrot.slane %v947, 5
        %v950 = vsel %vm936, %v945, %v949
        %v951 = vshrl.u32 %v922, 16
        %v953 = vrot.slane %v951, 4
        %v954 = vor.u32 %v953, %v949
        %v955 = vrot.slane %v954, 4
        %v957 = vshll.u32 %v930, 16
        %v959 = vrot.slane %v957, 5
        %v960 = vsel %vm936, %v955, %v959
        %v962 = vshrl.u32 %v923, 16
        %v964 = vrot.slane %v962, 4
        %v965 = vshll.u32 %v923, 16
        %v967 = vrot.slane %v965, 5
        %v968 = vor.u32 %v964, %v967
        %v969 = vrot.slane %v968, 4
        %v971 = vshll.u32 %v924, 16
        %v973 = vrot.slane %v971, 5
        %v974 = vsel %vm936, %v969, %v973
        %v975 = vshrl.u32 %v924, 16
        %v977 = vrot.slane %v975, 4
        %v978 = vor.u32 %v977, %v973
        %v979 = vrot.slane %v978, 4
        %v981 = vshll.u32 %v931, 16
        %v983 = vrot.slane %v981, 5
        %v984 = vsel %vm936, %v979, %v983
        %v986 = vshrl.u32 %v925, 16
        %v988 = vrot.slane %v986, 4
        %v989 = vshll.u32 %v925, 16
        %v991 = vrot.slane %v989, 5
        %v992 = vor.u32 %v988, %v991
        %v993 = vrot.slane %v992, 4
        %v995 = vshll.u32 %v926, 16
        %v997 = vrot.slane %v995, 5
        %v998 = vsel %vm936, %v993, %v997
        %v999 = vshrl.u32 %v926, 16
        %v1001 = vrot.slane %v999, 4
        %v1002 = vor.u32 %v1001, %v997
        %v1003 = vrot.slane %v1002, 4
        %v1005 = vshll.u32 %v932, 16
        %v1007 = vrot.slane %v1005, 5
        %v1008 = vsel %vm936, %v1003, %v1007
        %v1010 = vshrl.u32 %v927, 16
        %v1012 = vrot.slane %v1010, 4
        %v1013 = vshll.u32 %v927, 16
        %v1015 = vrot.slane %v1013, 5
        %v1016 = vor.u32 %v1012, %v1015
        %v1017 = vrot.slane %v1016, 4
        %v1019 = vshll.u32 %v928, 16
        %v1021 = vrot.slane %v1019, 5
        %v1022 = vsel %vm936, %v1017, %v1021
        %v1023 = vshrl.u32 %v928, 16
        %v1025 = vrot.slane %v1023, 4
        %v1026 = vor.u32 %v1025, %v1021
        %v1027 = vrot.slane %v1026, 4
        %v1029 = vshll.u32 %v933, 16
        %v1031 = vrot.slane %v1029, 5
        %v1032 = vsel %vm936, %v1027, %v1031
        %s1033 = scalar_lea.vmem %s3, 2
        %v1034 = vld [vmem:[%s1033] sm:$0x3]
        %v1035 = vunpack.c.l.b16 %v950
        %v1036 = vunpack.c.l.b16 %v960
        %v1037 = vunpack.c.l.b16 %v974
        %v1038 = vunpack.c.l.b16 %v984
        %v1039 = vunpack.c.l.b16 %v998
        %v1040 = vunpack.c.l.b16 %v1008
        %v1041 = vunpack.c.l.b16 %v1022
        %v1042 = vunpack.c.l.b16 %v1032
        %v1043 = vpack.c.b16 %v1036, %v1035
        %v1044 = vpack.c.b16 %v1038, %v1037
        %v1045 = vpack.c.b16 %v1040, %v1039
        %v1046 = vpack.c.b16 %v1042, %v1041
        %vm1047 = vcmask 23552
        %v1049 = vsel %vm1047, %v1043, 0
        %v1052 = vsel %vm1047, %v1044, 0
        %v1055 = vsel %vm1047, %v1045, 0
        %v1058 = vsel %vm1047, %v1046, 0
        %vm1060 = vcmask 1040384
        %vm1061 = vcmask 1041408
        %v1062 = vsel %vm1060, 4294967295, 65535
        %v1063 = vsel %vm1061, %v1062, 0
        %v1065 = vand.u32 %v1034, %v1063
        %1067 = vmatprep.subr.bf16.mxu0 0
        %1068 = vmatpush1.bf16.msra.mxu0 0
        %1069 = vmatprep.subr.bf16.mxu0 0
        %1070 = vmatpush1.bf16.msra.mxu0 0
        %1071 = vmatprep.subr.bf16.mxu0 0
        %1072 = vmatpush1.bf16.msra.mxu0 0
        %1073 = vmatprep.subr.bf16.mxu0 0
        %1074 = vmatpush1.bf16.msra.mxu0 0
        %1075 = vmatprep.subr.bf16.mxu0 0
        %1076 = vmatpush1.bf16.msra.mxu0 0
        %1077 = vmatprep.subr.bf16.mxu0 0
        %1078 = vmatpush1.bf16.msra.mxu0 0
        %1079 = vmatprep.subr.bf16.mxu0 0
        %1080 = vmatpush1.bf16.msra.mxu0 0
        %1081 = vmatprep.subr.bf16.mxu0 0
        %1082 = vmatpush1.bf16.msra.mxu0 %v1065
        %1083 = vmatprep.subr.bf16.mxu0 0
        %1084 = vmatpush2.bf16.msra.mxu0 0
        %1085 = vmatprep.subr.bf16.mxu0 0
        %1086 = vmatpush2.bf16.msra.mxu0 0
        %1087 = vmatprep.subr.bf16.mxu0 0
        %1088 = vmatpush2.bf16.msra.mxu0 0
        %1089 = vmatprep.subr.bf16.mxu0 0
        %1090 = vmatpush2.bf16.msra.mxu0 0
        %1091 = vmatprep.subr.bf16.mxu0 0
        %1092 = vmatpush2.bf16.msra.mxu0 0
        %1093 = vmatprep.subr.bf16.mxu0 0
        %1094 = vmatpush2.bf16.msra.mxu0 0
        %1095 = vmatprep.subr.bf16.mxu0 0
        %1096 = vmatpush2.bf16.msra.mxu0 0
        %1097 = vmatprep.subr.bf16.mxu0 0
        %1098 = vmatpush2.bf16.msra.mxu0 0
        %1099 = vmatprep.mubr.bf16.mxu0 0
        %1100 = vmatmul.mubr.bf16.gmra.mxu0 %v1049
        %v1101 = vpop.f32.mrf.mxu0
        %v1102 = vadd.f32 0.0, %v1101
        %v1103 = vpop.f32.mrf.mxu0
        %v1104 = vpop.f32.mrf.mxu0
        %v1105 = vadd.f32 0.0, %v1104
        %v1106 = vpop.f32.mrf.mxu0
        %1107 = vmatprep.mubr.bf16.mxu0 0
        %1108 = vmatmul.mubr.bf16.gmra.mxu0 %v1052
        %v1109 = vpop.f32.mrf.mxu0
        %v1110 = vadd.f32 0.0, %v1109
        %v1111 = vpop.f32.mrf.mxu0
        %v1112 = vpop.f32.mrf.mxu0
        %v1113 = vadd.f32 0.0, %v1112
        %v1114 = vpop.f32.mrf.mxu0
        %1115 = vmatprep.mubr.bf16.mxu0 0
        %1116 = vmatmul.mubr.bf16.gmra.mxu0 %v1055
        %v1117 = vpop.f32.mrf.mxu0
        %v1118 = vadd.f32 0.0, %v1117
        %v1119 = vpop.f32.mrf.mxu0
        %v1120 = vpop.f32.mrf.mxu0
        %v1121 = vadd.f32 0.0, %v1120
        %v1122 = vpop.f32.mrf.mxu0
        %1123 = vmatprep.mubr.bf16.mxu0 0
        %1124 = vmatmul.mubr.bf16.gmra.mxu0 %v1058
        %v1125 = vpop.f32.mrf.mxu0
        %v1126 = vadd.f32 0.0, %v1125
        %v1127 = vpop.f32.mrf.mxu0
        %v1128 = vpop.f32.mrf.mxu0
        %v1129 = vadd.f32 0.0, %v1128
        %v1130 = vpop.f32.mrf.mxu0
        %1131 = vdwg.mxu0
        %v1140 = vunpack.c.l.b16 %v921
        %v1141 = vunpack.c.l.b16 %v922
        %v1142 = vunpack.c.l.b16 %v923
        %v1143 = vunpack.c.l.b16 %v924
        %v1144 = vunpack.c.l.b16 %v925
        %v1145 = vunpack.c.l.b16 %v926
        %v1146 = vunpack.c.l.b16 %v927
        %v1147 = vunpack.c.l.b16 %v928
        %v1148 = vpack.c.b16 %v1141, %v1140
        %v1149 = vpack.c.b16 %v1143, %v1142
        %v1150 = vpack.c.b16 %v1145, %v1144
        %v1151 = vpack.c.b16 %v1147, %v1146
        %v1153 = vsel %vm1047, %v1148, 0
        %v1156 = vsel %vm1047, %v1149, 0
        %v1159 = vsel %vm1047, %v1150, 0
        %v1162 = vsel %vm1047, %v1151, 0
        %v1165 = vand.u32 %v929, %v1063
        %1167 = vmatprep.subr.bf16.mxu0 0
        %1168 = vmatpush1.bf16.msra.mxu0 0
        %1169 = vmatprep.subr.bf16.mxu0 0
        %1170 = vmatpush1.bf16.msra.mxu0 0
        %1171 = vmatprep.subr.bf16.mxu0 0
        %1172 = vmatpush1.bf16.msra.mxu0 0
        %1173 = vmatprep.subr.bf16.mxu0 0
        %1174 = vmatpush1.bf16.msra.mxu0 0
        %1175 = vmatprep.subr.bf16.mxu0 0
        %1176 = vmatpush1.bf16.msra.mxu0 0
        %1177 = vmatprep.subr.bf16.mxu0 0
        %1178 = vmatpush1.bf16.msra.mxu0 0
        %1179 = vmatprep.subr.bf16.mxu0 0
        %1180 = vmatpush1.bf16.msra.mxu0 0
        %1181 = vmatprep.subr.bf16.mxu0 0
        %1182 = vmatpush1.bf16.msra.mxu0 %v1165
        %1183 = vmatprep.subr.bf16.mxu0 0
        %1184 = vmatpush2.bf16.msra.mxu0 0
        %1185 = vmatprep.subr.bf16.mxu0 0
        %1186 = vmatpush2.bf16.msra.mxu0 0
        %1187 = vmatprep.subr.bf16.mxu0 0
        %1188 = vmatpush2.bf16.msra.mxu0 0
        %1189 = vmatprep.subr.bf16.mxu0 0
        %1190 = vmatpush2.bf16.msra.mxu0 0
        %1191 = vmatprep.subr.bf16.mxu0 0
        %1192 = vmatpush2.bf16.msra.mxu0 0
        %1193 = vmatprep.subr.bf16.mxu0 0
        %1194 = vmatpush2.bf16.msra.mxu0 0
        %1195 = vmatprep.subr.bf16.mxu0 0
        %1196 = vmatpush2.bf16.msra.mxu0 0
        %1197 = vmatprep.subr.bf16.mxu0 0
        %1198 = vmatpush2.bf16.msra.mxu0 0
        %1199 = vmatprep.mubr.bf16.mxu0 0
        %1200 = vmatmul.mubr.bf16.gmra.mxu0 %v1153
        %v1201 = vpop.f32.mrf.mxu0
        %v1202 = vadd.f32 %v1102, %v1201
        %v1203 = vpop.f32.mrf.mxu0
        %v1204 = vpop.f32.mrf.mxu0
        %v1205 = vadd.f32 %v1105, %v1204
        %v1206 = vpop.f32.mrf.mxu0
        %1207 = vmatprep.mubr.bf16.mxu0 0
        %1208 = vmatmul.mubr.bf16.gmra.mxu0 %v1156
        %v1209 = vpop.f32.mrf.mxu0
        %v1210 = vadd.f32 %v1110, %v1209
        %v1211 = vpop.f32.mrf.mxu0
        %v1212 = vpop.f32.mrf.mxu0
        %v1213 = vadd.f32 %v1113, %v1212
        %v1214 = vpop.f32.mrf.mxu0
        %1215 = vmatprep.mubr.bf16.mxu0 0
        %1216 = vmatmul.mubr.bf16.gmra.mxu0 %v1159
        %v1217 = vpop.f32.mrf.mxu0
        %v1218 = vadd.f32 %v1118, %v1217
        %v1219 = vpop.f32.mrf.mxu0
        %v1220 = vpop.f32.mrf.mxu0
        %v1221 = vadd.f32 %v1121, %v1220
        %v1222 = vpop.f32.mrf.mxu0
        %1223 = vmatprep.mubr.bf16.mxu0 0
        %1224 = vmatmul.mubr.bf16.gmra.mxu0 %v1162
        %v1225 = vpop.f32.mrf.mxu0
        %v1226 = vadd.f32 %v1126, %v1225
        %v1227 = vpop.f32.mrf.mxu0
        %v1228 = vpop.f32.mrf.mxu0
        %v1229 = vadd.f32 %v1129, %v1228
        %v1230 = vpop.f32.mrf.mxu0
        %1231 = vdwg.mxu0
        %v1232 = vld [vmem:[%s920] sm:$0xe]
        %v1233 = vld [vmem:[%s920 + $0xc] sm:$0xe]
        %v1234 = vld [vmem:[%s920 + $0x18] sm:$0xe]
        %v1235 = vld [vmem:[%s920 + $0x24] sm:$0xe]
        %vm1244 = vcmask 1042432
        %vm1245 = vcmask 1046532
        %vm1246 = vmor %vm1244, %vm1245
        %v1247 = vrot.slane %v1232, 5
        %v1248 = vrot.slane %v1247, 4
        %v1249 = vrot.slane %v922, 5
        %v1250 = vsel %vm1246, %v1248, %v1249
        %v1251 = vrot.slane %v1249, 4
        %v1252 = vrot.slane %v930, 5
        %v1253 = vsel %vm1246, %v1251, %v1252
        %v1254 = vrot.slane %v1233, 5
        %v1255 = vrot.slane %v1254, 4
        %v1256 = vrot.slane %v924, 5
        %v1257 = vsel %vm1246, %v1255, %v1256
        %v1258 = vrot.slane %v1256, 4
        %v1259 = vrot.slane %v931, 5
        %v1260 = vsel %vm1246, %v1258, %v1259
        %v1261 = vrot.slane %v1234, 5
        %v1262 = vrot.slane %v1261, 4
        %v1263 = vrot.slane %v926, 5
        %v1264 = vsel %vm1246, %v1262, %v1263
        %v1265 = vrot.slane %v1263, 4
        %v1266 = vrot.slane %v932, 5
        %v1267 = vsel %vm1246, %v1265, %v1266
        %v1268 = vrot.slane %v1235, 5
        %v1269 = vrot.slane %v1268, 4
        %v1270 = vrot.slane %v928, 5
        %v1271 = vsel %vm1246, %v1269, %v1270
        %v1272 = vrot.slane %v1270, 4
        %v1273 = vrot.slane %v933, 5
        %v1274 = vsel %vm1246, %v1272, %v1273
        %s1275 = scalar_lea.vmem %s3, 4
        %v1276 = vld [vmem:[%s1275] sm:$0x3]
        %v1277 = vunpack.c.l.b16 %v1250
        %v1278 = vunpack.c.l.b16 %v1253
        %v1279 = vunpack.c.l.b16 %v1257
        %v1280 = vunpack.c.l.b16 %v1260
        %v1281 = vunpack.c.l.b16 %v1264
        %v1282 = vunpack.c.l.b16 %v1267
        %v1283 = vunpack.c.l.b16 %v1271
        %v1284 = vunpack.c.l.b16 %v1274
        %v1285 = vpack.c.b16 %v1278, %v1277
        %v1286 = vpack.c.b16 %v1280, %v1279
        %v1287 = vpack.c.b16 %v1282, %v1281
        %v1288 = vpack.c.b16 %v1284, %v1283
        %v1290 = vsel %vm1047, %v1285, 0
        %v1293 = vsel %vm1047, %v1286, 0
        %v1296 = vsel %vm1047, %v1287, 0
        %v1299 = vsel %vm1047, %v1288, 0
        %v1302 = vand.u32 %v1276, %v1063
        %1304 = vmatprep.subr.bf16.mxu0 0
        %1305 = vmatpush1.bf16.msra.mxu0 0
        %1306 = vmatprep.subr.bf16.mxu0 0
        %1307 = vmatpush1.bf16.msra.mxu0 0
        %1308 = vmatprep.subr.bf16.mxu0 0
        %1309 = vmatpush1.bf16.msra.mxu0 0
        %1310 = vmatprep.subr.bf16.mxu0 0
        %1311 = vmatpush1.bf16.msra.mxu0 0
        %1312 = vmatprep.subr.bf16.mxu0 0
        %1313 = vmatpush1.bf16.msra.mxu0 0
        %1314 = vmatprep.subr.bf16.mxu0 0
        %1315 = vmatpush1.bf16.msra.mxu0 0
        %1316 = vmatprep.subr.bf16.mxu0 0
        %1317 = vmatpush1.bf16.msra.mxu0 0
        %1318 = vmatprep.subr.bf16.mxu0 0
        %1319 = vmatpush1.bf16.msra.mxu0 %v1302
        %1320 = vmatprep.subr.bf16.mxu0 0
        %1321 = vmatpush2.bf16.msra.mxu0 0
        %1322 = vmatprep.subr.bf16.mxu0 0
        %1323 = vmatpush2.bf16.msra.mxu0 0
        %1324 = vmatprep.subr.bf16.mxu0 0
        %1325 = vmatpush2.bf16.msra.mxu0 0
        %1326 = vmatprep.subr.bf16.mxu0 0
        %1327 = vmatpush2.bf16.msra.mxu0 0
        %1328 = vmatprep.subr.bf16.mxu0 0
        %1329 = vmatpush2.bf16.msra.mxu0 0
        %1330 = vmatprep.subr.bf16.mxu0 0
        %1331 = vmatpush2.bf16.msra.mxu0 0
        %1332 = vmatprep.subr.bf16.mxu0 0
        %1333 = vmatpush2.bf16.msra.mxu0 0
        %1334 = vmatprep.subr.bf16.mxu0 0
        %1335 = vmatpush2.bf16.msra.mxu0 0
        %1336 = vmatprep.mubr.bf16.mxu0 0
        %1337 = vmatmul.mubr.bf16.gmra.mxu0 %v1290
        %v1338 = vpop.f32.mrf.mxu0
        %v1339 = vadd.f32 0.0, %v1338
        %v1340 = vpop.f32.mrf.mxu0
        %v1341 = vpop.f32.mrf.mxu0
        %v1342 = vadd.f32 0.0, %v1341
        %v1343 = vpop.f32.mrf.mxu0
        %1344 = vmatprep.mubr.bf16.mxu0 0
        %1345 = vmatmul.mubr.bf16.gmra.mxu0 %v1293
        %v1346 = vpop.f32.mrf.mxu0
        %v1347 = vadd.f32 0.0, %v1346
        %v1348 = vpop.f32.mrf.mxu0
        %v1349 = vpop.f32.mrf.mxu0
        %v1350 = vadd.f32 0.0, %v1349
        %v1351 = vpop.f32.mrf.mxu0
        %1352 = vmatprep.mubr.bf16.mxu0 0
        %1353 = vmatmul.mubr.bf16.gmra.mxu0 %v1296
        %v1354 = vpop.f32.mrf.mxu0
        %v1355 = vadd.f32 0.0, %v1354
        %v1356 = vpop.f32.mrf.mxu0
        %v1357 = vpop.f32.mrf.mxu0
        %v1358 = vadd.f32 0.0, %v1357
        %v1359 = vpop.f32.mrf.mxu0
        %1360 = vmatprep.mubr.bf16.mxu0 0
        %1361 = vmatmul.mubr.bf16.gmra.mxu0 %v1299
        %v1362 = vpop.f32.mrf.mxu0
        %v1363 = vadd.f32 0.0, %v1362
        %v1364 = vpop.f32.mrf.mxu0
        %v1365 = vpop.f32.mrf.mxu0
        %v1366 = vadd.f32 0.0, %v1365
        %v1367 = vpop.f32.mrf.mxu0
        %1368 = vdwg.mxu0
        %v1369 = vadd.f32 %v1202, %v1339
        %v1370 = vadd.f32 %v1205, %v1342
        %v1371 = vadd.f32 %v1210, %v1347
        %v1372 = vadd.f32 %v1213, %v1350
        %v1373 = vadd.f32 %v1218, %v1355
        %v1374 = vadd.f32 %v1221, %v1358
        %v1375 = vadd.f32 %v1226, %v1363
        %v1376 = vadd.f32 %v1229, %v1366
        %s1377 = sadd.s32 %s917, 1
        %s1378 = smul.u32 %s1377, 3
        %s1379 = smul.addr %s1378, 4
        %s1380 = scalar_lea.vmem [#allocation2], %s1379
        %v1381 = vld [vmem:[%s1380] sm:$0xf]
        %v1382 = vld [vmem:[%s1380 + $0x4] sm:$0xf]
        %v1383 = vld [vmem:[%s1380 + $0xc] sm:$0xf]
        %v1384 = vld [vmem:[%s1380 + $0x10] sm:$0xf]
        %v1385 = vld [vmem:[%s1380 + $0x18] sm:$0xf]
        %v1386 = vld [vmem:[%s1380 + $0x1c] sm:$0xf]
        %v1387 = vld [vmem:[%s1380 + $0x24] sm:$0xf]
        %v1388 = vld [vmem:[%s1380 + $0x28] sm:$0xf]
        %s1389 = scalar_lea.vmem %s3, 6
        %v1390 = vld [vmem:[%s1389] sm:$0x3]
        %v1399 = vunpack.c.l.b16 %v1381
        %v1400 = vunpack.c.l.b16 %v1382
        %v1401 = vunpack.c.l.b16 %v1383
        %v1402 = vunpack.c.l.b16 %v1384
        %v1403 = vunpack.c.l.b16 %v1385
        %v1404 = vunpack.c.l.b16 %v1386
        %v1405 = vunpack.c.l.b16 %v1387
        %v1406 = vunpack.c.l.b16 %v1388
        %v1407 = vpack.c.b16 %v1400, %v1399
        %v1408 = vpack.c.b16 %v1402, %v1401
        %v1409 = vpack.c.b16 %v1404, %v1403
        %v1410 = vpack.c.b16 %v1406, %v1405
        %v1412 = vsel %vm1047, %v1407, 0
        %v1415 = vsel %vm1047, %v1408, 0
        %v1418 = vsel %vm1047, %v1409, 0
        %v1421 = vsel %vm1047, %v1410, 0
        %v1424 = vand.u32 %v1390, %v1063
        %1426 = vmatprep.subr.bf16.mxu0 0
        %1427 = vmatpush1.bf16.msra.mxu0 0
        %1428 = vmatprep.subr.bf16.mxu0 0
        %1429 = vmatpush1.bf16.msra.mxu0 0
        %1430 = vmatprep.subr.bf16.mxu0 0
        %1431 = vmatpush1.bf16.msra.mxu0 0
        %1432 = vmatprep.subr.bf16.mxu0 0
        %1433 = vmatpush1.bf16.msra.mxu0 0
        %1434 = vmatprep.subr.bf16.mxu0 0
        %1435 = vmatpush1.bf16.msra.mxu0 0
        %1436 = vmatprep.subr.bf16.mxu0 0
        %1437 = vmatpush1.bf16.msra.mxu0 0
        %1438 = vmatprep.subr.bf16.mxu0 0
        %1439 = vmatpush1.bf16.msra.mxu0 0
        %1440 = vmatprep.subr.bf16.mxu0 0
        %1441 = vmatpush1.bf16.msra.mxu0 %v1424
        %1442 = vmatprep.subr.bf16.mxu0 0
        %1443 = vmatpush2.bf16.msra.mxu0 0
        %1444 = vmatprep.subr.bf16.mxu0 0
        %1445 = vmatpush2.bf16.msra.mxu0 0
        %1446 = vmatprep.subr.bf16.mxu0 0
        %1447 = vmatpush2.bf16.msra.mxu0 0
        %1448 = vmatprep.subr.bf16.mxu0 0
        %1449 = vmatpush2.bf16.msra.mxu0 0
        %1450 = vmatprep.subr.bf16.mxu0 0
        %1451 = vmatpush2.bf16.msra.mxu0 0
        %1452 = vmatprep.subr.bf16.mxu0 0
        %1453 = vmatpush2.bf16.msra.mxu0 0
        %1454 = vmatprep.subr.bf16.mxu0 0
        %1455 = vmatpush2.bf16.msra.mxu0 0
        %1456 = vmatprep.subr.bf16.mxu0 0
        %1457 = vmatpush2.bf16.msra.mxu0 0
        %1458 = vmatprep.mubr.bf16.mxu0 0
        %1459 = vmatmul.mubr.bf16.gmra.mxu0 %v1412
        %v1460 = vpop.f32.mrf.mxu0
        %v1461 = vadd.f32 0.0, %v1460
        %v1462 = vpop.f32.mrf.mxu0
        %v1463 = vpop.f32.mrf.mxu0
        %v1464 = vadd.f32 0.0, %v1463
        %v1465 = vpop.f32.mrf.mxu0
        %1466 = vmatprep.mubr.bf16.mxu0 0
        %1467 = vmatmul.mubr.bf16.gmra.mxu0 %v1415
        %v1468 = vpop.f32.mrf.mxu0
        %v1469 = vadd.f32 0.0, %v1468
        %v1470 = vpop.f32.mrf.mxu0
        %v1471 = vpop.f32.mrf.mxu0
        %v1472 = vadd.f32 0.0, %v1471
        %v1473 = vpop.f32.mrf.mxu0
        %1474 = vmatprep.mubr.bf16.mxu0 0
        %1475 = vmatmul.mubr.bf16.gmra.mxu0 %v1418
        %v1476 = vpop.f32.mrf.mxu0
        %v1477 = vadd.f32 0.0, %v1476
        %v1478 = vpop.f32.mrf.mxu0
        %v1479 = vpop.f32.mrf.mxu0
        %v1480 = vadd.f32 0.0, %v1479
        %v1481 = vpop.f32.mrf.mxu0
        %1482 = vmatprep.mubr.bf16.mxu0 0
        %1483 = vmatmul.mubr.bf16.gmra.mxu0 %v1421
        %v1484 = vpop.f32.mrf.mxu0
        %v1485 = vadd.f32 0.0, %v1484
        %v1486 = vpop.f32.mrf.mxu0
        %v1487 = vpop.f32.mrf.mxu0
        %v1488 = vadd.f32 0.0, %v1487
        %v1489 = vpop.f32.mrf.mxu0
        %1490 = vdwg.mxu0
        %v1491 = vadd.f32 %v1369, %v1461
        %v1492 = vadd.f32 %v1370, %v1464
        %v1493 = vadd.f32 %v1371, %v1469
        %v1494 = vadd.f32 %v1372, %v1472
        %v1495 = vadd.f32 %v1373, %v1477
        %v1496 = vadd.f32 %v1374, %v1480
        %v1497 = vadd.f32 %v1375, %v1485
        %v1498 = vadd.f32 %v1376, %v1488
        %v1499 = vld [vmem:[%s1380] sm:$0xf]
        %v1500 = vld [vmem:[%s1380 + $0x4] sm:$0xf]
        %v1501 = vld [vmem:[%s1380 + $0x8] sm:$0x1]
        %v1502 = vld [vmem:[%s1380 + $0xc] sm:$0xf]
        %v1503 = vld [vmem:[%s1380 + $0x10] sm:$0xf]
        %v1504 = vld [vmem:[%s1380 + $0x14] sm:$0x1]
        %v1505 = vld [vmem:[%s1380 + $0x18] sm:$0xf]
        %v1506 = vld [vmem:[%s1380 + $0x1c] sm:$0xf]
        %v1507 = vld [vmem:[%s1380 + $0x20] sm:$0x1]
        %v1508 = vld [vmem:[%s1380 + $0x24] sm:$0xf]
        %v1509 = vld [vmem:[%s1380 + $0x28] sm:$0xf]
        %v1510 = vld [vmem:[%s1380 + $0x2c] sm:$0x1]
        %v1512 = vshrl.u32 %v1499, 16
        %v1514 = vrot.slane %v1512, 4
        %v1515 = vshll.u32 %v1499, 16
        %v1517 = vrot.slane %v1515, 5
        %v1518 = vor.u32 %v1514, %v1517
        %v1519 = vrot.slane %v1518, 4
        %v1521 = vshll.u32 %v1500, 16
        %v1523 = vrot.slane %v1521, 5
        %v1524 = vsel %vm936, %v1519, %v1523
        %v1525 = vshrl.u32 %v1500, 16
        %v1527 = vrot.slane %v1525, 4
        %v1528 = vor.u32 %v1527, %v1523
        %v1529 = vrot.slane %v1528, 4
        %v1531 = vshll.u32 %v1501, 16
        %v1533 = vrot.slane %v1531, 5
        %v1534 = vsel %vm936, %v1529, %v1533
        %v1536 = vshrl.u32 %v1502, 16
        %v1538 = vrot.slane %v1536, 4
        %v1539 = vshll.u32 %v1502, 16
        %v1541 = vrot.slane %v1539, 5
        %v1542 = vor.u32 %v1538, %v1541
        %v1543 = vrot.slane %v1542, 4
        %v1545 = vshll.u32 %v1503, 16
        %v1547 = vrot.slane %v1545, 5
        %v1548 = vsel %vm936, %v1543, %v1547
        %v1549 = vshrl.u32 %v1503, 16
        %v1551 = vrot.slane %v1549, 4
        %v1552 = vor.u32 %v1551, %v1547
        %v1553 = vrot.slane %v1552, 4
        %v1555 = vshll.u32 %v1504, 16
        %v1557 = vrot.slane %v1555, 5
        %v1558 = vsel %vm936, %v1553, %v1557
        %v1560 = vshrl.u32 %v1505, 16
        %v1562 = vrot.slane %v1560, 4
        %v1563 = vshll.u32 %v1505, 16
        %v1565 = vrot.slane %v1563, 5
        %v1566 = vor.u32 %v1562, %v1565
        %v1567 = vrot.slane %v1566, 4
        %v1569 = vshll.u32 %v1506, 16
        %v1571 = vrot.slane %v1569, 5
        %v1572 = vsel %vm936, %v1567, %v1571
        %v1573 = vshrl.u32 %v1506, 16
        %v1575 = vrot.slane %v1573, 4
        %v1576 = vor.u32 %v1575, %v1571
        %v1577 = vrot.slane %v1576, 4
        %v1579 = vshll.u32 %v1507, 16
        %v1581 = vrot.slane %v1579, 5
        %v1582 = vsel %vm936, %v1577, %v1581
        %v1584 = vshrl.u32 %v1508, 16
        %v1586 = vrot.slane %v1584, 4
        %v1587 = vshll.u32 %v1508, 16
        %v1589 = vrot.slane %v1587, 5
        %v1590 = vor.u32 %v1586, %v1589
        %v1591 = vrot.slane %v1590, 4
        %v1593 = vshll.u32 %v1509, 16
        %v1595 = vrot.slane %v1593, 5
        %v1596 = vsel %vm936, %v1591, %v1595
        %v1597 = vshrl.u32 %v1509, 16
        %v1599 = vrot.slane %v1597, 4
        %v1600 = vor.u32 %v1599, %v1595
        %v1601 = vrot.slane %v1600, 4
        %v1603 = vshll.u32 %v1510, 16
        %v1605 = vrot.slane %v1603, 5
        %v1606 = vsel %vm936, %v1601, %v1605
        %s1607 = scalar_lea.vmem %s3, 8
        %v1608 = vld [vmem:[%s1607] sm:$0x3]
        %v1609 = vunpack.c.l.b16 %v1524
        %v1610 = vunpack.c.l.b16 %v1534
        %v1611 = vunpack.c.l.b16 %v1548
        %v1612 = vunpack.c.l.b16 %v1558
        %v1613 = vunpack.c.l.b16 %v1572
        %v1614 = vunpack.c.l.b16 %v1582
        %v1615 = vunpack.c.l.b16 %v1596
        %v1616 = vunpack.c.l.b16 %v1606
        %v1617 = vpack.c.b16 %v1610, %v1609
        %v1618 = vpack.c.b16 %v1612, %v1611
        %v1619 = vpack.c.b16 %v1614, %v1613
        %v1620 = vpack.c.b16 %v1616, %v1615
        %v1622 = vsel %vm1047, %v1617, 0
        %v1625 = vsel %vm1047, %v1618, 0
        %v1628 = vsel %vm1047, %v1619, 0
        %v1631 = vsel %vm1047, %v1620, 0
        %v1634 = vand.u32 %v1608, %v1063
        %1636 = vmatprep.subr.bf16.mxu0 0
        %1637 = vmatpush1.bf16.msra.mxu0 0
        %1638 = vmatprep.subr.bf16.mxu0 0
        %1639 = vmatpush1.bf16.msra.mxu0 0
        %1640 = vmatprep.subr.bf16.mxu0 0
        %1641 = vmatpush1.bf16.msra.mxu0 0
        %1642 = vmatprep.subr.bf16.mxu0 0
        %1643 = vmatpush1.bf16.msra.mxu0 0
        %1644 = vmatprep.subr.bf16.mxu0 0
        %1645 = vmatpush1.bf16.msra.mxu0 0
        %1646 = vmatprep.subr.bf16.mxu0 0
        %1647 = vmatpush1.bf16.msra.mxu0 0
        %1648 = vmatprep.subr.bf16.mxu0 0
        %1649 = vmatpush1.bf16.msra.mxu0 0
        %1650 = vmatprep.subr.bf16.mxu0 0
        %1651 = vmatpush1.bf16.msra.mxu0 %v1634
        %1652 = vmatprep.subr.bf16.mxu0 0
        %1653 = vmatpush2.bf16.msra.mxu0 0
        %1654 = vmatprep.subr.bf16.mxu0 0
        %1655 = vmatpush2.bf16.msra.mxu0 0
        %1656 = vmatprep.subr.bf16.mxu0 0
        %1657 = vmatpush2.bf16.msra.mxu0 0
        %1658 = vmatprep.subr.bf16.mxu0 0
        %1659 = vmatpush2.bf16.msra.mxu0 0
        %1660 = vmatprep.subr.bf16.mxu0 0
        %1661 = vmatpush2.bf16.msra.mxu0 0
        %1662 = vmatprep.subr.bf16.mxu0 0
        %1663 = vmatpush2.bf16.msra.mxu0 0
        %1664 = vmatprep.subr.bf16.mxu0 0
        %1665 = vmatpush2.bf16.msra.mxu0 0
        %1666 = vmatprep.subr.bf16.mxu0 0
        %1667 = vmatpush2.bf16.msra.mxu0 0
        %1668 = vmatprep.mubr.bf16.mxu0 0
        %1669 = vmatmul.mubr.bf16.gmra.mxu0 %v1622
        %v1670 = vpop.f32.mrf.mxu0
        %v1671 = vadd.f32 0.0, %v1670
        %v1672 = vpop.f32.mrf.mxu0
        %v1673 = vpop.f32.mrf.mxu0
        %v1674 = vadd.f32 0.0, %v1673
        %v1675 = vpop.f32.mrf.mxu0
        %1676 = vmatprep.mubr.bf16.mxu0 0
        %1677 = vmatmul.mubr.bf16.gmra.mxu0 %v1625
        %v1678 = vpop.f32.mrf.mxu0
        %v1679 = vadd.f32 0.0, %v1678
        %v1680 = vpop.f32.mrf.mxu0
        %v1681 = vpop.f32.mrf.mxu0
        %v1682 = vadd.f32 0.0, %v1681
        %v1683 = vpop.f32.mrf.mxu0
        %1684 = vmatprep.mubr.bf16.mxu0 0
        %1685 = vmatmul.mubr.bf16.gmra.mxu0 %v1628
        %v1686 = vpop.f32.mrf.mxu0
        %v1687 = vadd.f32 0.0, %v1686
        %v1688 = vpop.f32.mrf.mxu0
        %v1689 = vpop.f32.mrf.mxu0
        %v1690 = vadd.f32 0.0, %v1689
        %v1691 = vpop.f32.mrf.mxu0
        %1692 = vmatprep.mubr.bf16.mxu0 0
        %1693 = vmatmul.mubr.bf16.gmra.mxu0 %v1631
        %v1694 = vpop.f32.mrf.mxu0
        %v1695 = vadd.f32 0.0, %v1694
        %v1696 = vpop.f32.mrf.mxu0
        %v1697 = vpop.f32.mrf.mxu0
        %v1698 = vadd.f32 0.0, %v1697
        %v1699 = vpop.f32.mrf.mxu0
        %1700 = vdwg.mxu0
        %v1701 = vadd.f32 %v1491, %v1671
        %v1702 = vadd.f32 %v1492, %v1674
        %v1703 = vadd.f32 %v1493, %v1679
        %v1704 = vadd.f32 %v1494, %v1682
        %v1705 = vadd.f32 %v1495, %v1687
        %v1706 = vadd.f32 %v1496, %v1690
        %v1707 = vadd.f32 %v1497, %v1695
        %v1708 = vadd.f32 %v1498, %v1698
        %v1709 = vld [vmem:[%s1380] sm:$0xe]
        %v1710 = vld [vmem:[%s1380 + $0xc] sm:$0xe]
        %v1711 = vld [vmem:[%s1380 + $0x18] sm:$0xe]
        %v1712 = vld [vmem:[%s1380 + $0x24] sm:$0xe]
        %v1725 = vrot.slane %v1709, 5
        %v1726 = vrot.slane %v1725, 4
        %v1727 = vrot.slane %v1500, 5
        %v1728 = vsel %vm1246, %v1726, %v1727
        %v1729 = vrot.slane %v1727, 4
        %v1730 = vrot.slane %v1501, 5
        %v1731 = vsel %vm1246, %v1729, %v1730
        %v1732 = vrot.slane %v1710, 5
        %v1733 = vrot.slane %v1732, 4
        %v1734 = vrot.slane %v1503, 5
        %v1735 = vsel %vm1246, %v1733, %v1734
        %v1736 = vrot.slane %v1734, 4
        %v1737 = vrot.slane %v1504, 5
        %v1738 = vsel %vm1246, %v1736, %v1737
        %v1739 = vrot.slane %v1711, 5
        %v1740 = vrot.slane %v1739, 4
        %v1741 = vrot.slane %v1506, 5
        %v1742 = vsel %vm1246, %v1740, %v1741
        %v1743 = vrot.slane %v1741, 4
        %v1744 = vrot.slane %v1507, 5
        %v1745 = vsel %vm1246, %v1743, %v1744
        %v1746 = vrot.slane %v1712, 5
        %v1747 = vrot.slane %v1746, 4
        %v1748 = vrot.slane %v1509, 5
        %v1749 = vsel %vm1246, %v1747, %v1748
        %v1750 = vrot.slane %v1748, 4
        %v1751 = vrot.slane %v1510, 5
        %v1752 = vsel %vm1246, %v1750, %v1751
        %s1753 = scalar_lea.vmem %s3, 10
        %v1754 = vld [vmem:[%s1753] sm:$0x3]
        %v1755 = vunpack.c.l.b16 %v1728
        %v1756 = vunpack.c.l.b16 %v1731
        %v1757 = vunpack.c.l.b16 %v1735
        %v1758 = vunpack.c.l.b16 %v1738
        %v1759 = vunpack.c.l.b16 %v1742
        %v1760 = vunpack.c.l.b16 %v1745
        %v1761 = vunpack.c.l.b16 %v1749
        %v1762 = vunpack.c.l.b16 %v1752
        %v1763 = vpack.c.b16 %v1756, %v1755
        %v1764 = vpack.c.b16 %v1758, %v1757
        %v1765 = vpack.c.b16 %v1760, %v1759
        %v1766 = vpack.c.b16 %v1762, %v1761
        %v1768 = vsel %vm1047, %v1763, 0
        %v1771 = vsel %vm1047, %v1764, 0
        %v1774 = vsel %vm1047, %v1765, 0
        %v1777 = vsel %vm1047, %v1766, 0
        %v1780 = vand.u32 %v1754, %v1063
        %1782 = vmatprep.subr.bf16.mxu0 0
        %1783 = vmatpush1.bf16.msra.mxu0 0
        %1784 = vmatprep.subr.bf16.mxu0 0
        %1785 = vmatpush1.bf16.msra.mxu0 0
        %1786 = vmatprep.subr.bf16.mxu0 0
        %1787 = vmatpush1.bf16.msra.mxu0 0
        %1788 = vmatprep.subr.bf16.mxu0 0
        %1789 = vmatpush1.bf16.msra.mxu0 0
        %1790 = vmatprep.subr.bf16.mxu0 0
        %1791 = vmatpush1.bf16.msra.mxu0 0
        %1792 = vmatprep.subr.bf16.mxu0 0
        %1793 = vmatpush1.bf16.msra.mxu0 0
        %1794 = vmatprep.subr.bf16.mxu0 0
        %1795 = vmatpush1.bf16.msra.mxu0 0
        %1796 = vmatprep.subr.bf16.mxu0 0
        %1797 = vmatpush1.bf16.msra.mxu0 %v1780
        %1798 = vmatprep.subr.bf16.mxu0 0
        %1799 = vmatpush2.bf16.msra.mxu0 0
        %1800 = vmatprep.subr.bf16.mxu0 0
        %1801 = vmatpush2.bf16.msra.mxu0 0
        %1802 = vmatprep.subr.bf16.mxu0 0
        %1803 = vmatpush2.bf16.msra.mxu0 0
        %1804 = vmatprep.subr.bf16.mxu0 0
        %1805 = vmatpush2.bf16.msra.mxu0 0
        %1806 = vmatprep.subr.bf16.mxu0 0
        %1807 = vmatpush2.bf16.msra.mxu0 0
        %1808 = vmatprep.subr.bf16.mxu0 0
        %1809 = vmatpush2.bf16.msra.mxu0 0
        %1810 = vmatprep.subr.bf16.mxu0 0
        %1811 = vmatpush2.bf16.msra.mxu0 0
        %1812 = vmatprep.subr.bf16.mxu0 0
        %1813 = vmatpush2.bf16.msra.mxu0 0
        %1814 = vmatprep.mubr.bf16.mxu0 0
        %1815 = vmatmul.mubr.bf16.gmra.mxu0 %v1768
        %v1816 = vpop.f32.mrf.mxu0
        %v1817 = vadd.f32 0.0, %v1816
        %v1818 = vpop.f32.mrf.mxu0
        %v1819 = vpop.f32.mrf.mxu0
        %v1820 = vadd.f32 0.0, %v1819
        %v1821 = vpop.f32.mrf.mxu0
        %1822 = vmatprep.mubr.bf16.mxu0 0
        %1823 = vmatmul.mubr.bf16.gmra.mxu0 %v1771
        %v1824 = vpop.f32.mrf.mxu0
        %v1825 = vadd.f32 0.0, %v1824
        %v1826 = vpop.f32.mrf.mxu0
        %v1827 = vpop.f32.mrf.mxu0
        %v1828 = vadd.f32 0.0, %v1827
        %v1829 = vpop.f32.mrf.mxu0
        %1830 = vmatprep.mubr.bf16.mxu0 0
        %1831 = vmatmul.mubr.bf16.gmra.mxu0 %v1774
        %v1832 = vpop.f32.mrf.mxu0
        %v1833 = vadd.f32 0.0, %v1832
        %v1834 = vpop.f32.mrf.mxu0
        %v1835 = vpop.f32.mrf.mxu0
        %v1836 = vadd.f32 0.0, %v1835
        %v1837 = vpop.f32.mrf.mxu0
        %1838 = vmatprep.mubr.bf16.mxu0 0
        %1839 = vmatmul.mubr.bf16.gmra.mxu0 %v1777
        %v1840 = vpop.f32.mrf.mxu0
        %v1841 = vadd.f32 0.0, %v1840
        %v1842 = vpop.f32.mrf.mxu0
        %v1843 = vpop.f32.mrf.mxu0
        %v1844 = vadd.f32 0.0, %v1843
        %v1845 = vpop.f32.mrf.mxu0
        %1846 = vdwg.mxu0
        %v1847 = vadd.f32 %v1701, %v1817
        %v1848 = vadd.f32 %v1702, %v1820
        %v1849 = vadd.f32 %v1703, %v1825
        %v1850 = vadd.f32 %v1704, %v1828
        %v1851 = vadd.f32 %v1705, %v1833
        %v1852 = vadd.f32 %v1706, %v1836
        %v1853 = vadd.f32 %v1707, %v1841
        %v1854 = vadd.f32 %v1708, %v1844
        %s1855 = sadd.s32 %s917, 2
        %s1856 = smul.u32 %s1855, 3
        %s1857 = smul.addr %s1856, 4
        %s1858 = scalar_lea.vmem [#allocation2], %s1857
        %v1859 = vld [vmem:[%s1858] sm:$0xf]
        %v1860 = vld [vmem:[%s1858 + $0x4] sm:$0xf]
        %v1861 = vld [vmem:[%s1858 + $0xc] sm:$0xf]
        %v1862 = vld [vmem:[%s1858 + $0x10] sm:$0xf]
        %v1863 = vld [vmem:[%s1858 + $0x18] sm:$0xf]
        %v1864 = vld [vmem:[%s1858 + $0x1c] sm:$0xf]
        %v1865 = vld [vmem:[%s1858 + $0x24] sm:$0xf]
        %v1866 = vld [vmem:[%s1858 + $0x28] sm:$0xf]
        %s1867 = scalar_lea.vmem %s3, 12
        %v1868 = vld [vmem:[%s1867] sm:$0x3]
        %v1877 = vunpack.c.l.b16 %v1859
        %v1878 = vunpack.c.l.b16 %v1860
        %v1879 = vunpack.c.l.b16 %v1861
        %v1880 = vunpack.c.l.b16 %v1862
        %v1881 = vunpack.c.l.b16 %v1863
        %v1882 = vunpack.c.l.b16 %v1864
        %v1883 = vunpack.c.l.b16 %v1865
        %v1884 = vunpack.c.l.b16 %v1866
        %v1885 = vpack.c.b16 %v1878, %v1877
        %v1886 = vpack.c.b16 %v1880, %v1879
        %v1887 = vpack.c.b16 %v1882, %v1881
        %v1888 = vpack.c.b16 %v1884, %v1883
        %v1890 = vsel %vm1047, %v1885, 0
        %v1893 = vsel %vm1047, %v1886, 0
        %v1896 = vsel %vm1047, %v1887, 0
        %v1899 = vsel %vm1047, %v1888, 0
        %v1902 = vand.u32 %v1868, %v1063
        %1904 = vmatprep.subr.bf16.mxu0 0
        %1905 = vmatpush1.bf16.msra.mxu0 0
        %1906 = vmatprep.subr.bf16.mxu0 0
        %1907 = vmatpush1.bf16.msra.mxu0 0
        %1908 = vmatprep.subr.bf16.mxu0 0
        %1909 = vmatpush1.bf16.msra.mxu0 0
        %1910 = vmatprep.subr.bf16.mxu0 0
        %1911 = vmatpush1.bf16.msra.mxu0 0
        %1912 = vmatprep.subr.bf16.mxu0 0
        %1913 = vmatpush1.bf16.msra.mxu0 0
        %1914 = vmatprep.subr.bf16.mxu0 0
        %1915 = vmatpush1.bf16.msra.mxu0 0
        %1916 = vmatprep.subr.bf16.mxu0 0
        %1917 = vmatpush1.bf16.msra.mxu0 0
        %1918 = vmatprep.subr.bf16.mxu0 0
        %1919 = vmatpush1.bf16.msra.mxu0 %v1902
        %1920 = vmatprep.subr.bf16.mxu0 0
        %1921 = vmatpush2.bf16.msra.mxu0 0
        %1922 = vmatprep.subr.bf16.mxu0 0
        %1923 = vmatpush2.bf16.msra.mxu0 0
        %1924 = vmatprep.subr.bf16.mxu0 0
        %1925 = vmatpush2.bf16.msra.mxu0 0
        %1926 = vmatprep.subr.bf16.mxu0 0
        %1927 = vmatpush2.bf16.msra.mxu0 0
        %1928 = vmatprep.subr.bf16.mxu0 0
        %1929 = vmatpush2.bf16.msra.mxu0 0
        %1930 = vmatprep.subr.bf16.mxu0 0
        %1931 = vmatpush2.bf16.msra.mxu0 0
        %1932 = vmatprep.subr.bf16.mxu0 0
        %1933 = vmatpush2.bf16.msra.mxu0 0
        %1934 = vmatprep.subr.bf16.mxu0 0
        %1935 = vmatpush2.bf16.msra.mxu0 0
        %1936 = vmatprep.mubr.bf16.mxu0 0
        %1937 = vmatmul.mubr.bf16.gmra.mxu0 %v1890
        %v1938 = vpop.f32.mrf.mxu0
        %v1939 = vadd.f32 0.0, %v1938
        %v1940 = vpop.f32.mrf.mxu0
        %v1941 = vpop.f32.mrf.mxu0
        %v1942 = vadd.f32 0.0, %v1941
        %v1943 = vpop.f32.mrf.mxu0
        %1944 = vmatprep.mubr.bf16.mxu0 0
        %1945 = vmatmul.mubr.bf16.gmra.mxu0 %v1893
        %v1946 = vpop.f32.mrf.mxu0
        %v1947 = vadd.f32 0.0, %v1946
        %v1948 = vpop.f32.mrf.mxu0
        %v1949 = vpop.f32.mrf.mxu0
        %v1950 = vadd.f32 0.0, %v1949
        %v1951 = vpop.f32.mrf.mxu0
        %1952 = vmatprep.mubr.bf16.mxu0 0
        %1953 = vmatmul.mubr.bf16.gmra.mxu0 %v1896
        %v1954 = vpop.f32.mrf.mxu0
        %v1955 = vadd.f32 0.0, %v1954
        %v1956 = vpop.f32.mrf.mxu0
        %v1957 = vpop.f32.mrf.mxu0
        %v1958 = vadd.f32 0.0, %v1957
        %v1959 = vpop.f32.mrf.mxu0
        %1960 = vmatprep.mubr.bf16.mxu0 0
        %1961 = vmatmul.mubr.bf16.gmra.mxu0 %v1899
        %v1962 = vpop.f32.mrf.mxu0
        %v1963 = vadd.f32 0.0, %v1962
        %v1964 = vpop.f32.mrf.mxu0
        %v1965 = vpop.f32.mrf.mxu0
        %v1966 = vadd.f32 0.0, %v1965
        %v1967 = vpop.f32.mrf.mxu0
        %1968 = vdwg.mxu0
        %v1969 = vadd.f32 %v1847, %v1939
        %v1970 = vadd.f32 %v1848, %v1942
        %v1971 = vadd.f32 %v1849, %v1947
        %v1972 = vadd.f32 %v1850, %v1950
        %v1973 = vadd.f32 %v1851, %v1955
        %v1974 = vadd.f32 %v1852, %v1958
        %v1975 = vadd.f32 %v1853, %v1963
        %v1976 = vadd.f32 %v1854, %v1966
        %v1977 = vld [vmem:[%s1858] sm:$0xf]
        %v1978 = vld [vmem:[%s1858 + $0x4] sm:$0xf]
        %v1979 = vld [vmem:[%s1858 + $0x8] sm:$0x1]
        %v1980 = vld [vmem:[%s1858 + $0xc] sm:$0xf]
        %v1981 = vld [vmem:[%s1858 + $0x10] sm:$0xf]
        %v1982 = vld [vmem:[%s1858 + $0x14] sm:$0x1]
        %v1983 = vld [vmem:[%s1858 + $0x18] sm:$0xf]
        %v1984 = vld [vmem:[%s1858 + $0x1c] sm:$0xf]
        %v1985 = vld [vmem:[%s1858 + $0x20] sm:$0x1]
        %v1986 = vld [vmem:[%s1858 + $0x24] sm:$0xf]
        %v1987 = vld [vmem:[%s1858 + $0x28] sm:$0xf]
        %v1988 = vld [vmem:[%s1858 + $0x2c] sm:$0x1]
        %v1990 = vshrl.u32 %v1977, 16
        %v1992 = vrot.slane %v1990, 4
        %v1993 = vshll.u32 %v1977, 16
        %v1995 = vrot.slane %v1993, 5
        %v1996 = vor.u32 %v1992, %v1995
        %v1997 = vrot.slane %v1996, 4
        %v1999 = vshll.u32 %v1978, 16
        %v2001 = vrot.slane %v1999, 5
        %v2002 = vsel %vm936, %v1997, %v2001
        %v2003 = vshrl.u32 %v1978, 16
        %v2005 = vrot.slane %v2003, 4
        %v2006 = vor.u32 %v2005, %v2001
        %v2007 = vrot.slane %v2006, 4
        %v2009 = vshll.u32 %v1979, 16
        %v2011 = vrot.slane %v2009, 5
        %v2012 = vsel %vm936, %v2007, %v2011
        %v2014 = vshrl.u32 %v1980, 16
        %v2016 = vrot.slane %v2014, 4
        %v2017 = vshll.u32 %v1980, 16
        %v2019 = vrot.slane %v2017, 5
        %v2020 = vor.u32 %v2016, %v2019
        %v2021 = vrot.slane %v2020, 4
        %v2023 = vshll.u32 %v1981, 16
        %v2025 = vrot.slane %v2023, 5
        %v2026 = vsel %vm936, %v2021, %v2025
        %v2027 = vshrl.u32 %v1981, 16
        %v2029 = vrot.slane %v2027, 4
        %v2030 = vor.u32 %v2029, %v2025
        %v2031 = vrot.slane %v2030, 4
        %v2033 = vshll.u32 %v1982, 16
        %v2035 = vrot.slane %v2033, 5
        %v2036 = vsel %vm936, %v2031, %v2035
        %v2038 = vshrl.u32 %v1983, 16
        %v2040 = vrot.slane %v2038, 4
        %v2041 = vshll.u32 %v1983, 16
        %v2043 = vrot.slane %v2041, 5
        %v2044 = vor.u32 %v2040, %v2043
        %v2045 = vrot.slane %v2044, 4
        %v2047 = vshll.u32 %v1984, 16
        %v2049 = vrot.slane %v2047, 5
        %v2050 = vsel %vm936, %v2045, %v2049
        %v2051 = vshrl.u32 %v1984, 16
        %v2053 = vrot.slane %v2051, 4
        %v2054 = vor.u32 %v2053, %v2049
        %v2055 = vrot.slane %v2054, 4
        %v2057 = vshll.u32 %v1985, 16
        %v2059 = vrot.slane %v2057, 5
        %v2060 = vsel %vm936, %v2055, %v2059
        %v2062 = vshrl.u32 %v1986, 16
        %v2064 = vrot.slane %v2062, 4
        %v2065 = vshll.u32 %v1986, 16
        %v2067 = vrot.slane %v2065, 5
        %v2068 = vor.u32 %v2064, %v2067
        %v2069 = vrot.slane %v2068, 4
        %v2071 = vshll.u32 %v1987, 16
        %v2073 = vrot.slane %v2071, 5
        %v2074 = vsel %vm936, %v2069, %v2073
        %v2075 = vshrl.u32 %v1987, 16
        %v2077 = vrot.slane %v2075, 4
        %v2078 = vor.u32 %v2077, %v2073
        %v2079 = vrot.slane %v2078, 4
        %v2081 = vshll.u32 %v1988, 16
        %v2083 = vrot.slane %v2081, 5
        %v2084 = vsel %vm936, %v2079, %v2083
        %s2085 = scalar_lea.vmem %s3, 14
        %v2086 = vld [vmem:[%s2085] sm:$0x3]
        %v2087 = vunpack.c.l.b16 %v2002
        %v2088 = vunpack.c.l.b16 %v2012
        %v2089 = vunpack.c.l.b16 %v2026
        %v2090 = vunpack.c.l.b16 %v2036
        %v2091 = vunpack.c.l.b16 %v2050
        %v2092 = vunpack.c.l.b16 %v2060
        %v2093 = vunpack.c.l.b16 %v2074
        %v2094 = vunpack.c.l.b16 %v2084
        %v2095 = vpack.c.b16 %v2088, %v2087
        %v2096 = vpack.c.b16 %v2090, %v2089
        %v2097 = vpack.c.b16 %v2092, %v2091
        %v2098 = vpack.c.b16 %v2094, %v2093
        %v2100 = vsel %vm1047, %v2095, 0
        %v2103 = vsel %vm1047, %v2096, 0
        %v2106 = vsel %vm1047, %v2097, 0
        %v2109 = vsel %vm1047, %v2098, 0
        %v2112 = vand.u32 %v2086, %v1063
        %2114 = vmatprep.subr.bf16.mxu0 0
        %2115 = vmatpush1.bf16.msra.mxu0 0
        %2116 = vmatprep.subr.bf16.mxu0 0
        %2117 = vmatpush1.bf16.msra.mxu0 0
        %2118 = vmatprep.subr.bf16.mxu0 0
        %2119 = vmatpush1.bf16.msra.mxu0 0
        %2120 = vmatprep.subr.bf16.mxu0 0
        %2121 = vmatpush1.bf16.msra.mxu0 0
        %2122 = vmatprep.subr.bf16.mxu0 0
        %2123 = vmatpush1.bf16.msra.mxu0 0
        %2124 = vmatprep.subr.bf16.mxu0 0
        %2125 = vmatpush1.bf16.msra.mxu0 0
        %2126 = vmatprep.subr.bf16.mxu0 0
        %2127 = vmatpush1.bf16.msra.mxu0 0
        %2128 = vmatprep.subr.bf16.mxu0 0
        %2129 = vmatpush1.bf16.msra.mxu0 %v2112
        %2130 = vmatprep.subr.bf16.mxu0 0
        %2131 = vmatpush2.bf16.msra.mxu0 0
        %2132 = vmatprep.subr.bf16.mxu0 0
        %2133 = vmatpush2.bf16.msra.mxu0 0
        %2134 = vmatprep.subr.bf16.mxu0 0
        %2135 = vmatpush2.bf16.msra.mxu0 0
        %2136 = vmatprep.subr.bf16.mxu0 0
        %2137 = vmatpush2.bf16.msra.mxu0 0
        %2138 = vmatprep.subr.bf16.mxu0 0
        %2139 = vmatpush2.bf16.msra.mxu0 0
        %2140 = vmatprep.subr.bf16.mxu0 0
        %2141 = vmatpush2.bf16.msra.mxu0 0
        %2142 = vmatprep.subr.bf16.mxu0 0
        %2143 = vmatpush2.bf16.msra.mxu0 0
        %2144 = vmatprep.subr.bf16.mxu0 0
        %2145 = vmatpush2.bf16.msra.mxu0 0
        %2146 = vmatprep.mubr.bf16.mxu0 0
        %2147 = vmatmul.mubr.bf16.gmra.mxu0 %v2100
        %v2148 = vpop.f32.mrf.mxu0
        %v2149 = vadd.f32 0.0, %v2148
        %v2150 = vpop.f32.mrf.mxu0
        %v2151 = vpop.f32.mrf.mxu0
        %v2152 = vadd.f32 0.0, %v2151
        %v2153 = vpop.f32.mrf.mxu0
        %2154 = vmatprep.mubr.bf16.mxu0 0
        %2155 = vmatmul.mubr.bf16.gmra.mxu0 %v2103
        %v2156 = vpop.f32.mrf.mxu0
        %v2157 = vadd.f32 0.0, %v2156
        %v2158 = vpop.f32.mrf.mxu0
        %v2159 = vpop.f32.mrf.mxu0
        %v2160 = vadd.f32 0.0, %v2159
        %v2161 = vpop.f32.mrf.mxu0
        %2162 = vmatprep.mubr.bf16.mxu0 0
        %2163 = vmatmul.mubr.bf16.gmra.mxu0 %v2106
        %v2164 = vpop.f32.mrf.mxu0
        %v2165 = vadd.f32 0.0, %v2164
        %v2166 = vpop.f32.mrf.mxu0
        %v2167 = vpop.f32.mrf.mxu0
        %v2168 = vadd.f32 0.0, %v2167
        %v2169 = vpop.f32.mrf.mxu0
        %2170 = vmatprep.mubr.bf16.mxu0 0
        %2171 = vmatmul.mubr.bf16.gmra.mxu0 %v2109
        %v2172 = vpop.f32.mrf.mxu0
        %v2173 = vadd.f32 0.0, %v2172
        %v2174 = vpop.f32.mrf.mxu0
        %v2175 = vpop.f32.mrf.mxu0
        %v2176 = vadd.f32 0.0, %v2175
        %v2177 = vpop.f32.mrf.mxu0
        %2178 = vdwg.mxu0
        %v2179 = vadd.f32 %v1969, %v2149
        %v2180 = vadd.f32 %v1970, %v2152
        %v2181 = vadd.f32 %v1971, %v2157
        %v2182 = vadd.f32 %v1972, %v2160
        %v2183 = vadd.f32 %v1973, %v2165
        %v2184 = vadd.f32 %v1974, %v2168
        %v2185 = vadd.f32 %v1975, %v2173
        %v2186 = vadd.f32 %v1976, %v2176
        %v2187 = vld [vmem:[%s1858] sm:$0xe]
        %v2188 = vld [vmem:[%s1858 + $0xc] sm:$0xe]
        %v2189 = vld [vmem:[%s1858 + $0x18] sm:$0xe]
        %v2190 = vld [vmem:[%s1858 + $0x24] sm:$0xe]
        %v2203 = vrot.slane %v2187, 5
        %v2204 = vrot.slane %v2203, 4
        %v2205 = vrot.slane %v1978, 5
        %v2206 = vsel %vm1246, %v2204, %v2205
        %v2207 = vrot.slane %v2205, 4
        %v2208 = vrot.slane %v1979, 5
        %v2209 = vsel %vm1246, %v2207, %v2208
        %v2210 = vrot.slane %v2188, 5
        %v2211 = vrot.slane %v2210, 4
        %v2212 = vrot.slane %v1981, 5
        %v2213 = vsel %vm1246, %v2211, %v2212
        %v2214 = vrot.slane %v2212, 4
        %v2215 = vrot.slane %v1982, 5
        %v2216 = vsel %vm1246, %v2214, %v2215
        %v2217 = vrot.slane %v2189, 5
        %v2218 = vrot.slane %v2217, 4
        %v2219 = vrot.slane %v1984, 5
        %v2220 = vsel %vm1246, %v2218, %v2219
        %v2221 = vrot.slane %v2219, 4
        %v2222 = vrot.slane %v1985, 5
        %v2223 = vsel %vm1246, %v2221, %v2222
        %v2224 = vrot.slane %v2190, 5
        %v2225 = vrot.slane %v2224, 4
        %v2226 = vrot.slane %v1987, 5
        %v2227 = vsel %vm1246, %v2225, %v2226
        %v2228 = vrot.slane %v2226, 4
        %v2229 = vrot.slane %v1988, 5
        %v2230 = vsel %vm1246, %v2228, %v2229
        %s2231 = scalar_lea.vmem %s3, 16
        %v2232 = vld [vmem:[%s2231] sm:$0x3]
        %v2233 = vunpack.c.l.b16 %v2206
        %v2234 = vunpack.c.l.b16 %v2209
        %v2235 = vunpack.c.l.b16 %v2213
        %v2236 = vunpack.c.l.b16 %v2216
        %v2237 = vunpack.c.l.b16 %v2220
        %v2238 = vunpack.c.l.b16 %v2223
        %v2239 = vunpack.c.l.b16 %v2227
        %v2240 = vunpack.c.l.b16 %v2230
        %v2241 = vpack.c.b16 %v2234, %v2233
        %v2242 = vpack.c.b16 %v2236, %v2235
        %v2243 = vpack.c.b16 %v2238, %v2237
        %v2244 = vpack.c.b16 %v2240, %v2239
        %v2246 = vsel %vm1047, %v2241, 0
        %v2249 = vsel %vm1047, %v2242, 0
        %v2252 = vsel %vm1047, %v2243, 0
        %v2255 = vsel %vm1047, %v2244, 0
        %v2258 = vand.u32 %v2232, %v1063
        %2260 = vmatprep.subr.bf16.mxu0 0
        %2261 = vmatpush1.bf16.msra.mxu0 0
        %2262 = vmatprep.subr.bf16.mxu0 0
        %2263 = vmatpush1.bf16.msra.mxu0 0
        %2264 = vmatprep.subr.bf16.mxu0 0
        %2265 = vmatpush1.bf16.msra.mxu0 0
        %2266 = vmatprep.subr.bf16.mxu0 0
        %2267 = vmatpush1.bf16.msra.mxu0 0
        %2268 = vmatprep.subr.bf16.mxu0 0
        %2269 = vmatpush1.bf16.msra.mxu0 0
        %2270 = vmatprep.subr.bf16.mxu0 0
        %2271 = vmatpush1.bf16.msra.mxu0 0
        %2272 = vmatprep.subr.bf16.mxu0 0
        %2273 = vmatpush1.bf16.msra.mxu0 0
        %2274 = vmatprep.subr.bf16.mxu0 0
        %2275 = vmatpush1.bf16.msra.mxu0 %v2258
        %2276 = vmatprep.subr.bf16.mxu0 0
        %2277 = vmatpush2.bf16.msra.mxu0 0
        %2278 = vmatprep.subr.bf16.mxu0 0
        %2279 = vmatpush2.bf16.msra.mxu0 0
        %2280 = vmatprep.subr.bf16.mxu0 0
        %2281 = vmatpush2.bf16.msra.mxu0 0
        %2282 = vmatprep.subr.bf16.mxu0 0
        %2283 = vmatpush2.bf16.msra.mxu0 0
        %2284 = vmatprep.subr.bf16.mxu0 0
        %2285 = vmatpush2.bf16.msra.mxu0 0
        %2286 = vmatprep.subr.bf16.mxu0 0
        %2287 = vmatpush2.bf16.msra.mxu0 0
        %2288 = vmatprep.subr.bf16.mxu0 0
        %2289 = vmatpush2.bf16.msra.mxu0 0
        %2290 = vmatprep.subr.bf16.mxu0 0
        %2291 = vmatpush2.bf16.msra.mxu0 0
        %2292 = vmatprep.mubr.bf16.mxu0 0
        %2293 = vmatmul.mubr.bf16.gmra.mxu0 %v2246
        %v2294 = vpop.f32.mrf.mxu0
        %v2295 = vadd.f32 0.0, %v2294
        %v2296 = vpop.f32.mrf.mxu0
        %v2297 = vpop.f32.mrf.mxu0
        %v2298 = vadd.f32 0.0, %v2297
        %v2299 = vpop.f32.mrf.mxu0
        %2300 = vmatprep.mubr.bf16.mxu0 0
        %2301 = vmatmul.mubr.bf16.gmra.mxu0 %v2249
        %v2302 = vpop.f32.mrf.mxu0
        %v2303 = vadd.f32 0.0, %v2302
        %v2304 = vpop.f32.mrf.mxu0
        %v2305 = vpop.f32.mrf.mxu0
        %v2306 = vadd.f32 0.0, %v2305
        %v2307 = vpop.f32.mrf.mxu0
        %2308 = vmatprep.mubr.bf16.mxu0 0
        %2309 = vmatmul.mubr.bf16.gmra.mxu0 %v2252
        %v2310 = vpop.f32.mrf.mxu0
        %v2311 = vadd.f32 0.0, %v2310
        %v2312 = vpop.f32.mrf.mxu0
        %v2313 = vpop.f32.mrf.mxu0
        %v2314 = vadd.f32 0.0, %v2313
        %v2315 = vpop.f32.mrf.mxu0
        %2316 = vmatprep.mubr.bf16.mxu0 0
        %2317 = vmatmul.mubr.bf16.gmra.mxu0 %v2255
        %v2318 = vpop.f32.mrf.mxu0
        %v2319 = vadd.f32 0.0, %v2318
        %v2320 = vpop.f32.mrf.mxu0
        %v2321 = vpop.f32.mrf.mxu0
        %v2322 = vadd.f32 0.0, %v2321
        %v2323 = vpop.f32.mrf.mxu0
        %2324 = vdwg.mxu0
        %v2325 = vadd.f32 %v2179, %v2295
        %v2326 = vadd.f32 %v2180, %v2298
        %v2327 = vadd.f32 %v2181, %v2303
        %v2328 = vadd.f32 %v2182, %v2306
        %v2329 = vadd.f32 %v2183, %v2311
        %v2330 = vadd.f32 %v2184, %v2314
        %v2331 = vadd.f32 %v2185, %v2319
        %v2332 = vadd.f32 %v2186, %v2322
        %v2333 = vld [vmem:[#allocation3] sm:$0x1]
        %v2335 = vlaneseq
        %v2336 = vshrl.u32 %v2335, 7
        %v2337 = vsub.s32 0, %v2336
        %v2338 = vrot.slane %v2333, %v2337
        %v2340 = vadd.f32 %v2325, %v2338
        %v2341 = vadd.f32 %v2326, %v2338
        %v2342 = vadd.f32 %v2327, %v2338
        %v2343 = vadd.f32 %v2328, %v2338
        %v2344 = vadd.f32 %v2329, %v2338
        %v2345 = vadd.f32 %v2330, %v2338
        %v2346 = vadd.f32 %v2331, %v2338
        %v2347 = vadd.f32 %v2332, %v2338
        // Predicated region
        $region49: #{conv_vencoder_forward.4} parent=39 // pred_check
          %p2348 = pneg %p335
        $region50: #{conv_vencoder_forward.4} parent=39 // pred_check_branch
          %2350 = sbr.rel (%p2348) target = $region52
        $region51: #{conv_vencoder_forward.4} parent=39 // pred_region
          %2351 = vst [vmem:[%s330] sm:$0x1] 0.0
          %2352 = vst [vmem:[%s333] sm:$0x1] 0.0
        $region52: #{conv_vencoder_forward.4} parent=39 // pred_fallthru
          _
        %v2353 = vld [vmem:[%s330] sm:$0x1]
        %v2354 = vadd.f32 %v2340, %v2341
        %v2355 = vadd.f32 %v2354, %v2342
        %v2356 = vadd.f32 %v2355, %v2343
        %v2357 = vadd.f32 %v2356, %v2344
        %v2358 = vadd.f32 %v2357, %v2345
        %v2359 = vadd.f32 %v2358, %v2346
        %v2360 = vadd.f32 %v2359, %v2347
        %v2361 = vrot.slane %v2360, 4
        %v2362 = vadd.f32 %v2360, %v2361
        %v2363 = vrot.slane %v2362, 2
        %v2364 = vadd.f32 %v2362, %v2363
        %v2365 = vrot.slane %v2364, 1
        %v2366 = vadd.f32 %v2364, %v2365
        %v2367 = vadd.f32 %v2353, %v2366
        %2368 = vst [vmem:[%s330] sm:$0x1] %v2367
        %v2369 = vld [vmem:[%s333] sm:$0x1]
        %v2370 = vmul.f32 %v2340, %v2340
        %v2371 = vmul.f32 %v2341, %v2341
        %v2372 = vmul.f32 %v2342, %v2342
        %v2373 = vmul.f32 %v2343, %v2343
        %v2374 = vmul.f32 %v2344, %v2344
        %v2375 = vmul.f32 %v2345, %v2345
        %v2376 = vmul.f32 %v2346, %v2346
        %v2377 = vmul.f32 %v2347, %v2347
        %v2378 = vadd.f32 %v2370, %v2371
        %v2379 = vadd.f32 %v2378, %v2372
        %v2380 = vadd.f32 %v2379, %v2373
        %v2381 = vadd.f32 %v2380, %v2374
        %v2382 = vadd.f32 %v2381, %v2375
        %v2383 = vadd.f32 %v2382, %v2376
        %v2384 = vadd.f32 %v2383, %v2377
        %v2385 = vrot.slane %v2384, 4
        %v2386 = vadd.f32 %v2384, %v2385
        %v2387 = vrot.slane %v2386, 2
        %v2388 = vadd.f32 %v2386, %v2387
        %v2389 = vrot.slane %v2388, 1
        %v2390 = vadd.f32 %v2388, %v2389
        %v2391 = vadd.f32 %v2369, %v2390
        %2392 = vst [vmem:[%s333] sm:$0x1] %v2391
        %v2393 = vpack.c.bf16 %v2341, %v2340
        %v2394 = vpack.c.bf16 %v2343, %v2342
        %v2395 = vpack.c.bf16 %v2345, %v2344
        %v2396 = vpack.c.bf16 %v2347, %v2346
        %v2401 = vunpack.c.l.b16 %v2393
        %v2402 = vunpack.c.h.b16 %v2393
        %v2403 = vunpack.c.l.b16 %v2394
        %v2404 = vunpack.c.h.b16 %v2394
        %v2405 = vunpack.c.l.b16 %v2395
        %v2406 = vunpack.c.h.b16 %v2395
        %v2407 = vunpack.c.l.b16 %v2396
        %v2408 = vunpack.c.h.b16 %v2396
        %v2409 = vpack.c.b16 %v2401, %v2401
        %v2410 = vpack.c.b16 %v2402, %v2402
        %v2411 = vpack.c.b16 %v2403, %v2403
        %v2412 = vpack.c.b16 %v2404, %v2404
        %v2413 = vpack.c.b16 %v2405, %v2405
        %v2414 = vpack.c.b16 %v2406, %v2406
        %v2415 = vpack.c.b16 %v2407, %v2407
        %v2416 = vpack.c.b16 %v2408, %v2408
        %2425 = vst [vmem:[%s326] sm:$0xf] %v2409
        %2426 = vst [vmem:[%s326 + $0x4] sm:$0xf] %v2410
        %2427 = vst [vmem:[%s326 + $0x8] sm:$0xf] %v2411
        %2428 = vst [vmem:[%s326 + $0xc] sm:$0xf] %v2412
        %2429 = vst [vmem:[%s326 + $0x10] sm:$0xf] %v2413
        %2430 = vst [vmem:[%s326 + $0x14] sm:$0xf] %v2414
        %2431 = vst [vmem:[%s326 + $0x18] sm:$0xf] %v2415
        %2432 = vst [vmem:[%s326 + $0x1c] sm:$0xf] %v2416
        %s2433 = smul.u32 4, %s25
        %p2434 = scmp.lt.s32.totalorder %s24, 1
        %s2435 = scalar_select %p2434, %s24, 1
        %p2436 = scmp.lt.s32.totalorder %s2433, 15
        %s2437 = scalar_select %p2436, %s2433, 15
        %s2438 = smul.addr %s2437, 2
        %s2439 = smul.addr %s2435, 32
        %s2440 = sadd.s32 %s2438, %s2439
        %s2441 = smul.addr %s2440, 4
        %s2442 = scalar_lea.vmem %s5, %s2441
        %p2443 = scmp.lt.s32.totalorder %s24, 1
        %s2444 = scalar_select %p2443, %s24, 1
        %s2445 = scalar_lea.vmem %s6, %s2444
        %p2446 = scmp.lt.s32.totalorder %s24, 1
        %s2447 = scalar_select %p2446, %s24, 1
        %s2448 = scalar_lea.vmem %s7, %s2447
        // Predicated region
        $region53: #{conv_vencoder_forward.4} parent=39 // pred_check
          %p2449 = pneg %p162
        $region54: #{conv_vencoder_forward.4} parent=39 // pred_check_branch
          %2451 = sbr.rel (%p2449) target = $region56
        $region55: #{conv_vencoder_forward.4} parent=39 // pred_region
          %s2452 = smul.u32 4, %s25
        $region56: #{conv_vencoder_forward.4} parent=39 // pred_fallthru
          _
        // Predicated region
        $region57: #{conv_vencoder_forward.4} parent=39 // pred_check
          %p2453 = pneg %p188
        $region58: #{conv_vencoder_forward.4} parent=39 // pred_check_branch
          %2455 = sbr.rel (%p2453) target = $region60
        $region59: #{conv_vencoder_forward.4} parent=39 // pred_region
          _
        $region60: #{conv_vencoder_forward.4} parent=39 // pred_fallthru
          _
        // Predicated region
        $region61: #{conv_vencoder_forward.4} parent=39 // pred_check
          %p2456 = pneg %p214
        $region62: #{conv_vencoder_forward.4} parent=39 // pred_check_branch
          %2458 = sbr.rel (%p2456) target = $region64
        $region63: #{conv_vencoder_forward.4} parent=39 // pred_region
          _
        $region64: #{conv_vencoder_forward.4} parent=39 // pred_fallthru
          _
      $region40: #{conv_vencoder_forward.4} parent=5 // pred_fallthru
        _
      %p2459 = scmp.le.s32.totalorder 2, %s15
      // Predicated region
      $region65: #{conv_vencoder_forward.4} parent=5 // pred_check
        %p2460 = pneg %p2459
      $region66: #{conv_vencoder_forward.4} parent=5 // pred_check_branch
        %2462 = sbr.rel (%p2460) target = $region68
      $region67: #{conv_vencoder_forward.4} parent=5 // pred_region
        %s2463 = ssub.s32 %s15, 2
        // Predicated region
        $region69: #{conv_vencoder_forward.4} parent=67 // pred_check
          %p2464 = pneg %p168
        $region70: #{conv_vencoder_forward.4} parent=67 // pred_check_branch
          %2466 = sbr.rel (%p2464) target = $region72
        $region71: #{conv_vencoder_forward.4} parent=67 // pred_region
          %s2467 = smul.u32 4, %s27
          %p2468 = scmp.lt.s32.totalorder %s26, 1
          %s2469 = scalar_select %p2468, %s26, 1
          %p2470 = scmp.lt.s32.totalorder %s2467, 15
          %s2471 = scalar_select %p2470, %s2467, 15
          %s2472 = smul.addr %s2471, 2
          %s2473 = smul.addr %s2469, 32
          %s2474 = sadd.s32 %s2472, %s2473
          %s2475 = smul.addr %s2474, 4
          %s2476 = scalar_lea.vmem %s5, %s2475
        $region72: #{conv_vencoder_forward.4} parent=67 // pred_fallthru
          _
        // Predicated region
        $region73: #{conv_vencoder_forward.4} parent=67 // pred_check
          %p2477 = pneg %p194
        $region74: #{conv_vencoder_forward.4} parent=67 // pred_check_branch
          %2479 = sbr.rel (%p2477) target = $region76
        $region75: #{conv_vencoder_forward.4} parent=67 // pred_region
          %p2480 = scmp.lt.s32.totalorder %s26, 1
          %s2481 = scalar_select %p2480, %s26, 1
          %s2482 = scalar_lea.vmem %s6, %s2481
        $region76: #{conv_vencoder_forward.4} parent=67 // pred_fallthru
          _
        // Predicated region
        $region77: #{conv_vencoder_forward.4} parent=67 // pred_check
          %p2483 = pneg %p220
        $region78: #{conv_vencoder_forward.4} parent=67 // pred_check_branch
          %2485 = sbr.rel (%p2483) target = $region80
        $region79: #{conv_vencoder_forward.4} parent=67 // pred_region
          %p2486 = scmp.lt.s32.totalorder %s26, 1
          %s2487 = scalar_select %p2486, %s26, 1
          %s2488 = scalar_lea.vmem %s7, %s2487
        $region80: #{conv_vencoder_forward.4} parent=67 // pred_fallthru
          _
      $region68: #{conv_vencoder_forward.4} parent=5 // pred_fallthru
        _
    $region6: #{conv_vencoder_forward.4} parent=1 // loop_footer
      %s19 = sadd.s32 1, %s15
    $region7: #{conv_vencoder_forward.4} parent=1 // loop_footer_branch
      %14 = sbr.rel target = $region3
    $region8: #{conv_vencoder_forward.4} parent=1 // loop_exit
      _
    %2489 = vsyncpa [#allocation4], 1
    %s2490 = scalar_lea.sflag [#allocation4], 1
    %2491 = vsyncpa %s2490, 1

// kernel: conv_vencoder_forward.5
$region0: #{conv_vencoder_forward.5}
  #allocation0 [shape = 'u32[]', space=smem, size = 0x4, offset = 0x4, fixed_abs, tag = 'smem constant byte address 0x4 - core index']
  #allocation1 [shape = 'u32[144,128]{1,0:T(1,128)}', space=vmem, size = 0x12000, scoped, tag = 'internal scratch']
  #allocation2 [shape = 'bf16[18,24,128]{2,1,0:T(8,128)(2,1)}', space=vmem, size = 0x1b000, scoped, tag = 'scratch operand']
  %s0 = inlined_call_operand.vmem [shape: bf16[2,16,16,128], index: 0, kind: input, shape index: {}]
  %s1 = inlined_call_operand.vmem [shape: f32[1,128], index: 1, kind: input, shape index: {}]
  %s2 = inlined_call_operand.vmem [shape: f32[1,128], index: 2, kind: input, shape index: {}]
  %s3 = inlined_call_operand.vmem [shape: bf16[9,128,256], index: 3, kind: input, shape index: {}]
  %s4 = inlined_call_operand.vmem [shape: f32[1,256], index: 4, kind: input, shape index: {}]
  %s5 = inlined_call_operand.vmem [shape: bf16[2,16,16,256], index: 5, kind: output, shape index: {0}]
  %s6 = inlined_call_operand.vmem [shape: f32[2,1,256], index: 6, kind: output, shape index: {1}]
  %s7 = inlined_call_operand.vmem [shape: f32[2,1,256], index: 7, kind: output, shape index: {2}]
  %8 = xla_tuple %s5, %s6, %s7
  %s9 = sld [smem:[#allocation0]]
  $region77: #{conv_vencoder_forward.5} parent=0
    _
  %s11 = ssub.s32 1, %s9
  %s12 = scalar_select 0, %s11, %s9
  loop: start=0, step=1, limit=10
  $region2: #{conv_vencoder_forward.5} parent=0 // loop_pre_header
    _
  $region3: #{conv_vencoder_forward.5} parent=0 // loop_header
    %s14 = sphi 0, %s18
    %p15 = scmp.ge.s32.totalorder %s14, 10
    %s21 = sphi 0, %s33
    %s22 = sphi 0, %s29
    %s23 = sphi 0, %s21
    %s24 = sphi 0, %s22
    %s25 = sphi 0, %s23
    %s26 = sphi 0, %s24
    %s36 = sphi 0, %s38
    %s39 = sphi 0, %s36
    %s40 = sphi 0, %s39
    %s56 = sphi 0, %s40
    %s60 = sphi 0, %s60
    %s62 = sphi 0, %s60
    %s63 = sphi 0, %s62
    %s77 = sphi 0, %s63
    %s81 = sphi 0, %s81
    %s83 = sphi 0, %s81
    %s84 = sphi 0, %s83
    %s98 = sphi 0, %s84
    %s102 = sphi 0, %s102
    %s104 = sphi 0, %s102
    %s105 = sphi 0, %s104
    %s119 = sphi 0, %s105
    %s123 = sphi 0, %s123
    %s125 = sphi 0, %s123
    %s126 = sphi 0, %s125
    %s140 = sphi 0, %s126
    %s148 = sphi 0, %s150
    %s151 = sphi 0, %s148
    %s152 = sphi 0, %s151
    %s168 = sphi 0, %s152
    %s174 = sphi 0, %s176
    %s177 = sphi 0, %s174
    %s178 = sphi 0, %s177
    %s194 = sphi 0, %s178
    %s200 = sphi 0, %s202
    %s203 = sphi 0, %s200
    %s204 = sphi 0, %s203
    %s220 = sphi 0, %s204
  $region4: #{conv_vencoder_forward.5} parent=0 // loop_header_branch
    %17 = sbr.rel (%p15) target = $region8
  $region5: #{conv_vencoder_forward.5} parent=0 // loop_body
    %s19 = ssub.s32 %s14, 1
    %s20 = ssub.s32 %s14, 2
    %s27 = sadd.s32 1, %s22
    %p28 = scmp.ge.s32.totalorder %s27, 4
    %s29 = scalar_select %p28, 0, %s27
    %s30 = sadd.s32 1, %s21
    %s31 = scalar_select %p28, %s30, %s21
    %p32 = scmp.ge.s32.totalorder %s31, 2
    %s33 = scalar_select %p32, 0, %s31
    %s34 = ssub.s32 %s21, %s33
    %p35 = scmp.eq.s32.totalorder %s34, 0
    %s37 = sadd.s32 %s36, 1
    %s38 = scalar_select %p35, %s36, %s37
    %p41 = pneg %p35
    %p42 = scmp.eq.s32.totalorder %s14, 7
    %p43 = por %p41, %p42
    %p44 = scmp.ne.s32.totalorder %s36, %s39
    %p45 = scmp.eq.s32.totalorder %s14, 0
    %p46 = por %p44, %p45
    %p47 = scmp.ne.s32.totalorder %s36, %s39
    %p48 = scmp.eq.s32.totalorder %s19, 7
    %p49 = por %p47, %p48
    %p50 = scmp.ne.s32.totalorder %s39, %s40
    %p51 = scmp.eq.s32.totalorder %s19, 0
    %p52 = por %p50, %p51
    %p53 = scmp.ne.s32.totalorder %s39, %s40
    %p54 = scmp.eq.s32.totalorder %s20, 7
    %p55 = por %p53, %p54
    %p57 = scmp.ne.s32.totalorder %s40, %s56
    %p58 = scmp.eq.s32.totalorder %s20, 0
    %p59 = por %p57, %p58
    %s61 = sadd.s32 %s60, 1
    %p64 = scmp.eq.s32.totalorder %s14, 7
    %p65 = scmp.ne.s32.totalorder %s60, %s62
    %p66 = scmp.eq.s32.totalorder %s14, 0
    %p67 = por %p65, %p66
    %p68 = scmp.ne.s32.totalorder %s60, %s62
    %p69 = scmp.eq.s32.totalorder %s19, 7
    %p70 = por %p68, %p69
    %p71 = scmp.ne.s32.totalorder %s62, %s63
    %p72 = scmp.eq.s32.totalorder %s19, 0
    %p73 = por %p71, %p72
    %p74 = scmp.ne.s32.totalorder %s62, %s63
    %p75 = scmp.eq.s32.totalorder %s20, 7
    %p76 = por %p74, %p75
    %p78 = scmp.ne.s32.totalorder %s63, %s77
    %p79 = scmp.eq.s32.totalorder %s20, 0
    %p80 = por %p78, %p79
    %s82 = sadd.s32 %s81, 1
    %p85 = scmp.eq.s32.totalorder %s14, 7
    %p86 = scmp.ne.s32.totalorder %s81, %s83
    %p87 = scmp.eq.s32.totalorder %s14, 0
    %p88 = por %p86, %p87
    %p89 = scmp.ne.s32.totalorder %s81, %s83
    %p90 = scmp.eq.s32.totalorder %s19, 7
    %p91 = por %p89, %p90
    %p92 = scmp.ne.s32.totalorder %s83, %s84
    %p93 = scmp.eq.s32.totalorder %s19, 0
    %p94 = por %p92, %p93
    %p95 = scmp.ne.s32.totalorder %s83, %s84
    %p96 = scmp.eq.s32.totalorder %s20, 7
    %p97 = por %p95, %p96
    %p99 = scmp.ne.s32.totalorder %s84, %s98
    %p100 = scmp.eq.s32.totalorder %s20, 0
    %p101 = por %p99, %p100
    %s103 = sadd.s32 %s102, 1
    %p106 = scmp.eq.s32.totalorder %s14, 7
    %p107 = scmp.ne.s32.totalorder %s102, %s104
    %p108 = scmp.eq.s32.totalorder %s14, 0
    %p109 = por %p107, %p108
    %p110 = scmp.ne.s32.totalorder %s102, %s104
    %p111 = scmp.eq.s32.totalorder %s19, 7
    %p112 = por %p110, %p111
    %p113 = scmp.ne.s32.totalorder %s104, %s105
    %p114 = scmp.eq.s32.totalorder %s19, 0
    %p115 = por %p113, %p114
    %p116 = scmp.ne.s32.totalorder %s104, %s105
    %p117 = scmp.eq.s32.totalorder %s20, 7
    %p118 = por %p116, %p117
    %p120 = scmp.ne.s32.totalorder %s105, %s119
    %p121 = scmp.eq.s32.totalorder %s20, 0
    %p122 = por %p120, %p121
    %s124 = sadd.s32 %s123, 1
    %p127 = scmp.eq.s32.totalorder %s14, 7
    %p128 = scmp.ne.s32.totalorder %s123, %s125
    %p129 = scmp.eq.s32.totalorder %s14, 0
    %p130 = por %p128, %p129
    %p131 = scmp.ne.s32.totalorder %s123, %s125
    %p132 = scmp.eq.s32.totalorder %s19, 7
    %p133 = por %p131, %p132
    %p134 = scmp.ne.s32.totalorder %s125, %s126
    %p135 = scmp.eq.s32.totalorder %s19, 0
    %p136 = por %p134, %p135
    %p137 = scmp.ne.s32.totalorder %s125, %s126
    %p138 = scmp.eq.s32.totalorder %s20, 7
    %p139 = por %p137, %p138
    %p141 = scmp.ne.s32.totalorder %s126, %s140
    %p142 = scmp.eq.s32.totalorder %s20, 0
    %p143 = por %p141, %p142
    %s144 = ssub.s32 %s21, %s33
    %s145 = ssub.s32 %s22, %s29
    %s146 = sor.u32 %s144, %s145
    %p147 = scmp.eq.s32.totalorder %s146, 0
    %s149 = sadd.s32 %s148, 1
    %s150 = scalar_select %p147, %s148, %s149
    %p153 = pneg %p147
    %p154 = scmp.eq.s32.totalorder %s14, 7
    %p155 = por %p153, %p154
    %p156 = scmp.ne.s32.totalorder %s148, %s151
    %p157 = scmp.eq.s32.totalorder %s14, 0
    %p158 = por %p156, %p157
    %p159 = scmp.ne.s32.totalorder %s148, %s151
    %p160 = scmp.eq.s32.totalorder %s19, 7
    %p161 = por %p159, %p160
    %p162 = scmp.ne.s32.totalorder %s151, %s152
    %p163 = scmp.eq.s32.totalorder %s19, 0
    %p164 = por %p162, %p163
    %p165 = scmp.ne.s32.totalorder %s151, %s152
    %p166 = scmp.eq.s32.totalorder %s20, 7
    %p167 = por %p165, %p166
    %p169 = scmp.ne.s32.totalorder %s152, %s168
    %p170 = scmp.eq.s32.totalorder %s20, 0
    %p171 = por %p169, %p170
    %s172 = ssub.s32 %s21, %s33
    %p173 = scmp.eq.s32.totalorder %s172, 0
    %s175 = sadd.s32 %s174, 1
    %s176 = scalar_select %p173, %s174, %s175
    %p179 = pneg %p173
    %p180 = scmp.eq.s32.totalorder %s14, 7
    %p181 = por %p179, %p180
    %p182 = scmp.ne.s32.totalorder %s174, %s177
    %p183 = scmp.eq.s32.totalorder %s14, 0
    %p184 = por %p182, %p183
    %p185 = scmp.ne.s32.totalorder %s174, %s177
    %p186 = scmp.eq.s32.totalorder %s19, 7
    %p187 = por %p185, %p186
    %p188 = scmp.ne.s32.totalorder %s177, %s178
    %p189 = scmp.eq.s32.totalorder %s19, 0
    %p190 = por %p188, %p189
    %p191 = scmp.ne.s32.totalorder %s177, %s178
    %p192 = scmp.eq.s32.totalorder %s20, 7
    %p193 = por %p191, %p192
    %p195 = scmp.ne.s32.totalorder %s178, %s194
    %p196 = scmp.eq.s32.totalorder %s20, 0
    %p197 = por %p195, %p196
    %s198 = ssub.s32 %s21, %s33
    %p199 = scmp.eq.s32.totalorder %s198, 0
    %s201 = sadd.s32 %s200, 1
    %s202 = scalar_select %p199, %s200, %s201
    %p205 = pneg %p199
    %p206 = scmp.eq.s32.totalorder %s14, 7
    %p207 = por %p205, %p206
    %p208 = scmp.ne.s32.totalorder %s200, %s203
    %p209 = scmp.eq.s32.totalorder %s14, 0
    %p210 = por %p208, %p209
    %p211 = scmp.ne.s32.totalorder %s200, %s203
    %p212 = scmp.eq.s32.totalorder %s19, 7
    %p213 = por %p211, %p212
    %p214 = scmp.ne.s32.totalorder %s203, %s204
    %p215 = scmp.eq.s32.totalorder %s19, 0
    %p216 = por %p214, %p215
    %p217 = scmp.ne.s32.totalorder %s203, %s204
    %p218 = scmp.eq.s32.totalorder %s20, 7
    %p219 = por %p217, %p218
    %p221 = scmp.ne.s32.totalorder %s204, %s220
    %p222 = scmp.eq.s32.totalorder %s20, 0
    %p223 = por %p221, %p222
    %p224 = scmp.le.s32.totalorder 1, %s14
    %p225 = scmp.lt.s32.totalorder %s14, 9
    %p226 = pnand %p224, %p225
    %p227 = pneg %p226
    // Predicated region
    $region9: #{conv_vencoder_forward.5} parent=5 // pred_check
      _
    $region10: #{conv_vencoder_forward.5} parent=5 // pred_check_branch
      %229 = sbr.rel (%p226) target = $region12
    $region11: #{conv_vencoder_forward.5} parent=5 // pred_region
      %s230 = ssub.s32 %s14, 1
      // Predicated region
      $region13: #{conv_vencoder_forward.5} parent=11 // pred_check
        %p231 = pneg %p73
      $region14: #{conv_vencoder_forward.5} parent=11 // pred_check_branch
        %233 = sbr.rel (%p231) target = $region16
      $region15: #{conv_vencoder_forward.5} parent=11 // pred_region
        _
      $region16: #{conv_vencoder_forward.5} parent=11 // pred_fallthru
        _
      // Predicated region
      $region17: #{conv_vencoder_forward.5} parent=11 // pred_check
        %p234 = pneg %p94
      $region18: #{conv_vencoder_forward.5} parent=11 // pred_check_branch
        %236 = sbr.rel (%p234) target = $region20
      $region19: #{conv_vencoder_forward.5} parent=11 // pred_region
        _
      $region20: #{conv_vencoder_forward.5} parent=11 // pred_fallthru
        _
      // Predicated region
      $region21: #{conv_vencoder_forward.5} parent=11 // pred_check
        %p237 = pneg %p115
      $region22: #{conv_vencoder_forward.5} parent=11 // pred_check_branch
        %239 = sbr.rel (%p237) target = $region24
      $region23: #{conv_vencoder_forward.5} parent=11 // pred_region
        _
      $region24: #{conv_vencoder_forward.5} parent=11 // pred_fallthru
        _
      // Predicated region
      $region25: #{conv_vencoder_forward.5} parent=11 // pred_check
        %p240 = pneg %p136
      $region26: #{conv_vencoder_forward.5} parent=11 // pred_check_branch
        %242 = sbr.rel (%p240) target = $region28
      $region27: #{conv_vencoder_forward.5} parent=11 // pred_region
        _
      $region28: #{conv_vencoder_forward.5} parent=11 // pred_fallthru
        _
    $region12: #{conv_vencoder_forward.5} parent=5 // pred_fallthru
      _
    %p243 = scmp.lt.s32.totalorder %s14, 8
    // Predicated region
    $region29: #{conv_vencoder_forward.5} parent=5 // pred_check
      %p244 = pneg %p243
    $region30: #{conv_vencoder_forward.5} parent=5 // pred_check_branch
      %246 = sbr.rel (%p244) target = $region32
    $region31: #{conv_vencoder_forward.5} parent=5 // pred_region
      // Predicated region
      $region33: #{conv_vencoder_forward.5} parent=31 // pred_check
        %p247 = pneg %p46
      $region34: #{conv_vencoder_forward.5} parent=31 // pred_check_branch
        %249 = sbr.rel (%p247) target = $region36
      $region35: #{conv_vencoder_forward.5} parent=31 // pred_region
        %p250 = scmp.lt.s32.totalorder %s21, 1
        %s251 = scalar_select %p250, %s21, 1
        %s252 = smul.addr %s251, 32
        %s253 = smul.addr %s252, 4
        %s254 = scalar_lea.vmem %s0, %s253
      $region36: #{conv_vencoder_forward.5} parent=31 // pred_fallthru
        _
    $region32: #{conv_vencoder_forward.5} parent=5 // pred_fallthru
      _
    %p255 = scmp.le.s32.totalorder 1, %s14
    %p256 = scmp.lt.s32.totalorder %s14, 9
    %p257 = pnand %p255, %p256
    %p258 = pneg %p257
    // Predicated region
    $region37: #{conv_vencoder_forward.5} parent=5 // pred_check
      _
    $region38: #{conv_vencoder_forward.5} parent=5 // pred_check_branch
      %260 = sbr.rel (%p257) target = $region40
    $region39: #{conv_vencoder_forward.5} parent=5 // pred_region
      %s261 = ssub.s32 %s14, 1
      %p262 = scmp.lt.s32.totalorder %s23, 1
      %s263 = scalar_select %p262, %s23, 1
      %s264 = smul.addr %s263, 32
      %s265 = smul.addr %s264, 4
      %s266 = scalar_lea.vmem %s0, %s265
      %p267 = pneg %p52
      %p268 = pneg %p49
      %p269 = pneg %p73
      %p270 = pneg %p70
      %p271 = pneg %p94
      %p272 = pneg %p91
      %p273 = pneg %p115
      %p274 = pneg %p112
      %p275 = pneg %p136
      %p276 = pneg %p133
      %p277 = pneg %p164
      %p278 = pneg %p161
      %s279 = smul.u32 4, %s24
      %p280 = scmp.lt.s32.totalorder %s23, 1
      %s281 = scalar_select %p280, %s23, 1
      %p282 = scmp.lt.s32.totalorder %s279, 15
      %s283 = scalar_select %p282, %s279, 15
      %s284 = smul.addr %s283, 4
      %s285 = smul.addr %s281, 64
      %s286 = sadd.s32 %s284, %s285
      %s287 = smul.addr %s286, 4
      %s288 = scalar_lea.vmem %s5, %s287
      %p289 = pneg %p190
      %p290 = pneg %p187
      %p291 = scmp.lt.s32.totalorder %s23, 1
      %s292 = scalar_select %p291, %s23, 1
      %s293 = smul.addr %s292, 2
      %s294 = scalar_lea.vmem %s6, %s293
      %p295 = pneg %p216
      %p296 = pneg %p213
      %p297 = scmp.lt.s32.totalorder %s23, 1
      %s298 = scalar_select %p297, %s23, 1
      %s299 = smul.addr %s298, 2
      %s300 = scalar_lea.vmem %s7, %s299
      %p301 = scmp.lt.s32.totalorder %s23, 1
      %s302 = scalar_select %p301, %s23, 1
      %s303 = smul.addr %s302, 32
      %s304 = smul.addr %s303, 4
      %s305 = scalar_lea.vmem %s0, %s304
      %s306 = smul.u32 4, %s24
      %p307 = scmp.lt.s32.totalorder %s23, 1
      %s308 = scalar_select %p307, %s23, 1
      %p309 = scmp.lt.s32.totalorder %s306, 15
      %s310 = scalar_select %p309, %s306, 15
      %s311 = smul.addr %s310, 4
      %s312 = smul.addr %s308, 64
      %s313 = sadd.s32 %s311, %s312
      %s314 = smul.addr %s313, 4
      %s315 = scalar_lea.vmem %s5, %s314
      %s316 = smul.u32 4, %s24
      %p317 = scmp.lt.s32.totalorder %s23, 1
      %s318 = scalar_select %p317, %s23, 1
      %s319 = smul.addr %s318, 2
      %s320 = scalar_lea.vmem %s6, %s319
      %p321 = scmp.lt.s32.totalorder %s23, 1
      %s322 = scalar_select %p321, %s23, 1
      %s323 = smul.addr %s322, 2
      %s324 = scalar_lea.vmem %s7, %s323
      %p326 = scmp.eq.s32.totalorder %s24, 0
      // Predicated region
      $region41: #{conv_vencoder_forward.5} parent=39 // pred_check
        %p327 = pneg %p326
      $region42: #{conv_vencoder_forward.5} parent=39 // pred_check_branch
        %329 = sbr.rel (%p327) target = $region44
      $region43: #{conv_vencoder_forward.5} parent=39 // pred_region
        %v330 = vld [vmem:[%s305] sm:$0xf]
        %v331 = vld [vmem:[%s305 + $0x4] sm:$0xf]
        %v332 = vld [vmem:[%s305 + $0x8] sm:$0xf]
        %v333 = vld [vmem:[%s305 + $0xc] sm:$0xf]
        %v334 = vld [vmem:[%s305 + $0x10] sm:$0xf]
        %v335 = vld [vmem:[%s305 + $0x14] sm:$0xf]
        %v336 = vld [vmem:[%s305 + $0x18] sm:$0xf]
        %v337 = vld [vmem:[%s305 + $0x1c] sm:$0xf]
        %v338 = vld [vmem:[%s305 + $0x20] sm:$0xf]
        %v339 = vld [vmem:[%s305 + $0x24] sm:$0xf]
        %v340 = vld [vmem:[%s305 + $0x28] sm:$0xf]
        %v341 = vld [vmem:[%s305 + $0x2c] sm:$0xf]
        %v342 = vld [vmem:[%s305 + $0x30] sm:$0xf]
        %v343 = vld [vmem:[%s305 + $0x34] sm:$0xf]
        %v344 = vld [vmem:[%s305 + $0x38] sm:$0xf]
        %v345 = vld [vmem:[%s305 + $0x3c] sm:$0xf]
        %v346 = vld [vmem:[%s305 + $0x40] sm:$0xf]
        %v347 = vld [vmem:[%s305 + $0x44] sm:$0xf]
        %v348 = vld [vmem:[%s305 + $0x48] sm:$0xf]
        %v349 = vld [vmem:[%s305 + $0x4c] sm:$0xf]
        %v350 = vld [vmem:[%s305 + $0x50] sm:$0xf]
        %v351 = vld [vmem:[%s305 + $0x54] sm:$0xf]
        %v352 = vld [vmem:[%s305 + $0x58] sm:$0xf]
        %v353 = vld [vmem:[%s305 + $0x5c] sm:$0xf]
        %v354 = vld [vmem:[%s305 + $0x60] sm:$0xf]
        %v355 = vld [vmem:[%s305 + $0x64] sm:$0xf]
        %v356 = vld [vmem:[%s305 + $0x68] sm:$0xf]
        %v357 = vld [vmem:[%s305 + $0x6c] sm:$0xf]
        %v358 = vld [vmem:[%s305 + $0x70] sm:$0xf]
        %v359 = vld [vmem:[%s305 + $0x74] sm:$0xf]
        %v360 = vld [vmem:[%s305 + $0x78] sm:$0xf]
        %v361 = vld [vmem:[%s305 + $0x7c] sm:$0xf]
        %v362 = vunpack.c.l.bf16 %v330
        %v363 = vunpack.c.l.bf16 %v331
        %v364 = vunpack.c.l.bf16 %v332
        %v365 = vunpack.c.l.bf16 %v333
        %v366 = vunpack.c.l.bf16 %v334
        %v367 = vunpack.c.l.bf16 %v335
        %v368 = vunpack.c.l.bf16 %v336
        %v369 = vunpack.c.l.bf16 %v337
        %v370 = vunpack.c.l.bf16 %v338
        %v371 = vunpack.c.l.bf16 %v339
        %v372 = vunpack.c.l.bf16 %v340
        %v373 = vunpack.c.l.bf16 %v341
        %v374 = vunpack.c.l.bf16 %v342
        %v375 = vunpack.c.l.bf16 %v343
        %v376 = vunpack.c.l.bf16 %v344
        %v377 = vunpack.c.l.bf16 %v345
        %v378 = vunpack.c.l.bf16 %v346
        %v379 = vunpack.c.l.bf16 %v347
        %v380 = vunpack.c.l.bf16 %v348
        %v381 = vunpack.c.l.bf16 %v349
        %v382 = vunpack.c.l.bf16 %v350
        %v383 = vunpack.c.l.bf16 %v351
        %v384 = vunpack.c.l.bf16 %v352
        %v385 = vunpack.c.l.bf16 %v353
        %v386 = vunpack.c.l.bf16 %v354
        %v387 = vunpack.c.l.bf16 %v355
        %v388 = vunpack.c.l.bf16 %v356
        %v389 = vunpack.c.l.bf16 %v357
        %v390 = vunpack.c.l.bf16 %v358
        %v391 = vunpack.c.l.bf16 %v359
        %v392 = vunpack.c.l.bf16 %v360
        %v393 = vunpack.c.l.bf16 %v361
        %v394 = vld [vmem:[%s1] sm:$0x1]
        %v396 = vlaneseq
        %v397 = vshrl.u32 %v396, 7
        %v398 = vsub.s32 0, %v397
        %v399 = vrot.slane %v394, %v398
        %v401 = vmul.f32 %v362, %v399
        %v402 = vmul.f32 %v363, %v399
        %v403 = vmul.f32 %v364, %v399
        %v404 = vmul.f32 %v365, %v399
        %v405 = vmul.f32 %v366, %v399
        %v406 = vmul.f32 %v367, %v399
        %v407 = vmul.f32 %v368, %v399
        %v408 = vmul.f32 %v369, %v399
        %v409 = vmul.f32 %v370, %v399
        %v410 = vmul.f32 %v371, %v399
        %v411 = vmul.f32 %v372, %v399
        %v412 = vmul.f32 %v373, %v399
        %v413 = vmul.f32 %v374, %v399
        %v414 = vmul.f32 %v375, %v399
        %v415 = vmul.f32 %v376, %v399
        %v416 = vmul.f32 %v377, %v399
        %v417 = vmul.f32 %v378, %v399
        %v418 = vmul.f32 %v379, %v399
        %v419 = vmul.f32 %v380, %v399
        %v420 = vmul.f32 %v381, %v399
        %v421 = vmul.f32 %v382, %v399
        %v422 = vmul.f32 %v383, %v399
        %v423 = vmul.f32 %v384, %v399
        %v424 = vmul.f32 %v385, %v399
        %v425 = vmul.f32 %v386, %v399
        %v426 = vmul.f32 %v387, %v399
        %v427 = vmul.f32 %v388, %v399
        %v428 = vmul.f32 %v389, %v399
        %v429 = vmul.f32 %v390, %v399
        %v430 = vmul.f32 %v391, %v399
        %v431 = vmul.f32 %v392, %v399
        %v432 = vmul.f32 %v393, %v399
        %v433 = vld [vmem:[%s2] sm:$0x1]
        %v435 = vlaneseq
        %v436 = vshrl.u32 %v435, 7
        %v437 = vsub.s32 0, %v436
        %v438 = vrot.slane %v433, %v437
        %v440 = vadd.f32 %v401, %v438
        %v441 = vadd.f32 %v402, %v438
        %v442 = vadd.f32 %v403, %v438
        %v443 = vadd.f32 %v404, %v438
        %v444 = vadd.f32 %v405, %v438
        %v445 = vadd.f32 %v406, %v438
        %v446 = vadd.f32 %v407, %v438
        %v447 = vadd.f32 %v408, %v438
        %v448 = vadd.f32 %v409, %v438
        %v449 = vadd.f32 %v410, %v438
        %v450 = vadd.f32 %v411, %v438
        %v451 = vadd.f32 %v412, %v438
        %v452 = vadd.f32 %v413, %v438
        %v453 = vadd.f32 %v414, %v438
        %v454 = vadd.f32 %v415, %v438
        %v455 = vadd.f32 %v416, %v438
        %v456 = vadd.f32 %v417, %v438
        %v457 = vadd.f32 %v418, %v438
        %v458 = vadd.f32 %v419, %v438
        %v459 = vadd.f32 %v420, %v438
        %v460 = vadd.f32 %v421, %v438
        %v461 = vadd.f32 %v422, %v438
        %v462 = vadd.f32 %v423, %v438
        %v463 = vadd.f32 %v424, %v438
        %v464 = vadd.f32 %v425, %v438
        %v465 = vadd.f32 %v426, %v438
        %v466 = vadd.f32 %v427, %v438
        %v467 = vadd.f32 %v428, %v438
        %v468 = vadd.f32 %v429, %v438
        %v469 = vadd.f32 %v430, %v438
        %v470 = vadd.f32 %v431, %v438
        %v471 = vadd.f32 %v432, %v438
        %v472 = vmax.f32 %v440, 0.0
        %v473 = vmax.f32 %v441, 0.0
        %v474 = vmax.f32 %v442, 0.0
        %v475 = vmax.f32 %v443, 0.0
        %v476 = vmax.f32 %v444, 0.0
        %v477 = vmax.f32 %v445, 0.0
        %v478 = vmax.f32 %v446, 0.0
        %v479 = vmax.f32 %v447, 0.0
        %v480 = vmax.f32 %v448, 0.0
        %v481 = vmax.f32 %v449, 0.0
        %v482 = vmax.f32 %v450, 0.0
        %v483 = vmax.f32 %v451, 0.0
        %v484 = vmax.f32 %v452, 0.0
        %v485 = vmax.f32 %v453, 0.0
        %v486 = vmax.f32 %v454, 0.0
        %v487 = vmax.f32 %v455, 0.0
        %v488 = vmax.f32 %v456, 0.0
        %v489 = vmax.f32 %v457, 0.0
        %v490 = vmax.f32 %v458, 0.0
        %v491 = vmax.f32 %v459, 0.0
        %v492 = vmax.f32 %v460, 0.0
        %v493 = vmax.f32 %v461, 0.0
        %v494 = vmax.f32 %v462, 0.0
        %v495 = vmax.f32 %v463, 0.0
        %v496 = vmax.f32 %v464, 0.0
        %v497 = vmax.f32 %v465, 0.0
        %v498 = vmax.f32 %v466, 0.0
        %v499 = vmax.f32 %v467, 0.0
        %v500 = vmax.f32 %v468, 0.0
        %v501 = vmax.f32 %v469, 0.0
        %v502 = vmax.f32 %v470, 0.0
        %v503 = vmax.f32 %v471, 0.0
        %v504 = vpack.c.bf16 %v473, %v472
        %v505 = vpack.c.bf16 %v475, %v474
        %v506 = vpack.c.bf16 %v477, %v476
        %v507 = vpack.c.bf16 %v479, %v478
        %v508 = vpack.c.bf16 %v481, %v480
        %v509 = vpack.c.bf16 %v483, %v482
        %v510 = vpack.c.bf16 %v485, %v484
        %v511 = vpack.c.bf16 %v487, %v486
        %v512 = vpack.c.bf16 %v489, %v488
        %v513 = vpack.c.bf16 %v491, %v490
        %v514 = vpack.c.bf16 %v493, %v492
        %v515 = vpack.c.bf16 %v495, %v494
        %v516 = vpack.c.bf16 %v497, %v496
        %v517 = vpack.c.bf16 %v499, %v498
        %v518 = vpack.c.bf16 %v501, %v500
        %v519 = vpack.c.bf16 %v503, %v502
        %v536 = vunpack.c.l.b16 %v504
        %v537 = vunpack.c.h.b16 %v504
        %v538 = vunpack.c.l.b16 %v505
        %v539 = vunpack.c.h.b16 %v505
        %v540 = vunpack.c.l.b16 %v506
        %v541 = vunpack.c.h.b16 %v506
        %v542 = vunpack.c.l.b16 %v507
        %v543 = vunpack.c.h.b16 %v507
        %v544 = vunpack.c.l.b16 %v508
        %v545 = vunpack.c.h.b16 %v508
        %v546 = vunpack.c.l.b16 %v509
        %v547 = vunpack.c.h.b16 %v509
        %v548 = vunpack.c.l.b16 %v510
        %v549 = vunpack.c.h.b16 %v510
        %v550 = vunpack.c.l.b16 %v511
        %v551 = vunpack.c.h.b16 %v511
        %v552 = vunpack.c.l.b16 %v512
        %v553 = vunpack.c.h.b16 %v512
        %v554 = vunpack.c.l.b16 %v513
        %v555 = vunpack.c.h.b16 %v513
        %v556 = vunpack.c.l.b16 %v514
        %v557 = vunpack.c.h.b16 %v514
        %v558 = vunpack.c.l.b16 %v515
        %v559 = vunpack.c.h.b16 %v515
        %v560 = vunpack.c.l.b16 %v516
        %v561 = vunpack.c.h.b16 %v516
        %v562 = vunpack.c.l.b16 %v517
        %v563 = vunpack.c.h.b16 %v517
        %v564 = vunpack.c.l.b16 %v518
        %v565 = vunpack.c.h.b16 %v518
        %v566 = vunpack.c.l.b16 %v519
        %v567 = vunpack.c.h.b16 %v519
        %v568 = vpack.c.b16 %v536, %v536
        %v569 = vpack.c.b16 %v537, %v537
        %v570 = vpack.c.b16 %v538, %v538
        %v571 = vpack.c.b16 %v539, %v539
        %v572 = vpack.c.b16 %v540, %v540
        %v573 = vpack.c.b16 %v541, %v541
        %v574 = vpack.c.b16 %v542, %v542
        %v575 = vpack.c.b16 %v543, %v543
        %v576 = vpack.c.b16 %v544, %v544
        %v577 = vpack.c.b16 %v545, %v545
        %v578 = vpack.c.b16 %v546, %v546
        %v579 = vpack.c.b16 %v547, %v547
        %v580 = vpack.c.b16 %v548, %v548
        %v581 = vpack.c.b16 %v549, %v549
        %v582 = vpack.c.b16 %v550, %v550
        %v583 = vpack.c.b16 %v551, %v551
        %v584 = vpack.c.b16 %v552, %v552
        %v585 = vpack.c.b16 %v553, %v553
        %v586 = vpack.c.b16 %v554, %v554
        %v587 = vpack.c.b16 %v555, %v555
        %v588 = vpack.c.b16 %v556, %v556
        %v589 = vpack.c.b16 %v557, %v557
        %v590 = vpack.c.b16 %v558, %v558
        %v591 = vpack.c.b16 %v559, %v559
        %v592 = vpack.c.b16 %v560, %v560
        %v593 = vpack.c.b16 %v561, %v561
        %v594 = vpack.c.b16 %v562, %v562
        %v595 = vpack.c.b16 %v563, %v563
        %v596 = vpack.c.b16 %v564, %v564
        %v597 = vpack.c.b16 %v565, %v565
        %v598 = vpack.c.b16 %v566, %v566
        %v599 = vpack.c.b16 %v567, %v567
        %vm600 = vsmask.f32 256
        %vm601 = vsmask.f32 4368
        %vm602 = vmor %vm600, %vm601
        %v604 = vshrl.u32 %v568, 16
        %v606 = vrot.slane %v604, 7
        %v607 = vshll.u32 %v568, 16
        %v609 = vor.u32 %v606, %v607
        %v610 = vrot.slane %v606, 4
        %v612 = vshrl.u32 %v569, 16
        %v614 = vrot.slane %v612, 7
        %v615 = vshll.u32 %v569, 16
        %v617 = vor.u32 %v614, %v615
        %v618 = vsel %vm602, %v610, %v617
        %v619 = vrot.slane %v614, 4
        %v621 = vshrl.u32 %v570, 16
        %v623 = vrot.slane %v621, 7
        %v624 = vshll.u32 %v570, 16
        %v626 = vor.u32 %v623, %v624
        %v627 = vrot.slane %v623, 4
        %v629 = vshrl.u32 %v571, 16
        %v631 = vrot.slane %v629, 7
        %v632 = vshll.u32 %v571, 16
        %v634 = vor.u32 %v631, %v632
        %v635 = vsel %vm602, %v627, %v634
        %v636 = vrot.slane %v631, 4
        %v638 = vshrl.u32 %v572, 16
        %v640 = vrot.slane %v638, 7
        %v641 = vshll.u32 %v572, 16
        %v643 = vor.u32 %v640, %v641
        %v644 = vrot.slane %v640, 4
        %v646 = vshrl.u32 %v573, 16
        %v648 = vrot.slane %v646, 7
        %v649 = vshll.u32 %v573, 16
        %v651 = vor.u32 %v648, %v649
        %v652 = vsel %vm602, %v644, %v651
        %v653 = vrot.slane %v648, 4
        %v655 = vshrl.u32 %v574, 16
        %v657 = vrot.slane %v655, 7
        %v658 = vshll.u32 %v574, 16
        %v660 = vor.u32 %v657, %v658
        %v661 = vrot.slane %v657, 4
        %v663 = vshrl.u32 %v575, 16
        %v665 = vrot.slane %v663, 7
        %v666 = vshll.u32 %v575, 16
        %v668 = vor.u32 %v665, %v666
        %v669 = vsel %vm602, %v661, %v668
        %v670 = vrot.slane %v665, 4
        %v672 = vshrl.u32 %v576, 16
        %v674 = vrot.slane %v672, 7
        %v675 = vshll.u32 %v576, 16
        %v677 = vor.u32 %v674, %v675
        %v678 = vrot.slane %v674, 4
        %v680 = vshrl.u32 %v577, 16
        %v682 = vrot.slane %v680, 7
        %v683 = vshll.u32 %v577, 16
        %v685 = vor.u32 %v682, %v683
        %v686 = vsel %vm602, %v678, %v685
        %v687 = vrot.slane %v682, 4
        %v689 = vshrl.u32 %v578, 16
        %v691 = vrot.slane %v689, 7
        %v692 = vshll.u32 %v578, 16
        %v694 = vor.u32 %v691, %v692
        %v695 = vrot.slane %v691, 4
        %v697 = vshrl.u32 %v579, 16
        %v699 = vrot.slane %v697, 7
        %v700 = vshll.u32 %v579, 16
        %v702 = vor.u32 %v699, %v700
        %v703 = vsel %vm602, %v695, %v702
        %v704 = vrot.slane %v699, 4
        %v706 = vshrl.u32 %v580, 16
        %v708 = vrot.slane %v706, 7
        %v709 = vshll.u32 %v580, 16
        %v711 = vor.u32 %v708, %v709
        %v712 = vrot.slane %v708, 4
        %v714 = vshrl.u32 %v581, 16
        %v716 = vrot.slane %v714, 7
        %v717 = vshll.u32 %v581, 16
        %v719 = vor.u32 %v716, %v717
        %v720 = vsel %vm602, %v712, %v719
        %v721 = vrot.slane %v716, 4
        %v723 = vshrl.u32 %v582, 16
        %v725 = vrot.slane %v723, 7
        %v726 = vshll.u32 %v582, 16
        %v728 = vor.u32 %v725, %v726
        %v729 = vrot.slane %v725, 4
        %v731 = vshrl.u32 %v583, 16
        %v733 = vrot.slane %v731, 7
        %v734 = vshll.u32 %v583, 16
        %v736 = vor.u32 %v733, %v734
        %v737 = vsel %vm602, %v729, %v736
        %v738 = vrot.slane %v733, 4
        %v740 = vshrl.u32 %v584, 16
        %v742 = vrot.slane %v740, 7
        %v743 = vshll.u32 %v584, 16
        %v745 = vor.u32 %v742, %v743
        %v746 = vrot.slane %v742, 4
        %v748 = vshrl.u32 %v585, 16
        %v750 = vrot.slane %v748, 7
        %v751 = vshll.u32 %v585, 16
        %v753 = vor.u32 %v750, %v751
        %v754 = vsel %vm602, %v746, %v753
        %v755 = vrot.slane %v750, 4
        %v757 = vshrl.u32 %v586, 16
        %v759 = vrot.slane %v757, 7
        %v760 = vshll.u32 %v586, 16
        %v762 = vor.u32 %v759, %v760
        %v763 = vrot.slane %v759, 4
        %v765 = vshrl.u32 %v587, 16
        %v767 = vrot.slane %v765, 7
        %v768 = vshll.u32 %v587, 16
        %v770 = vor.u32 %v767, %v768
        %v771 = vsel %vm602, %v763, %v770
        %v772 = vrot.slane %v767, 4
        %v774 = vshrl.u32 %v588, 16
        %v776 = vrot.slane %v774, 7
        %v777 = vshll.u32 %v588, 16
        %v779 = vor.u32 %v776, %v777
        %v780 = vrot.slane %v776, 4
        %v782 = vshrl.u32 %v589, 16
        %v784 = vrot.slane %v782, 7
        %v785 = vshll.u32 %v589, 16
        %v787 = vor.u32 %v784, %v785
        %v788 = vsel %vm602, %v780, %v787
        %v789 = vrot.slane %v784, 4
        %v791 = vshrl.u32 %v590, 16
        %v793 = vrot.slane %v791, 7
        %v794 = vshll.u32 %v590, 16
        %v796 = vor.u32 %v793, %v794
        %v797 = vrot.slane %v793, 4
        %v799 = vshrl.u32 %v591, 16
        %v801 = vrot.slane %v799, 7
        %v802 = vshll.u32 %v591, 16
        %v804 = vor.u32 %v801, %v802
        %v805 = vsel %vm602, %v797, %v804
        %v806 = vrot.slane %v801, 4
        %v808 = vshrl.u32 %v592, 16
        %v810 = vrot.slane %v808, 7
        %v811 = vshll.u32 %v592, 16
        %v813 = vor.u32 %v810, %v811
        %v814 = vrot.slane %v810, 4
        %v816 = vshrl.u32 %v593, 16
        %v818 = vrot.slane %v816, 7
        %v819 = vshll.u32 %v593, 16
        %v821 = vor.u32 %v818, %v819
        %v822 = vsel %vm602, %v814, %v821
        %v823 = vrot.slane %v818, 4
        %v825 = vshrl.u32 %v594, 16
        %v827 = vrot.slane %v825, 7
        %v828 = vshll.u32 %v594, 16
        %v830 = vor.u32 %v827, %v828
        %v831 = vrot.slane %v827, 4
        %v833 = vshrl.u32 %v595, 16
        %v835 = vrot.slane %v833, 7
        %v836 = vshll.u32 %v595, 16
        %v838 = vor.u32 %v835, %v836
        %v839 = vsel %vm602, %v831, %v838
        %v840 = vrot.slane %v835, 4
        %v842 = vshrl.u32 %v596, 16
        %v844 = vrot.slane %v842, 7
        %v845 = vshll.u32 %v596, 16
        %v847 = vor.u32 %v844, %v845
        %v848 = vrot.slane %v844, 4
        %v850 = vshrl.u32 %v597, 16
        %v852 = vrot.slane %v850, 7
        %v853 = vshll.u32 %v597, 16
        %v855 = vor.u32 %v852, %v853
        %v856 = vsel %vm602, %v848, %v855
        %v857 = vrot.slane %v852, 4
        %v859 = vshrl.u32 %v598, 16
        %v861 = vrot.slane %v859, 7
        %v862 = vshll.u32 %v598, 16
        %v864 = vor.u32 %v861, %v862
        %v865 = vrot.slane %v861, 4
        %v867 = vshrl.u32 %v599, 16
        %v869 = vrot.slane %v867, 7
        %v870 = vshll.u32 %v599, 16
        %v872 = vor.u32 %v869, %v870
        %v873 = vsel %vm602, %v865, %v872
        %v874 = vrot.slane %v869, 4
        %s923 = scalar_lea.vmem [#allocation2], 12
        %vm924 = vcmask 1043456
        %vm925 = vsmask.f32 7938
        %vm926 = vmand %vm924, %vm925
        %v927 = vld [vmem:[%s923] sm:$0xf]
        %v928 = vsel %vm926, %v609, %v927
        %929 = vst [vmem:[%s923] sm:$0xf] %v928
        %930 = vst [vmem:[%s923 + $0x4] sm:$0xf] %v618
        %vm931 = vcmask 1040384
        %vm932 = vmand %vm931, %vm600
        %v933 = vld [vmem:[%s923 + $0x8] sm:$0x1]
        %v934 = vsel %vm932, %v619, %v933
        %935 = vst [vmem:[%s923 + $0x8] sm:$0x1] %v934
        %v936 = vld [vmem:[%s923 + $0xc] sm:$0xf]
        %v937 = vsel %vm926, %v626, %v936
        %938 = vst [vmem:[%s923 + $0xc] sm:$0xf] %v937
        %939 = vst [vmem:[%s923 + $0x10] sm:$0xf] %v635
        %v940 = vld [vmem:[%s923 + $0x14] sm:$0x1]
        %v941 = vsel %vm932, %v636, %v940
        %942 = vst [vmem:[%s923 + $0x14] sm:$0x1] %v941
        %v943 = vld [vmem:[%s923 + $0x18] sm:$0xf]
        %v944 = vsel %vm926, %v643, %v943
        %945 = vst [vmem:[%s923 + $0x18] sm:$0xf] %v944
        %946 = vst [vmem:[%s923 + $0x1c] sm:$0xf] %v652
        %v947 = vld [vmem:[%s923 + $0x20] sm:$0x1]
        %v948 = vsel %vm932, %v653, %v947
        %949 = vst [vmem:[%s923 + $0x20] sm:$0x1] %v948
        %v950 = vld [vmem:[%s923 + $0x24] sm:$0xf]
        %v951 = vsel %vm926, %v660, %v950
        %952 = vst [vmem:[%s923 + $0x24] sm:$0xf] %v951
        %953 = vst [vmem:[%s923 + $0x28] sm:$0xf] %v669
        %v954 = vld [vmem:[%s923 + $0x2c] sm:$0x1]
        %v955 = vsel %vm932, %v670, %v954
        %956 = vst [vmem:[%s923 + $0x2c] sm:$0x1] %v955
        %v957 = vld [vmem:[%s923 + $0x30] sm:$0xf]
        %v958 = vsel %vm926, %v677, %v957
        %959 = vst [vmem:[%s923 + $0x30] sm:$0xf] %v958
        %960 = vst [vmem:[%s923 + $0x34] sm:$0xf] %v686
        %v961 = vld [vmem:[%s923 + $0x38] sm:$0x1]
        %v962 = vsel %vm932, %v687, %v961
        %963 = vst [vmem:[%s923 + $0x38] sm:$0x1] %v962
        %v964 = vld [vmem:[%s923 + $0x3c] sm:$0xf]
        %v965 = vsel %vm926, %v694, %v964
        %966 = vst [vmem:[%s923 + $0x3c] sm:$0xf] %v965
        %967 = vst [vmem:[%s923 + $0x40] sm:$0xf] %v703
        %v968 = vld [vmem:[%s923 + $0x44] sm:$0x1]
        %v969 = vsel %vm932, %v704, %v968
        %970 = vst [vmem:[%s923 + $0x44] sm:$0x1] %v969
        %v971 = vld [vmem:[%s923 + $0x48] sm:$0xf]
        %v972 = vsel %vm926, %v711, %v971
        %973 = vst [vmem:[%s923 + $0x48] sm:$0xf] %v972
        %974 = vst [vmem:[%s923 + $0x4c] sm:$0xf] %v720
        %v975 = vld [vmem:[%s923 + $0x50] sm:$0x1]
        %v976 = vsel %vm932, %v721, %v975
        %977 = vst [vmem:[%s923 + $0x50] sm:$0x1] %v976
        %v978 = vld [vmem:[%s923 + $0x54] sm:$0xf]
        %v979 = vsel %vm926, %v728, %v978
        %980 = vst [vmem:[%s923 + $0x54] sm:$0xf] %v979
        %981 = vst [vmem:[%s923 + $0x58] sm:$0xf] %v737
        %v982 = vld [vmem:[%s923 + $0x5c] sm:$0x1]
        %v983 = vsel %vm932, %v738, %v982
        %984 = vst [vmem:[%s923 + $0x5c] sm:$0x1] %v983
        %v985 = vld [vmem:[%s923 + $0x60] sm:$0xf]
        %v986 = vsel %vm926, %v745, %v985
        %987 = vst [vmem:[%s923 + $0x60] sm:$0xf] %v986
        %988 = vst [vmem:[%s923 + $0x64] sm:$0xf] %v754
        %v989 = vld [vmem:[%s923 + $0x68] sm:$0x1]
        %v990 = vsel %vm932, %v755, %v989
        %991 = vst [vmem:[%s923 + $0x68] sm:$0x1] %v990
        %v992 = vld [vmem:[%s923 + $0x6c] sm:$0xf]
        %v993 = vsel %vm926, %v762, %v992
        %994 = vst [vmem:[%s923 + $0x6c] sm:$0xf] %v993
        %995 = vst [vmem:[%s923 + $0x70] sm:$0xf] %v771
        %v996 = vld [vmem:[%s923 + $0x74] sm:$0x1]
        %v997 = vsel %vm932, %v772, %v996
        %998 = vst [vmem:[%s923 + $0x74] sm:$0x1] %v997
        %v999 = vld [vmem:[%s923 + $0x78] sm:$0xf]
        %v1000 = vsel %vm926, %v779, %v999
        %1001 = vst [vmem:[%s923 + $0x78] sm:$0xf] %v1000
        %1002 = vst [vmem:[%s923 + $0x7c] sm:$0xf] %v788
        %v1003 = vld [vmem:[%s923 + $0x80] sm:$0x1]
        %v1004 = vsel %vm932, %v789, %v1003
        %1005 = vst [vmem:[%s923 + $0x80] sm:$0x1] %v1004
        %v1006 = vld [vmem:[%s923 + $0x84] sm:$0xf]
        %v1007 = vsel %vm926, %v796, %v1006
        %1008 = vst [vmem:[%s923 + $0x84] sm:$0xf] %v1007
        %1009 = vst [vmem:[%s923 + $0x88] sm:$0xf] %v805
        %v1010 = vld [vmem:[%s923 + $0x8c] sm:$0x1]
        %v1011 = vsel %vm932, %v806, %v1010
        %1012 = vst [vmem:[%s923 + $0x8c] sm:$0x1] %v1011
        %v1013 = vld [vmem:[%s923 + $0x90] sm:$0xf]
        %v1014 = vsel %vm926, %v813, %v1013
        %1015 = vst [vmem:[%s923 + $0x90] sm:$0xf] %v1014
        %1016 = vst [vmem:[%s923 + $0x94] sm:$0xf] %v822
        %v1017 = vld [vmem:[%s923 + $0x98] sm:$0x1]
        %v1018 = vsel %vm932, %v823, %v1017
        %1019 = vst [vmem:[%s923 + $0x98] sm:$0x1] %v1018
        %v1020 = vld [vmem:[%s923 + $0x9c] sm:$0xf]
        %v1021 = vsel %vm926, %v830, %v1020
        %1022 = vst [vmem:[%s923 + $0x9c] sm:$0xf] %v1021
        %1023 = vst [vmem:[%s923 + $0xa0] sm:$0xf] %v839
        %v1024 = vld [vmem:[%s923 + $0xa4] sm:$0x1]
        %v1025 = vsel %vm932, %v840, %v1024
        %1026 = vst [vmem:[%s923 + $0xa4] sm:$0x1] %v1025
        %v1027 = vld [vmem:[%s923 + $0xa8] sm:$0xf]
        %v1028 = vsel %vm926, %v847, %v1027
        %1029 = vst [vmem:[%s923 + $0xa8] sm:$0xf] %v1028
        %1030 = vst [vmem:[%s923 + $0xac] sm:$0xf] %v856
        %v1031 = vld [vmem:[%s923 + $0xb0] sm:$0x1]
        %v1032 = vsel %vm932, %v857, %v1031
        %1033 = vst [vmem:[%s923 + $0xb0] sm:$0x1] %v1032
        %v1034 = vld [vmem:[%s923 + $0xb4] sm:$0xf]
        %v1035 = vsel %vm926, %v864, %v1034
        %1036 = vst [vmem:[%s923 + $0xb4] sm:$0xf] %v1035
        %1037 = vst [vmem:[%s923 + $0xb8] sm:$0xf] %v873
        %v1038 = vld [vmem:[%s923 + $0xbc] sm:$0x1]
        %v1039 = vsel %vm932, %v874, %v1038
        %1040 = vst [vmem:[%s923 + $0xbc] sm:$0x1] %v1039
        %1041 = vst [vmem:[#allocation2] sm:$0xf] 0
        %1042 = vst [vmem:[#allocation2 + $0x4] sm:$0xf] 0
        %1043 = vst [vmem:[#allocation2 + $0x8] sm:$0xf] 0
        %s1044 = scalar_lea.vmem [#allocation2], 204
        %1045 = vst [vmem:[%s1044] sm:$0xf] 0
        %1046 = vst [vmem:[%s1044 + $0x4] sm:$0xf] 0
        %1047 = vst [vmem:[%s1044 + $0x8] sm:$0xf] 0
        %v1048 = vld [vmem:[%s923] sm:$0x1]
        %v1049 = vsel %vm932, 0, %v1048
        %1050 = vst [vmem:[%s923] sm:$0x1] %v1049
        %v1051 = vld [vmem:[%s923 + $0xc] sm:$0x1]
        %v1052 = vsel %vm932, 0, %v1051
        %1053 = vst [vmem:[%s923 + $0xc] sm:$0x1] %v1052
        %v1054 = vld [vmem:[%s923 + $0x18] sm:$0x1]
        %v1055 = vsel %vm932, 0, %v1054
        %1056 = vst [vmem:[%s923 + $0x18] sm:$0x1] %v1055
        %v1057 = vld [vmem:[%s923 + $0x24] sm:$0x1]
        %v1058 = vsel %vm932, 0, %v1057
        %1059 = vst [vmem:[%s923 + $0x24] sm:$0x1] %v1058
        %v1060 = vld [vmem:[%s923 + $0x30] sm:$0x1]
        %v1061 = vsel %vm932, 0, %v1060
        %1062 = vst [vmem:[%s923 + $0x30] sm:$0x1] %v1061
        %v1063 = vld [vmem:[%s923 + $0x3c] sm:$0x1]
        %v1064 = vsel %vm932, 0, %v1063
        %1065 = vst [vmem:[%s923 + $0x3c] sm:$0x1] %v1064
        %v1066 = vld [vmem:[%s923 + $0x48] sm:$0x1]
        %v1067 = vsel %vm932, 0, %v1066
        %1068 = vst [vmem:[%s923 + $0x48] sm:$0x1] %v1067
        %v1069 = vld [vmem:[%s923 + $0x54] sm:$0x1]
        %v1070 = vsel %vm932, 0, %v1069
        %1071 = vst [vmem:[%s923 + $0x54] sm:$0x1] %v1070
        %v1072 = vld [vmem:[%s923 + $0x60] sm:$0x1]
        %v1073 = vsel %vm932, 0, %v1072
        %1074 = vst [vmem:[%s923 + $0x60] sm:$0x1] %v1073
        %v1075 = vld [vmem:[%s923 + $0x6c] sm:$0x1]
        %v1076 = vsel %vm932, 0, %v1075
        %1077 = vst [vmem:[%s923 + $0x6c] sm:$0x1] %v1076
        %v1078 = vld [vmem:[%s923 + $0x78] sm:$0x1]
        %v1079 = vsel %vm932, 0, %v1078
        %1080 = vst [vmem:[%s923 + $0x78] sm:$0x1] %v1079
        %v1081 = vld [vmem:[%s923 + $0x84] sm:$0x1]
        %v1082 = vsel %vm932, 0, %v1081
        %1083 = vst [vmem:[%s923 + $0x84] sm:$0x1] %v1082
        %v1084 = vld [vmem:[%s923 + $0x90] sm:$0x1]
        %v1085 = vsel %vm932, 0, %v1084
        %1086 = vst [vmem:[%s923 + $0x90] sm:$0x1] %v1085
        %v1087 = vld [vmem:[%s923 + $0x9c] sm:$0x1]
        %v1088 = vsel %vm932, 0, %v1087
        %1089 = vst [vmem:[%s923 + $0x9c] sm:$0x1] %v1088
        %v1090 = vld [vmem:[%s923 + $0xa8] sm:$0x1]
        %v1091 = vsel %vm932, 0, %v1090
        %1092 = vst [vmem:[%s923 + $0xa8] sm:$0x1] %v1091
        %v1093 = vld [vmem:[%s923 + $0xb4] sm:$0x1]
        %v1094 = vsel %vm932, 0, %v1093
        %1095 = vst [vmem:[%s923 + $0xb4] sm:$0x1] %v1094
        %vm1096 = vmand %vm931, %vm925
        %v1097 = vld [vmem:[%s923 + $0x8] sm:$0x1]
        %v1098 = vsel %vm1096, 0, %v1097
        %1099 = vst [vmem:[%s923 + $0x8] sm:$0x1] %v1098
        %v1100 = vld [vmem:[%s923 + $0x14] sm:$0x1]
        %v1101 = vsel %vm1096, 0, %v1100
        %1102 = vst [vmem:[%s923 + $0x14] sm:$0x1] %v1101
        %v1103 = vld [vmem:[%s923 + $0x20] sm:$0x1]
        %v1104 = vsel %vm1096, 0, %v1103
        %1105 = vst [vmem:[%s923 + $0x20] sm:$0x1] %v1104
        %v1106 = vld [vmem:[%s923 + $0x2c] sm:$0x1]
        %v1107 = vsel %vm1096, 0, %v1106
        %1108 = vst [vmem:[%s923 + $0x2c] sm:$0x1] %v1107
        %v1109 = vld [vmem:[%s923 + $0x38] sm:$0x1]
        %v1110 = vsel %vm1096, 0, %v1109
        %1111 = vst [vmem:[%s923 + $0x38] sm:$0x1] %v1110
        %v1112 = vld [vmem:[%s923 + $0x44] sm:$0x1]
        %v1113 = vsel %vm1096, 0, %v1112
        %1114 = vst [vmem:[%s923 + $0x44] sm:$0x1] %v1113
        %v1115 = vld [vmem:[%s923 + $0x50] sm:$0x1]
        %v1116 = vsel %vm1096, 0, %v1115
        %1117 = vst [vmem:[%s923 + $0x50] sm:$0x1] %v1116
        %v1118 = vld [vmem:[%s923 + $0x5c] sm:$0x1]
        %v1119 = vsel %vm1096, 0, %v1118
        %1120 = vst [vmem:[%s923 + $0x5c] sm:$0x1] %v1119
        %v1121 = vld [vmem:[%s923 + $0x68] sm:$0x1]
        %v1122 = vsel %vm1096, 0, %v1121
        %1123 = vst [vmem:[%s923 + $0x68] sm:$0x1] %v1122
        %v1124 = vld [vmem:[%s923 + $0x74] sm:$0x1]
        %v1125 = vsel %vm1096, 0, %v1124
        %1126 = vst [vmem:[%s923 + $0x74] sm:$0x1] %v1125
        %v1127 = vld [vmem:[%s923 + $0x80] sm:$0x1]
        %v1128 = vsel %vm1096, 0, %v1127
        %1129 = vst [vmem:[%s923 + $0x80] sm:$0x1] %v1128
        %v1130 = vld [vmem:[%s923 + $0x8c] sm:$0x1]
        %v1131 = vsel %vm1096, 0, %v1130
        %1132 = vst [vmem:[%s923 + $0x8c] sm:$0x1] %v1131
        %v1133 = vld [vmem:[%s923 + $0x98] sm:$0x1]
        %v1134 = vsel %vm1096, 0, %v1133
        %1135 = vst [vmem:[%s923 + $0x98] sm:$0x1] %v1134
        %v1136 = vld [vmem:[%s923 + $0xa4] sm:$0x1]
        %v1137 = vsel %vm1096, 0, %v1136
        %1138 = vst [vmem:[%s923 + $0xa4] sm:$0x1] %v1137
        %v1139 = vld [vmem:[%s923 + $0xb0] sm:$0x1]
        %v1140 = vsel %vm1096, 0, %v1139
        %1141 = vst [vmem:[%s923 + $0xb0] sm:$0x1] %v1140
        %v1142 = vld [vmem:[%s923 + $0xbc] sm:$0x1]
        %v1143 = vsel %vm1096, 0, %v1142
        %1144 = vst [vmem:[%s923 + $0xbc] sm:$0x1] %v1143
      $region44: #{conv_vencoder_forward.5} parent=39 // pred_fallthru
        _
      %s1145 = smul.u32 %s24, 4
      %s1146 = smul.u32 %s1145, 3
      %s1147 = smul.addr %s1146, 4
      %s1148 = scalar_lea.vmem [#allocation2], %s1147
      %v1149 = vld [vmem:[%s1148] sm:$0xf]
      %v1150 = vld [vmem:[%s1148 + $0x4] sm:$0xf]
      %v1151 = vld [vmem:[%s1148 + $0xc] sm:$0xf]
      %v1152 = vld [vmem:[%s1148 + $0x10] sm:$0xf]
      %v1153 = vld [vmem:[%s1148 + $0x18] sm:$0xf]
      %v1154 = vld [vmem:[%s1148 + $0x1c] sm:$0xf]
      %v1155 = vld [vmem:[%s1148 + $0x24] sm:$0xf]
      %v1156 = vld [vmem:[%s1148 + $0x28] sm:$0xf]
      %v1157 = vld [vmem:[%s3] sm:$0xff]
      %v1158 = vld [vmem:[%s3 + $0x8] sm:$0xff]
      %v1159 = vld [vmem:[%s3 + $0x10] sm:$0xff]
      %v1160 = vld [vmem:[%s3 + $0x18] sm:$0xff]
      %v1161 = vld [vmem:[%s3 + $0x20] sm:$0xff]
      %v1162 = vld [vmem:[%s3 + $0x28] sm:$0xff]
      %v1163 = vld [vmem:[%s3 + $0x30] sm:$0xff]
      %v1164 = vld [vmem:[%s3 + $0x38] sm:$0xff]
      %v1165 = vld [vmem:[%s3 + $0x40] sm:$0xff]
      %v1166 = vld [vmem:[%s3 + $0x48] sm:$0xff]
      %v1167 = vld [vmem:[%s3 + $0x50] sm:$0xff]
      %v1168 = vld [vmem:[%s3 + $0x58] sm:$0xff]
      %v1169 = vld [vmem:[%s3 + $0x60] sm:$0xff]
      %v1170 = vld [vmem:[%s3 + $0x68] sm:$0xff]
      %v1171 = vld [vmem:[%s3 + $0x70] sm:$0xff]
      %v1172 = vld [vmem:[%s3 + $0x78] sm:$0xff]
      %v1173 = vld [vmem:[%s1148 + $0x8] sm:$0x1]
      %v1174 = vld [vmem:[%s1148 + $0x14] sm:$0x1]
      %v1175 = vld [vmem:[%s1148 + $0x20] sm:$0x1]
      %v1176 = vld [vmem:[%s1148 + $0x2c] sm:$0x1]
      %vm1177 = vsmask.f32 3328
      %vm1178 = vsmask.f32 7440
      %vm1179 = vmor %vm1177, %vm1178
      %v1181 = vshrl.u32 %v1149, 16
      %v1183 = vrot.slane %v1181, 4
      %v1184 = vshll.u32 %v1149, 16
      %v1186 = vrot.slane %v1184, 5
      %v1187 = vor.u32 %v1183, %v1186
      %v1188 = vrot.slane %v1187, 4
      %v1190 = vshll.u32 %v1150, 16
      %v1192 = vrot.slane %v1190, 5
      %v1193 = vsel %vm1179, %v1188, %v1192
      %v1194 = vshrl.u32 %v1150, 16
      %v1196 = vrot.slane %v1194, 4
      %v1197 = vor.u32 %v1196, %v1192
      %v1198 = vrot.slane %v1197, 4
      %v1200 = vshll.u32 %v1173, 16
      %v1202 = vrot.slane %v1200, 5
      %v1203 = vsel %vm1179, %v1198, %v1202
      %v1205 = vshrl.u32 %v1151, 16
      %v1207 = vrot.slane %v1205, 4
      %v1208 = vshll.u32 %v1151, 16
      %v1210 = vrot.slane %v1208, 5
      %v1211 = vor.u32 %v1207, %v1210
      %v1212 = vrot.slane %v1211, 4
      %v1214 = vshll.u32 %v1152, 16
      %v1216 = vrot.slane %v1214, 5
      %v1217 = vsel %vm1179, %v1212, %v1216
      %v1218 = vshrl.u32 %v1152, 16
      %v1220 = vrot.slane %v1218, 4
      %v1221 = vor.u32 %v1220, %v1216
      %v1222 = vrot.slane %v1221, 4
      %v1224 = vshll.u32 %v1174, 16
      %v1226 = vrot.slane %v1224, 5
      %v1227 = vsel %vm1179, %v1222, %v1226
      %v1229 = vshrl.u32 %v1153, 16
      %v1231 = vrot.slane %v1229, 4
      %v1232 = vshll.u32 %v1153, 16
      %v1234 = vrot.slane %v1232, 5
      %v1235 = vor.u32 %v1231, %v1234
      %v1236 = vrot.slane %v1235, 4
      %v1238 = vshll.u32 %v1154, 16
      %v1240 = vrot.slane %v1238, 5
      %v1241 = vsel %vm1179, %v1236, %v1240
      %v1242 = vshrl.u32 %v1154, 16
      %v1244 = vrot.slane %v1242, 4
      %v1245 = vor.u32 %v1244, %v1240
      %v1246 = vrot.slane %v1245, 4
      %v1248 = vshll.u32 %v1175, 16
      %v1250 = vrot.slane %v1248, 5
      %v1251 = vsel %vm1179, %v1246, %v1250
      %v1253 = vshrl.u32 %v1155, 16
      %v1255 = vrot.slane %v1253, 4
      %v1256 = vshll.u32 %v1155, 16
      %v1258 = vrot.slane %v1256, 5
      %v1259 = vor.u32 %v1255, %v1258
      %v1260 = vrot.slane %v1259, 4
      %v1262 = vshll.u32 %v1156, 16
      %v1264 = vrot.slane %v1262, 5
      %v1265 = vsel %vm1179, %v1260, %v1264
      %v1266 = vshrl.u32 %v1156, 16
      %v1268 = vrot.slane %v1266, 4
      %v1269 = vor.u32 %v1268, %v1264
      %v1270 = vrot.slane %v1269, 4
      %v1272 = vshll.u32 %v1176, 16
      %v1274 = vrot.slane %v1272, 5
      %v1275 = vsel %vm1179, %v1270, %v1274
      %s1276 = scalar_lea.vmem %s3, 128
      %v1277 = vld [vmem:[%s1276] sm:$0xff]
      %v1278 = vld [vmem:[%s1276 + $0x8] sm:$0xff]
      %v1279 = vld [vmem:[%s1276 + $0x10] sm:$0xff]
      %v1280 = vld [vmem:[%s1276 + $0x18] sm:$0xff]
      %v1281 = vld [vmem:[%s1276 + $0x20] sm:$0xff]
      %v1282 = vld [vmem:[%s1276 + $0x28] sm:$0xff]
      %v1283 = vld [vmem:[%s1276 + $0x30] sm:$0xff]
      %v1284 = vld [vmem:[%s1276 + $0x38] sm:$0xff]
      %v1285 = vld [vmem:[%s1276 + $0x40] sm:$0xff]
      %v1286 = vld [vmem:[%s1276 + $0x48] sm:$0xff]
      %v1287 = vld [vmem:[%s1276 + $0x50] sm:$0xff]
      %v1288 = vld [vmem:[%s1276 + $0x58] sm:$0xff]
      %v1289 = vld [vmem:[%s1276 + $0x60] sm:$0xff]
      %v1290 = vld [vmem:[%s1276 + $0x68] sm:$0xff]
      %v1291 = vld [vmem:[%s1276 + $0x70] sm:$0xff]
      %v1292 = vld [vmem:[%s1276 + $0x78] sm:$0xff]
      %v1293 = vunpack.c.l.b16 %v1193
      %v1294 = vunpack.c.l.b16 %v1203
      %v1295 = vunpack.c.l.b16 %v1217
      %v1296 = vunpack.c.l.b16 %v1227
      %v1297 = vunpack.c.l.b16 %v1241
      %v1298 = vunpack.c.l.b16 %v1251
      %v1299 = vunpack.c.l.b16 %v1265
      %v1300 = vunpack.c.l.b16 %v1275
      %v1301 = vpack.c.b16 %v1294, %v1293
      %v1302 = vpack.c.b16 %v1296, %v1295
      %v1303 = vpack.c.b16 %v1298, %v1297
      %v1304 = vpack.c.b16 %v1300, %v1299
      %v1325 = vunpack.c.l.b16 %v1277
      %v1326 = vunpack.c.h.b16 %v1277
      %v1327 = vunpack.c.l.b16 %v1278
      %v1328 = vunpack.c.h.b16 %v1278
      %v1329 = vunpack.c.l.b16 %v1279
      %v1330 = vunpack.c.h.b16 %v1279
      %v1331 = vunpack.c.l.b16 %v1280
      %v1332 = vunpack.c.h.b16 %v1280
      %v1333 = vunpack.c.l.b16 %v1281
      %v1334 = vunpack.c.h.b16 %v1281
      %v1335 = vunpack.c.l.b16 %v1282
      %v1336 = vunpack.c.h.b16 %v1282
      %v1337 = vunpack.c.l.b16 %v1283
      %v1338 = vunpack.c.h.b16 %v1283
      %v1339 = vunpack.c.l.b16 %v1284
      %v1340 = vunpack.c.h.b16 %v1284
      %v1341 = vunpack.c.l.b16 %v1285
      %v1342 = vunpack.c.h.b16 %v1285
      %v1343 = vunpack.c.l.b16 %v1286
      %v1344 = vunpack.c.h.b16 %v1286
      %v1345 = vunpack.c.l.b16 %v1287
      %v1346 = vunpack.c.h.b16 %v1287
      %v1347 = vunpack.c.l.b16 %v1288
      %v1348 = vunpack.c.h.b16 %v1288
      %v1349 = vunpack.c.l.b16 %v1289
      %v1350 = vunpack.c.h.b16 %v1289
      %v1351 = vunpack.c.l.b16 %v1290
      %v1352 = vunpack.c.h.b16 %v1290
      %v1353 = vunpack.c.l.b16 %v1291
      %v1354 = vunpack.c.h.b16 %v1291
      %v1355 = vunpack.c.l.b16 %v1292
      %v1356 = vunpack.c.h.b16 %v1292
      %v1357 = vpack.c.b16 %v1327, %v1325
      %v1358 = vpack.c.b16 %v1328, %v1326
      %v1359 = vpack.c.b16 %v1331, %v1329
      %v1360 = vpack.c.b16 %v1332, %v1330
      %v1361 = vpack.c.b16 %v1335, %v1333
      %v1362 = vpack.c.b16 %v1336, %v1334
      %v1363 = vpack.c.b16 %v1339, %v1337
      %v1364 = vpack.c.b16 %v1340, %v1338
      %v1365 = vpack.c.b16 %v1343, %v1341
      %v1366 = vpack.c.b16 %v1344, %v1342
      %v1367 = vpack.c.b16 %v1347, %v1345
      %v1368 = vpack.c.b16 %v1348, %v1346
      %v1369 = vpack.c.b16 %v1351, %v1349
      %v1370 = vpack.c.b16 %v1352, %v1350
      %v1371 = vpack.c.b16 %v1355, %v1353
      %v1372 = vpack.c.b16 %v1356, %v1354
      %1389 = vmatprep.subr.bf16.mxu0 %v1372
      %1390 = vmatpush1.bf16.msra.mxu0 %v1371
      %1391 = vmatprep.subr.bf16.mxu0 %v1370
      %1392 = vmatpush1.bf16.msra.mxu0 %v1369
      %1393 = vmatprep.subr.bf16.mxu0 %v1368
      %1394 = vmatpush1.bf16.msra.mxu0 %v1367
      %1395 = vmatprep.subr.bf16.mxu0 %v1366
      %1396 = vmatpush1.bf16.msra.mxu0 %v1365
      %1397 = vmatprep.subr.bf16.mxu0 %v1364
      %1398 = vmatpush1.bf16.msra.mxu0 %v1363
      %1399 = vmatprep.subr.bf16.mxu0 %v1362
      %1400 = vmatpush1.bf16.msra.mxu0 %v1361
      %1401 = vmatprep.subr.bf16.mxu0 %v1360
      %1402 = vmatpush1.bf16.msra.mxu0 %v1359
      %1403 = vmatprep.subr.bf16.mxu0 %v1358
      %1404 = vmatpush1.bf16.msra.mxu0 %v1357
      %1405 = vmatprep.subr.bf16.mxu0 0
      %1406 = vmatpush2.bf16.msra.mxu0 0
      %1407 = vmatprep.subr.bf16.mxu0 0
      %1408 = vmatpush2.bf16.msra.mxu0 0
      %1409 = vmatprep.subr.bf16.mxu0 0
      %1410 = vmatpush2.bf16.msra.mxu0 0
      %1411 = vmatprep.subr.bf16.mxu0 0
      %1412 = vmatpush2.bf16.msra.mxu0 0
      %1413 = vmatprep.subr.bf16.mxu0 0
      %1414 = vmatpush2.bf16.msra.mxu0 0
      %1415 = vmatprep.subr.bf16.mxu0 0
      %1416 = vmatpush2.bf16.msra.mxu0 0
      %1417 = vmatprep.subr.bf16.mxu0 0
      %1418 = vmatpush2.bf16.msra.mxu0 0
      %1419 = vmatprep.subr.bf16.mxu0 0
      %1420 = vmatpush2.bf16.msra.mxu0 0
      %1421 = vmatprep.mubr.bf16.mxu0 0
      %1422 = vmatmul.mubr.bf16.gmra.mxu0 %v1301
      %v1423 = vpop.f32.mrf.mxu0
      %v1424 = vadd.f32 0.0, %v1423
      %v1425 = vpop.f32.mrf.mxu0
      %v1426 = vadd.f32 0.0, %v1425
      %v1427 = vpop.f32.mrf.mxu0
      %v1428 = vadd.f32 0.0, %v1427
      %v1429 = vpop.f32.mrf.mxu0
      %v1430 = vadd.f32 0.0, %v1429
      %1431 = vmatprep.mubr.bf16.mxu0 0
      %1432 = vmatmul.mubr.bf16.gmra.mxu0 %v1302
      %v1433 = vpop.f32.mrf.mxu0
      %v1434 = vadd.f32 0.0, %v1433
      %v1435 = vpop.f32.mrf.mxu0
      %v1436 = vadd.f32 0.0, %v1435
      %v1437 = vpop.f32.mrf.mxu0
      %v1438 = vadd.f32 0.0, %v1437
      %v1439 = vpop.f32.mrf.mxu0
      %v1440 = vadd.f32 0.0, %v1439
      %1441 = vmatprep.mubr.bf16.mxu0 0
      %1442 = vmatmul.mubr.bf16.gmra.mxu0 %v1303
      %v1443 = vpop.f32.mrf.mxu0
      %v1444 = vadd.f32 0.0, %v1443
      %v1445 = vpop.f32.mrf.mxu0
      %v1446 = vadd.f32 0.0, %v1445
      %v1447 = vpop.f32.mrf.mxu0
      %v1448 = vadd.f32 0.0, %v1447
      %v1449 = vpop.f32.mrf.mxu0
      %v1450 = vadd.f32 0.0, %v1449
      %1451 = vmatprep.mubr.bf16.mxu0 0
      %1452 = vmatmul.mubr.bf16.gmra.mxu0 %v1304
      %v1453 = vpop.f32.mrf.mxu0
      %v1454 = vadd.f32 0.0, %v1453
      %v1455 = vpop.f32.mrf.mxu0
      %v1456 = vadd.f32 0.0, %v1455
      %v1457 = vpop.f32.mrf.mxu0
      %v1458 = vadd.f32 0.0, %v1457
      %v1459 = vpop.f32.mrf.mxu0
      %v1460 = vadd.f32 0.0, %v1459
      %1461 = vdwg.mxu0
      %v1470 = vunpack.c.l.b16 %v1149
      %v1471 = vunpack.c.l.b16 %v1150
      %v1472 = vunpack.c.l.b16 %v1151
      %v1473 = vunpack.c.l.b16 %v1152
      %v1474 = vunpack.c.l.b16 %v1153
      %v1475 = vunpack.c.l.b16 %v1154
      %v1476 = vunpack.c.l.b16 %v1155
      %v1477 = vunpack.c.l.b16 %v1156
      %v1478 = vpack.c.b16 %v1471, %v1470
      %v1479 = vpack.c.b16 %v1473, %v1472
      %v1480 = vpack.c.b16 %v1475, %v1474
      %v1481 = vpack.c.b16 %v1477, %v1476
      %v1502 = vunpack.c.l.b16 %v1157
      %v1503 = vunpack.c.h.b16 %v1157
      %v1504 = vunpack.c.l.b16 %v1158
      %v1505 = vunpack.c.h.b16 %v1158
      %v1506 = vunpack.c.l.b16 %v1159
      %v1507 = vunpack.c.h.b16 %v1159
      %v1508 = vunpack.c.l.b16 %v1160
      %v1509 = vunpack.c.h.b16 %v1160
      %v1510 = vunpack.c.l.b16 %v1161
      %v1511 = vunpack.c.h.b16 %v1161
      %v1512 = vunpack.c.l.b16 %v1162
      %v1513 = vunpack.c.h.b16 %v1162
      %v1514 = vunpack.c.l.b16 %v1163
      %v1515 = vunpack.c.h.b16 %v1163
      %v1516 = vunpack.c.l.b16 %v1164
      %v1517 = vunpack.c.h.b16 %v1164
      %v1518 = vunpack.c.l.b16 %v1165
      %v1519 = vunpack.c.h.b16 %v1165
      %v1520 = vunpack.c.l.b16 %v1166
      %v1521 = vunpack.c.h.b16 %v1166
      %v1522 = vunpack.c.l.b16 %v1167
      %v1523 = vunpack.c.h.b16 %v1167
      %v1524 = vunpack.c.l.b16 %v1168
      %v1525 = vunpack.c.h.b16 %v1168
      %v1526 = vunpack.c.l.b16 %v1169
      %v1527 = vunpack.c.h.b16 %v1169
      %v1528 = vunpack.c.l.b16 %v1170
      %v1529 = vunpack.c.h.b16 %v1170
      %v1530 = vunpack.c.l.b16 %v1171
      %v1531 = vunpack.c.h.b16 %v1171
      %v1532 = vunpack.c.l.b16 %v1172
      %v1533 = vunpack.c.h.b16 %v1172
      %v1534 = vpack.c.b16 %v1504, %v1502
      %v1535 = vpack.c.b16 %v1505, %v1503
      %v1536 = vpack.c.b16 %v1508, %v1506
      %v1537 = vpack.c.b16 %v1509, %v1507
      %v1538 = vpack.c.b16 %v1512, %v1510
      %v1539 = vpack.c.b16 %v1513, %v1511
      %v1540 = vpack.c.b16 %v1516, %v1514
      %v1541 = vpack.c.b16 %v1517, %v1515
      %v1542 = vpack.c.b16 %v1520, %v1518
      %v1543 = vpack.c.b16 %v1521, %v1519
      %v1544 = vpack.c.b16 %v1524, %v1522
      %v1545 = vpack.c.b16 %v1525, %v1523
      %v1546 = vpack.c.b16 %v1528, %v1526
      %v1547 = vpack.c.b16 %v1529, %v1527
      %v1548 = vpack.c.b16 %v1532, %v1530
      %v1549 = vpack.c.b16 %v1533, %v1531
      %1566 = vmatprep.subr.bf16.mxu0 %v1549
      %1567 = vmatpush1.bf16.msra.mxu0 %v1548
      %1568 = vmatprep.subr.bf16.mxu0 %v1547
      %1569 = vmatpush1.bf16.msra.mxu0 %v1546
      %1570 = vmatprep.subr.bf16.mxu0 %v1545
      %1571 = vmatpush1.bf16.msra.mxu0 %v1544
      %1572 = vmatprep.subr.bf16.mxu0 %v1543
      %1573 = vmatpush1.bf16.msra.mxu0 %v1542
      %1574 = vmatprep.subr.bf16.mxu0 %v1541
      %1575 = vmatpush1.bf16.msra.mxu0 %v1540
      %1576 = vmatprep.subr.bf16.mxu0 %v1539
      %1577 = vmatpush1.bf16.msra.mxu0 %v1538
      %1578 = vmatprep.subr.bf16.mxu0 %v1537
      %1579 = vmatpush1.bf16.msra.mxu0 %v1536
      %1580 = vmatprep.subr.bf16.mxu0 %v1535
      %1581 = vmatpush1.bf16.msra.mxu0 %v1534
      %1582 = vmatprep.subr.bf16.mxu0 0
      %1583 = vmatpush2.bf16.msra.mxu0 0
      %1584 = vmatprep.subr.bf16.mxu0 0
      %1585 = vmatpush2.bf16.msra.mxu0 0
      %1586 = vmatprep.subr.bf16.mxu0 0
      %1587 = vmatpush2.bf16.msra.mxu0 0
      %1588 = vmatprep.subr.bf16.mxu0 0
      %1589 = vmatpush2.bf16.msra.mxu0 0
      %1590 = vmatprep.subr.bf16.mxu0 0
      %1591 = vmatpush2.bf16.msra.mxu0 0
      %1592 = vmatprep.subr.bf16.mxu0 0
      %1593 = vmatpush2.bf16.msra.mxu0 0
      %1594 = vmatprep.subr.bf16.mxu0 0
      %1595 = vmatpush2.bf16.msra.mxu0 0
      %1596 = vmatprep.subr.bf16.mxu0 0
      %1597 = vmatpush2.bf16.msra.mxu0 0
      %1598 = vmatprep.mubr.bf16.mxu0 0
      %1599 = vmatmul.mubr.bf16.gmra.mxu0 %v1478
      %v1600 = vpop.f32.mrf.mxu0
      %v1601 = vadd.f32 %v1424, %v1600
      %v1602 = vpop.f32.mrf.mxu0
      %v1603 = vadd.f32 %v1426, %v1602
      %v1604 = vpop.f32.mrf.mxu0
      %v1605 = vadd.f32 %v1428, %v1604
      %v1606 = vpop.f32.mrf.mxu0
      %v1607 = vadd.f32 %v1430, %v1606
      %1608 = vmatprep.mubr.bf16.mxu0 0
      %1609 = vmatmul.mubr.bf16.gmra.mxu0 %v1479
      %v1610 = vpop.f32.mrf.mxu0
      %v1611 = vadd.f32 %v1434, %v1610
      %v1612 = vpop.f32.mrf.mxu0
      %v1613 = vadd.f32 %v1436, %v1612
      %v1614 = vpop.f32.mrf.mxu0
      %v1615 = vadd.f32 %v1438, %v1614
      %v1616 = vpop.f32.mrf.mxu0
      %v1617 = vadd.f32 %v1440, %v1616
      %1618 = vmatprep.mubr.bf16.mxu0 0
      %1619 = vmatmul.mubr.bf16.gmra.mxu0 %v1480
      %v1620 = vpop.f32.mrf.mxu0
      %v1621 = vadd.f32 %v1444, %v1620
      %v1622 = vpop.f32.mrf.mxu0
      %v1623 = vadd.f32 %v1446, %v1622
      %v1624 = vpop.f32.mrf.mxu0
      %v1625 = vadd.f32 %v1448, %v1624
      %v1626 = vpop.f32.mrf.mxu0
      %v1627 = vadd.f32 %v1450, %v1626
      %1628 = vmatprep.mubr.bf16.mxu0 0
      %1629 = vmatmul.mubr.bf16.gmra.mxu0 %v1481
      %v1630 = vpop.f32.mrf.mxu0
      %v1631 = vadd.f32 %v1454, %v1630
      %v1632 = vpop.f32.mrf.mxu0
      %v1633 = vadd.f32 %v1456, %v1632
      %v1634 = vpop.f32.mrf.mxu0
      %v1635 = vadd.f32 %v1458, %v1634
      %v1636 = vpop.f32.mrf.mxu0
      %v1637 = vadd.f32 %v1460, %v1636
      %1638 = vdwg.mxu0
      %v1639 = vld [vmem:[%s1148] sm:$0xe]
      %v1640 = vld [vmem:[%s1148 + $0xc] sm:$0xe]
      %v1641 = vld [vmem:[%s1148 + $0x18] sm:$0xe]
      %v1642 = vld [vmem:[%s1148 + $0x24] sm:$0xe]
      %vm1651 = vcmask 1042432
      %vm1652 = vcmask 1046532
      %vm1653 = vmor %vm1651, %vm1652
      %v1654 = vrot.slane %v1639, 5
      %v1655 = vrot.slane %v1654, 4
      %v1656 = vrot.slane %v1150, 5
      %v1657 = vsel %vm1653, %v1655, %v1656
      %v1658 = vrot.slane %v1656, 4
      %v1659 = vrot.slane %v1173, 5
      %v1660 = vsel %vm1653, %v1658, %v1659
      %v1661 = vrot.slane %v1640, 5
      %v1662 = vrot.slane %v1661, 4
      %v1663 = vrot.slane %v1152, 5
      %v1664 = vsel %vm1653, %v1662, %v1663
      %v1665 = vrot.slane %v1663, 4
      %v1666 = vrot.slane %v1174, 5
      %v1667 = vsel %vm1653, %v1665, %v1666
      %v1668 = vrot.slane %v1641, 5
      %v1669 = vrot.slane %v1668, 4
      %v1670 = vrot.slane %v1154, 5
      %v1671 = vsel %vm1653, %v1669, %v1670
      %v1672 = vrot.slane %v1670, 4
      %v1673 = vrot.slane %v1175, 5
      %v1674 = vsel %vm1653, %v1672, %v1673
      %v1675 = vrot.slane %v1642, 5
      %v1676 = vrot.slane %v1675, 4
      %v1677 = vrot.slane %v1156, 5
      %v1678 = vsel %vm1653, %v1676, %v1677
      %v1679 = vrot.slane %v1677, 4
      %v1680 = vrot.slane %v1176, 5
      %v1681 = vsel %vm1653, %v1679, %v1680
      %s1682 = scalar_lea.vmem %s3, 256
      %v1683 = vld [vmem:[%s1682] sm:$0xff]
      %v1684 = vld [vmem:[%s1682 + $0x8] sm:$0xff]
      %v1685 = vld [vmem:[%s1682 + $0x10] sm:$0xff]
      %v1686 = vld [vmem:[%s1682 + $0x18] sm:$0xff]
      %v1687 = vld [vmem:[%s1682 + $0x20] sm:$0xff]
      %v1688 = vld [vmem:[%s1682 + $0x28] sm:$0xff]
      %v1689 = vld [vmem:[%s1682 + $0x30] sm:$0xff]
      %v1690 = vld [vmem:[%s1682 + $0x38] sm:$0xff]
      %v1691 = vld [vmem:[%s1682 + $0x40] sm:$0xff]
      %v1692 = vld [vmem:[%s1682 + $0x48] sm:$0xff]
      %v1693 = vld [vmem:[%s1682 + $0x50] sm:$0xff]
      %v1694 = vld [vmem:[%s1682 + $0x58] sm:$0xff]
      %v1695 = vld [vmem:[%s1682 + $0x60] sm:$0xff]
      %v1696 = vld [vmem:[%s1682 + $0x68] sm:$0xff]
      %v1697 = vld [vmem:[%s1682 + $0x70] sm:$0xff]
      %v1698 = vld [vmem:[%s1682 + $0x78] sm:$0xff]
      %v1699 = vunpack.c.l.b16 %v1657
      %v1700 = vunpack.c.l.b16 %v1660
      %v1701 = vunpack.c.l.b16 %v1664
      %v1702 = vunpack.c.l.b16 %v1667
      %v1703 = vunpack.c.l.b16 %v1671
      %v1704 = vunpack.c.l.b16 %v1674
      %v1705 = vunpack.c.l.b16 %v1678
      %v1706 = vunpack.c.l.b16 %v1681
      %v1707 = vpack.c.b16 %v1700, %v1699
      %v1708 = vpack.c.b16 %v1702, %v1701
      %v1709 = vpack.c.b16 %v1704, %v1703
      %v1710 = vpack.c.b16 %v1706, %v1705
      %v1731 = vunpack.c.l.b16 %v1683
      %v1732 = vunpack.c.h.b16 %v1683
      %v1733 = vunpack.c.l.b16 %v1684
      %v1734 = vunpack.c.h.b16 %v1684
      %v1735 = vunpack.c.l.b16 %v1685
      %v1736 = vunpack.c.h.b16 %v1685
      %v1737 = vunpack.c.l.b16 %v1686
      %v1738 = vunpack.c.h.b16 %v1686
      %v1739 = vunpack.c.l.b16 %v1687
      %v1740 = vunpack.c.h.b16 %v1687
      %v1741 = vunpack.c.l.b16 %v1688
      %v1742 = vunpack.c.h.b16 %v1688
      %v1743 = vunpack.c.l.b16 %v1689
      %v1744 = vunpack.c.h.b16 %v1689
      %v1745 = vunpack.c.l.b16 %v1690
      %v1746 = vunpack.c.h.b16 %v1690
      %v1747 = vunpack.c.l.b16 %v1691
      %v1748 = vunpack.c.h.b16 %v1691
      %v1749 = vunpack.c.l.b16 %v1692
      %v1750 = vunpack.c.h.b16 %v1692
      %v1751 = vunpack.c.l.b16 %v1693
      %v1752 = vunpack.c.h.b16 %v1693
      %v1753 = vunpack.c.l.b16 %v1694
      %v1754 = vunpack.c.h.b16 %v1694
      %v1755 = vunpack.c.l.b16 %v1695
      %v1756 = vunpack.c.h.b16 %v1695
      %v1757 = vunpack.c.l.b16 %v1696
      %v1758 = vunpack.c.h.b16 %v1696
      %v1759 = vunpack.c.l.b16 %v1697
      %v1760 = vunpack.c.h.b16 %v1697
      %v1761 = vunpack.c.l.b16 %v1698
      %v1762 = vunpack.c.h.b16 %v1698
      %v1763 = vpack.c.b16 %v1733, %v1731
      %v1764 = vpack.c.b16 %v1734, %v1732
      %v1765 = vpack.c.b16 %v1737, %v1735
      %v1766 = vpack.c.b16 %v1738, %v1736
      %v1767 = vpack.c.b16 %v1741, %v1739
      %v1768 = vpack.c.b16 %v1742, %v1740
      %v1769 = vpack.c.b16 %v1745, %v1743
      %v1770 = vpack.c.b16 %v1746, %v1744
      %v1771 = vpack.c.b16 %v1749, %v1747
      %v1772 = vpack.c.b16 %v1750, %v1748
      %v1773 = vpack.c.b16 %v1753, %v1751
      %v1774 = vpack.c.b16 %v1754, %v1752
      %v1775 = vpack.c.b16 %v1757, %v1755
      %v1776 = vpack.c.b16 %v1758, %v1756
      %v1777 = vpack.c.b16 %v1761, %v1759
      %v1778 = vpack.c.b16 %v1762, %v1760
      %1795 = vmatprep.subr.bf16.mxu0 %v1778
      %1796 = vmatpush1.bf16.msra.mxu0 %v1777
      %1797 = vmatprep.subr.bf16.mxu0 %v1776
      %1798 = vmatpush1.bf16.msra.mxu0 %v1775
      %1799 = vmatprep.subr.bf16.mxu0 %v1774
      %1800 = vmatpush1.bf16.msra.mxu0 %v1773
      %1801 = vmatprep.subr.bf16.mxu0 %v1772
      %1802 = vmatpush1.bf16.msra.mxu0 %v1771
      %1803 = vmatprep.subr.bf16.mxu0 %v1770
      %1804 = vmatpush1.bf16.msra.mxu0 %v1769
      %1805 = vmatprep.subr.bf16.mxu0 %v1768
      %1806 = vmatpush1.bf16.msra.mxu0 %v1767
      %1807 = vmatprep.subr.bf16.mxu0 %v1766
      %1808 = vmatpush1.bf16.msra.mxu0 %v1765
      %1809 = vmatprep.subr.bf16.mxu0 %v1764
      %1810 = vmatpush1.bf16.msra.mxu0 %v1763
      %1811 = vmatprep.subr.bf16.mxu0 0
      %1812 = vmatpush2.bf16.msra.mxu0 0
      %1813 = vmatprep.subr.bf16.mxu0 0
      %1814 = vmatpush2.bf16.msra.mxu0 0
      %1815 = vmatprep.subr.bf16.mxu0 0
      %1816 = vmatpush2.bf16.msra.mxu0 0
      %1817 = vmatprep.subr.bf16.mxu0 0
      %1818 = vmatpush2.bf16.msra.mxu0 0
      %1819 = vmatprep.subr.bf16.mxu0 0
      %1820 = vmatpush2.bf16.msra.mxu0 0
      %1821 = vmatprep.subr.bf16.mxu0 0
      %1822 = vmatpush2.bf16.msra.mxu0 0
      %1823 = vmatprep.subr.bf16.mxu0 0
      %1824 = vmatpush2.bf16.msra.mxu0 0
      %1825 = vmatprep.subr.bf16.mxu0 0
      %1826 = vmatpush2.bf16.msra.mxu0 0
      %1827 = vmatprep.mubr.bf16.mxu0 0
      %1828 = vmatmul.mubr.bf16.gmra.mxu0 %v1707
      %v1829 = vpop.f32.mrf.mxu0
      %v1830 = vadd.f32 0.0, %v1829
      %v1831 = vpop.f32.mrf.mxu0
      %v1832 = vadd.f32 0.0, %v1831
      %v1833 = vpop.f32.mrf.mxu0
      %v1834 = vadd.f32 0.0, %v1833
      %v1835 = vpop.f32.mrf.mxu0
      %v1836 = vadd.f32 0.0, %v1835
      %1837 = vmatprep.mubr.bf16.mxu0 0
      %1838 = vmatmul.mubr.bf16.gmra.mxu0 %v1708
      %v1839 = vpop.f32.mrf.mxu0
      %v1840 = vadd.f32 0.0, %v1839
      %v1841 = vpop.f32.mrf.mxu0
      %v1842 = vadd.f32 0.0, %v1841
      %v1843 = vpop.f32.mrf.mxu0
      %v1844 = vadd.f32 0.0, %v1843
      %v1845 = vpop.f32.mrf.mxu0
      %v1846 = vadd.f32 0.0, %v1845
      %1847 = vmatprep.mubr.bf16.mxu0 0
      %1848 = vmatmul.mubr.bf16.gmra.mxu0 %v1709
      %v1849 = vpop.f32.mrf.mxu0
      %v1850 = vadd.f32 0.0, %v1849
      %v1851 = vpop.f32.mrf.mxu0
      %v1852 = vadd.f32 0.0, %v1851
      %v1853 = vpop.f32.mrf.mxu0
      %v1854 = vadd.f32 0.0, %v1853
      %v1855 = vpop.f32.mrf.mxu0
      %v1856 = vadd.f32 0.0, %v1855
      %1857 = vmatprep.mubr.bf16.mxu0 0
      %1858 = vmatmul.mubr.bf16.gmra.mxu0 %v1710
      %v1859 = vpop.f32.mrf.mxu0
      %v1860 = vadd.f32 0.0, %v1859
      %v1861 = vpop.f32.mrf.mxu0
      %v1862 = vadd.f32 0.0, %v1861
      %v1863 = vpop.f32.mrf.mxu0
      %v1864 = vadd.f32 0.0, %v1863
      %v1865 = vpop.f32.mrf.mxu0
      %v1866 = vadd.f32 0.0, %v1865
      %1867 = vdwg.mxu0
      %v1868 = vadd.f32 %v1601, %v1830
      %v1869 = vadd.f32 %v1603, %v1832
      %v1870 = vadd.f32 %v1605, %v1834
      %v1871 = vadd.f32 %v1607, %v1836
      %v1872 = vadd.f32 %v1611, %v1840
      %v1873 = vadd.f32 %v1613, %v1842
      %v1874 = vadd.f32 %v1615, %v1844
      %v1875 = vadd.f32 %v1617, %v1846
      %v1876 = vadd.f32 %v1621, %v1850
      %v1877 = vadd.f32 %v1623, %v1852
      %v1878 = vadd.f32 %v1625, %v1854
      %v1879 = vadd.f32 %v1627, %v1856
      %v1880 = vadd.f32 %v1631, %v1860
      %v1881 = vadd.f32 %v1633, %v1862
      %v1882 = vadd.f32 %v1635, %v1864
      %v1883 = vadd.f32 %v1637, %v1866
      %s1884 = sadd.s32 %s1145, 1
      %s1885 = smul.u32 %s1884, 3
      %s1886 = smul.addr %s1885, 4
      %s1887 = scalar_lea.vmem [#allocation2], %s1886
      %v1888 = vld [vmem:[%s1887] sm:$0xf]
      %v1889 = vld [vmem:[%s1887 + $0x4] sm:$0xf]
      %v1890 = vld [vmem:[%s1887 + $0xc] sm:$0xf]
      %v1891 = vld [vmem:[%s1887 + $0x10] sm:$0xf]
      %v1892 = vld [vmem:[%s1887 + $0x18] sm:$0xf]
      %v1893 = vld [vmem:[%s1887 + $0x1c] sm:$0xf]
      %v1894 = vld [vmem:[%s1887 + $0x24] sm:$0xf]
      %v1895 = vld [vmem:[%s1887 + $0x28] sm:$0xf]
      %s1896 = scalar_lea.vmem %s3, 384
      %v1897 = vld [vmem:[%s1896] sm:$0xff]
      %v1898 = vld [vmem:[%s1896 + $0x8] sm:$0xff]
      %v1899 = vld [vmem:[%s1896 + $0x10] sm:$0xff]
      %v1900 = vld [vmem:[%s1896 + $0x18] sm:$0xff]
      %v1901 = vld [vmem:[%s1896 + $0x20] sm:$0xff]
      %v1902 = vld [vmem:[%s1896 + $0x28] sm:$0xff]
      %v1903 = vld [vmem:[%s1896 + $0x30] sm:$0xff]
      %v1904 = vld [vmem:[%s1896 + $0x38] sm:$0xff]
      %v1905 = vld [vmem:[%s1896 + $0x40] sm:$0xff]
      %v1906 = vld [vmem:[%s1896 + $0x48] sm:$0xff]
      %v1907 = vld [vmem:[%s1896 + $0x50] sm:$0xff]
      %v1908 = vld [vmem:[%s1896 + $0x58] sm:$0xff]
      %v1909 = vld [vmem:[%s1896 + $0x60] sm:$0xff]
      %v1910 = vld [vmem:[%s1896 + $0x68] sm:$0xff]
      %v1911 = vld [vmem:[%s1896 + $0x70] sm:$0xff]
      %v1912 = vld [vmem:[%s1896 + $0x78] sm:$0xff]
      %v1921 = vunpack.c.l.b16 %v1888
      %v1922 = vunpack.c.l.b16 %v1889
      %v1923 = vunpack.c.l.b16 %v1890
      %v1924 = vunpack.c.l.b16 %v1891
      %v1925 = vunpack.c.l.b16 %v1892
      %v1926 = vunpack.c.l.b16 %v1893
      %v1927 = vunpack.c.l.b16 %v1894
      %v1928 = vunpack.c.l.b16 %v1895
      %v1929 = vpack.c.b16 %v1922, %v1921
      %v1930 = vpack.c.b16 %v1924, %v1923
      %v1931 = vpack.c.b16 %v1926, %v1925
      %v1932 = vpack.c.b16 %v1928, %v1927
      %v1953 = vunpack.c.l.b16 %v1897
      %v1954 = vunpack.c.h.b16 %v1897
      %v1955 = vunpack.c.l.b16 %v1898
      %v1956 = vunpack.c.h.b16 %v1898
      %v1957 = vunpack.c.l.b16 %v1899
      %v1958 = vunpack.c.h.b16 %v1899
      %v1959 = vunpack.c.l.b16 %v1900
      %v1960 = vunpack.c.h.b16 %v1900
      %v1961 = vunpack.c.l.b16 %v1901
      %v1962 = vunpack.c.h.b16 %v1901
      %v1963 = vunpack.c.l.b16 %v1902
      %v1964 = vunpack.c.h.b16 %v1902
      %v1965 = vunpack.c.l.b16 %v1903
      %v1966 = vunpack.c.h.b16 %v1903
      %v1967 = vunpack.c.l.b16 %v1904
      %v1968 = vunpack.c.h.b16 %v1904
      %v1969 = vunpack.c.l.b16 %v1905
      %v1970 = vunpack.c.h.b16 %v1905
      %v1971 = vunpack.c.l.b16 %v1906
      %v1972 = vunpack.c.h.b16 %v1906
      %v1973 = vunpack.c.l.b16 %v1907
      %v1974 = vunpack.c.h.b16 %v1907
      %v1975 = vunpack.c.l.b16 %v1908
      %v1976 = vunpack.c.h.b16 %v1908
      %v1977 = vunpack.c.l.b16 %v1909
      %v1978 = vunpack.c.h.b16 %v1909
      %v1979 = vunpack.c.l.b16 %v1910
      %v1980 = vunpack.c.h.b16 %v1910
      %v1981 = vunpack.c.l.b16 %v1911
      %v1982 = vunpack.c.h.b16 %v1911
      %v1983 = vunpack.c.l.b16 %v1912
      %v1984 = vunpack.c.h.b16 %v1912
      %v1985 = vpack.c.b16 %v1955, %v1953
      %v1986 = vpack.c.b16 %v1956, %v1954
      %v1987 = vpack.c.b16 %v1959, %v1957
      %v1988 = vpack.c.b16 %v1960, %v1958
      %v1989 = vpack.c.b16 %v1963, %v1961
      %v1990 = vpack.c.b16 %v1964, %v1962
      %v1991 = vpack.c.b16 %v1967, %v1965
      %v1992 = vpack.c.b16 %v1968, %v1966
      %v1993 = vpack.c.b16 %v1971, %v1969
      %v1994 = vpack.c.b16 %v1972, %v1970
      %v1995 = vpack.c.b16 %v1975, %v1973
      %v1996 = vpack.c.b16 %v1976, %v1974
      %v1997 = vpack.c.b16 %v1979, %v1977
      %v1998 = vpack.c.b16 %v1980, %v1978
      %v1999 = vpack.c.b16 %v1983, %v1981
      %v2000 = vpack.c.b16 %v1984, %v1982
      %2017 = vmatprep.subr.bf16.mxu0 %v2000
      %2018 = vmatpush1.bf16.msra.mxu0 %v1999
      %2019 = vmatprep.subr.bf16.mxu0 %v1998
      %2020 = vmatpush1.bf16.msra.mxu0 %v1997
      %2021 = vmatprep.subr.bf16.mxu0 %v1996
      %2022 = vmatpush1.bf16.msra.mxu0 %v1995
      %2023 = vmatprep.subr.bf16.mxu0 %v1994
      %2024 = vmatpush1.bf16.msra.mxu0 %v1993
      %2025 = vmatprep.subr.bf16.mxu0 %v1992
      %2026 = vmatpush1.bf16.msra.mxu0 %v1991
      %2027 = vmatprep.subr.bf16.mxu0 %v1990
      %2028 = vmatpush1.bf16.msra.mxu0 %v1989
      %2029 = vmatprep.subr.bf16.mxu0 %v1988
      %2030 = vmatpush1.bf16.msra.mxu0 %v1987
      %2031 = vmatprep.subr.bf16.mxu0 %v1986
      %2032 = vmatpush1.bf16.msra.mxu0 %v1985
      %2033 = vmatprep.subr.bf16.mxu0 0
      %2034 = vmatpush2.bf16.msra.mxu0 0
      %2035 = vmatprep.subr.bf16.mxu0 0
      %2036 = vmatpush2.bf16.msra.mxu0 0
      %2037 = vmatprep.subr.bf16.mxu0 0
      %2038 = vmatpush2.bf16.msra.mxu0 0
      %2039 = vmatprep.subr.bf16.mxu0 0
      %2040 = vmatpush2.bf16.msra.mxu0 0
      %2041 = vmatprep.subr.bf16.mxu0 0
      %2042 = vmatpush2.bf16.msra.mxu0 0
      %2043 = vmatprep.subr.bf16.mxu0 0
      %2044 = vmatpush2.bf16.msra.mxu0 0
      %2045 = vmatprep.subr.bf16.mxu0 0
      %2046 = vmatpush2.bf16.msra.mxu0 0
      %2047 = vmatprep.subr.bf16.mxu0 0
      %2048 = vmatpush2.bf16.msra.mxu0 0
      %2049 = vmatprep.mubr.bf16.mxu0 0
      %2050 = vmatmul.mubr.bf16.gmra.mxu0 %v1929
      %v2051 = vpop.f32.mrf.mxu0
      %v2052 = vadd.f32 0.0, %v2051
      %v2053 = vpop.f32.mrf.mxu0
      %v2054 = vadd.f32 0.0, %v2053
      %v2055 = vpop.f32.mrf.mxu0
      %v2056 = vadd.f32 0.0, %v2055
      %v2057 = vpop.f32.mrf.mxu0
      %v2058 = vadd.f32 0.0, %v2057
      %2059 = vmatprep.mubr.bf16.mxu0 0
      %2060 = vmatmul.mubr.bf16.gmra.mxu0 %v1930
      %v2061 = vpop.f32.mrf.mxu0
      %v2062 = vadd.f32 0.0, %v2061
      %v2063 = vpop.f32.mrf.mxu0
      %v2064 = vadd.f32 0.0, %v2063
      %v2065 = vpop.f32.mrf.mxu0
      %v2066 = vadd.f32 0.0, %v2065
      %v2067 = vpop.f32.mrf.mxu0
      %v2068 = vadd.f32 0.0, %v2067
      %2069 = vmatprep.mubr.bf16.mxu0 0
      %2070 = vmatmul.mubr.bf16.gmra.mxu0 %v1931
      %v2071 = vpop.f32.mrf.mxu0
      %v2072 = vadd.f32 0.0, %v2071
      %v2073 = vpop.f32.mrf.mxu0
      %v2074 = vadd.f32 0.0, %v2073
      %v2075 = vpop.f32.mrf.mxu0
      %v2076 = vadd.f32 0.0, %v2075
      %v2077 = vpop.f32.mrf.mxu0
      %v2078 = vadd.f32 0.0, %v2077
      %2079 = vmatprep.mubr.bf16.mxu0 0
      %2080 = vmatmul.mubr.bf16.gmra.mxu0 %v1932
      %v2081 = vpop.f32.mrf.mxu0
      %v2082 = vadd.f32 0.0, %v2081
      %v2083 = vpop.f32.mrf.mxu0
      %v2084 = vadd.f32 0.0, %v2083
      %v2085 = vpop.f32.mrf.mxu0
      %v2086 = vadd.f32 0.0, %v2085
      %v2087 = vpop.f32.mrf.mxu0
      %v2088 = vadd.f32 0.0, %v2087
      %2089 = vdwg.mxu0
      %v2090 = vadd.f32 %v1868, %v2052
      %v2091 = vadd.f32 %v1869, %v2054
      %v2092 = vadd.f32 %v1870, %v2056
      %v2093 = vadd.f32 %v1871, %v2058
      %v2094 = vadd.f32 %v1872, %v2062
      %v2095 = vadd.f32 %v1873, %v2064
      %v2096 = vadd.f32 %v1874, %v2066
      %v2097 = vadd.f32 %v1875, %v2068
      %v2098 = vadd.f32 %v1876, %v2072
      %v2099 = vadd.f32 %v1877, %v2074
      %v2100 = vadd.f32 %v1878, %v2076
      %v2101 = vadd.f32 %v1879, %v2078
      %v2102 = vadd.f32 %v1880, %v2082
      %v2103 = vadd.f32 %v1881, %v2084
      %v2104 = vadd.f32 %v1882, %v2086
      %v2105 = vadd.f32 %v1883, %v2088
      %v2106 = vld [vmem:[%s1887] sm:$0xf]
      %v2107 = vld [vmem:[%s1887 + $0x4] sm:$0xf]
      %v2108 = vld [vmem:[%s1887 + $0x8] sm:$0x1]
      %v2109 = vld [vmem:[%s1887 + $0xc] sm:$0xf]
      %v2110 = vld [vmem:[%s1887 + $0x10] sm:$0xf]
      %v2111 = vld [vmem:[%s1887 + $0x14] sm:$0x1]
      %v2112 = vld [vmem:[%s1887 + $0x18] sm:$0xf]
      %v2113 = vld [vmem:[%s1887 + $0x1c] sm:$0xf]
      %v2114 = vld [vmem:[%s1887 + $0x20] sm:$0x1]
      %v2115 = vld [vmem:[%s1887 + $0x24] sm:$0xf]
      %v2116 = vld [vmem:[%s1887 + $0x28] sm:$0xf]
      %v2117 = vld [vmem:[%s1887 + $0x2c] sm:$0x1]
      %v2119 = vshrl.u32 %v2106, 16
      %v2121 = vrot.slane %v2119, 4
      %v2122 = vshll.u32 %v2106, 16
      %v2124 = vrot.slane %v2122, 5
      %v2125 = vor.u32 %v2121, %v2124
      %v2126 = vrot.slane %v2125, 4
      %v2128 = vshll.u32 %v2107, 16
      %v2130 = vrot.slane %v2128, 5
      %v2131 = vsel %vm1179, %v2126, %v2130
      %v2132 = vshrl.u32 %v2107, 16
      %v2134 = vrot.slane %v2132, 4
      %v2135 = vor.u32 %v2134, %v2130
      %v2136 = vrot.slane %v2135, 4
      %v2138 = vshll.u32 %v2108, 16
      %v2140 = vrot.slane %v2138, 5
      %v2141 = vsel %vm1179, %v2136, %v2140
      %v2143 = vshrl.u32 %v2109, 16
      %v2145 = vrot.slane %v2143, 4
      %v2146 = vshll.u32 %v2109, 16
      %v2148 = vrot.slane %v2146, 5
      %v2149 = vor.u32 %v2145, %v2148
      %v2150 = vrot.slane %v2149, 4
      %v2152 = vshll.u32 %v2110, 16
      %v2154 = vrot.slane %v2152, 5
      %v2155 = vsel %vm1179, %v2150, %v2154
      %v2156 = vshrl.u32 %v2110, 16
      %v2158 = vrot.slane %v2156, 4
      %v2159 = vor.u32 %v2158, %v2154
      %v2160 = vrot.slane %v2159, 4
      %v2162 = vshll.u32 %v2111, 16
      %v2164 = vrot.slane %v2162, 5
      %v2165 = vsel %vm1179, %v2160, %v2164
      %v2167 = vshrl.u32 %v2112, 16
      %v2169 = vrot.slane %v2167, 4
      %v2170 = vshll.u32 %v2112, 16
      %v2172 = vrot.slane %v2170, 5
      %v2173 = vor.u32 %v2169, %v2172
      %v2174 = vrot.slane %v2173, 4
      %v2176 = vshll.u32 %v2113, 16
      %v2178 = vrot.slane %v2176, 5
      %v2179 = vsel %vm1179, %v2174, %v2178
      %v2180 = vshrl.u32 %v2113, 16
      %v2182 = vrot.slane %v2180, 4
      %v2183 = vor.u32 %v2182, %v2178
      %v2184 = vrot.slane %v2183, 4
      %v2186 = vshll.u32 %v2114, 16
      %v2188 = vrot.slane %v2186, 5
      %v2189 = vsel %vm1179, %v2184, %v2188
      %v2191 = vshrl.u32 %v2115, 16
      %v2193 = vrot.slane %v2191, 4
      %v2194 = vshll.u32 %v2115, 16
      %v2196 = vrot.slane %v2194, 5
      %v2197 = vor.u32 %v2193, %v2196
      %v2198 = vrot.slane %v2197, 4
      %v2200 = vshll.u32 %v2116, 16
      %v2202 = vrot.slane %v2200, 5
      %v2203 = vsel %vm1179, %v2198, %v2202
      %v2204 = vshrl.u32 %v2116, 16
      %v2206 = vrot.slane %v2204, 4
      %v2207 = vor.u32 %v2206, %v2202
      %v2208 = vrot.slane %v2207, 4
      %v2210 = vshll.u32 %v2117, 16
      %v2212 = vrot.slane %v2210, 5
      %v2213 = vsel %vm1179, %v2208, %v2212
      %s2214 = scalar_lea.vmem %s3, 512
      %v2215 = vld [vmem:[%s2214] sm:$0xff]
      %v2216 = vld [vmem:[%s2214 + $0x8] sm:$0xff]
      %v2217 = vld [vmem:[%s2214 + $0x10] sm:$0xff]
      %v2218 = vld [vmem:[%s2214 + $0x18] sm:$0xff]
      %v2219 = vld [vmem:[%s2214 + $0x20] sm:$0xff]
      %v2220 = vld [vmem:[%s2214 + $0x28] sm:$0xff]
      %v2221 = vld [vmem:[%s2214 + $0x30] sm:$0xff]
      %v2222 = vld [vmem:[%s2214 + $0x38] sm:$0xff]
      %v2223 = vld [vmem:[%s2214 + $0x40] sm:$0xff]
      %v2224 = vld [vmem:[%s2214 + $0x48] sm:$0xff]
      %v2225 = vld [vmem:[%s2214 + $0x50] sm:$0xff]
      %v2226 = vld [vmem:[%s2214 + $0x58] sm:$0xff]
      %v2227 = vld [vmem:[%s2214 + $0x60] sm:$0xff]
      %v2228 = vld [vmem:[%s2214 + $0x68] sm:$0xff]
      %v2229 = vld [vmem:[%s2214 + $0x70] sm:$0xff]
      %v2230 = vld [vmem:[%s2214 + $0x78] sm:$0xff]
      %v2231 = vunpack.c.l.b16 %v2131
      %v2232 = vunpack.c.l.b16 %v2141
      %v2233 = vunpack.c.l.b16 %v2155
      %v2234 = vunpack.c.l.b16 %v2165
      %v2235 = vunpack.c.l.b16 %v2179
      %v2236 = vunpack.c.l.b16 %v2189
      %v2237 = vunpack.c.l.b16 %v2203
      %v2238 = vunpack.c.l.b16 %v2213
      %v2239 = vpack.c.b16 %v2232, %v2231
      %v2240 = vpack.c.b16 %v2234, %v2233
      %v2241 = vpack.c.b16 %v2236, %v2235
      %v2242 = vpack.c.b16 %v2238, %v2237
      %v2263 = vunpack.c.l.b16 %v2215
      %v2264 = vunpack.c.h.b16 %v2215
      %v2265 = vunpack.c.l.b16 %v2216
      %v2266 = vunpack.c.h.b16 %v2216
      %v2267 = vunpack.c.l.b16 %v2217
      %v2268 = vunpack.c.h.b16 %v2217
      %v2269 = vunpack.c.l.b16 %v2218
      %v2270 = vunpack.c.h.b16 %v2218
      %v2271 = vunpack.c.l.b16 %v2219
      %v2272 = vunpack.c.h.b16 %v2219
      %v2273 = vunpack.c.l.b16 %v2220
      %v2274 = vunpack.c.h.b16 %v2220
      %v2275 = vunpack.c.l.b16 %v2221
      %v2276 = vunpack.c.h.b16 %v2221
      %v2277 = vunpack.c.l.b16 %v2222
      %v2278 = vunpack.c.h.b16 %v2222
      %v2279 = vunpack.c.l.b16 %v2223
      %v2280 = vunpack.c.h.b16 %v2223
      %v2281 = vunpack.c.l.b16 %v2224
      %v2282 = vunpack.c.h.b16 %v2224
      %v2283 = vunpack.c.l.b16 %v2225
      %v2284 = vunpack.c.h.b16 %v2225
      %v2285 = vunpack.c.l.b16 %v2226
      %v2286 = vunpack.c.h.b16 %v2226
      %v2287 = vunpack.c.l.b16 %v2227
      %v2288 = vunpack.c.h.b16 %v2227
      %v2289 = vunpack.c.l.b16 %v2228
      %v2290 = vunpack.c.h.b16 %v2228
      %v2291 = vunpack.c.l.b16 %v2229
      %v2292 = vunpack.c.h.b16 %v2229
      %v2293 = vunpack.c.l.b16 %v2230
      %v2294 = vunpack.c.h.b16 %v2230
      %v2295 = vpack.c.b16 %v2265, %v2263
      %v2296 = vpack.c.b16 %v2266, %v2264
      %v2297 = vpack.c.b16 %v2269, %v2267
      %v2298 = vpack.c.b16 %v2270, %v2268
      %v2299 = vpack.c.b16 %v2273, %v2271
      %v2300 = vpack.c.b16 %v2274, %v2272
      %v2301 = vpack.c.b16 %v2277, %v2275
      %v2302 = vpack.c.b16 %v2278, %v2276
      %v2303 = vpack.c.b16 %v2281, %v2279
      %v2304 = vpack.c.b16 %v2282, %v2280
      %v2305 = vpack.c.b16 %v2285, %v2283
      %v2306 = vpack.c.b16 %v2286, %v2284
      %v2307 = vpack.c.b16 %v2289, %v2287
      %v2308 = vpack.c.b16 %v2290, %v2288
      %v2309 = vpack.c.b16 %v2293, %v2291
      %v2310 = vpack.c.b16 %v2294, %v2292
      %2327 = vmatprep.subr.bf16.mxu0 %v2310
      %2328 = vmatpush1.bf16.msra.mxu0 %v2309
      %2329 = vmatprep.subr.bf16.mxu0 %v2308
      %2330 = vmatpush1.bf16.msra.mxu0 %v2307
      %2331 = vmatprep.subr.bf16.mxu0 %v2306
      %2332 = vmatpush1.bf16.msra.mxu0 %v2305
      %2333 = vmatprep.subr.bf16.mxu0 %v2304
      %2334 = vmatpush1.bf16.msra.mxu0 %v2303
      %2335 = vmatprep.subr.bf16.mxu0 %v2302
      %2336 = vmatpush1.bf16.msra.mxu0 %v2301
      %2337 = vmatprep.subr.bf16.mxu0 %v2300
      %2338 = vmatpush1.bf16.msra.mxu0 %v2299
      %2339 = vmatprep.subr.bf16.mxu0 %v2298
      %2340 = vmatpush1.bf16.msra.mxu0 %v2297
      %2341 = vmatprep.subr.bf16.mxu0 %v2296
      %2342 = vmatpush1.bf16.msra.mxu0 %v2295
      %2343 = vmatprep.subr.bf16.mxu0 0
      %2344 = vmatpush2.bf16.msra.mxu0 0
      %2345 = vmatprep.subr.bf16.mxu0 0
      %2346 = vmatpush2.bf16.msra.mxu0 0
      %2347 = vmatprep.subr.bf16.mxu0 0
      %2348 = vmatpush2.bf16.msra.mxu0 0
      %2349 = vmatprep.subr.bf16.mxu0 0
      %2350 = vmatpush2.bf16.msra.mxu0 0
      %2351 = vmatprep.subr.bf16.mxu0 0
      %2352 = vmatpush2.bf16.msra.mxu0 0
      %2353 = vmatprep.subr.bf16.mxu0 0
      %2354 = vmatpush2.bf16.msra.mxu0 0
      %2355 = vmatprep.subr.bf16.mxu0 0
      %2356 = vmatpush2.bf16.msra.mxu0 0
      %2357 = vmatprep.subr.bf16.mxu0 0
      %2358 = vmatpush2.bf16.msra.mxu0 0
      %2359 = vmatprep.mubr.bf16.mxu0 0
      %2360 = vmatmul.mubr.bf16.gmra.mxu0 %v2239
      %v2361 = vpop.f32.mrf.mxu0
      %v2362 = vadd.f32 0.0, %v2361
      %v2363 = vpop.f32.mrf.mxu0
      %v2364 = vadd.f32 0.0, %v2363
      %v2365 = vpop.f32.mrf.mxu0
      %v2366 = vadd.f32 0.0, %v2365
      %v2367 = vpop.f32.mrf.mxu0
      %v2368 = vadd.f32 0.0, %v2367
      %2369 = vmatprep.mubr.bf16.mxu0 0
      %2370 = vmatmul.mubr.bf16.gmra.mxu0 %v2240
      %v2371 = vpop.f32.mrf.mxu0
      %v2372 = vadd.f32 0.0, %v2371
      %v2373 = vpop.f32.mrf.mxu0
      %v2374 = vadd.f32 0.0, %v2373
      %v2375 = vpop.f32.mrf.mxu0
      %v2376 = vadd.f32 0.0, %v2375
      %v2377 = vpop.f32.mrf.mxu0
      %v2378 = vadd.f32 0.0, %v2377
      %2379 = vmatprep.mubr.bf16.mxu0 0
      %2380 = vmatmul.mubr.bf16.gmra.mxu0 %v2241
      %v2381 = vpop.f32.mrf.mxu0
      %v2382 = vadd.f32 0.0, %v2381
      %v2383 = vpop.f32.mrf.mxu0
      %v2384 = vadd.f32 0.0, %v2383
      %v2385 = vpop.f32.mrf.mxu0
      %v2386 = vadd.f32 0.0, %v2385
      %v2387 = vpop.f32.mrf.mxu0
      %v2388 = vadd.f32 0.0, %v2387
      %2389 = vmatprep.mubr.bf16.mxu0 0
      %2390 = vmatmul.mubr.bf16.gmra.mxu0 %v2242
      %v2391 = vpop.f32.mrf.mxu0
      %v2392 = vadd.f32 0.0, %v2391
      %v2393 = vpop.f32.mrf.mxu0
      %v2394 = vadd.f32 0.0, %v2393
      %v2395 = vpop.f32.mrf.mxu0
      %v2396 = vadd.f32 0.0, %v2395
      %v2397 = vpop.f32.mrf.mxu0
      %v2398 = vadd.f32 0.0, %v2397
      %2399 = vdwg.mxu0
      %v2400 = vadd.f32 %v2090, %v2362
      %v2401 = vadd.f32 %v2091, %v2364
      %v2402 = vadd.f32 %v2092, %v2366
      %v2403 = vadd.f32 %v2093, %v2368
      %v2404 = vadd.f32 %v2094, %v2372
      %v2405 = vadd.f32 %v2095, %v2374
      %v2406 = vadd.f32 %v2096, %v2376
      %v2407 = vadd.f32 %v2097, %v2378
      %v2408 = vadd.f32 %v2098, %v2382
      %v2409 = vadd.f32 %v2099, %v2384
      %v2410 = vadd.f32 %v2100, %v2386
      %v2411 = vadd.f32 %v2101, %v2388
      %v2412 = vadd.f32 %v2102, %v2392
      %v2413 = vadd.f32 %v2103, %v2394
      %v2414 = vadd.f32 %v2104, %v2396
      %v2415 = vadd.f32 %v2105, %v2398
      %v2416 = vld [vmem:[%s1887] sm:$0xe]
      %v2417 = vld [vmem:[%s1887 + $0xc] sm:$0xe]
      %v2418 = vld [vmem:[%s1887 + $0x18] sm:$0xe]
      %v2419 = vld [vmem:[%s1887 + $0x24] sm:$0xe]
      %v2432 = vrot.slane %v2416, 5
      %v2433 = vrot.slane %v2432, 4
      %v2434 = vrot.slane %v2107, 5
      %v2435 = vsel %vm1653, %v2433, %v2434
      %v2436 = vrot.slane %v2434, 4
      %v2437 = vrot.slane %v2108, 5
      %v2438 = vsel %vm1653, %v2436, %v2437
      %v2439 = vrot.slane %v2417, 5
      %v2440 = vrot.slane %v2439, 4
      %v2441 = vrot.slane %v2110, 5
      %v2442 = vsel %vm1653, %v2440, %v2441
      %v2443 = vrot.slane %v2441, 4
      %v2444 = vrot.slane %v2111, 5
      %v2445 = vsel %vm1653, %v2443, %v2444
      %v2446 = vrot.slane %v2418, 5
      %v2447 = vrot.slane %v2446, 4
      %v2448 = vrot.slane %v2113, 5
      %v2449 = vsel %vm1653, %v2447, %v2448
      %v2450 = vrot.slane %v2448, 4
      %v2451 = vrot.slane %v2114, 5
      %v2452 = vsel %vm1653, %v2450, %v2451
      %v2453 = vrot.slane %v2419, 5
      %v2454 = vrot.slane %v2453, 4
      %v2455 = vrot.slane %v2116, 5
      %v2456 = vsel %vm1653, %v2454, %v2455
      %v2457 = vrot.slane %v2455, 4
      %v2458 = vrot.slane %v2117, 5
      %v2459 = vsel %vm1653, %v2457, %v2458
      %s2460 = scalar_lea.vmem %s3, 640
      %v2461 = vld [vmem:[%s2460] sm:$0xff]
      %v2462 = vld [vmem:[%s2460 + $0x8] sm:$0xff]
      %v2463 = vld [vmem:[%s2460 + $0x10] sm:$0xff]
      %v2464 = vld [vmem:[%s2460 + $0x18] sm:$0xff]
      %v2465 = vld [vmem:[%s2460 + $0x20] sm:$0xff]
      %v2466 = vld [vmem:[%s2460 + $0x28] sm:$0xff]
      %v2467 = vld [vmem:[%s2460 + $0x30] sm:$0xff]
      %v2468 = vld [vmem:[%s2460 + $0x38] sm:$0xff]
      %v2469 = vld [vmem:[%s2460 + $0x40] sm:$0xff]
      %v2470 = vld [vmem:[%s2460 + $0x48] sm:$0xff]
      %v2471 = vld [vmem:[%s2460 + $0x50] sm:$0xff]
      %v2472 = vld [vmem:[%s2460 + $0x58] sm:$0xff]
      %v2473 = vld [vmem:[%s2460 + $0x60] sm:$0xff]
      %v2474 = vld [vmem:[%s2460 + $0x68] sm:$0xff]
      %v2475 = vld [vmem:[%s2460 + $0x70] sm:$0xff]
      %v2476 = vld [vmem:[%s2460 + $0x78] sm:$0xff]
      %v2477 = vunpack.c.l.b16 %v2435
      %v2478 = vunpack.c.l.b16 %v2438
      %v2479 = vunpack.c.l.b16 %v2442
      %v2480 = vunpack.c.l.b16 %v2445
      %v2481 = vunpack.c.l.b16 %v2449
      %v2482 = vunpack.c.l.b16 %v2452
      %v2483 = vunpack.c.l.b16 %v2456
      %v2484 = vunpack.c.l.b16 %v2459
      %v2485 = vpack.c.b16 %v2478, %v2477
      %v2486 = vpack.c.b16 %v2480, %v2479
      %v2487 = vpack.c.b16 %v2482, %v2481
      %v2488 = vpack.c.b16 %v2484, %v2483
      %v2509 = vunpack.c.l.b16 %v2461
      %v2510 = vunpack.c.h.b16 %v2461
      %v2511 = vunpack.c.l.b16 %v2462
      %v2512 = vunpack.c.h.b16 %v2462
      %v2513 = vunpack.c.l.b16 %v2463
      %v2514 = vunpack.c.h.b16 %v2463
      %v2515 = vunpack.c.l.b16 %v2464
      %v2516 = vunpack.c.h.b16 %v2464
      %v2517 = vunpack.c.l.b16 %v2465
      %v2518 = vunpack.c.h.b16 %v2465
      %v2519 = vunpack.c.l.b16 %v2466
      %v2520 = vunpack.c.h.b16 %v2466
      %v2521 = vunpack.c.l.b16 %v2467
      %v2522 = vunpack.c.h.b16 %v2467
      %v2523 = vunpack.c.l.b16 %v2468
      %v2524 = vunpack.c.h.b16 %v2468
      %v2525 = vunpack.c.l.b16 %v2469
      %v2526 = vunpack.c.h.b16 %v2469
      %v2527 = vunpack.c.l.b16 %v2470
      %v2528 = vunpack.c.h.b16 %v2470
      %v2529 = vunpack.c.l.b16 %v2471
      %v2530 = vunpack.c.h.b16 %v2471
      %v2531 = vunpack.c.l.b16 %v2472
      %v2532 = vunpack.c.h.b16 %v2472
      %v2533 = vunpack.c.l.b16 %v2473
      %v2534 = vunpack.c.h.b16 %v2473
      %v2535 = vunpack.c.l.b16 %v2474
      %v2536 = vunpack.c.h.b16 %v2474
      %v2537 = vunpack.c.l.b16 %v2475
      %v2538 = vunpack.c.h.b16 %v2475
      %v2539 = vunpack.c.l.b16 %v2476
      %v2540 = vunpack.c.h.b16 %v2476
      %v2541 = vpack.c.b16 %v2511, %v2509
      %v2542 = vpack.c.b16 %v2512, %v2510
      %v2543 = vpack.c.b16 %v2515, %v2513
      %v2544 = vpack.c.b16 %v2516, %v2514
      %v2545 = vpack.c.b16 %v2519, %v2517
      %v2546 = vpack.c.b16 %v2520, %v2518
      %v2547 = vpack.c.b16 %v2523, %v2521
      %v2548 = vpack.c.b16 %v2524, %v2522
      %v2549 = vpack.c.b16 %v2527, %v2525
      %v2550 = vpack.c.b16 %v2528, %v2526
      %v2551 = vpack.c.b16 %v2531, %v2529
      %v2552 = vpack.c.b16 %v2532, %v2530
      %v2553 = vpack.c.b16 %v2535, %v2533
      %v2554 = vpack.c.b16 %v2536, %v2534
      %v2555 = vpack.c.b16 %v2539, %v2537
      %v2556 = vpack.c.b16 %v2540, %v2538
      %2573 = vmatprep.subr.bf16.mxu0 %v2556
      %2574 = vmatpush1.bf16.msra.mxu0 %v2555
      %2575 = vmatprep.subr.bf16.mxu0 %v2554
      %2576 = vmatpush1.bf16.msra.mxu0 %v2553
      %2577 = vmatprep.subr.bf16.mxu0 %v2552
      %2578 = vmatpush1.bf16.msra.mxu0 %v2551
      %2579 = vmatprep.subr.bf16.mxu0 %v2550
      %2580 = vmatpush1.bf16.msra.mxu0 %v2549
      %2581 = vmatprep.subr.bf16.mxu0 %v2548
      %2582 = vmatpush1.bf16.msra.mxu0 %v2547
      %2583 = vmatprep.subr.bf16.mxu0 %v2546
      %2584 = vmatpush1.bf16.msra.mxu0 %v2545
      %2585 = vmatprep.subr.bf16.mxu0 %v2544
      %2586 = vmatpush1.bf16.msra.mxu0 %v2543
      %2587 = vmatprep.subr.bf16.mxu0 %v2542
      %2588 = vmatpush1.bf16.msra.mxu0 %v2541
      %2589 = vmatprep.subr.bf16.mxu0 0
      %2590 = vmatpush2.bf16.msra.mxu0 0
      %2591 = vmatprep.subr.bf16.mxu0 0
      %2592 = vmatpush2.bf16.msra.mxu0 0
      %2593 = vmatprep.subr.bf16.mxu0 0
      %2594 = vmatpush2.bf16.msra.mxu0 0
      %2595 = vmatprep.subr.bf16.mxu0 0
      %2596 = vmatpush2.bf16.msra.mxu0 0
      %2597 = vmatprep.subr.bf16.mxu0 0
      %2598 = vmatpush2.bf16.msra.mxu0 0
      %2599 = vmatprep.subr.bf16.mxu0 0
      %2600 = vmatpush2.bf16.msra.mxu0 0
      %2601 = vmatprep.subr.bf16.mxu0 0
      %2602 = vmatpush2.bf16.msra.mxu0 0
      %2603 = vmatprep.subr.bf16.mxu0 0
      %2604 = vmatpush2.bf16.msra.mxu0 0
      %2605 = vmatprep.mubr.bf16.mxu0 0
      %2606 = vmatmul.mubr.bf16.gmra.mxu0 %v2485
      %v2607 = vpop.f32.mrf.mxu0
      %v2608 = vadd.f32 0.0, %v2607
      %v2609 = vpop.f32.mrf.mxu0
      %v2610 = vadd.f32 0.0, %v2609
      %v2611 = vpop.f32.mrf.mxu0
      %v2612 = vadd.f32 0.0, %v2611
      %v2613 = vpop.f32.mrf.mxu0
      %v2614 = vadd.f32 0.0, %v2613
      %2615 = vmatprep.mubr.bf16.mxu0 0
      %2616 = vmatmul.mubr.bf16.gmra.mxu0 %v2486
      %v2617 = vpop.f32.mrf.mxu0
      %v2618 = vadd.f32 0.0, %v2617
      %v2619 = vpop.f32.mrf.mxu0
      %v2620 = vadd.f32 0.0, %v2619
      %v2621 = vpop.f32.mrf.mxu0
      %v2622 = vadd.f32 0.0, %v2621
      %v2623 = vpop.f32.mrf.mxu0
      %v2624 = vadd.f32 0.0, %v2623
      %2625 = vmatprep.mubr.bf16.mxu0 0
      %2626 = vmatmul.mubr.bf16.gmra.mxu0 %v2487
      %v2627 = vpop.f32.mrf.mxu0
      %v2628 = vadd.f32 0.0, %v2627
      %v2629 = vpop.f32.mrf.mxu0
      %v2630 = vadd.f32 0.0, %v2629
      %v2631 = vpop.f32.mrf.mxu0
      %v2632 = vadd.f32 0.0, %v2631
      %v2633 = vpop.f32.mrf.mxu0
      %v2634 = vadd.f32 0.0, %v2633
      %2635 = vmatprep.mubr.bf16.mxu0 0
      %2636 = vmatmul.mubr.bf16.gmra.mxu0 %v2488
      %v2637 = vpop.f32.mrf.mxu0
      %v2638 = vadd.f32 0.0, %v2637
      %v2639 = vpop.f32.mrf.mxu0
      %v2640 = vadd.f32 0.0, %v2639
      %v2641 = vpop.f32.mrf.mxu0
      %v2642 = vadd.f32 0.0, %v2641
      %v2643 = vpop.f32.mrf.mxu0
      %v2644 = vadd.f32 0.0, %v2643
      %2645 = vdwg.mxu0
      %v2646 = vadd.f32 %v2400, %v2608
      %v2647 = vadd.f32 %v2401, %v2610
      %v2648 = vadd.f32 %v2402, %v2612
      %v2649 = vadd.f32 %v2403, %v2614
      %v2650 = vadd.f32 %v2404, %v2618
      %v2651 = vadd.f32 %v2405, %v2620
      %v2652 = vadd.f32 %v2406, %v2622
      %v2653 = vadd.f32 %v2407, %v2624
      %v2654 = vadd.f32 %v2408, %v2628
      %v2655 = vadd.f32 %v2409, %v2630
      %v2656 = vadd.f32 %v2410, %v2632
      %v2657 = vadd.f32 %v2411, %v2634
      %v2658 = vadd.f32 %v2412, %v2638
      %v2659 = vadd.f32 %v2413, %v2640
      %v2660 = vadd.f32 %v2414, %v2642
      %v2661 = vadd.f32 %v2415, %v2644
      %s2662 = sadd.s32 %s1145, 2
      %s2663 = smul.u32 %s2662, 3
      %s2664 = smul.addr %s2663, 4
      %s2665 = scalar_lea.vmem [#allocation2], %s2664
      %v2666 = vld [vmem:[%s2665] sm:$0xf]
      %v2667 = vld [vmem:[%s2665 + $0x4] sm:$0xf]
      %v2668 = vld [vmem:[%s2665 + $0xc] sm:$0xf]
      %v2669 = vld [vmem:[%s2665 + $0x10] sm:$0xf]
      %v2670 = vld [vmem:[%s2665 + $0x18] sm:$0xf]
      %v2671 = vld [vmem:[%s2665 + $0x1c] sm:$0xf]
      %v2672 = vld [vmem:[%s2665 + $0x24] sm:$0xf]
      %v2673 = vld [vmem:[%s2665 + $0x28] sm:$0xf]
      %s2674 = scalar_lea.vmem %s3, 768
      %v2675 = vld [vmem:[%s2674] sm:$0xff]
      %v2676 = vld [vmem:[%s2674 + $0x8] sm:$0xff]
      %v2677 = vld [vmem:[%s2674 + $0x10] sm:$0xff]
      %v2678 = vld [vmem:[%s2674 + $0x18] sm:$0xff]
      %v2679 = vld [vmem:[%s2674 + $0x20] sm:$0xff]
      %v2680 = vld [vmem:[%s2674 + $0x28] sm:$0xff]
      %v2681 = vld [vmem:[%s2674 + $0x30] sm:$0xff]
      %v2682 = vld [vmem:[%s2674 + $0x38] sm:$0xff]
      %v2683 = vld [vmem:[%s2674 + $0x40] sm:$0xff]
      %v2684 = vld [vmem:[%s2674 + $0x48] sm:$0xff]
      %v2685 = vld [vmem:[%s2674 + $0x50] sm:$0xff]
      %v2686 = vld [vmem:[%s2674 + $0x58] sm:$0xff]
      %v2687 = vld [vmem:[%s2674 + $0x60] sm:$0xff]
      %v2688 = vld [vmem:[%s2674 + $0x68] sm:$0xff]
      %v2689 = vld [vmem:[%s2674 + $0x70] sm:$0xff]
      %v2690 = vld [vmem:[%s2674 + $0x78] sm:$0xff]
      %v2699 = vunpack.c.l.b16 %v2666
      %v2700 = vunpack.c.l.b16 %v2667
      %v2701 = vunpack.c.l.b16 %v2668
      %v2702 = vunpack.c.l.b16 %v2669
      %v2703 = vunpack.c.l.b16 %v2670
      %v2704 = vunpack.c.l.b16 %v2671
      %v2705 = vunpack.c.l.b16 %v2672
      %v2706 = vunpack.c.l.b16 %v2673
      %v2707 = vpack.c.b16 %v2700, %v2699
      %v2708 = vpack.c.b16 %v2702, %v2701
      %v2709 = vpack.c.b16 %v2704, %v2703
      %v2710 = vpack.c.b16 %v2706, %v2705
      %v2731 = vunpack.c.l.b16 %v2675
      %v2732 = vunpack.c.h.b16 %v2675
      %v2733 = vunpack.c.l.b16 %v2676
      %v2734 = vunpack.c.h.b16 %v2676
      %v2735 = vunpack.c.l.b16 %v2677
      %v2736 = vunpack.c.h.b16 %v2677
      %v2737 = vunpack.c.l.b16 %v2678
      %v2738 = vunpack.c.h.b16 %v2678
      %v2739 = vunpack.c.l.b16 %v2679
      %v2740 = vunpack.c.h.b16 %v2679
      %v2741 = vunpack.c.l.b16 %v2680
      %v2742 = vunpack.c.h.b16 %v2680
      %v2743 = vunpack.c.l.b16 %v2681
      %v2744 = vunpack.c.h.b16 %v2681
      %v2745 = vunpack.c.l.b16 %v2682
      %v2746 = vunpack.c.h.b16 %v2682
      %v2747 = vunpack.c.l.b16 %v2683
      %v2748 = vunpack.c.h.b16 %v2683
      %v2749 = vunpack.c.l.b16 %v2684
      %v2750 = vunpack.c.h.b16 %v2684
      %v2751 = vunpack.c.l.b16 %v2685
      %v2752 = vunpack.c.h.b16 %v2685
      %v2753 = vunpack.c.l.b16 %v2686
      %v2754 = vunpack.c.h.b16 %v2686
      %v2755 = vunpack.c.l.b16 %v2687
      %v2756 = vunpack.c.h.b16 %v2687
      %v2757 = vunpack.c.l.b16 %v2688
      %v2758 = vunpack.c.h.b16 %v2688
      %v2759 = vunpack.c.l.b16 %v2689
      %v2760 = vunpack.c.h.b16 %v2689
      %v2761 = vunpack.c.l.b16 %v2690
      %v2762 = vunpack.c.h.b16 %v2690
      %v2763 = vpack.c.b16 %v2733, %v2731
      %v2764 = vpack.c.b16 %v2734, %v2732
      %v2765 = vpack.c.b16 %v2737, %v2735
      %v2766 = vpack.c.b16 %v2738, %v2736
      %v2767 = vpack.c.b16 %v2741, %v2739
      %v2768 = vpack.c.b16 %v2742, %v2740
      %v2769 = vpack.c.b16 %v2745, %v2743
      %v2770 = vpack.c.b16 %v2746, %v2744
      %v2771 = vpack.c.b16 %v2749, %v2747
      %v2772 = vpack.c.b16 %v2750, %v2748
      %v2773 = vpack.c.b16 %v2753, %v2751
      %v2774 = vpack.c.b16 %v2754, %v2752
      %v2775 = vpack.c.b16 %v2757, %v2755
      %v2776 = vpack.c.b16 %v2758, %v2756
      %v2777 = vpack.c.b16 %v2761, %v2759
      %v2778 = vpack.c.b16 %v2762, %v2760
      %2795 = vmatprep.subr.bf16.mxu0 %v2778
      %2796 = vmatpush1.bf16.msra.mxu0 %v2777
      %2797 = vmatprep.subr.bf16.mxu0 %v2776
      %2798 = vmatpush1.bf16.msra.mxu0 %v2775
      %2799 = vmatprep.subr.bf16.mxu0 %v2774
      %2800 = vmatpush1.bf16.msra.mxu0 %v2773
      %2801 = vmatprep.subr.bf16.mxu0 %v2772
      %2802 = vmatpush1.bf16.msra.mxu0 %v2771
      %2803 = vmatprep.subr.bf16.mxu0 %v2770
      %2804 = vmatpush1.bf16.msra.mxu0 %v2769
      %2805 = vmatprep.subr.bf16.mxu0 %v2768
      %2806 = vmatpush1.bf16.msra.mxu0 %v2767
      %2807 = vmatprep.subr.bf16.mxu0 %v2766
      %2808 = vmatpush1.bf16.msra.mxu0 %v2765
      %2809 = vmatprep.subr.bf16.mxu0 %v2764
      %2810 = vmatpush1.bf16.msra.mxu0 %v2763
      %2811 = vmatprep.subr.bf16.mxu0 0
      %2812 = vmatpush2.bf16.msra.mxu0 0
      %2813 = vmatprep.subr.bf16.mxu0 0
      %2814 = vmatpush2.bf16.msra.mxu0 0
      %2815 = vmatprep.subr.bf16.mxu0 0
      %2816 = vmatpush2.bf16.msra.mxu0 0
      %2817 = vmatprep.subr.bf16.mxu0 0
      %2818 = vmatpush2.bf16.msra.mxu0 0
      %2819 = vmatprep.subr.bf16.mxu0 0
      %2820 = vmatpush2.bf16.msra.mxu0 0
      %2821 = vmatprep.subr.bf16.mxu0 0
      %2822 = vmatpush2.bf16.msra.mxu0 0
      %2823 = vmatprep.subr.bf16.mxu0 0
      %2824 = vmatpush2.bf16.msra.mxu0 0
      %2825 = vmatprep.subr.bf16.mxu0 0
      %2826 = vmatpush2.bf16.msra.mxu0 0
      %2827 = vmatprep.mubr.bf16.mxu0 0
      %2828 = vmatmul.mubr.bf16.gmra.mxu0 %v2707
      %v2829 = vpop.f32.mrf.mxu0
      %v2830 = vadd.f32 0.0, %v2829
      %v2831 = vpop.f32.mrf.mxu0
      %v2832 = vadd.f32 0.0, %v2831
      %v2833 = vpop.f32.mrf.mxu0
      %v2834 = vadd.f32 0.0, %v2833
      %v2835 = vpop.f32.mrf.mxu0
      %v2836 = vadd.f32 0.0, %v2835
      %2837 = vmatprep.mubr.bf16.mxu0 0
      %2838 = vmatmul.mubr.bf16.gmra.mxu0 %v2708
      %v2839 = vpop.f32.mrf.mxu0
      %v2840 = vadd.f32 0.0, %v2839
      %v2841 = vpop.f32.mrf.mxu0
      %v2842 = vadd.f32 0.0, %v2841
      %v2843 = vpop.f32.mrf.mxu0
      %v2844 = vadd.f32 0.0, %v2843
      %v2845 = vpop.f32.mrf.mxu0
      %v2846 = vadd.f32 0.0, %v2845
      %2847 = vmatprep.mubr.bf16.mxu0 0
      %2848 = vmatmul.mubr.bf16.gmra.mxu0 %v2709
      %v2849 = vpop.f32.mrf.mxu0
      %v2850 = vadd.f32 0.0, %v2849
      %v2851 = vpop.f32.mrf.mxu0
      %v2852 = vadd.f32 0.0, %v2851
      %v2853 = vpop.f32.mrf.mxu0
      %v2854 = vadd.f32 0.0, %v2853
      %v2855 = vpop.f32.mrf.mxu0
      %v2856 = vadd.f32 0.0, %v2855
      %2857 = vmatprep.mubr.bf16.mxu0 0
      %2858 = vmatmul.mubr.bf16.gmra.mxu0 %v2710
      %v2859 = vpop.f32.mrf.mxu0
      %v2860 = vadd.f32 0.0, %v2859
      %v2861 = vpop.f32.mrf.mxu0
      %v2862 = vadd.f32 0.0, %v2861
      %v2863 = vpop.f32.mrf.mxu0
      %v2864 = vadd.f32 0.0, %v2863
      %v2865 = vpop.f32.mrf.mxu0
      %v2866 = vadd.f32 0.0, %v2865
      %2867 = vdwg.mxu0
      %v2868 = vadd.f32 %v2646, %v2830
      %v2869 = vadd.f32 %v2647, %v2832
      %v2870 = vadd.f32 %v2648, %v2834
      %v2871 = vadd.f32 %v2649, %v2836
      %v2872 = vadd.f32 %v2650, %v2840
      %v2873 = vadd.f32 %v2651, %v2842
      %v2874 = vadd.f32 %v2652, %v2844
      %v2875 = vadd.f32 %v2653, %v2846
      %v2876 = vadd.f32 %v2654, %v2850
      %v2877 = vadd.f32 %v2655, %v2852
      %v2878 = vadd.f32 %v2656, %v2854
      %v2879 = vadd.f32 %v2657, %v2856
      %v2880 = vadd.f32 %v2658, %v2860
      %v2881 = vadd.f32 %v2659, %v2862
      %v2882 = vadd.f32 %v2660, %v2864
      %v2883 = vadd.f32 %v2661, %v2866
      %v2884 = vld [vmem:[%s2665] sm:$0xf]
      %v2885 = vld [vmem:[%s2665 + $0x4] sm:$0xf]
      %v2886 = vld [vmem:[%s2665 + $0x8] sm:$0x1]
      %v2887 = vld [vmem:[%s2665 + $0xc] sm:$0xf]
      %v2888 = vld [vmem:[%s2665 + $0x10] sm:$0xf]
      %v2889 = vld [vmem:[%s2665 + $0x14] sm:$0x1]
      %v2890 = vld [vmem:[%s2665 + $0x18] sm:$0xf]
      %v2891 = vld [vmem:[%s2665 + $0x1c] sm:$0xf]
      %v2892 = vld [vmem:[%s2665 + $0x20] sm:$0x1]
      %v2893 = vld [vmem:[%s2665 + $0x24] sm:$0xf]
      %v2894 = vld [vmem:[%s2665 + $0x28] sm:$0xf]
      %v2895 = vld [vmem:[%s2665 + $0x2c] sm:$0x1]
      %v2897 = vshrl.u32 %v2884, 16
      %v2899 = vrot.slane %v2897, 4
      %v2900 = vshll.u32 %v2884, 16
      %v2902 = vrot.slane %v2900, 5
      %v2903 = vor.u32 %v2899, %v2902
      %v2904 = vrot.slane %v2903, 4
      %v2906 = vshll.u32 %v2885, 16
      %v2908 = vrot.slane %v2906, 5
      %v2909 = vsel %vm1179, %v2904, %v2908
      %v2910 = vshrl.u32 %v2885, 16
      %v2912 = vrot.slane %v2910, 4
      %v2913 = vor.u32 %v2912, %v2908
      %v2914 = vrot.slane %v2913, 4
      %v2916 = vshll.u32 %v2886, 16
      %v2918 = vrot.slane %v2916, 5
      %v2919 = vsel %vm1179, %v2914, %v2918
      %v2921 = vshrl.u32 %v2887, 16
      %v2923 = vrot.slane %v2921, 4
      %v2924 = vshll.u32 %v2887, 16
      %v2926 = vrot.slane %v2924, 5
      %v2927 = vor.u32 %v2923, %v2926
      %v2928 = vrot.slane %v2927, 4
      %v2930 = vshll.u32 %v2888, 16
      %v2932 = vrot.slane %v2930, 5
      %v2933 = vsel %vm1179, %v2928, %v2932
      %v2934 = vshrl.u32 %v2888, 16
      %v2936 = vrot.slane %v2934, 4
      %v2937 = vor.u32 %v2936, %v2932
      %v2938 = vrot.slane %v2937, 4
      %v2940 = vshll.u32 %v2889, 16
      %v2942 = vrot.slane %v2940, 5
      %v2943 = vsel %vm1179, %v2938, %v2942
      %v2945 = vshrl.u32 %v2890, 16
      %v2947 = vrot.slane %v2945, 4
      %v2948 = vshll.u32 %v2890, 16
      %v2950 = vrot.slane %v2948, 5
      %v2951 = vor.u32 %v2947, %v2950
      %v2952 = vrot.slane %v2951, 4
      %v2954 = vshll.u32 %v2891, 16
      %v2956 = vrot.slane %v2954, 5
      %v2957 = vsel %vm1179, %v2952, %v2956
      %v2958 = vshrl.u32 %v2891, 16
      %v2960 = vrot.slane %v2958, 4
      %v2961 = vor.u32 %v2960, %v2956
      %v2962 = vrot.slane %v2961, 4
      %v2964 = vshll.u32 %v2892, 16
      %v2966 = vrot.slane %v2964, 5
      %v2967 = vsel %vm1179, %v2962, %v2966
      %v2969 = vshrl.u32 %v2893, 16
      %v2971 = vrot.slane %v2969, 4
      %v2972 = vshll.u32 %v2893, 16
      %v2974 = vrot.slane %v2972, 5
      %v2975 = vor.u32 %v2971, %v2974
      %v2976 = vrot.slane %v2975, 4
      %v2978 = vshll.u32 %v2894, 16
      %v2980 = vrot.slane %v2978, 5
      %v2981 = vsel %vm1179, %v2976, %v2980
      %v2982 = vshrl.u32 %v2894, 16
      %v2984 = vrot.slane %v2982, 4
      %v2985 = vor.u32 %v2984, %v2980
      %v2986 = vrot.slane %v2985, 4
      %v2988 = vshll.u32 %v2895, 16
      %v2990 = vrot.slane %v2988, 5
      %v2991 = vsel %vm1179, %v2986, %v2990
      %s2992 = scalar_lea.vmem %s3, 896
      %v2993 = vld [vmem:[%s2992] sm:$0xff]
      %v2994 = vld [vmem:[%s2992 + $0x8] sm:$0xff]
      %v2995 = vld [vmem:[%s2992 + $0x10] sm:$0xff]
      %v2996 = vld [vmem:[%s2992 + $0x18] sm:$0xff]
      %v2997 = vld [vmem:[%s2992 + $0x20] sm:$0xff]
      %v2998 = vld [vmem:[%s2992 + $0x28] sm:$0xff]
      %v2999 = vld [vmem:[%s2992 + $0x30] sm:$0xff]
      %v3000 = vld [vmem:[%s2992 + $0x38] sm:$0xff]
      %v3001 = vld [vmem:[%s2992 + $0x40] sm:$0xff]
      %v3002 = vld [vmem:[%s2992 + $0x48] sm:$0xff]
      %v3003 = vld [vmem:[%s2992 + $0x50] sm:$0xff]
      %v3004 = vld [vmem:[%s2992 + $0x58] sm:$0xff]
      %v3005 = vld [vmem:[%s2992 + $0x60] sm:$0xff]
      %v3006 = vld [vmem:[%s2992 + $0x68] sm:$0xff]
      %v3007 = vld [vmem:[%s2992 + $0x70] sm:$0xff]
      %v3008 = vld [vmem:[%s2992 + $0x78] sm:$0xff]
      %v3009 = vunpack.c.l.b16 %v2909
      %v3010 = vunpack.c.l.b16 %v2919
      %v3011 = vunpack.c.l.b16 %v2933
      %v3012 = vunpack.c.l.b16 %v2943
      %v3013 = vunpack.c.l.b16 %v2957
      %v3014 = vunpack.c.l.b16 %v2967
      %v3015 = vunpack.c.l.b16 %v2981
      %v3016 = vunpack.c.l.b16 %v2991
      %v3017 = vpack.c.b16 %v3010, %v3009
      %v3018 = vpack.c.b16 %v3012, %v3011
      %v3019 = vpack.c.b16 %v3014, %v3013
      %v3020 = vpack.c.b16 %v3016, %v3015
      %v3041 = vunpack.c.l.b16 %v2993
      %v3042 = vunpack.c.h.b16 %v2993
      %v3043 = vunpack.c.l.b16 %v2994
      %v3044 = vunpack.c.h.b16 %v2994
      %v3045 = vunpack.c.l.b16 %v2995
      %v3046 = vunpack.c.h.b16 %v2995
      %v3047 = vunpack.c.l.b16 %v2996
      %v3048 = vunpack.c.h.b16 %v2996
      %v3049 = vunpack.c.l.b16 %v2997
      %v3050 = vunpack.c.h.b16 %v2997
      %v3051 = vunpack.c.l.b16 %v2998
      %v3052 = vunpack.c.h.b16 %v2998
      %v3053 = vunpack.c.l.b16 %v2999
      %v3054 = vunpack.c.h.b16 %v2999
      %v3055 = vunpack.c.l.b16 %v3000
      %v3056 = vunpack.c.h.b16 %v3000
      %v3057 = vunpack.c.l.b16 %v3001
      %v3058 = vunpack.c.h.b16 %v3001
      %v3059 = vunpack.c.l.b16 %v3002
      %v3060 = vunpack.c.h.b16 %v3002
      %v3061 = vunpack.c.l.b16 %v3003
      %v3062 = vunpack.c.h.b16 %v3003
      %v3063 = vunpack.c.l.b16 %v3004
      %v3064 = vunpack.c.h.b16 %v3004
      %v3065 = vunpack.c.l.b16 %v3005
      %v3066 = vunpack.c.h.b16 %v3005
      %v3067 = vunpack.c.l.b16 %v3006
      %v3068 = vunpack.c.h.b16 %v3006
      %v3069 = vunpack.c.l.b16 %v3007
      %v3070 = vunpack.c.h.b16 %v3007
      %v3071 = vunpack.c.l.b16 %v3008
      %v3072 = vunpack.c.h.b16 %v3008
      %v3073 = vpack.c.b16 %v3043, %v3041
      %v3074 = vpack.c.b16 %v3044, %v3042
      %v3075 = vpack.c.b16 %v3047, %v3045
      %v3076 = vpack.c.b16 %v3048, %v3046
      %v3077 = vpack.c.b16 %v3051, %v3049
      %v3078 = vpack.c.b16 %v3052, %v3050
      %v3079 = vpack.c.b16 %v3055, %v3053
      %v3080 = vpack.c.b16 %v3056, %v3054
      %v3081 = vpack.c.b16 %v3059, %v3057
      %v3082 = vpack.c.b16 %v3060, %v3058
      %v3083 = vpack.c.b16 %v3063, %v3061
      %v3084 = vpack.c.b16 %v3064, %v3062
      %v3085 = vpack.c.b16 %v3067, %v3065
      %v3086 = vpack.c.b16 %v3068, %v3066
      %v3087 = vpack.c.b16 %v3071, %v3069
      %v3088 = vpack.c.b16 %v3072, %v3070
      %3105 = vmatprep.subr.bf16.mxu0 %v3088
      %3106 = vmatpush1.bf16.msra.mxu0 %v3087
      %3107 = vmatprep.subr.bf16.mxu0 %v3086
      %3108 = vmatpush1.bf16.msra.mxu0 %v3085
      %3109 = vmatprep.subr.bf16.mxu0 %v3084
      %3110 = vmatpush1.bf16.msra.mxu0 %v3083
      %3111 = vmatprep.subr.bf16.mxu0 %v3082
      %3112 = vmatpush1.bf16.msra.mxu0 %v3081
      %3113 = vmatprep.subr.bf16.mxu0 %v3080
      %3114 = vmatpush1.bf16.msra.mxu0 %v3079
      %3115 = vmatprep.subr.bf16.mxu0 %v3078
      %3116 = vmatpush1.bf16.msra.mxu0 %v3077
      %3117 = vmatprep.subr.bf16.mxu0 %v3076
      %3118 = vmatpush1.bf16.msra.mxu0 %v3075
      %3119 = vmatprep.subr.bf16.mxu0 %v3074
      %3120 = vmatpush1.bf16.msra.mxu0 %v3073
      %3121 = vmatprep.subr.bf16.mxu0 0
      %3122 = vmatpush2.bf16.msra.mxu0 0
      %3123 = vmatprep.subr.bf16.mxu0 0
      %3124 = vmatpush2.bf16.msra.mxu0 0
      %3125 = vmatprep.subr.bf16.mxu0 0
      %3126 = vmatpush2.bf16.msra.mxu0 0
      %3127 = vmatprep.subr.bf16.mxu0 0
      %3128 = vmatpush2.bf16.msra.mxu0 0
      %3129 = vmatprep.subr.bf16.mxu0 0
      %3130 = vmatpush2.bf16.msra.mxu0 0
      %3131 = vmatprep.subr.bf16.mxu0 0
      %3132 = vmatpush2.bf16.msra.mxu0 0
      %3133 = vmatprep.subr.bf16.mxu0 0
      %3134 = vmatpush2.bf16.msra.mxu0 0
      %3135 = vmatprep.subr.bf16.mxu0 0
      %3136 = vmatpush2.bf16.msra.mxu0 0
      %3137 = vmatprep.mubr.bf16.mxu0 0
      %3138 = vmatmul.mubr.bf16.gmra.mxu0 %v3017
      %v3139 = vpop.f32.mrf.mxu0
      %v3140 = vadd.f32 0.0, %v3139
      %v3141 = vpop.f32.mrf.mxu0
      %v3142 = vadd.f32 0.0, %v3141
      %v3143 = vpop.f32.mrf.mxu0
      %v3144 = vadd.f32 0.0, %v3143
      %v3145 = vpop.f32.mrf.mxu0
      %v3146 = vadd.f32 0.0, %v3145
      %3147 = vmatprep.mubr.bf16.mxu0 0
      %3148 = vmatmul.mubr.bf16.gmra.mxu0 %v3018
      %v3149 = vpop.f32.mrf.mxu0
      %v3150 = vadd.f32 0.0, %v3149
      %v3151 = vpop.f32.mrf.mxu0
      %v3152 = vadd.f32 0.0, %v3151
      %v3153 = vpop.f32.mrf.mxu0
      %v3154 = vadd.f32 0.0, %v3153
      %v3155 = vpop.f32.mrf.mxu0
      %v3156 = vadd.f32 0.0, %v3155
      %3157 = vmatprep.mubr.bf16.mxu0 0
      %3158 = vmatmul.mubr.bf16.gmra.mxu0 %v3019
      %v3159 = vpop.f32.mrf.mxu0
      %v3160 = vadd.f32 0.0, %v3159
      %v3161 = vpop.f32.mrf.mxu0
      %v3162 = vadd.f32 0.0, %v3161
      %v3163 = vpop.f32.mrf.mxu0
      %v3164 = vadd.f32 0.0, %v3163
      %v3165 = vpop.f32.mrf.mxu0
      %v3166 = vadd.f32 0.0, %v3165
      %3167 = vmatprep.mubr.bf16.mxu0 0
      %3168 = vmatmul.mubr.bf16.gmra.mxu0 %v3020
      %v3169 = vpop.f32.mrf.mxu0
      %v3170 = vadd.f32 0.0, %v3169
      %v3171 = vpop.f32.mrf.mxu0
      %v3172 = vadd.f32 0.0, %v3171
      %v3173 = vpop.f32.mrf.mxu0
      %v3174 = vadd.f32 0.0, %v3173
      %v3175 = vpop.f32.mrf.mxu0
      %v3176 = vadd.f32 0.0, %v3175
      %3177 = vdwg.mxu0
      %v3178 = vadd.f32 %v2868, %v3140
      %v3179 = vadd.f32 %v2869, %v3142
      %v3180 = vadd.f32 %v2870, %v3144
      %v3181 = vadd.f32 %v2871, %v3146
      %v3182 = vadd.f32 %v2872, %v3150
      %v3183 = vadd.f32 %v2873, %v3152
      %v3184 = vadd.f32 %v2874, %v3154
      %v3185 = vadd.f32 %v2875, %v3156
      %v3186 = vadd.f32 %v2876, %v3160
      %v3187 = vadd.f32 %v2877, %v3162
      %v3188 = vadd.f32 %v2878, %v3164
      %v3189 = vadd.f32 %v2879, %v3166
      %v3190 = vadd.f32 %v2880, %v3170
      %v3191 = vadd.f32 %v2881, %v3172
      %v3192 = vadd.f32 %v2882, %v3174
      %v3193 = vadd.f32 %v2883, %v3176
      %v3194 = vld [vmem:[%s2665] sm:$0xe]
      %v3195 = vld [vmem:[%s2665 + $0xc] sm:$0xe]
      %v3196 = vld [vmem:[%s2665 + $0x18] sm:$0xe]
      %v3197 = vld [vmem:[%s2665 + $0x24] sm:$0xe]
      %v3210 = vrot.slane %v3194, 5
      %v3211 = vrot.slane %v3210, 4
      %v3212 = vrot.slane %v2885, 5
      %v3213 = vsel %vm1653, %v3211, %v3212
      %v3214 = vrot.slane %v3212, 4
      %v3215 = vrot.slane %v2886, 5
      %v3216 = vsel %vm1653, %v3214, %v3215
      %v3217 = vrot.slane %v3195, 5
      %v3218 = vrot.slane %v3217, 4
      %v3219 = vrot.slane %v2888, 5
      %v3220 = vsel %vm1653, %v3218, %v3219
      %v3221 = vrot.slane %v3219, 4
      %v3222 = vrot.slane %v2889, 5
      %v3223 = vsel %vm1653, %v3221, %v3222
      %v3224 = vrot.slane %v3196, 5
      %v3225 = vrot.slane %v3224, 4
      %v3226 = vrot.slane %v2891, 5
      %v3227 = vsel %vm1653, %v3225, %v3226
      %v3228 = vrot.slane %v3226, 4
      %v3229 = vrot.slane %v2892, 5
      %v3230 = vsel %vm1653, %v3228, %v3229
      %v3231 = vrot.slane %v3197, 5
      %v3232 = vrot.slane %v3231, 4
      %v3233 = vrot.slane %v2894, 5
      %v3234 = vsel %vm1653, %v3232, %v3233
      %v3235 = vrot.slane %v3233, 4
      %v3236 = vrot.slane %v2895, 5
      %v3237 = vsel %vm1653, %v3235, %v3236
      %s3238 = scalar_lea.vmem %s3, 1024
      %v3239 = vld [vmem:[%s3238] sm:$0xff]
      %v3240 = vld [vmem:[%s3238 + $0x8] sm:$0xff]
      %v3241 = vld [vmem:[%s3238 + $0x10] sm:$0xff]
      %v3242 = vld [vmem:[%s3238 + $0x18] sm:$0xff]
      %v3243 = vld [vmem:[%s3238 + $0x20] sm:$0xff]
      %v3244 = vld [vmem:[%s3238 + $0x28] sm:$0xff]
      %v3245 = vld [vmem:[%s3238 + $0x30] sm:$0xff]
      %v3246 = vld [vmem:[%s3238 + $0x38] sm:$0xff]
      %v3247 = vld [vmem:[%s3238 + $0x40] sm:$0xff]
      %v3248 = vld [vmem:[%s3238 + $0x48] sm:$0xff]
      %v3249 = vld [vmem:[%s3238 + $0x50] sm:$0xff]
      %v3250 = vld [vmem:[%s3238 + $0x58] sm:$0xff]
      %v3251 = vld [vmem:[%s3238 + $0x60] sm:$0xff]
      %v3252 = vld [vmem:[%s3238 + $0x68] sm:$0xff]
      %v3253 = vld [vmem:[%s3238 + $0x70] sm:$0xff]
      %v3254 = vld [vmem:[%s3238 + $0x78] sm:$0xff]
      %v3255 = vunpack.c.l.b16 %v3213
      %v3256 = vunpack.c.l.b16 %v3216
      %v3257 = vunpack.c.l.b16 %v3220
      %v3258 = vunpack.c.l.b16 %v3223
      %v3259 = vunpack.c.l.b16 %v3227
      %v3260 = vunpack.c.l.b16 %v3230
      %v3261 = vunpack.c.l.b16 %v3234
      %v3262 = vunpack.c.l.b16 %v3237
      %v3263 = vpack.c.b16 %v3256, %v3255
      %v3264 = vpack.c.b16 %v3258, %v3257
      %v3265 = vpack.c.b16 %v3260, %v3259
      %v3266 = vpack.c.b16 %v3262, %v3261
      %v3287 = vunpack.c.l.b16 %v3239
      %v3288 = vunpack.c.h.b16 %v3239
      %v3289 = vunpack.c.l.b16 %v3240
      %v3290 = vunpack.c.h.b16 %v3240
      %v3291 = vunpack.c.l.b16 %v3241
      %v3292 = vunpack.c.h.b16 %v3241
      %v3293 = vunpack.c.l.b16 %v3242
      %v3294 = vunpack.c.h.b16 %v3242
      %v3295 = vunpack.c.l.b16 %v3243
      %v3296 = vunpack.c.h.b16 %v3243
      %v3297 = vunpack.c.l.b16 %v3244
      %v3298 = vunpack.c.h.b16 %v3244
      %v3299 = vunpack.c.l.b16 %v3245
      %v3300 = vunpack.c.h.b16 %v3245
      %v3301 = vunpack.c.l.b16 %v3246
      %v3302 = vunpack.c.h.b16 %v3246
      %v3303 = vunpack.c.l.b16 %v3247
      %v3304 = vunpack.c.h.b16 %v3247
      %v3305 = vunpack.c.l.b16 %v3248
      %v3306 = vunpack.c.h.b16 %v3248
      %v3307 = vunpack.c.l.b16 %v3249
      %v3308 = vunpack.c.h.b16 %v3249
      %v3309 = vunpack.c.l.b16 %v3250
      %v3310 = vunpack.c.h.b16 %v3250
      %v3311 = vunpack.c.l.b16 %v3251
      %v3312 = vunpack.c.h.b16 %v3251
      %v3313 = vunpack.c.l.b16 %v3252
      %v3314 = vunpack.c.h.b16 %v3252
      %v3315 = vunpack.c.l.b16 %v3253
      %v3316 = vunpack.c.h.b16 %v3253
      %v3317 = vunpack.c.l.b16 %v3254
      %v3318 = vunpack.c.h.b16 %v3254
      %v3319 = vpack.c.b16 %v3289, %v3287
      %v3320 = vpack.c.b16 %v3290, %v3288
      %v3321 = vpack.c.b16 %v3293, %v3291
      %v3322 = vpack.c.b16 %v3294, %v3292
      %v3323 = vpack.c.b16 %v3297, %v3295
      %v3324 = vpack.c.b16 %v3298, %v3296
      %v3325 = vpack.c.b16 %v3301, %v3299
      %v3326 = vpack.c.b16 %v3302, %v3300
      %v3327 = vpack.c.b16 %v3305, %v3303
      %v3328 = vpack.c.b16 %v3306, %v3304
      %v3329 = vpack.c.b16 %v3309, %v3307
      %v3330 = vpack.c.b16 %v3310, %v3308
      %v3331 = vpack.c.b16 %v3313, %v3311
      %v3332 = vpack.c.b16 %v3314, %v3312
      %v3333 = vpack.c.b16 %v3317, %v3315
      %v3334 = vpack.c.b16 %v3318, %v3316
      %3351 = vmatprep.subr.bf16.mxu0 %v3334
      %3352 = vmatpush1.bf16.msra.mxu0 %v3333
      %3353 = vmatprep.subr.bf16.mxu0 %v3332
      %3354 = vmatpush1.bf16.msra.mxu0 %v3331
      %3355 = vmatprep.subr.bf16.mxu0 %v3330
      %3356 = vmatpush1.bf16.msra.mxu0 %v3329
      %3357 = vmatprep.subr.bf16.mxu0 %v3328
      %3358 = vmatpush1.bf16.msra.mxu0 %v3327
      %3359 = vmatprep.subr.bf16.mxu0 %v3326
      %3360 = vmatpush1.bf16.msra.mxu0 %v3325
      %3361 = vmatprep.subr.bf16.mxu0 %v3324
      %3362 = vmatpush1.bf16.msra.mxu0 %v3323
      %3363 = vmatprep.subr.bf16.mxu0 %v3322
      %3364 = vmatpush1.bf16.msra.mxu0 %v3321
      %3365 = vmatprep.subr.bf16.mxu0 %v3320
      %3366 = vmatpush1.bf16.msra.mxu0 %v3319
      %3367 = vmatprep.subr.bf16.mxu0 0
      %3368 = vmatpush2.bf16.msra.mxu0 0
      %3369 = vmatprep.subr.bf16.mxu0 0
      %3370 = vmatpush2.bf16.msra.mxu0 0
      %3371 = vmatprep.subr.bf16.mxu0 0
      %3372 = vmatpush2.bf16.msra.mxu0 0
      %3373 = vmatprep.subr.bf16.mxu0 0
      %3374 = vmatpush2.bf16.msra.mxu0 0
      %3375 = vmatprep.subr.bf16.mxu0 0
      %3376 = vmatpush2.bf16.msra.mxu0 0
      %3377 = vmatprep.subr.bf16.mxu0 0
      %3378 = vmatpush2.bf16.msra.mxu0 0
      %3379 = vmatprep.subr.bf16.mxu0 0
      %3380 = vmatpush2.bf16.msra.mxu0 0
      %3381 = vmatprep.subr.bf16.mxu0 0
      %3382 = vmatpush2.bf16.msra.mxu0 0
      %3383 = vmatprep.mubr.bf16.mxu0 0
      %3384 = vmatmul.mubr.bf16.gmra.mxu0 %v3263
      %v3385 = vpop.f32.mrf.mxu0
      %v3386 = vadd.f32 0.0, %v3385
      %v3387 = vpop.f32.mrf.mxu0
      %v3388 = vadd.f32 0.0, %v3387
      %v3389 = vpop.f32.mrf.mxu0
      %v3390 = vadd.f32 0.0, %v3389
      %v3391 = vpop.f32.mrf.mxu0
      %v3392 = vadd.f32 0.0, %v3391
      %3393 = vmatprep.mubr.bf16.mxu0 0
      %3394 = vmatmul.mubr.bf16.gmra.mxu0 %v3264
      %v3395 = vpop.f32.mrf.mxu0
      %v3396 = vadd.f32 0.0, %v3395
      %v3397 = vpop.f32.mrf.mxu0
      %v3398 = vadd.f32 0.0, %v3397
      %v3399 = vpop.f32.mrf.mxu0
      %v3400 = vadd.f32 0.0, %v3399
      %v3401 = vpop.f32.mrf.mxu0
      %v3402 = vadd.f32 0.0, %v3401
      %3403 = vmatprep.mubr.bf16.mxu0 0
      %3404 = vmatmul.mubr.bf16.gmra.mxu0 %v3265
      %v3405 = vpop.f32.mrf.mxu0
      %v3406 = vadd.f32 0.0, %v3405
      %v3407 = vpop.f32.mrf.mxu0
      %v3408 = vadd.f32 0.0, %v3407
      %v3409 = vpop.f32.mrf.mxu0
      %v3410 = vadd.f32 0.0, %v3409
      %v3411 = vpop.f32.mrf.mxu0
      %v3412 = vadd.f32 0.0, %v3411
      %3413 = vmatprep.mubr.bf16.mxu0 0
      %3414 = vmatmul.mubr.bf16.gmra.mxu0 %v3266
      %v3415 = vpop.f32.mrf.mxu0
      %v3416 = vadd.f32 0.0, %v3415
      %v3417 = vpop.f32.mrf.mxu0
      %v3418 = vadd.f32 0.0, %v3417
      %v3419 = vpop.f32.mrf.mxu0
      %v3420 = vadd.f32 0.0, %v3419
      %v3421 = vpop.f32.mrf.mxu0
      %v3422 = vadd.f32 0.0, %v3421
      %3423 = vdwg.mxu0
      %v3424 = vadd.f32 %v3178, %v3386
      %v3425 = vadd.f32 %v3179, %v3388
      %v3426 = vadd.f32 %v3180, %v3390
      %v3427 = vadd.f32 %v3181, %v3392
      %v3428 = vadd.f32 %v3182, %v3396
      %v3429 = vadd.f32 %v3183, %v3398
      %v3430 = vadd.f32 %v3184, %v3400
      %v3431 = vadd.f32 %v3185, %v3402
      %v3432 = vadd.f32 %v3186, %v3406
      %v3433 = vadd.f32 %v3187, %v3408
      %v3434 = vadd.f32 %v3188, %v3410
      %v3435 = vadd.f32 %v3189, %v3412
      %v3436 = vadd.f32 %v3190, %v3416
      %v3437 = vadd.f32 %v3191, %v3418
      %v3438 = vadd.f32 %v3192, %v3420
      %v3439 = vadd.f32 %v3193, %v3422
      %v3440 = vld [vmem:[%s4] sm:$0x3]
      %v3442 = vlaneseq
      %v3443 = vshrl.u32 %v3442, 7
      %v3444 = vsub.s32 0, %v3443
      %v3445 = vrot.slane %v3440, %v3444
      %v3446 = vlaneseq
      %v3447 = vshrl.u32 %v3446, 7
      %v3448 = vsub.s32 1, %v3447
      %v3449 = vrot.slane %v3440, %v3448
      %v3452 = vadd.f32 %v3424, %v3445
      %v3453 = vadd.f32 %v3425, %v3449
      %v3454 = vadd.f32 %v3426, %v3445
      %v3455 = vadd.f32 %v3427, %v3449
      %v3456 = vadd.f32 %v3428, %v3445
      %v3457 = vadd.f32 %v3429, %v3449
      %v3458 = vadd.f32 %v3430, %v3445
      %v3459 = vadd.f32 %v3431, %v3449
      %v3460 = vadd.f32 %v3432, %v3445
      %v3461 = vadd.f32 %v3433, %v3449
      %v3462 = vadd.f32 %v3434, %v3445
      %v3463 = vadd.f32 %v3435, %v3449
      %v3464 = vadd.f32 %v3436, %v3445
      %v3465 = vadd.f32 %v3437, %v3449
      %v3466 = vadd.f32 %v3438, %v3445
      %v3467 = vadd.f32 %v3439, %v3449
      // Predicated region
      $region45: #{conv_vencoder_forward.5} parent=39 // pred_check
        %p3468 = pneg %p326
      $region46: #{conv_vencoder_forward.5} parent=39 // pred_check_branch
        %3470 = sbr.rel (%p3468) target = $region48
      $region47: #{conv_vencoder_forward.5} parent=39 // pred_region
        %v3471 = vlaneseq
        %vm3472 = vcmp.ge.s32.totalorder %v3471, 0
        %vm3473 = vcmp.lt.s32.totalorder %v3471, 256
        %vm3474 = vmand %vm3472, %vm3473
        %3475 = vst.msk [vmem:[%s320] sm:$0x3] %vm3474, 0.0
        %3476 = vst.msk [vmem:[%s324] sm:$0x3] %vm3474, 0.0
      $region48: #{conv_vencoder_forward.5} parent=39 // pred_fallthru
        _
      %v3477 = vld [vmem:[%s320] sm:$0x3]
      %v3478 = vadd.f32 %v3452, %v3454
      %v3479 = vadd.f32 %v3478, %v3456
      %v3480 = vadd.f32 %v3479, %v3458
      %v3481 = vadd.f32 %v3480, %v3460
      %v3482 = vadd.f32 %v3481, %v3462
      %v3483 = vadd.f32 %v3482, %v3464
      %v3484 = vadd.f32 %v3483, %v3466
      %v3485 = vrot.slane %v3484, 4
      %v3486 = vadd.f32 %v3484, %v3485
      %v3487 = vrot.slane %v3486, 2
      %v3488 = vadd.f32 %v3486, %v3487
      %v3489 = vrot.slane %v3488, 1
      %v3490 = vadd.f32 %v3488, %v3489
      %v3491 = vadd.f32 %v3453, %v3455
      %v3492 = vadd.f32 %v3491, %v3457
      %v3493 = vadd.f32 %v3492, %v3459
      %v3494 = vadd.f32 %v3493, %v3461
      %v3495 = vadd.f32 %v3494, %v3463
      %v3496 = vadd.f32 %v3495, %v3465
      %v3497 = vadd.f32 %v3496, %v3467
      %v3498 = vrot.slane %v3497, 4
      %v3499 = vadd.f32 %v3497, %v3498
      %v3500 = vrot.slane %v3499, 2
      %v3501 = vadd.f32 %v3499, %v3500
      %v3502 = vrot.slane %v3501, 1
      %v3503 = vadd.f32 %v3501, %v3502
      %v3506 = vcombine.low %v3490, %v3503
      %v3508 = vunpack.c.l.s4 1966171168
      %v3509 = vunpack.c.0.s8 %v3508
      %v3510 = vlaneseq
      %v3511 = vshrl.u32 %v3510, 7
      %v3512 = vsub.s32 %v3509, %v3511
      %v3513 = vrot.slane %v3506, %v3512
      %v3515 = vunpack.c.l.s4 1966171168
      %v3516 = vunpack.c.0.s8 %v3515
      %v3517 = vlaneseq
      %v3518 = vshrl.u32 %v3517, 7
      %v3519 = vsub.s32 %v3516, %v3518
      %v3520 = vrot.slane %v3513, %v3519
      %v3522 = vadd.f32 %v3477, %v3520
      %v3523 = vlaneseq
      %vm3524 = vcmp.ge.s32.totalorder %v3523, 0
      %vm3525 = vcmp.lt.s32.totalorder %v3523, 256
      %vm3526 = vmand %vm3524, %vm3525
      %3527 = vst.msk [vmem:[%s320] sm:$0x3] %vm3526, %v3522
      %v3528 = vld [vmem:[%s324] sm:$0x3]
      %v3529 = vmul.f32 %v3452, %v3452
      %v3530 = vmul.f32 %v3453, %v3453
      %v3531 = vmul.f32 %v3454, %v3454
      %v3532 = vmul.f32 %v3455, %v3455
      %v3533 = vmul.f32 %v3456, %v3456
      %v3534 = vmul.f32 %v3457, %v3457
      %v3535 = vmul.f32 %v3458, %v3458
      %v3536 = vmul.f32 %v3459, %v3459
      %v3537 = vmul.f32 %v3460, %v3460
      %v3538 = vmul.f32 %v3461, %v3461
      %v3539 = vmul.f32 %v3462, %v3462
      %v3540 = vmul.f32 %v3463, %v3463
      %v3541 = vmul.f32 %v3464, %v3464
      %v3542 = vmul.f32 %v3465, %v3465
      %v3543 = vmul.f32 %v3466, %v3466
      %v3544 = vmul.f32 %v3467, %v3467
      %v3545 = vadd.f32 %v3529, %v3531
      %v3546 = vadd.f32 %v3545, %v3533
      %v3547 = vadd.f32 %v3546, %v3535
      %v3548 = vadd.f32 %v3547, %v3537
      %v3549 = vadd.f32 %v3548, %v3539
      %v3550 = vadd.f32 %v3549, %v3541
      %v3551 = vadd.f32 %v3550, %v3543
      %v3552 = vrot.slane %v3551, 4
      %v3553 = vadd.f32 %v3551, %v3552
      %v3554 = vrot.slane %v3553, 2
      %v3555 = vadd.f32 %v3553, %v3554
      %v3556 = vrot.slane %v3555, 1
      %v3557 = vadd.f32 %v3555, %v3556
      %v3558 = vadd.f32 %v3530, %v3532
      %v3559 = vadd.f32 %v3558, %v3534
      %v3560 = vadd.f32 %v3559, %v3536
      %v3561 = vadd.f32 %v3560, %v3538
      %v3562 = vadd.f32 %v3561, %v3540
      %v3563 = vadd.f32 %v3562, %v3542
      %v3564 = vadd.f32 %v3563, %v3544
      %v3565 = vrot.slane %v3564, 4
      %v3566 = vadd.f32 %v3564, %v3565
      %v3567 = vrot.slane %v3566, 2
      %v3568 = vadd.f32 %v3566, %v3567
      %v3569 = vrot.slane %v3568, 1
      %v3570 = vadd.f32 %v3568, %v3569
      %v3573 = vcombine.low %v3557, %v3570
      %v3575 = vunpack.c.l.s4 1966171168
      %v3576 = vunpack.c.0.s8 %v3575
      %v3577 = vlaneseq
      %v3578 = vshrl.u32 %v3577, 7
      %v3579 = vsub.s32 %v3576, %v3578
      %v3580 = vrot.slane %v3573, %v3579
      %v3582 = vunpack.c.l.s4 1966171168
      %v3583 = vunpack.c.0.s8 %v3582
      %v3584 = vlaneseq
      %v3585 = vshrl.u32 %v3584, 7
      %v3586 = vsub.s32 %v3583, %v3585
      %v3587 = vrot.slane %v3580, %v3586
      %v3589 = vadd.f32 %v3528, %v3587
      %3590 = vst.msk [vmem:[%s324] sm:$0x3] %vm3526, %v3589
      %v3591 = vpack.c.bf16 %v3454, %v3452
      %v3592 = vpack.c.bf16 %v3455, %v3453
      %v3593 = vpack.c.bf16 %v3458, %v3456
      %v3594 = vpack.c.bf16 %v3459, %v3457
      %v3595 = vpack.c.bf16 %v3462, %v3460
      %v3596 = vpack.c.bf16 %v3463, %v3461
      %v3597 = vpack.c.bf16 %v3466, %v3464
      %v3598 = vpack.c.bf16 %v3467, %v3465
      %v3607 = vunpack.c.l.b16 %v3591
      %v3608 = vunpack.c.l.b16 %v3592
      %v3609 = vunpack.c.h.b16 %v3591
      %v3610 = vunpack.c.h.b16 %v3592
      %v3611 = vunpack.c.l.b16 %v3593
      %v3612 = vunpack.c.l.b16 %v3594
      %v3613 = vunpack.c.h.b16 %v3593
      %v3614 = vunpack.c.h.b16 %v3594
      %v3615 = vunpack.c.l.b16 %v3595
      %v3616 = vunpack.c.l.b16 %v3596
      %v3617 = vunpack.c.h.b16 %v3595
      %v3618 = vunpack.c.h.b16 %v3596
      %v3619 = vunpack.c.l.b16 %v3597
      %v3620 = vunpack.c.l.b16 %v3598
      %v3621 = vunpack.c.h.b16 %v3597
      %v3622 = vunpack.c.h.b16 %v3598
      %v3623 = vpack.c.b16 %v3608, %v3607
      %v3624 = vpack.c.b16 %v3610, %v3609
      %v3625 = vpack.c.b16 %v3612, %v3611
      %v3626 = vpack.c.b16 %v3614, %v3613
      %v3627 = vpack.c.b16 %v3616, %v3615
      %v3628 = vpack.c.b16 %v3618, %v3617
      %v3629 = vpack.c.b16 %v3620, %v3619
      %v3630 = vpack.c.b16 %v3622, %v3621
      %3639 = vst [vmem:[%s315] sm:$0xff] %v3623
      %3640 = vst [vmem:[%s315 + $0x8] sm:$0xff] %v3624
      %3641 = vst [vmem:[%s315 + $0x10] sm:$0xff] %v3625
      %3642 = vst [vmem:[%s315 + $0x18] sm:$0xff] %v3626
      %3643 = vst [vmem:[%s315 + $0x20] sm:$0xff] %v3627
      %3644 = vst [vmem:[%s315 + $0x28] sm:$0xff] %v3628
      %3645 = vst [vmem:[%s315 + $0x30] sm:$0xff] %v3629
      %3646 = vst [vmem:[%s315 + $0x38] sm:$0xff] %v3630
      %s3647 = smul.u32 4, %s24
      %p3648 = scmp.lt.s32.totalorder %s23, 1
      %s3649 = scalar_select %p3648, %s23, 1
      %p3650 = scmp.lt.s32.totalorder %s3647, 15
      %s3651 = scalar_select %p3650, %s3647, 15
      %s3652 = smul.addr %s3651, 4
      %s3653 = smul.addr %s3649, 64
      %s3654 = sadd.s32 %s3652, %s3653
      %s3655 = smul.addr %s3654, 4
      %s3656 = scalar_lea.vmem %s5, %s3655
      %p3657 = scmp.lt.s32.totalorder %s23, 1
      %s3658 = scalar_select %p3657, %s23, 1
      %s3659 = smul.addr %s3658, 2
      %s3660 = scalar_lea.vmem %s6, %s3659
      %p3661 = scmp.lt.s32.totalorder %s23, 1
      %s3662 = scalar_select %p3661, %s23, 1
      %s3663 = smul.addr %s3662, 2
      %s3664 = scalar_lea.vmem %s7, %s3663
      // Predicated region
      $region49: #{conv_vencoder_forward.5} parent=39 // pred_check
        %p3665 = pneg %p161
      $region50: #{conv_vencoder_forward.5} parent=39 // pred_check_branch
        %3667 = sbr.rel (%p3665) target = $region52
      $region51: #{conv_vencoder_forward.5} parent=39 // pred_region
        %s3668 = smul.u32 4, %s24
      $region52: #{conv_vencoder_forward.5} parent=39 // pred_fallthru
        _
      // Predicated region
      $region53: #{conv_vencoder_forward.5} parent=39 // pred_check
        %p3669 = pneg %p187
      $region54: #{conv_vencoder_forward.5} parent=39 // pred_check_branch
        %3671 = sbr.rel (%p3669) target = $region56
      $region55: #{conv_vencoder_forward.5} parent=39 // pred_region
        _
      $region56: #{conv_vencoder_forward.5} parent=39 // pred_fallthru
        _
      // Predicated region
      $region57: #{conv_vencoder_forward.5} parent=39 // pred_check
        %p3672 = pneg %p213
      $region58: #{conv_vencoder_forward.5} parent=39 // pred_check_branch
        %3674 = sbr.rel (%p3672) target = $region60
      $region59: #{conv_vencoder_forward.5} parent=39 // pred_region
        _
      $region60: #{conv_vencoder_forward.5} parent=39 // pred_fallthru
        _
    $region40: #{conv_vencoder_forward.5} parent=5 // pred_fallthru
      _
    %p3675 = scmp.le.s32.totalorder 2, %s14
    // Predicated region
    $region61: #{conv_vencoder_forward.5} parent=5 // pred_check
      %p3676 = pneg %p3675
    $region62: #{conv_vencoder_forward.5} parent=5 // pred_check_branch
      %3678 = sbr.rel (%p3676) target = $region64
    $region63: #{conv_vencoder_forward.5} parent=5 // pred_region
      %s3679 = ssub.s32 %s14, 2
      // Predicated region
      $region65: #{conv_vencoder_forward.5} parent=63 // pred_check
        %p3680 = pneg %p167
      $region66: #{conv_vencoder_forward.5} parent=63 // pred_check_branch
        %3682 = sbr.rel (%p3680) target = $region68
      $region67: #{conv_vencoder_forward.5} parent=63 // pred_region
        %s3683 = smul.u32 4, %s26
        %p3684 = scmp.lt.s32.totalorder %s25, 1
        %s3685 = scalar_select %p3684, %s25, 1
        %p3686 = scmp.lt.s32.totalorder %s3683, 15
        %s3687 = scalar_select %p3686, %s3683, 15
        %s3688 = smul.addr %s3687, 4
        %s3689 = smul.addr %s3685, 64
        %s3690 = sadd.s32 %s3688, %s3689
        %s3691 = smul.addr %s3690, 4
        %s3692 = scalar_lea.vmem %s5, %s3691
      $region68: #{conv_vencoder_forward.5} parent=63 // pred_fallthru
        _
      // Predicated region
      $region69: #{conv_vencoder_forward.5} parent=63 // pred_check
        %p3693 = pneg %p193
      $region70: #{conv_vencoder_forward.5} parent=63 // pred_check_branch
        %3695 = sbr.rel (%p3693) target = $region72
      $region71: #{conv_vencoder_forward.5} parent=63 // pred_region
        %p3696 = scmp.lt.s32.totalorder %s25, 1
        %s3697 = scalar_select %p3696, %s25, 1
        %s3698 = smul.addr %s3697, 2
        %s3699 = scalar_lea.vmem %s6, %s3698
      $region72: #{conv_vencoder_forward.5} parent=63 // pred_fallthru
        _
      // Predicated region
      $region73: #{conv_vencoder_forward.5} parent=63 // pred_check
        %p3700 = pneg %p219
      $region74: #{conv_vencoder_forward.5} parent=63 // pred_check_branch
        %3702 = sbr.rel (%p3700) target = $region76
      $region75: #{conv_vencoder_forward.5} parent=63 // pred_region
        %p3703 = scmp.lt.s32.totalorder %s25, 1
        %s3704 = scalar_select %p3703, %s25, 1
        %s3705 = smul.addr %s3704, 2
        %s3706 = scalar_lea.vmem %s7, %s3705
      $region76: #{conv_vencoder_forward.5} parent=63 // pred_fallthru
        _
    $region64: #{conv_vencoder_forward.5} parent=5 // pred_fallthru
      _
  $region6: #{conv_vencoder_forward.5} parent=0 // loop_footer
    %s18 = sadd.s32 1, %s14
  $region7: #{conv_vencoder_forward.5} parent=0 // loop_footer_branch
    %13 = sbr.rel target = $region3
  $region8: #{conv_vencoder_forward.5} parent=0 // loop_exit
    _

// kernel: conv_vencoder_forward.6
$region0: #{conv_vencoder_forward.6}
  #allocation0 [shape = 'u32[]', space=smem, size = 0x4, offset = 0x4, fixed_abs, tag = 'smem constant byte address 0x4 - core index']
  #allocation1 [shape = 'u32[144,128]{1,0:T(1,128)}', space=vmem, size = 0x12000, scoped, tag = 'internal scratch']
  #allocation2 [shape = 'bf16[18,24,256]{2,1,0:T(8,128)(2,1)}', space=vmem, size = 0x36000, scoped, tag = 'scratch operand']
  %s0 = inlined_call_operand.vmem [shape: bf16[2,16,16,256], index: 0, kind: input, shape index: {}]
  %s1 = inlined_call_operand.vmem [shape: f32[1,256], index: 1, kind: input, shape index: {}]
  %s2 = inlined_call_operand.vmem [shape: f32[1,256], index: 2, kind: input, shape index: {}]
  %s3 = inlined_call_operand.vmem [shape: bf16[9,32,256], index: 3, kind: input, shape index: {}]
  %s4 = inlined_call_operand.vmem [shape: f32[32,1], index: 4, kind: input, shape index: {}]
  %s5 = inlined_call_operand.vmem [shape: bf16[2,32,256], index: 5, kind: output, shape index: {0}]
  %s6 = inlined_call_operand.vmem [shape: f32[2,32,1], index: 6, kind: output, shape index: {1}]
  %s7 = inlined_call_operand.vmem [shape: f32[2,32,1], index: 7, kind: output, shape index: {2}]
  %8 = xla_tuple %s5, %s6, %s7
  %s9 = sld [smem:[#allocation0]]
  $region114: #{conv_vencoder_forward.6} parent=0
    _
  %s11 = ssub.s32 1, %s9
  %s12 = scalar_select 0, %s11, %s9
  $region1: #{conv_vencoder_forward.6} parent=0
    #allocation3 [shape = 'u8[16384]{0}', space=vmem, size = 0x4000, scoped, tag = 'output window, operand 0']
    loop: start=0, step=1, limit=6
    $region2: #{conv_vencoder_forward.6} parent=1 // loop_pre_header
      _
    $region3: #{conv_vencoder_forward.6} parent=1 // loop_header
      %s14 = sphi 0, %s18
      %p15 = scmp.ge.s32.totalorder %s14, 6
      %s21 = sphi 0, %s33
      %s22 = sphi 0, %s29
      %s23 = sphi 0, %s21
      %s24 = sphi 0, %s22
      %s25 = sphi 0, %s23
      %s26 = sphi 0, %s24
      %s36 = sphi 0, %s38
      %s39 = sphi 0, %s36
      %s40 = sphi 0, %s39
      %s56 = sphi 0, %s40
      %s60 = sphi 0, %s60
      %s62 = sphi 0, %s60
      %s63 = sphi 0, %s62
      %s77 = sphi 0, %s63
      %s81 = sphi 0, %s81
      %s83 = sphi 0, %s81
      %s84 = sphi 0, %s83
      %s98 = sphi 0, %s84
      %s102 = sphi 0, %s102
      %s104 = sphi 0, %s102
      %s105 = sphi 0, %s104
      %s119 = sphi 0, %s105
      %s123 = sphi 0, %s123
      %s125 = sphi 0, %s123
      %s126 = sphi 0, %s125
      %s140 = sphi 0, %s126
      %s148 = sphi 0, %s150
      %s151 = sphi 0, %s148
      %s152 = sphi 0, %s151
      %s168 = sphi 0, %s152
      %s174 = sphi 0, %s176
      %s177 = sphi 0, %s174
      %s178 = sphi 0, %s177
      %s194 = sphi 0, %s178
      %s200 = sphi 0, %s202
      %s203 = sphi 0, %s200
      %s204 = sphi 0, %s203
      %s220 = sphi 0, %s204
    $region4: #{conv_vencoder_forward.6} parent=1 // loop_header_branch
      %17 = sbr.rel (%p15) target = $region8
    $region5: #{conv_vencoder_forward.6} parent=1 // loop_body
      %s19 = ssub.s32 %s14, 1
      %s20 = ssub.s32 %s14, 2
      %s27 = sadd.s32 1, %s22
      %p28 = scmp.ge.s32.totalorder %s27, 2
      %s29 = scalar_select %p28, 0, %s27
      %s30 = sadd.s32 1, %s21
      %s31 = scalar_select %p28, %s30, %s21
      %p32 = scmp.ge.s32.totalorder %s31, 2
      %s33 = scalar_select %p32, 0, %s31
      %s34 = ssub.s32 %s21, %s33
      %p35 = scmp.eq.s32.totalorder %s34, 0
      %s37 = sadd.s32 %s36, 1
      %s38 = scalar_select %p35, %s36, %s37
      %p41 = pneg %p35
      %p42 = scmp.eq.s32.totalorder %s14, 3
      %p43 = por %p41, %p42
      %p44 = scmp.ne.s32.totalorder %s36, %s39
      %p45 = scmp.eq.s32.totalorder %s14, 0
      %p46 = por %p44, %p45
      %p47 = scmp.ne.s32.totalorder %s36, %s39
      %p48 = scmp.eq.s32.totalorder %s19, 3
      %p49 = por %p47, %p48
      %p50 = scmp.ne.s32.totalorder %s39, %s40
      %p51 = scmp.eq.s32.totalorder %s19, 0
      %p52 = por %p50, %p51
      %p53 = scmp.ne.s32.totalorder %s39, %s40
      %p54 = scmp.eq.s32.totalorder %s20, 3
      %p55 = por %p53, %p54
      %p57 = scmp.ne.s32.totalorder %s40, %s56
      %p58 = scmp.eq.s32.totalorder %s20, 0
      %p59 = por %p57, %p58
      %s61 = sadd.s32 %s60, 1
      %p64 = scmp.eq.s32.totalorder %s14, 3
      %p65 = scmp.ne.s32.totalorder %s60, %s62
      %p66 = scmp.eq.s32.totalorder %s14, 0
      %p67 = por %p65, %p66
      %p68 = scmp.ne.s32.totalorder %s60, %s62
      %p69 = scmp.eq.s32.totalorder %s19, 3
      %p70 = por %p68, %p69
      %p71 = scmp.ne.s32.totalorder %s62, %s63
      %p72 = scmp.eq.s32.totalorder %s19, 0
      %p73 = por %p71, %p72
      %p74 = scmp.ne.s32.totalorder %s62, %s63
      %p75 = scmp.eq.s32.totalorder %s20, 3
      %p76 = por %p74, %p75
      %p78 = scmp.ne.s32.totalorder %s63, %s77
      %p79 = scmp.eq.s32.totalorder %s20, 0
      %p80 = por %p78, %p79
      %s82 = sadd.s32 %s81, 1
      %p85 = scmp.eq.s32.totalorder %s14, 3
      %p86 = scmp.ne.s32.totalorder %s81, %s83
      %p87 = scmp.eq.s32.totalorder %s14, 0
      %p88 = por %p86, %p87
      %p89 = scmp.ne.s32.totalorder %s81, %s83
      %p90 = scmp.eq.s32.totalorder %s19, 3
      %p91 = por %p89, %p90
      %p92 = scmp.ne.s32.totalorder %s83, %s84
      %p93 = scmp.eq.s32.totalorder %s19, 0
      %p94 = por %p92, %p93
      %p95 = scmp.ne.s32.totalorder %s83, %s84
      %p96 = scmp.eq.s32.totalorder %s20, 3
      %p97 = por %p95, %p96
      %p99 = scmp.ne.s32.totalorder %s84, %s98
      %p100 = scmp.eq.s32.totalorder %s20, 0
      %p101 = por %p99, %p100
      %s103 = sadd.s32 %s102, 1
      %p106 = scmp.eq.s32.totalorder %s14, 3
      %p107 = scmp.ne.s32.totalorder %s102, %s104
      %p108 = scmp.eq.s32.totalorder %s14, 0
      %p109 = por %p107, %p108
      %p110 = scmp.ne.s32.totalorder %s102, %s104
      %p111 = scmp.eq.s32.totalorder %s19, 3
      %p112 = por %p110, %p111
      %p113 = scmp.ne.s32.totalorder %s104, %s105
      %p114 = scmp.eq.s32.totalorder %s19, 0
      %p115 = por %p113, %p114
      %p116 = scmp.ne.s32.totalorder %s104, %s105
      %p117 = scmp.eq.s32.totalorder %s20, 3
      %p118 = por %p116, %p117
      %p120 = scmp.ne.s32.totalorder %s105, %s119
      %p121 = scmp.eq.s32.totalorder %s20, 0
      %p122 = por %p120, %p121
      %s124 = sadd.s32 %s123, 1
      %p127 = scmp.eq.s32.totalorder %s14, 3
      %p128 = scmp.ne.s32.totalorder %s123, %s125
      %p129 = scmp.eq.s32.totalorder %s14, 0
      %p130 = por %p128, %p129
      %p131 = scmp.ne.s32.totalorder %s123, %s125
      %p132 = scmp.eq.s32.totalorder %s19, 3
      %p133 = por %p131, %p132
      %p134 = scmp.ne.s32.totalorder %s125, %s126
      %p135 = scmp.eq.s32.totalorder %s19, 0
      %p136 = por %p134, %p135
      %p137 = scmp.ne.s32.totalorder %s125, %s126
      %p138 = scmp.eq.s32.totalorder %s20, 3
      %p139 = por %p137, %p138
      %p141 = scmp.ne.s32.totalorder %s126, %s140
      %p142 = scmp.eq.s32.totalorder %s20, 0
      %p143 = por %p141, %p142
      %s144 = ssub.s32 %s21, %s33
      %s145 = ssub.s32 %s22, %s29
      %s146 = sor.u32 %s144, %s145
      %p147 = scmp.eq.s32.totalorder %s146, 0
      %s149 = sadd.s32 %s148, 1
      %s150 = scalar_select %p147, %s148, %s149
      %p153 = pneg %p147
      %p154 = scmp.eq.s32.totalorder %s14, 3
      %p155 = por %p153, %p154
      %p156 = scmp.ne.s32.totalorder %s148, %s151
      %p157 = scmp.eq.s32.totalorder %s14, 0
      %p158 = por %p156, %p157
      %p159 = scmp.ne.s32.totalorder %s148, %s151
      %p160 = scmp.eq.s32.totalorder %s19, 3
      %p161 = por %p159, %p160
      %p162 = scmp.ne.s32.totalorder %s151, %s152
      %p163 = scmp.eq.s32.totalorder %s19, 0
      %p164 = por %p162, %p163
      %p165 = scmp.ne.s32.totalorder %s151, %s152
      %p166 = scmp.eq.s32.totalorder %s20, 3
      %p167 = por %p165, %p166
      %p169 = scmp.ne.s32.totalorder %s152, %s168
      %p170 = scmp.eq.s32.totalorder %s20, 0
      %p171 = por %p169, %p170
      %s172 = ssub.s32 %s21, %s33
      %p173 = scmp.eq.s32.totalorder %s172, 0
      %s175 = sadd.s32 %s174, 1
      %s176 = scalar_select %p173, %s174, %s175
      %p179 = pneg %p173
      %p180 = scmp.eq.s32.totalorder %s14, 3
      %p181 = por %p179, %p180
      %p182 = scmp.ne.s32.totalorder %s174, %s177
      %p183 = scmp.eq.s32.totalorder %s14, 0
      %p184 = por %p182, %p183
      %p185 = scmp.ne.s32.totalorder %s174, %s177
      %p186 = scmp.eq.s32.totalorder %s19, 3
      %p187 = por %p185, %p186
      %p188 = scmp.ne.s32.totalorder %s177, %s178
      %p189 = scmp.eq.s32.totalorder %s19, 0
      %p190 = por %p188, %p189
      %p191 = scmp.ne.s32.totalorder %s177, %s178
      %p192 = scmp.eq.s32.totalorder %s20, 3
      %p193 = por %p191, %p192
      %p195 = scmp.ne.s32.totalorder %s178, %s194
      %p196 = scmp.eq.s32.totalorder %s20, 0
      %p197 = por %p195, %p196
      %s198 = ssub.s32 %s21, %s33
      %p199 = scmp.eq.s32.totalorder %s198, 0
      %s201 = sadd.s32 %s200, 1
      %s202 = scalar_select %p199, %s200, %s201
      %p205 = pneg %p199
      %p206 = scmp.eq.s32.totalorder %s14, 3
      %p207 = por %p205, %p206
      %p208 = scmp.ne.s32.totalorder %s200, %s203
      %p209 = scmp.eq.s32.totalorder %s14, 0
      %p210 = por %p208, %p209
      %p211 = scmp.ne.s32.totalorder %s200, %s203
      %p212 = scmp.eq.s32.totalorder %s19, 3
      %p213 = por %p211, %p212
      %p214 = scmp.ne.s32.totalorder %s203, %s204
      %p215 = scmp.eq.s32.totalorder %s19, 0
      %p216 = por %p214, %p215
      %p217 = scmp.ne.s32.totalorder %s203, %s204
      %p218 = scmp.eq.s32.totalorder %s20, 3
      %p219 = por %p217, %p218
      %p221 = scmp.ne.s32.totalorder %s204, %s220
      %p222 = scmp.eq.s32.totalorder %s20, 0
      %p223 = por %p221, %p222
      %p224 = scmp.le.s32.totalorder 1, %s14
      %p225 = scmp.lt.s32.totalorder %s14, 5
      %p226 = pnand %p224, %p225
      %p227 = pneg %p226
      // Predicated region
      $region9: #{conv_vencoder_forward.6} parent=5 // pred_check
        _
      $region10: #{conv_vencoder_forward.6} parent=5 // pred_check_branch
        %229 = sbr.rel (%p226) target = $region12
      $region11: #{conv_vencoder_forward.6} parent=5 // pred_region
        %s230 = ssub.s32 %s14, 1
        // Predicated region
        $region13: #{conv_vencoder_forward.6} parent=11 // pred_check
          %p231 = pneg %p73
        $region14: #{conv_vencoder_forward.6} parent=11 // pred_check_branch
          %233 = sbr.rel (%p231) target = $region16
        $region15: #{conv_vencoder_forward.6} parent=11 // pred_region
          _
        $region16: #{conv_vencoder_forward.6} parent=11 // pred_fallthru
          _
        // Predicated region
        $region17: #{conv_vencoder_forward.6} parent=11 // pred_check
          %p234 = pneg %p94
        $region18: #{conv_vencoder_forward.6} parent=11 // pred_check_branch
          %236 = sbr.rel (%p234) target = $region20
        $region19: #{conv_vencoder_forward.6} parent=11 // pred_region
          _
        $region20: #{conv_vencoder_forward.6} parent=11 // pred_fallthru
          _
        // Predicated region
        $region21: #{conv_vencoder_forward.6} parent=11 // pred_check
          %p237 = pneg %p115
        $region22: #{conv_vencoder_forward.6} parent=11 // pred_check_branch
          %239 = sbr.rel (%p237) target = $region24
        $region23: #{conv_vencoder_forward.6} parent=11 // pred_region
          _
        $region24: #{conv_vencoder_forward.6} parent=11 // pred_fallthru
          _
        // Predicated region
        $region25: #{conv_vencoder_forward.6} parent=11 // pred_check
          %p240 = pneg %p136
        $region26: #{conv_vencoder_forward.6} parent=11 // pred_check_branch
          %242 = sbr.rel (%p240) target = $region28
        $region27: #{conv_vencoder_forward.6} parent=11 // pred_region
          _
        $region28: #{conv_vencoder_forward.6} parent=11 // pred_fallthru
          _
      $region12: #{conv_vencoder_forward.6} parent=5 // pred_fallthru
        _
      %p243 = scmp.lt.s32.totalorder %s14, 4
      // Predicated region
      $region29: #{conv_vencoder_forward.6} parent=5 // pred_check
        %p244 = pneg %p243
      $region30: #{conv_vencoder_forward.6} parent=5 // pred_check_branch
        %246 = sbr.rel (%p244) target = $region32
      $region31: #{conv_vencoder_forward.6} parent=5 // pred_region
        // Predicated region
        $region33: #{conv_vencoder_forward.6} parent=31 // pred_check
          %p247 = pneg %p46
        $region34: #{conv_vencoder_forward.6} parent=31 // pred_check_branch
          %249 = sbr.rel (%p247) target = $region36
        $region35: #{conv_vencoder_forward.6} parent=31 // pred_region
          %p250 = scmp.lt.s32.totalorder %s21, 1
          %s251 = scalar_select %p250, %s21, 1
          %s252 = smul.addr %s251, 64
          %s253 = smul.addr %s252, 4
          %s254 = scalar_lea.vmem %s0, %s253
        $region36: #{conv_vencoder_forward.6} parent=31 // pred_fallthru
          _
      $region32: #{conv_vencoder_forward.6} parent=5 // pred_fallthru
        _
      %p255 = scmp.le.s32.totalorder 1, %s14
      %p256 = scmp.lt.s32.totalorder %s14, 5
      %p257 = pnand %p255, %p256
      %p258 = pneg %p257
      // Predicated region
      $region37: #{conv_vencoder_forward.6} parent=5 // pred_check
        _
      $region38: #{conv_vencoder_forward.6} parent=5 // pred_check_branch
        %260 = sbr.rel (%p257) target = $region40
      $region39: #{conv_vencoder_forward.6} parent=5 // pred_region
        %s261 = ssub.s32 %s14, 1
        %p262 = scmp.lt.s32.totalorder %s23, 1
        %s263 = scalar_select %p262, %s23, 1
        %s264 = smul.addr %s263, 64
        %s265 = smul.addr %s264, 4
        %s266 = scalar_lea.vmem %s0, %s265
        %p267 = pneg %p52
        %p268 = pneg %p49
        %p269 = pneg %p73
        %p270 = pneg %p70
        %p271 = pneg %p94
        %p272 = pneg %p91
        %p273 = pneg %p115
        %p274 = pneg %p112
        %p275 = pneg %p136
        %p276 = pneg %p133
        %p277 = pneg %p164
        %p278 = pneg %p161
        %s279 = sand.u32 %s151, 1
        %s280 = sand.u32 %s151, 1
        %s281 = smul.addr %s280, 16
        %s282 = scalar_lea.vmem [#allocation3], %s281
        %p283 = pneg %p190
        %p284 = pneg %p187
        %p285 = scmp.lt.s32.totalorder %s23, 1
        %s286 = scalar_select %p285, %s23, 1
        %s287 = smul.addr %s286, 4
        %s288 = smul.addr %s287, 8
        %s289 = scalar_lea.vmem %s6, %s288
        %p290 = pneg %p216
        %p291 = pneg %p213
        %p292 = scmp.lt.s32.totalorder %s23, 1
        %s293 = scalar_select %p292, %s23, 1
        %s294 = smul.addr %s293, 4
        %s295 = smul.addr %s294, 8
        %s296 = scalar_lea.vmem %s7, %s295
        %p297 = scmp.lt.s32.totalorder %s23, 1
        %s298 = scalar_select %p297, %s23, 1
        %s299 = smul.addr %s298, 64
        %s300 = smul.addr %s299, 4
        %s301 = scalar_lea.vmem %s0, %s300
        %p302 = scmp.lt.s32.totalorder %s23, 1
        %s303 = scalar_select %p302, %s23, 1
        %s304 = smul.addr %s303, 4
        %s305 = smul.addr %s304, 8
        %s306 = scalar_lea.vmem %s6, %s305
        %p307 = scmp.lt.s32.totalorder %s23, 1
        %s308 = scalar_select %p307, %s23, 1
        %s309 = smul.addr %s308, 4
        %s310 = smul.addr %s309, 8
        %s311 = scalar_lea.vmem %s7, %s310
        %p313 = scmp.eq.s32.totalorder %s24, 0
        // Predicated region
        $region41: #{conv_vencoder_forward.6} parent=39 // pred_check
          %p314 = pneg %p313
        $region42: #{conv_vencoder_forward.6} parent=39 // pred_check_branch
          %316 = sbr.rel (%p314) target = $region44
        $region43: #{conv_vencoder_forward.6} parent=39 // pred_region
          %v317 = vld [vmem:[%s301] sm:$0xff]
          %v318 = vld [vmem:[%s301 + $0x8] sm:$0xff]
          %v319 = vld [vmem:[%s301 + $0x10] sm:$0xff]
          %v320 = vld [vmem:[%s301 + $0x18] sm:$0xff]
          %v321 = vld [vmem:[%s301 + $0x20] sm:$0xff]
          %v322 = vld [vmem:[%s301 + $0x28] sm:$0xff]
          %v323 = vld [vmem:[%s301 + $0x30] sm:$0xff]
          %v324 = vld [vmem:[%s301 + $0x38] sm:$0xff]
          %v325 = vld [vmem:[%s301 + $0x40] sm:$0xff]
          %v326 = vld [vmem:[%s301 + $0x48] sm:$0xff]
          %v327 = vld [vmem:[%s301 + $0x50] sm:$0xff]
          %v328 = vld [vmem:[%s301 + $0x58] sm:$0xff]
          %v329 = vld [vmem:[%s301 + $0x60] sm:$0xff]
          %v330 = vld [vmem:[%s301 + $0x68] sm:$0xff]
          %v331 = vld [vmem:[%s301 + $0x70] sm:$0xff]
          %v332 = vld [vmem:[%s301 + $0x78] sm:$0xff]
          %v333 = vld [vmem:[%s301 + $0x80] sm:$0xff]
          %v334 = vld [vmem:[%s301 + $0x88] sm:$0xff]
          %v335 = vld [vmem:[%s301 + $0x90] sm:$0xff]
          %v336 = vld [vmem:[%s301 + $0x98] sm:$0xff]
          %v337 = vld [vmem:[%s301 + $0xa0] sm:$0xff]
          %v338 = vld [vmem:[%s301 + $0xa8] sm:$0xff]
          %v339 = vld [vmem:[%s301 + $0xb0] sm:$0xff]
          %v340 = vld [vmem:[%s301 + $0xb8] sm:$0xff]
          %v341 = vld [vmem:[%s301 + $0xc0] sm:$0xff]
          %v342 = vld [vmem:[%s301 + $0xc8] sm:$0xff]
          %v343 = vld [vmem:[%s301 + $0xd0] sm:$0xff]
          %v344 = vld [vmem:[%s301 + $0xd8] sm:$0xff]
          %v345 = vld [vmem:[%s301 + $0xe0] sm:$0xff]
          %v346 = vld [vmem:[%s301 + $0xe8] sm:$0xff]
          %v347 = vld [vmem:[%s301 + $0xf0] sm:$0xff]
          %v348 = vld [vmem:[%s301 + $0xf8] sm:$0xff]
          %v349 = vunpack.c.l.bf16 %v317
          %v350 = vunpack.c.h.bf16 %v317
          %v351 = vunpack.c.l.bf16 %v318
          %v352 = vunpack.c.h.bf16 %v318
          %v353 = vunpack.c.l.bf16 %v319
          %v354 = vunpack.c.h.bf16 %v319
          %v355 = vunpack.c.l.bf16 %v320
          %v356 = vunpack.c.h.bf16 %v320
          %v357 = vunpack.c.l.bf16 %v321
          %v358 = vunpack.c.h.bf16 %v321
          %v359 = vunpack.c.l.bf16 %v322
          %v360 = vunpack.c.h.bf16 %v322
          %v361 = vunpack.c.l.bf16 %v323
          %v362 = vunpack.c.h.bf16 %v323
          %v363 = vunpack.c.l.bf16 %v324
          %v364 = vunpack.c.h.bf16 %v324
          %v365 = vunpack.c.l.bf16 %v325
          %v366 = vunpack.c.h.bf16 %v325
          %v367 = vunpack.c.l.bf16 %v326
          %v368 = vunpack.c.h.bf16 %v326
          %v369 = vunpack.c.l.bf16 %v327
          %v370 = vunpack.c.h.bf16 %v327
          %v371 = vunpack.c.l.bf16 %v328
          %v372 = vunpack.c.h.bf16 %v328
          %v373 = vunpack.c.l.bf16 %v329
          %v374 = vunpack.c.h.bf16 %v329
          %v375 = vunpack.c.l.bf16 %v330
          %v376 = vunpack.c.h.bf16 %v330
          %v377 = vunpack.c.l.bf16 %v331
          %v378 = vunpack.c.h.bf16 %v331
          %v379 = vunpack.c.l.bf16 %v332
          %v380 = vunpack.c.h.bf16 %v332
          %v381 = vunpack.c.l.bf16 %v333
          %v382 = vunpack.c.h.bf16 %v333
          %v383 = vunpack.c.l.bf16 %v334
          %v384 = vunpack.c.h.bf16 %v334
          %v385 = vunpack.c.l.bf16 %v335
          %v386 = vunpack.c.h.bf16 %v335
          %v387 = vunpack.c.l.bf16 %v336
          %v388 = vunpack.c.h.bf16 %v336
          %v389 = vunpack.c.l.bf16 %v337
          %v390 = vunpack.c.h.bf16 %v337
          %v391 = vunpack.c.l.bf16 %v338
          %v392 = vunpack.c.h.bf16 %v338
          %v393 = vunpack.c.l.bf16 %v339
          %v394 = vunpack.c.h.bf16 %v339
          %v395 = vunpack.c.l.bf16 %v340
          %v396 = vunpack.c.h.bf16 %v340
          %v397 = vunpack.c.l.bf16 %v341
          %v398 = vunpack.c.h.bf16 %v341
          %v399 = vunpack.c.l.bf16 %v342
          %v400 = vunpack.c.h.bf16 %v342
          %v401 = vunpack.c.l.bf16 %v343
          %v402 = vunpack.c.h.bf16 %v343
          %v403 = vunpack.c.l.bf16 %v344
          %v404 = vunpack.c.h.bf16 %v344
          %v405 = vunpack.c.l.bf16 %v345
          %v406 = vunpack.c.h.bf16 %v345
          %v407 = vunpack.c.l.bf16 %v346
          %v408 = vunpack.c.h.bf16 %v346
          %v409 = vunpack.c.l.bf16 %v347
          %v410 = vunpack.c.h.bf16 %v347
          %v411 = vunpack.c.l.bf16 %v348
          %v412 = vunpack.c.h.bf16 %v348
          %v413 = vld [vmem:[%s1] sm:$0x3]
          %v415 = vlaneseq
          %v416 = vshrl.u32 %v415, 7
          %v417 = vsub.s32 0, %v416
          %v418 = vrot.slane %v413, %v417
          %v419 = vlaneseq
          %v420 = vshrl.u32 %v419, 7
          %v421 = vsub.s32 1, %v420
          %v422 = vrot.slane %v413, %v421
          %v425 = vmul.f32 %v349, %v418
          %v426 = vmul.f32 %v350, %v422
          %v427 = vmul.f32 %v351, %v418
          %v428 = vmul.f32 %v352, %v422
          %v429 = vmul.f32 %v353, %v418
          %v430 = vmul.f32 %v354, %v422
          %v431 = vmul.f32 %v355, %v418
          %v432 = vmul.f32 %v356, %v422
          %v433 = vmul.f32 %v357, %v418
          %v434 = vmul.f32 %v358, %v422
          %v435 = vmul.f32 %v359, %v418
          %v436 = vmul.f32 %v360, %v422
          %v437 = vmul.f32 %v361, %v418
          %v438 = vmul.f32 %v362, %v422
          %v439 = vmul.f32 %v363, %v418
          %v440 = vmul.f32 %v364, %v422
          %v441 = vmul.f32 %v365, %v418
          %v442 = vmul.f32 %v366, %v422
          %v443 = vmul.f32 %v367, %v418
          %v444 = vmul.f32 %v368, %v422
          %v445 = vmul.f32 %v369, %v418
          %v446 = vmul.f32 %v370, %v422
          %v447 = vmul.f32 %v371, %v418
          %v448 = vmul.f32 %v372, %v422
          %v449 = vmul.f32 %v373, %v418
          %v450 = vmul.f32 %v374, %v422
          %v451 = vmul.f32 %v375, %v418
          %v452 = vmul.f32 %v376, %v422
          %v453 = vmul.f32 %v377, %v418
          %v454 = vmul.f32 %v378, %v422
          %v455 = vmul.f32 %v379, %v418
          %v456 = vmul.f32 %v380, %v422
          %v457 = vmul.f32 %v381, %v418
          %v458 = vmul.f32 %v382, %v422
          %v459 = vmul.f32 %v383, %v418
          %v460 = vmul.f32 %v384, %v422
          %v461 = vmul.f32 %v385, %v418
          %v462 = vmul.f32 %v386, %v422
          %v463 = vmul.f32 %v387, %v418
          %v464 = vmul.f32 %v388, %v422
          %v465 = vmul.f32 %v389, %v418
          %v466 = vmul.f32 %v390, %v422
          %v467 = vmul.f32 %v391, %v418
          %v468 = vmul.f32 %v392, %v422
          %v469 = vmul.f32 %v393, %v418
          %v470 = vmul.f32 %v394, %v422
          %v471 = vmul.f32 %v395, %v418
          %v472 = vmul.f32 %v396, %v422
          %v473 = vmul.f32 %v397, %v418
          %v474 = vmul.f32 %v398, %v422
          %v475 = vmul.f32 %v399, %v418
          %v476 = vmul.f32 %v400, %v422
          %v477 = vmul.f32 %v401, %v418
          %v478 = vmul.f32 %v402, %v422
          %v479 = vmul.f32 %v403, %v418
          %v480 = vmul.f32 %v404, %v422
          %v481 = vmul.f32 %v405, %v418
          %v482 = vmul.f32 %v406, %v422
          %v483 = vmul.f32 %v407, %v418
          %v484 = vmul.f32 %v408, %v422
          %v485 = vmul.f32 %v409, %v418
          %v486 = vmul.f32 %v410, %v422
          %v487 = vmul.f32 %v411, %v418
          %v488 = vmul.f32 %v412, %v422
          %v489 = vld [vmem:[%s2] sm:$0x3]
          %v491 = vlaneseq
          %v492 = vshrl.u32 %v491, 7
          %v493 = vsub.s32 0, %v492
          %v494 = vrot.slane %v489, %v493
          %v495 = vlaneseq
          %v496 = vshrl.u32 %v495, 7
          %v497 = vsub.s32 1, %v496
          %v498 = vrot.slane %v489, %v497
          %v501 = vadd.f32 %v425, %v494
          %v502 = vadd.f32 %v426, %v498
          %v503 = vadd.f32 %v427, %v494
          %v504 = vadd.f32 %v428, %v498
          %v505 = vadd.f32 %v429, %v494
          %v506 = vadd.f32 %v430, %v498
          %v507 = vadd.f32 %v431, %v494
          %v508 = vadd.f32 %v432, %v498
          %v509 = vadd.f32 %v433, %v494
          %v510 = vadd.f32 %v434, %v498
          %v511 = vadd.f32 %v435, %v494
          %v512 = vadd.f32 %v436, %v498
          %v513 = vadd.f32 %v437, %v494
          %v514 = vadd.f32 %v438, %v498
          %v515 = vadd.f32 %v439, %v494
          %v516 = vadd.f32 %v440, %v498
          %v517 = vadd.f32 %v441, %v494
          %v518 = vadd.f32 %v442, %v498
          %v519 = vadd.f32 %v443, %v494
          %v520 = vadd.f32 %v444, %v498
          %v521 = vadd.f32 %v445, %v494
          %v522 = vadd.f32 %v446, %v498
          %v523 = vadd.f32 %v447, %v494
          %v524 = vadd.f32 %v448, %v498
          %v525 = vadd.f32 %v449, %v494
          %v526 = vadd.f32 %v450, %v498
          %v527 = vadd.f32 %v451, %v494
          %v528 = vadd.f32 %v452, %v498
          %v529 = vadd.f32 %v453, %v494
          %v530 = vadd.f32 %v454, %v498
          %v531 = vadd.f32 %v455, %v494
          %v532 = vadd.f32 %v456, %v498
          %v533 = vadd.f32 %v457, %v494
          %v534 = vadd.f32 %v458, %v498
          %v535 = vadd.f32 %v459, %v494
          %v536 = vadd.f32 %v460, %v498
          %v537 = vadd.f32 %v461, %v494
          %v538 = vadd.f32 %v462, %v498
          %v539 = vadd.f32 %v463, %v494
          %v540 = vadd.f32 %v464, %v498
          %v541 = vadd.f32 %v465, %v494
          %v542 = vadd.f32 %v466, %v498
          %v543 = vadd.f32 %v467, %v494
          %v544 = vadd.f32 %v468, %v498
          %v545 = vadd.f32 %v469, %v494
          %v546 = vadd.f32 %v470, %v498
          %v547 = vadd.f32 %v471, %v494
          %v548 = vadd.f32 %v472, %v498
          %v549 = vadd.f32 %v473, %v494
          %v550 = vadd.f32 %v474, %v498
          %v551 = vadd.f32 %v475, %v494
          %v552 = vadd.f32 %v476, %v498
          %v553 = vadd.f32 %v477, %v494
          %v554 = vadd.f32 %v478, %v498
          %v555 = vadd.f32 %v479, %v494
          %v556 = vadd.f32 %v480, %v498
          %v557 = vadd.f32 %v481, %v494
          %v558 = vadd.f32 %v482, %v498
          %v559 = vadd.f32 %v483, %v494
          %v560 = vadd.f32 %v484, %v498
          %v561 = vadd.f32 %v485, %v494
          %v562 = vadd.f32 %v486, %v498
          %v563 = vadd.f32 %v487, %v494
          %v564 = vadd.f32 %v488, %v498
          %v565 = vmax.f32 %v501, 0.0
          %v566 = vmax.f32 %v502, 0.0
          %v567 = vmax.f32 %v503, 0.0
          %v568 = vmax.f32 %v504, 0.0
          %v569 = vmax.f32 %v505, 0.0
          %v570 = vmax.f32 %v506, 0.0
          %v571 = vmax.f32 %v507, 0.0
          %v572 = vmax.f32 %v508, 0.0
          %v573 = vmax.f32 %v509, 0.0
          %v574 = vmax.f32 %v510, 0.0
          %v575 = vmax.f32 %v511, 0.0
          %v576 = vmax.f32 %v512, 0.0
          %v577 = vmax.f32 %v513, 0.0
          %v578 = vmax.f32 %v514, 0.0
          %v579 = vmax.f32 %v515, 0.0
          %v580 = vmax.f32 %v516, 0.0
          %v581 = vmax.f32 %v517, 0.0
          %v582 = vmax.f32 %v518, 0.0
          %v583 = vmax.f32 %v519, 0.0
          %v584 = vmax.f32 %v520, 0.0
          %v585 = vmax.f32 %v521, 0.0
          %v586 = vmax.f32 %v522, 0.0
          %v587 = vmax.f32 %v523, 0.0
          %v588 = vmax.f32 %v524, 0.0
          %v589 = vmax.f32 %v525, 0.0
          %v590 = vmax.f32 %v526, 0.0
          %v591 = vmax.f32 %v527, 0.0
          %v592 = vmax.f32 %v528, 0.0
          %v593 = vmax.f32 %v529, 0.0
          %v594 = vmax.f32 %v530, 0.0
          %v595 = vmax.f32 %v531, 0.0
          %v596 = vmax.f32 %v532, 0.0
          %v597 = vmax.f32 %v533, 0.0
          %v598 = vmax.f32 %v534, 0.0
          %v599 = vmax.f32 %v535, 0.0
          %v600 = vmax.f32 %v536, 0.0
          %v601 = vmax.f32 %v537, 0.0
          %v602 = vmax.f32 %v538, 0.0
          %v603 = vmax.f32 %v539, 0.0
          %v604 = vmax.f32 %v540, 0.0
          %v605 = vmax.f32 %v541, 0.0
          %v606 = vmax.f32 %v542, 0.0
          %v607 = vmax.f32 %v543, 0.0
          %v608 = vmax.f32 %v544, 0.0
          %v609 = vmax.f32 %v545, 0.0
          %v610 = vmax.f32 %v546, 0.0
          %v611 = vmax.f32 %v547, 0.0
          %v612 = vmax.f32 %v548, 0.0
          %v613 = vmax.f32 %v549, 0.0
          %v614 = vmax.f32 %v550, 0.0
          %v615 = vmax.f32 %v551, 0.0
          %v616 = vmax.f32 %v552, 0.0
          %v617 = vmax.f32 %v553, 0.0
          %v618 = vmax.f32 %v554, 0.0
          %v619 = vmax.f32 %v555, 0.0
          %v620 = vmax.f32 %v556, 0.0
          %v621 = vmax.f32 %v557, 0.0
          %v622 = vmax.f32 %v558, 0.0
          %v623 = vmax.f32 %v559, 0.0
          %v624 = vmax.f32 %v560, 0.0
          %v625 = vmax.f32 %v561, 0.0
          %v626 = vmax.f32 %v562, 0.0
          %v627 = vmax.f32 %v563, 0.0
          %v628 = vmax.f32 %v564, 0.0
          %v629 = vpack.c.bf16 %v567, %v565
          %v630 = vpack.c.bf16 %v568, %v566
          %v631 = vpack.c.bf16 %v571, %v569
          %v632 = vpack.c.bf16 %v572, %v570
          %v633 = vpack.c.bf16 %v575, %v573
          %v634 = vpack.c.bf16 %v576, %v574
          %v635 = vpack.c.bf16 %v579, %v577
          %v636 = vpack.c.bf16 %v580, %v578
          %v637 = vpack.c.bf16 %v583, %v581
          %v638 = vpack.c.bf16 %v584, %v582
          %v639 = vpack.c.bf16 %v587, %v585
          %v640 = vpack.c.bf16 %v588, %v586
          %v641 = vpack.c.bf16 %v591, %v589
          %v642 = vpack.c.bf16 %v592, %v590
          %v643 = vpack.c.bf16 %v595, %v593
          %v644 = vpack.c.bf16 %v596, %v594
          %v645 = vpack.c.bf16 %v599, %v597
          %v646 = vpack.c.bf16 %v600, %v598
          %v647 = vpack.c.bf16 %v603, %v601
          %v648 = vpack.c.bf16 %v604, %v602
          %v649 = vpack.c.bf16 %v607, %v605
          %v650 = vpack.c.bf16 %v608, %v606
          %v651 = vpack.c.bf16 %v611, %v609
          %v652 = vpack.c.bf16 %v612, %v610
          %v653 = vpack.c.bf16 %v615, %v613
          %v654 = vpack.c.bf16 %v616, %v614
          %v655 = vpack.c.bf16 %v619, %v617
          %v656 = vpack.c.bf16 %v620, %v618
          %v657 = vpack.c.bf16 %v623, %v621
          %v658 = vpack.c.bf16 %v624, %v622
          %v659 = vpack.c.bf16 %v627, %v625
          %v660 = vpack.c.bf16 %v628, %v626
          %v693 = vunpack.c.l.b16 %v629
          %v694 = vunpack.c.l.b16 %v630
          %v695 = vunpack.c.h.b16 %v629
          %v696 = vunpack.c.h.b16 %v630
          %v697 = vunpack.c.l.b16 %v631
          %v698 = vunpack.c.l.b16 %v632
          %v699 = vunpack.c.h.b16 %v631
          %v700 = vunpack.c.h.b16 %v632
          %v701 = vunpack.c.l.b16 %v633
          %v702 = vunpack.c.l.b16 %v634
          %v703 = vunpack.c.h.b16 %v633
          %v704 = vunpack.c.h.b16 %v634
          %v705 = vunpack.c.l.b16 %v635
          %v706 = vunpack.c.l.b16 %v636
          %v707 = vunpack.c.h.b16 %v635
          %v708 = vunpack.c.h.b16 %v636
          %v709 = vunpack.c.l.b16 %v637
          %v710 = vunpack.c.l.b16 %v638
          %v711 = vunpack.c.h.b16 %v637
          %v712 = vunpack.c.h.b16 %v638
          %v713 = vunpack.c.l.b16 %v639
          %v714 = vunpack.c.l.b16 %v640
          %v715 = vunpack.c.h.b16 %v639
          %v716 = vunpack.c.h.b16 %v640
          %v717 = vunpack.c.l.b16 %v641
          %v718 = vunpack.c.l.b16 %v642
          %v719 = vunpack.c.h.b16 %v641
          %v720 = vunpack.c.h.b16 %v642
          %v721 = vunpack.c.l.b16 %v643
          %v722 = vunpack.c.l.b16 %v644
          %v723 = vunpack.c.h.b16 %v643
          %v724 = vunpack.c.h.b16 %v644
          %v725 = vunpack.c.l.b16 %v645
          %v726 = vunpack.c.l.b16 %v646
          %v727 = vunpack.c.h.b16 %v645
          %v728 = vunpack.c.h.b16 %v646
          %v729 = vunpack.c.l.b16 %v647
          %v730 = vunpack.c.l.b16 %v648
          %v731 = vunpack.c.h.b16 %v647
          %v732 = vunpack.c.h.b16 %v648
          %v733 = vunpack.c.l.b16 %v649
          %v734 = vunpack.c.l.b16 %v650
          %v735 = vunpack.c.h.b16 %v649
          %v736 = vunpack.c.h.b16 %v650
          %v737 = vunpack.c.l.b16 %v651
          %v738 = vunpack.c.l.b16 %v652
          %v739 = vunpack.c.h.b16 %v651
          %v740 = vunpack.c.h.b16 %v652
          %v741 = vunpack.c.l.b16 %v653
          %v742 = vunpack.c.l.b16 %v654
          %v743 = vunpack.c.h.b16 %v653
          %v744 = vunpack.c.h.b16 %v654
          %v745 = vunpack.c.l.b16 %v655
          %v746 = vunpack.c.l.b16 %v656
          %v747 = vunpack.c.h.b16 %v655
          %v748 = vunpack.c.h.b16 %v656
          %v749 = vunpack.c.l.b16 %v657
          %v750 = vunpack.c.l.b16 %v658
          %v751 = vunpack.c.h.b16 %v657
          %v752 = vunpack.c.h.b16 %v658
          %v753 = vunpack.c.l.b16 %v659
          %v754 = vunpack.c.l.b16 %v660
          %v755 = vunpack.c.h.b16 %v659
          %v756 = vunpack.c.h.b16 %v660
          %v757 = vpack.c.b16 %v694, %v693
          %v758 = vpack.c.b16 %v696, %v695
          %v759 = vpack.c.b16 %v698, %v697
          %v760 = vpack.c.b16 %v700, %v699
          %v761 = vpack.c.b16 %v702, %v701
          %v762 = vpack.c.b16 %v704, %v703
          %v763 = vpack.c.b16 %v706, %v705
          %v764 = vpack.c.b16 %v708, %v707
          %v765 = vpack.c.b16 %v710, %v709
          %v766 = vpack.c.b16 %v712, %v711
          %v767 = vpack.c.b16 %v714, %v713
          %v768 = vpack.c.b16 %v716, %v715
          %v769 = vpack.c.b16 %v718, %v717
          %v770 = vpack.c.b16 %v720, %v719
          %v771 = vpack.c.b16 %v722, %v721
          %v772 = vpack.c.b16 %v724, %v723
          %v773 = vpack.c.b16 %v726, %v725
          %v774 = vpack.c.b16 %v728, %v727
          %v775 = vpack.c.b16 %v730, %v729
          %v776 = vpack.c.b16 %v732, %v731
          %v777 = vpack.c.b16 %v734, %v733
          %v778 = vpack.c.b16 %v736, %v735
          %v779 = vpack.c.b16 %v738, %v737
          %v780 = vpack.c.b16 %v740, %v739
          %v781 = vpack.c.b16 %v742, %v741
          %v782 = vpack.c.b16 %v744, %v743
          %v783 = vpack.c.b16 %v746, %v745
          %v784 = vpack.c.b16 %v748, %v747
          %v785 = vpack.c.b16 %v750, %v749
          %v786 = vpack.c.b16 %v752, %v751
          %v787 = vpack.c.b16 %v754, %v753
          %v788 = vpack.c.b16 %v756, %v755
          %vm789 = vsmask.f32 256
          %vm790 = vsmask.f32 4368
          %vm791 = vmor %vm789, %vm790
          %v793 = vshrl.u32 %v757, 16
          %v795 = vrot.slane %v793, 7
          %v796 = vshll.u32 %v757, 16
          %v798 = vor.u32 %v795, %v796
          %v799 = vrot.slane %v795, 4
          %v801 = vshrl.u32 %v758, 16
          %v803 = vrot.slane %v801, 7
          %v804 = vshll.u32 %v758, 16
          %v806 = vor.u32 %v803, %v804
          %v807 = vsel %vm791, %v799, %v806
          %v808 = vrot.slane %v803, 4
          %v810 = vshrl.u32 %v759, 16
          %v812 = vrot.slane %v810, 7
          %v813 = vshll.u32 %v759, 16
          %v815 = vor.u32 %v812, %v813
          %v816 = vrot.slane %v812, 4
          %v818 = vshrl.u32 %v760, 16
          %v820 = vrot.slane %v818, 7
          %v821 = vshll.u32 %v760, 16
          %v823 = vor.u32 %v820, %v821
          %v824 = vsel %vm791, %v816, %v823
          %v825 = vrot.slane %v820, 4
          %v827 = vshrl.u32 %v761, 16
          %v829 = vrot.slane %v827, 7
          %v830 = vshll.u32 %v761, 16
          %v832 = vor.u32 %v829, %v830
          %v833 = vrot.slane %v829, 4
          %v835 = vshrl.u32 %v762, 16
          %v837 = vrot.slane %v835, 7
          %v838 = vshll.u32 %v762, 16
          %v840 = vor.u32 %v837, %v838
          %v841 = vsel %vm791, %v833, %v840
          %v842 = vrot.slane %v837, 4
          %v844 = vshrl.u32 %v763, 16
          %v846 = vrot.slane %v844, 7
          %v847 = vshll.u32 %v763, 16
          %v849 = vor.u32 %v846, %v847
          %v850 = vrot.slane %v846, 4
          %v852 = vshrl.u32 %v764, 16
          %v854 = vrot.slane %v852, 7
          %v855 = vshll.u32 %v764, 16
          %v857 = vor.u32 %v854, %v855
          %v858 = vsel %vm791, %v850, %v857
          %v859 = vrot.slane %v854, 4
          %v861 = vshrl.u32 %v765, 16
          %v863 = vrot.slane %v861, 7
          %v864 = vshll.u32 %v765, 16
          %v866 = vor.u32 %v863, %v864
          %v867 = vrot.slane %v863, 4
          %v869 = vshrl.u32 %v766, 16
          %v871 = vrot.slane %v869, 7
          %v872 = vshll.u32 %v766, 16
          %v874 = vor.u32 %v871, %v872
          %v875 = vsel %vm791, %v867, %v874
          %v876 = vrot.slane %v871, 4
          %v878 = vshrl.u32 %v767, 16
          %v880 = vrot.slane %v878, 7
          %v881 = vshll.u32 %v767, 16
          %v883 = vor.u32 %v880, %v881
          %v884 = vrot.slane %v880, 4
          %v886 = vshrl.u32 %v768, 16
          %v888 = vrot.slane %v886, 7
          %v889 = vshll.u32 %v768, 16
          %v891 = vor.u32 %v888, %v889
          %v892 = vsel %vm791, %v884, %v891
          %v893 = vrot.slane %v888, 4
          %v895 = vshrl.u32 %v769, 16
          %v897 = vrot.slane %v895, 7
          %v898 = vshll.u32 %v769, 16
          %v900 = vor.u32 %v897, %v898
          %v901 = vrot.slane %v897, 4
          %v903 = vshrl.u32 %v770, 16
          %v905 = vrot.slane %v903, 7
          %v906 = vshll.u32 %v770, 16
          %v908 = vor.u32 %v905, %v906
          %v909 = vsel %vm791, %v901, %v908
          %v910 = vrot.slane %v905, 4
          %v912 = vshrl.u32 %v771, 16
          %v914 = vrot.slane %v912, 7
          %v915 = vshll.u32 %v771, 16
          %v917 = vor.u32 %v914, %v915
          %v918 = vrot.slane %v914, 4
          %v920 = vshrl.u32 %v772, 16
          %v922 = vrot.slane %v920, 7
          %v923 = vshll.u32 %v772, 16
          %v925 = vor.u32 %v922, %v923
          %v926 = vsel %vm791, %v918, %v925
          %v927 = vrot.slane %v922, 4
          %v929 = vshrl.u32 %v773, 16
          %v931 = vrot.slane %v929, 7
          %v932 = vshll.u32 %v773, 16
          %v934 = vor.u32 %v931, %v932
          %v935 = vrot.slane %v931, 4
          %v937 = vshrl.u32 %v774, 16
          %v939 = vrot.slane %v937, 7
          %v940 = vshll.u32 %v774, 16
          %v942 = vor.u32 %v939, %v940
          %v943 = vsel %vm791, %v935, %v942
          %v944 = vrot.slane %v939, 4
          %v946 = vshrl.u32 %v775, 16
          %v948 = vrot.slane %v946, 7
          %v949 = vshll.u32 %v775, 16
          %v951 = vor.u32 %v948, %v949
          %v952 = vrot.slane %v948, 4
          %v954 = vshrl.u32 %v776, 16
          %v956 = vrot.slane %v954, 7
          %v957 = vshll.u32 %v776, 16
          %v959 = vor.u32 %v956, %v957
          %v960 = vsel %vm791, %v952, %v959
          %v961 = vrot.slane %v956, 4
          %v963 = vshrl.u32 %v777, 16
          %v965 = vrot.slane %v963, 7
          %v966 = vshll.u32 %v777, 16
          %v968 = vor.u32 %v965, %v966
          %v969 = vrot.slane %v965, 4
          %v971 = vshrl.u32 %v778, 16
          %v973 = vrot.slane %v971, 7
          %v974 = vshll.u32 %v778, 16
          %v976 = vor.u32 %v973, %v974
          %v977 = vsel %vm791, %v969, %v976
          %v978 = vrot.slane %v973, 4
          %v980 = vshrl.u32 %v779, 16
          %v982 = vrot.slane %v980, 7
          %v983 = vshll.u32 %v779, 16
          %v985 = vor.u32 %v982, %v983
          %v986 = vrot.slane %v982, 4
          %v988 = vshrl.u32 %v780, 16
          %v990 = vrot.slane %v988, 7
          %v991 = vshll.u32 %v780, 16
          %v993 = vor.u32 %v990, %v991
          %v994 = vsel %vm791, %v986, %v993
          %v995 = vrot.slane %v990, 4
          %v997 = vshrl.u32 %v781, 16
          %v999 = vrot.slane %v997, 7
          %v1000 = vshll.u32 %v781, 16
          %v1002 = vor.u32 %v999, %v1000
          %v1003 = vrot.slane %v999, 4
          %v1005 = vshrl.u32 %v782, 16
          %v1007 = vrot.slane %v1005, 7
          %v1008 = vshll.u32 %v782, 16
          %v1010 = vor.u32 %v1007, %v1008
          %v1011 = vsel %vm791, %v1003, %v1010
          %v1012 = vrot.slane %v1007, 4
          %v1014 = vshrl.u32 %v783, 16
          %v1016 = vrot.slane %v1014, 7
          %v1017 = vshll.u32 %v783, 16
          %v1019 = vor.u32 %v1016, %v1017
          %v1020 = vrot.slane %v1016, 4
          %v1022 = vshrl.u32 %v784, 16
          %v1024 = vrot.slane %v1022, 7
          %v1025 = vshll.u32 %v784, 16
          %v1027 = vor.u32 %v1024, %v1025
          %v1028 = vsel %vm791, %v1020, %v1027
          %v1029 = vrot.slane %v1024, 4
          %v1031 = vshrl.u32 %v785, 16
          %v1033 = vrot.slane %v1031, 7
          %v1034 = vshll.u32 %v785, 16
          %v1036 = vor.u32 %v1033, %v1034
          %v1037 = vrot.slane %v1033, 4
          %v1039 = vshrl.u32 %v786, 16
          %v1041 = vrot.slane %v1039, 7
          %v1042 = vshll.u32 %v786, 16
          %v1044 = vor.u32 %v1041, %v1042
          %v1045 = vsel %vm791, %v1037, %v1044
          %v1046 = vrot.slane %v1041, 4
          %v1048 = vshrl.u32 %v787, 16
          %v1050 = vrot.slane %v1048, 7
          %v1051 = vshll.u32 %v787, 16
          %v1053 = vor.u32 %v1050, %v1051
          %v1054 = vrot.slane %v1050, 4
          %v1056 = vshrl.u32 %v788, 16
          %v1058 = vrot.slane %v1056, 7
          %v1059 = vshll.u32 %v788, 16
          %v1061 = vor.u32 %v1058, %v1059
          %v1062 = vsel %vm791, %v1054, %v1061
          %v1063 = vrot.slane %v1058, 4
          %s1112 = scalar_lea.vmem [#allocation2], 24
          %vm1113 = vcmask 1043456
          %vm1114 = vsmask.f32 7938
          %vm1115 = vmand %vm1113, %vm1114
          %vm1116 = vcmask 1047556
          %vm1117 = vsmask.f32 7954
          %vm1118 = vmand %vm1116, %vm1117
          %vm1119 = vmor %vm1118, %vm1115
          %v1120 = vld [vmem:[%s1112] sm:$0xff]
          %v1121 = vsel %vm1119, %v798, %v1120
          %1122 = vst [vmem:[%s1112] sm:$0xff] %v1121
          %1123 = vst [vmem:[%s1112 + $0x8] sm:$0xff] %v807
          %vm1124 = vcmask 1040384
          %vm1125 = vmand %vm1124, %vm789
          %vm1126 = vcmask 1044484
          %vm1127 = vsmask.f32 4352
          %vm1128 = vmand %vm1126, %vm1127
          %vm1129 = vmor %vm1128, %vm1125
          %v1130 = vld [vmem:[%s1112 + $0x10] sm:$0x11]
          %v1131 = vsel %vm1129, %v808, %v1130
          %1132 = vst [vmem:[%s1112 + $0x10] sm:$0x11] %v1131
          %v1133 = vld [vmem:[%s1112 + $0x18] sm:$0xff]
          %v1134 = vsel %vm1119, %v815, %v1133
          %1135 = vst [vmem:[%s1112 + $0x18] sm:$0xff] %v1134
          %1136 = vst [vmem:[%s1112 + $0x20] sm:$0xff] %v824
          %v1137 = vld [vmem:[%s1112 + $0x28] sm:$0x11]
          %v1138 = vsel %vm1129, %v825, %v1137
          %1139 = vst [vmem:[%s1112 + $0x28] sm:$0x11] %v1138
          %v1140 = vld [vmem:[%s1112 + $0x30] sm:$0xff]
          %v1141 = vsel %vm1119, %v832, %v1140
          %1142 = vst [vmem:[%s1112 + $0x30] sm:$0xff] %v1141
          %1143 = vst [vmem:[%s1112 + $0x38] sm:$0xff] %v841
          %v1144 = vld [vmem:[%s1112 + $0x40] sm:$0x11]
          %v1145 = vsel %vm1129, %v842, %v1144
          %1146 = vst [vmem:[%s1112 + $0x40] sm:$0x11] %v1145
          %v1147 = vld [vmem:[%s1112 + $0x48] sm:$0xff]
          %v1148 = vsel %vm1119, %v849, %v1147
          %1149 = vst [vmem:[%s1112 + $0x48] sm:$0xff] %v1148
          %1150 = vst [vmem:[%s1112 + $0x50] sm:$0xff] %v858
          %v1151 = vld [vmem:[%s1112 + $0x58] sm:$0x11]
          %v1152 = vsel %vm1129, %v859, %v1151
          %1153 = vst [vmem:[%s1112 + $0x58] sm:$0x11] %v1152
          %v1154 = vld [vmem:[%s1112 + $0x60] sm:$0xff]
          %v1155 = vsel %vm1119, %v866, %v1154
          %1156 = vst [vmem:[%s1112 + $0x60] sm:$0xff] %v1155
          %1157 = vst [vmem:[%s1112 + $0x68] sm:$0xff] %v875
          %v1158 = vld [vmem:[%s1112 + $0x70] sm:$0x11]
          %v1159 = vsel %vm1129, %v876, %v1158
          %1160 = vst [vmem:[%s1112 + $0x70] sm:$0x11] %v1159
          %v1161 = vld [vmem:[%s1112 + $0x78] sm:$0xff]
          %v1162 = vsel %vm1119, %v883, %v1161
          %1163 = vst [vmem:[%s1112 + $0x78] sm:$0xff] %v1162
          %1164 = vst [vmem:[%s1112 + $0x80] sm:$0xff] %v892
          %v1165 = vld [vmem:[%s1112 + $0x88] sm:$0x11]
          %v1166 = vsel %vm1129, %v893, %v1165
          %1167 = vst [vmem:[%s1112 + $0x88] sm:$0x11] %v1166
          %v1168 = vld [vmem:[%s1112 + $0x90] sm:$0xff]
          %v1169 = vsel %vm1119, %v900, %v1168
          %1170 = vst [vmem:[%s1112 + $0x90] sm:$0xff] %v1169
          %1171 = vst [vmem:[%s1112 + $0x98] sm:$0xff] %v909
          %v1172 = vld [vmem:[%s1112 + $0xa0] sm:$0x11]
          %v1173 = vsel %vm1129, %v910, %v1172
          %1174 = vst [vmem:[%s1112 + $0xa0] sm:$0x11] %v1173
          %v1175 = vld [vmem:[%s1112 + $0xa8] sm:$0xff]
          %v1176 = vsel %vm1119, %v917, %v1175
          %1177 = vst [vmem:[%s1112 + $0xa8] sm:$0xff] %v1176
          %1178 = vst [vmem:[%s1112 + $0xb0] sm:$0xff] %v926
          %v1179 = vld [vmem:[%s1112 + $0xb8] sm:$0x11]
          %v1180 = vsel %vm1129, %v927, %v1179
          %1181 = vst [vmem:[%s1112 + $0xb8] sm:$0x11] %v1180
          %v1182 = vld [vmem:[%s1112 + $0xc0] sm:$0xff]
          %v1183 = vsel %vm1119, %v934, %v1182
          %1184 = vst [vmem:[%s1112 + $0xc0] sm:$0xff] %v1183
          %1185 = vst [vmem:[%s1112 + $0xc8] sm:$0xff] %v943
          %v1186 = vld [vmem:[%s1112 + $0xd0] sm:$0x11]
          %v1187 = vsel %vm1129, %v944, %v1186
          %1188 = vst [vmem:[%s1112 + $0xd0] sm:$0x11] %v1187
          %v1189 = vld [vmem:[%s1112 + $0xd8] sm:$0xff]
          %v1190 = vsel %vm1119, %v951, %v1189
          %1191 = vst [vmem:[%s1112 + $0xd8] sm:$0xff] %v1190
          %1192 = vst [vmem:[%s1112 + $0xe0] sm:$0xff] %v960
          %v1193 = vld [vmem:[%s1112 + $0xe8] sm:$0x11]
          %v1194 = vsel %vm1129, %v961, %v1193
          %1195 = vst [vmem:[%s1112 + $0xe8] sm:$0x11] %v1194
          %v1196 = vld [vmem:[%s1112 + $0xf0] sm:$0xff]
          %v1197 = vsel %vm1119, %v968, %v1196
          %1198 = vst [vmem:[%s1112 + $0xf0] sm:$0xff] %v1197
          %1199 = vst [vmem:[%s1112 + $0xf8] sm:$0xff] %v977
          %v1200 = vld [vmem:[%s1112 + $0x100] sm:$0x11]
          %v1201 = vsel %vm1129, %v978, %v1200
          %1202 = vst [vmem:[%s1112 + $0x100] sm:$0x11] %v1201
          %v1203 = vld [vmem:[%s1112 + $0x108] sm:$0xff]
          %v1204 = vsel %vm1119, %v985, %v1203
          %1205 = vst [vmem:[%s1112 + $0x108] sm:$0xff] %v1204
          %1206 = vst [vmem:[%s1112 + $0x110] sm:$0xff] %v994
          %v1207 = vld [vmem:[%s1112 + $0x118] sm:$0x11]
          %v1208 = vsel %vm1129, %v995, %v1207
          %1209 = vst [vmem:[%s1112 + $0x118] sm:$0x11] %v1208
          %v1210 = vld [vmem:[%s1112 + $0x120] sm:$0xff]
          %v1211 = vsel %vm1119, %v1002, %v1210
          %1212 = vst [vmem:[%s1112 + $0x120] sm:$0xff] %v1211
          %1213 = vst [vmem:[%s1112 + $0x128] sm:$0xff] %v1011
          %v1214 = vld [vmem:[%s1112 + $0x130] sm:$0x11]
          %v1215 = vsel %vm1129, %v1012, %v1214
          %1216 = vst [vmem:[%s1112 + $0x130] sm:$0x11] %v1215
          %v1217 = vld [vmem:[%s1112 + $0x138] sm:$0xff]
          %v1218 = vsel %vm1119, %v1019, %v1217
          %1219 = vst [vmem:[%s1112 + $0x138] sm:$0xff] %v1218
          %1220 = vst [vmem:[%s1112 + $0x140] sm:$0xff] %v1028
          %v1221 = vld [vmem:[%s1112 + $0x148] sm:$0x11]
          %v1222 = vsel %vm1129, %v1029, %v1221
          %1223 = vst [vmem:[%s1112 + $0x148] sm:$0x11] %v1222
          %v1224 = vld [vmem:[%s1112 + $0x150] sm:$0xff]
          %v1225 = vsel %vm1119, %v1036, %v1224
          %1226 = vst [vmem:[%s1112 + $0x150] sm:$0xff] %v1225
          %1227 = vst [vmem:[%s1112 + $0x158] sm:$0xff] %v1045
          %v1228 = vld [vmem:[%s1112 + $0x160] sm:$0x11]
          %v1229 = vsel %vm1129, %v1046, %v1228
          %1230 = vst [vmem:[%s1112 + $0x160] sm:$0x11] %v1229
          %v1231 = vld [vmem:[%s1112 + $0x168] sm:$0xff]
          %v1232 = vsel %vm1119, %v1053, %v1231
          %1233 = vst [vmem:[%s1112 + $0x168] sm:$0xff] %v1232
          %1234 = vst [vmem:[%s1112 + $0x170] sm:$0xff] %v1062
          %v1235 = vld [vmem:[%s1112 + $0x178] sm:$0x11]
          %v1236 = vsel %vm1129, %v1063, %v1235
          %1237 = vst [vmem:[%s1112 + $0x178] sm:$0x11] %v1236
          %1238 = vst [vmem:[#allocation2] sm:$0xff] 0
          %1239 = vst [vmem:[#allocation2 + $0x8] sm:$0xff] 0
          %1240 = vst [vmem:[#allocation2 + $0x10] sm:$0xff] 0
          %s1241 = scalar_lea.vmem [#allocation2], 408
          %1242 = vst [vmem:[%s1241] sm:$0xff] 0
          %1243 = vst [vmem:[%s1241 + $0x8] sm:$0xff] 0
          %1244 = vst [vmem:[%s1241 + $0x10] sm:$0xff] 0
          %v1245 = vld [vmem:[%s1112] sm:$0x11]
          %v1246 = vsel %vm1129, 0, %v1245
          %1247 = vst [vmem:[%s1112] sm:$0x11] %v1246
          %v1248 = vld [vmem:[%s1112 + $0x18] sm:$0x11]
          %v1249 = vsel %vm1129, 0, %v1248
          %1250 = vst [vmem:[%s1112 + $0x18] sm:$0x11] %v1249
          %v1251 = vld [vmem:[%s1112 + $0x30] sm:$0x11]
          %v1252 = vsel %vm1129, 0, %v1251
          %1253 = vst [vmem:[%s1112 + $0x30] sm:$0x11] %v1252
          %v1254 = vld [vmem:[%s1112 + $0x48] sm:$0x11]
          %v1255 = vsel %vm1129, 0, %v1254
          %1256 = vst [vmem:[%s1112 + $0x48] sm:$0x11] %v1255
          %v1257 = vld [vmem:[%s1112 + $0x60] sm:$0x11]
          %v1258 = vsel %vm1129, 0, %v1257
          %1259 = vst [vmem:[%s1112 + $0x60] sm:$0x11] %v1258
          %v1260 = vld [vmem:[%s1112 + $0x78] sm:$0x11]
          %v1261 = vsel %vm1129, 0, %v1260
          %1262 = vst [vmem:[%s1112 + $0x78] sm:$0x11] %v1261
          %v1263 = vld [vmem:[%s1112 + $0x90] sm:$0x11]
          %v1264 = vsel %vm1129, 0, %v1263
          %1265 = vst [vmem:[%s1112 + $0x90] sm:$0x11] %v1264
          %v1266 = vld [vmem:[%s1112 + $0xa8] sm:$0x11]
          %v1267 = vsel %vm1129, 0, %v1266
          %1268 = vst [vmem:[%s1112 + $0xa8] sm:$0x11] %v1267
          %v1269 = vld [vmem:[%s1112 + $0xc0] sm:$0x11]
          %v1270 = vsel %vm1129, 0, %v1269
          %1271 = vst [vmem:[%s1112 + $0xc0] sm:$0x11] %v1270
          %v1272 = vld [vmem:[%s1112 + $0xd8] sm:$0x11]
          %v1273 = vsel %vm1129, 0, %v1272
          %1274 = vst [vmem:[%s1112 + $0xd8] sm:$0x11] %v1273
          %v1275 = vld [vmem:[%s1112 + $0xf0] sm:$0x11]
          %v1276 = vsel %vm1129, 0, %v1275
          %1277 = vst [vmem:[%s1112 + $0xf0] sm:$0x11] %v1276
          %v1278 = vld [vmem:[%s1112 + $0x108] sm:$0x11]
          %v1279 = vsel %vm1129, 0, %v1278
          %1280 = vst [vmem:[%s1112 + $0x108] sm:$0x11] %v1279
          %v1281 = vld [vmem:[%s1112 + $0x120] sm:$0x11]
          %v1282 = vsel %vm1129, 0, %v1281
          %1283 = vst [vmem:[%s1112 + $0x120] sm:$0x11] %v1282
          %v1284 = vld [vmem:[%s1112 + $0x138] sm:$0x11]
          %v1285 = vsel %vm1129, 0, %v1284
          %1286 = vst [vmem:[%s1112 + $0x138] sm:$0x11] %v1285
          %v1287 = vld [vmem:[%s1112 + $0x150] sm:$0x11]
          %v1288 = vsel %vm1129, 0, %v1287
          %1289 = vst [vmem:[%s1112 + $0x150] sm:$0x11] %v1288
          %v1290 = vld [vmem:[%s1112 + $0x168] sm:$0x11]
          %v1291 = vsel %vm1129, 0, %v1290
          %1292 = vst [vmem:[%s1112 + $0x168] sm:$0x11] %v1291
          %vm1293 = vmand %vm1124, %vm1114
          %vm1294 = vmand %vm1126, %vm1117
          %vm1295 = vmor %vm1294, %vm1293
          %v1296 = vld [vmem:[%s1112 + $0x10] sm:$0x11]
          %v1297 = vsel %vm1295, 0, %v1296
          %1298 = vst [vmem:[%s1112 + $0x10] sm:$0x11] %v1297
          %v1299 = vld [vmem:[%s1112 + $0x28] sm:$0x11]
          %v1300 = vsel %vm1295, 0, %v1299
          %1301 = vst [vmem:[%s1112 + $0x28] sm:$0x11] %v1300
          %v1302 = vld [vmem:[%s1112 + $0x40] sm:$0x11]
          %v1303 = vsel %vm1295, 0, %v1302
          %1304 = vst [vmem:[%s1112 + $0x40] sm:$0x11] %v1303
          %v1305 = vld [vmem:[%s1112 + $0x58] sm:$0x11]
          %v1306 = vsel %vm1295, 0, %v1305
          %1307 = vst [vmem:[%s1112 + $0x58] sm:$0x11] %v1306
          %v1308 = vld [vmem:[%s1112 + $0x70] sm:$0x11]
          %v1309 = vsel %vm1295, 0, %v1308
          %1310 = vst [vmem:[%s1112 + $0x70] sm:$0x11] %v1309
          %v1311 = vld [vmem:[%s1112 + $0x88] sm:$0x11]
          %v1312 = vsel %vm1295, 0, %v1311
          %1313 = vst [vmem:[%s1112 + $0x88] sm:$0x11] %v1312
          %v1314 = vld [vmem:[%s1112 + $0xa0] sm:$0x11]
          %v1315 = vsel %vm1295, 0, %v1314
          %1316 = vst [vmem:[%s1112 + $0xa0] sm:$0x11] %v1315
          %v1317 = vld [vmem:[%s1112 + $0xb8] sm:$0x11]
          %v1318 = vsel %vm1295, 0, %v1317
          %1319 = vst [vmem:[%s1112 + $0xb8] sm:$0x11] %v1318
          %v1320 = vld [vmem:[%s1112 + $0xd0] sm:$0x11]
          %v1321 = vsel %vm1295, 0, %v1320
          %1322 = vst [vmem:[%s1112 + $0xd0] sm:$0x11] %v1321
          %v1323 = vld [vmem:[%s1112 + $0xe8] sm:$0x11]
          %v1324 = vsel %vm1295, 0, %v1323
          %1325 = vst [vmem:[%s1112 + $0xe8] sm:$0x11] %v1324
          %v1326 = vld [vmem:[%s1112 + $0x100] sm:$0x11]
          %v1327 = vsel %vm1295, 0, %v1326
          %1328 = vst [vmem:[%s1112 + $0x100] sm:$0x11] %v1327
          %v1329 = vld [vmem:[%s1112 + $0x118] sm:$0x11]
          %v1330 = vsel %vm1295, 0, %v1329
          %1331 = vst [vmem:[%s1112 + $0x118] sm:$0x11] %v1330
          %v1332 = vld [vmem:[%s1112 + $0x130] sm:$0x11]
          %v1333 = vsel %vm1295, 0, %v1332
          %1334 = vst [vmem:[%s1112 + $0x130] sm:$0x11] %v1333
          %v1335 = vld [vmem:[%s1112 + $0x148] sm:$0x11]
          %v1336 = vsel %vm1295, 0, %v1335
          %1337 = vst [vmem:[%s1112 + $0x148] sm:$0x11] %v1336
          %v1338 = vld [vmem:[%s1112 + $0x160] sm:$0x11]
          %v1339 = vsel %vm1295, 0, %v1338
          %1340 = vst [vmem:[%s1112 + $0x160] sm:$0x11] %v1339
          %v1341 = vld [vmem:[%s1112 + $0x178] sm:$0x11]
          %v1342 = vsel %vm1295, 0, %v1341
          %1343 = vst [vmem:[%s1112 + $0x178] sm:$0x11] %v1342
        $region44: #{conv_vencoder_forward.6} parent=39 // pred_fallthru
          _
        %s1344 = smul.u32 %s24, 8
        %v1345 = vld [vmem:[%s3] sm:$0xff]
        %v1346 = vld [vmem:[%s3 + $0x8] sm:$0xff]
        %v1347 = vld [vmem:[%s3 + $0x10] sm:$0xff]
        %v1348 = vld [vmem:[%s3 + $0x18] sm:$0xff]
        %s1349 = smul.u32 %s1344, 6
        %s1350 = smul.addr %s1349, 4
        %s1351 = scalar_lea.vmem [#allocation2], %s1350
        %v1352 = vld [vmem:[%s1351] sm:$0xff]
        %v1353 = vld [vmem:[%s1351 + $0x8] sm:$0xff]
        %v1354 = vld [vmem:[%s1351 + $0x18] sm:$0xff]
        %v1355 = vld [vmem:[%s1351 + $0x20] sm:$0xff]
        %v1356 = vld [vmem:[%s1351 + $0x30] sm:$0xff]
        %v1357 = vld [vmem:[%s1351 + $0x38] sm:$0xff]
        %v1358 = vld [vmem:[%s1351 + $0x48] sm:$0xff]
        %v1359 = vld [vmem:[%s1351 + $0x50] sm:$0xff]
        %v1360 = vld [vmem:[%s1351 + $0x60] sm:$0xff]
        %v1361 = vld [vmem:[%s1351 + $0x68] sm:$0xff]
        %v1362 = vld [vmem:[%s1351 + $0x78] sm:$0xff]
        %v1363 = vld [vmem:[%s1351 + $0x80] sm:$0xff]
        %v1364 = vld [vmem:[%s1351 + $0x90] sm:$0xff]
        %v1365 = vld [vmem:[%s1351 + $0x98] sm:$0xff]
        %v1366 = vld [vmem:[%s1351 + $0xa8] sm:$0xff]
        %v1367 = vld [vmem:[%s1351 + $0xb0] sm:$0xff]
        %s1368 = scalar_lea.vmem %s3, 32
        %v1369 = vld [vmem:[%s1368] sm:$0xff]
        %v1370 = vld [vmem:[%s1368 + $0x8] sm:$0xff]
        %v1371 = vld [vmem:[%s1368 + $0x10] sm:$0xff]
        %v1372 = vld [vmem:[%s1368 + $0x18] sm:$0xff]
        %v1373 = vld [vmem:[%s1351 + $0x10] sm:$0x11]
        %v1374 = vld [vmem:[%s1351 + $0x28] sm:$0x11]
        %v1375 = vld [vmem:[%s1351 + $0x40] sm:$0x11]
        %v1376 = vld [vmem:[%s1351 + $0x58] sm:$0x11]
        %v1377 = vld [vmem:[%s1351 + $0x70] sm:$0x11]
        %v1378 = vld [vmem:[%s1351 + $0x88] sm:$0x11]
        %v1379 = vld [vmem:[%s1351 + $0xa0] sm:$0x11]
        %v1380 = vld [vmem:[%s1351 + $0xb8] sm:$0x11]
        %vm1381 = vsmask.f32 3328
        %vm1382 = vsmask.f32 7440
        %vm1383 = vmor %vm1381, %vm1382
        %v1385 = vshrl.u32 %v1352, 16
        %v1387 = vrot.slane %v1385, 4
        %v1388 = vshll.u32 %v1352, 16
        %v1390 = vrot.slane %v1388, 5
        %v1391 = vor.u32 %v1387, %v1390
        %v1392 = vrot.slane %v1391, 4
        %v1394 = vshll.u32 %v1353, 16
        %v1396 = vrot.slane %v1394, 5
        %v1397 = vsel %vm1383, %v1392, %v1396
        %v1398 = vshrl.u32 %v1353, 16
        %v1400 = vrot.slane %v1398, 4
        %v1401 = vor.u32 %v1400, %v1396
        %v1402 = vrot.slane %v1401, 4
        %v1404 = vshll.u32 %v1373, 16
        %v1406 = vrot.slane %v1404, 5
        %v1407 = vsel %vm1383, %v1402, %v1406
        %v1409 = vshrl.u32 %v1354, 16
        %v1411 = vrot.slane %v1409, 4
        %v1412 = vshll.u32 %v1354, 16
        %v1414 = vrot.slane %v1412, 5
        %v1415 = vor.u32 %v1411, %v1414
        %v1416 = vrot.slane %v1415, 4
        %v1418 = vshll.u32 %v1355, 16
        %v1420 = vrot.slane %v1418, 5
        %v1421 = vsel %vm1383, %v1416, %v1420
        %v1422 = vshrl.u32 %v1355, 16
        %v1424 = vrot.slane %v1422, 4
        %v1425 = vor.u32 %v1424, %v1420
        %v1426 = vrot.slane %v1425, 4
        %v1428 = vshll.u32 %v1374, 16
        %v1430 = vrot.slane %v1428, 5
        %v1431 = vsel %vm1383, %v1426, %v1430
        %v1433 = vshrl.u32 %v1356, 16
        %v1435 = vrot.slane %v1433, 4
        %v1436 = vshll.u32 %v1356, 16
        %v1438 = vrot.slane %v1436, 5
        %v1439 = vor.u32 %v1435, %v1438
        %v1440 = vrot.slane %v1439, 4
        %v1442 = vshll.u32 %v1357, 16
        %v1444 = vrot.slane %v1442, 5
        %v1445 = vsel %vm1383, %v1440, %v1444
        %v1446 = vshrl.u32 %v1357, 16
        %v1448 = vrot.slane %v1446, 4
        %v1449 = vor.u32 %v1448, %v1444
        %v1450 = vrot.slane %v1449, 4
        %v1452 = vshll.u32 %v1375, 16
        %v1454 = vrot.slane %v1452, 5
        %v1455 = vsel %vm1383, %v1450, %v1454
        %v1457 = vshrl.u32 %v1358, 16
        %v1459 = vrot.slane %v1457, 4
        %v1460 = vshll.u32 %v1358, 16
        %v1462 = vrot.slane %v1460, 5
        %v1463 = vor.u32 %v1459, %v1462
        %v1464 = vrot.slane %v1463, 4
        %v1466 = vshll.u32 %v1359, 16
        %v1468 = vrot.slane %v1466, 5
        %v1469 = vsel %vm1383, %v1464, %v1468
        %v1470 = vshrl.u32 %v1359, 16
        %v1472 = vrot.slane %v1470, 4
        %v1473 = vor.u32 %v1472, %v1468
        %v1474 = vrot.slane %v1473, 4
        %v1476 = vshll.u32 %v1376, 16
        %v1478 = vrot.slane %v1476, 5
        %v1479 = vsel %vm1383, %v1474, %v1478
        %v1481 = vshrl.u32 %v1360, 16
        %v1483 = vrot.slane %v1481, 4
        %v1484 = vshll.u32 %v1360, 16
        %v1486 = vrot.slane %v1484, 5
        %v1487 = vor.u32 %v1483, %v1486
        %v1488 = vrot.slane %v1487, 4
        %v1490 = vshll.u32 %v1361, 16
        %v1492 = vrot.slane %v1490, 5
        %v1493 = vsel %vm1383, %v1488, %v1492
        %v1494 = vshrl.u32 %v1361, 16
        %v1496 = vrot.slane %v1494, 4
        %v1497 = vor.u32 %v1496, %v1492
        %v1498 = vrot.slane %v1497, 4
        %v1500 = vshll.u32 %v1377, 16
        %v1502 = vrot.slane %v1500, 5
        %v1503 = vsel %vm1383, %v1498, %v1502
        %v1505 = vshrl.u32 %v1362, 16
        %v1507 = vrot.slane %v1505, 4
        %v1508 = vshll.u32 %v1362, 16
        %v1510 = vrot.slane %v1508, 5
        %v1511 = vor.u32 %v1507, %v1510
        %v1512 = vrot.slane %v1511, 4
        %v1514 = vshll.u32 %v1363, 16
        %v1516 = vrot.slane %v1514, 5
        %v1517 = vsel %vm1383, %v1512, %v1516
        %v1518 = vshrl.u32 %v1363, 16
        %v1520 = vrot.slane %v1518, 4
        %v1521 = vor.u32 %v1520, %v1516
        %v1522 = vrot.slane %v1521, 4
        %v1524 = vshll.u32 %v1378, 16
        %v1526 = vrot.slane %v1524, 5
        %v1527 = vsel %vm1383, %v1522, %v1526
        %v1529 = vshrl.u32 %v1364, 16
        %v1531 = vrot.slane %v1529, 4
        %v1532 = vshll.u32 %v1364, 16
        %v1534 = vrot.slane %v1532, 5
        %v1535 = vor.u32 %v1531, %v1534
        %v1536 = vrot.slane %v1535, 4
        %v1538 = vshll.u32 %v1365, 16
        %v1540 = vrot.slane %v1538, 5
        %v1541 = vsel %vm1383, %v1536, %v1540
        %v1542 = vshrl.u32 %v1365, 16
        %v1544 = vrot.slane %v1542, 4
        %v1545 = vor.u32 %v1544, %v1540
        %v1546 = vrot.slane %v1545, 4
        %v1548 = vshll.u32 %v1379, 16
        %v1550 = vrot.slane %v1548, 5
        %v1551 = vsel %vm1383, %v1546, %v1550
        %v1553 = vshrl.u32 %v1366, 16
        %v1555 = vrot.slane %v1553, 4
        %v1556 = vshll.u32 %v1366, 16
        %v1558 = vrot.slane %v1556, 5
        %v1559 = vor.u32 %v1555, %v1558
        %v1560 = vrot.slane %v1559, 4
        %v1562 = vshll.u32 %v1367, 16
        %v1564 = vrot.slane %v1562, 5
        %v1565 = vsel %vm1383, %v1560, %v1564
        %v1566 = vshrl.u32 %v1367, 16
        %v1568 = vrot.slane %v1566, 4
        %v1569 = vor.u32 %v1568, %v1564
        %v1570 = vrot.slane %v1569, 4
        %v1572 = vshll.u32 %v1380, 16
        %v1574 = vrot.slane %v1572, 5
        %v1575 = vsel %vm1383, %v1570, %v1574
        %v1580 = vunpack.c.l.b16 %v1369
        %v1581 = vunpack.c.h.b16 %v1369
        %v1582 = vunpack.c.l.b16 %v1370
        %v1583 = vunpack.c.h.b16 %v1370
        %v1584 = vunpack.c.l.b16 %v1371
        %v1585 = vunpack.c.h.b16 %v1371
        %v1586 = vunpack.c.l.b16 %v1372
        %v1587 = vunpack.c.h.b16 %v1372
        %v1588 = vpack.c.b16 %v1582, %v1580
        %v1589 = vpack.c.b16 %v1583, %v1581
        %v1590 = vpack.c.b16 %v1586, %v1584
        %v1591 = vpack.c.b16 %v1587, %v1585
        %v1596 = vunpack.c.l.b16 %v1397
        %v1597 = vunpack.c.h.b16 %v1397
        %v1598 = vunpack.c.l.b16 %v1407
        %v1599 = vunpack.c.h.b16 %v1407
        %v1600 = vunpack.c.l.b16 %v1421
        %v1601 = vunpack.c.h.b16 %v1421
        %v1602 = vunpack.c.l.b16 %v1431
        %v1603 = vunpack.c.h.b16 %v1431
        %v1604 = vunpack.c.l.b16 %v1445
        %v1605 = vunpack.c.h.b16 %v1445
        %v1606 = vunpack.c.l.b16 %v1455
        %v1607 = vunpack.c.h.b16 %v1455
        %v1608 = vunpack.c.l.b16 %v1469
        %v1609 = vunpack.c.h.b16 %v1469
        %v1610 = vunpack.c.l.b16 %v1479
        %v1611 = vunpack.c.h.b16 %v1479
        %v1612 = vunpack.c.l.b16 %v1493
        %v1613 = vunpack.c.h.b16 %v1493
        %v1614 = vunpack.c.l.b16 %v1503
        %v1615 = vunpack.c.h.b16 %v1503
        %v1616 = vunpack.c.l.b16 %v1517
        %v1617 = vunpack.c.h.b16 %v1517
        %v1618 = vunpack.c.l.b16 %v1527
        %v1619 = vunpack.c.h.b16 %v1527
        %v1620 = vunpack.c.l.b16 %v1541
        %v1621 = vunpack.c.h.b16 %v1541
        %v1622 = vunpack.c.l.b16 %v1551
        %v1623 = vunpack.c.h.b16 %v1551
        %v1624 = vunpack.c.l.b16 %v1565
        %v1625 = vunpack.c.h.b16 %v1565
        %v1626 = vunpack.c.l.b16 %v1575
        %v1627 = vunpack.c.h.b16 %v1575
        %v1628 = vpack.c.b16 %v1598, %v1596
        %v1629 = vpack.c.b16 %v1599, %v1597
        %v1630 = vpack.c.b16 %v1602, %v1600
        %v1631 = vpack.c.b16 %v1603, %v1601
        %v1632 = vpack.c.b16 %v1606, %v1604
        %v1633 = vpack.c.b16 %v1607, %v1605
        %v1634 = vpack.c.b16 %v1610, %v1608
        %v1635 = vpack.c.b16 %v1611, %v1609
        %v1636 = vpack.c.b16 %v1614, %v1612
        %v1637 = vpack.c.b16 %v1615, %v1613
        %v1638 = vpack.c.b16 %v1618, %v1616
        %v1639 = vpack.c.b16 %v1619, %v1617
        %v1640 = vpack.c.b16 %v1622, %v1620
        %v1641 = vpack.c.b16 %v1623, %v1621
        %v1642 = vpack.c.b16 %v1626, %v1624
        %v1643 = vpack.c.b16 %v1627, %v1625
        %1660 = vmatprep.subr.bf16.mxu0 %v1643
        %1661 = vmatpush1.bf16.xpose.msra.mxu0 %v1642
        %1662 = vmatprep.subr.bf16.mxu0 %v1641
        %1663 = vmatpush1.bf16.xpose.msra.mxu0 %v1640
        %1664 = vmatprep.subr.bf16.mxu0 %v1639
        %1665 = vmatpush1.bf16.xpose.msra.mxu0 %v1638
        %1666 = vmatprep.subr.bf16.mxu0 %v1637
        %1667 = vmatpush1.bf16.xpose.msra.mxu0 %v1636
        %1668 = vmatprep.subr.bf16.mxu0 %v1635
        %1669 = vmatpush1.bf16.xpose.msra.mxu0 %v1634
        %1670 = vmatprep.subr.bf16.mxu0 %v1633
        %1671 = vmatpush1.bf16.xpose.msra.mxu0 %v1632
        %1672 = vmatprep.subr.bf16.mxu0 %v1631
        %1673 = vmatpush1.bf16.xpose.msra.mxu0 %v1630
        %1674 = vmatprep.subr.bf16.mxu0 %v1629
        %1675 = vmatpush1.bf16.xpose.msra.mxu0 %v1628
        %1676 = vmatprep.subr.bf16.mxu0 0
        %1677 = vmatpush2.bf16.xpose.msra.mxu0 0
        %1678 = vmatprep.subr.bf16.mxu0 0
        %1679 = vmatpush2.bf16.xpose.msra.mxu0 0
        %1680 = vmatprep.subr.bf16.mxu0 0
        %1681 = vmatpush2.bf16.xpose.msra.mxu0 0
        %1682 = vmatprep.subr.bf16.mxu0 0
        %1683 = vmatpush2.bf16.xpose.msra.mxu0 0
        %1684 = vmatprep.subr.bf16.mxu0 0
        %1685 = vmatpush2.bf16.xpose.msra.mxu0 0
        %1686 = vmatprep.subr.bf16.mxu0 0
        %1687 = vmatpush2.bf16.xpose.msra.mxu0 0
        %1688 = vmatprep.subr.bf16.mxu0 0
        %1689 = vmatpush2.bf16.xpose.msra.mxu0 0
        %1690 = vmatprep.subr.bf16.mxu0 0
        %1691 = vmatpush2.bf16.xpose.msra.mxu0 0
        %1692 = vmatprep.mubr.bf16.mxu0 %v1589
        %1693 = vmatmul.mubr.bf16.gmra.mxu0 %v1588
        %v1694 = vpop.f32.mrf.mxu0
        %v1695 = vadd.f32 0.0, %v1694
        %v1696 = vpop.f32.mrf.mxu0
        %v1697 = vpop.f32.mrf.mxu0
        %v1698 = vadd.f32 0.0, %v1697
        %v1699 = vpop.f32.mrf.mxu0
        %1700 = vmatprep.mubr.bf16.mxu0 %v1591
        %1701 = vmatmul.mubr.bf16.gmra.mxu0 %v1590
        %v1702 = vpop.f32.mrf.mxu0
        %v1703 = vadd.f32 0.0, %v1702
        %v1704 = vpop.f32.mrf.mxu0
        %v1705 = vpop.f32.mrf.mxu0
        %v1706 = vadd.f32 0.0, %v1705
        %v1707 = vpop.f32.mrf.mxu0
        %1708 = vdwg.mxu0
        %v1713 = vunpack.c.l.b16 %v1345
        %v1714 = vunpack.c.h.b16 %v1345
        %v1715 = vunpack.c.l.b16 %v1346
        %v1716 = vunpack.c.h.b16 %v1346
        %v1717 = vunpack.c.l.b16 %v1347
        %v1718 = vunpack.c.h.b16 %v1347
        %v1719 = vunpack.c.l.b16 %v1348
        %v1720 = vunpack.c.h.b16 %v1348
        %v1721 = vpack.c.b16 %v1715, %v1713
        %v1722 = vpack.c.b16 %v1716, %v1714
        %v1723 = vpack.c.b16 %v1719, %v1717
        %v1724 = vpack.c.b16 %v1720, %v1718
        %v1745 = vunpack.c.l.b16 %v1352
        %v1746 = vunpack.c.h.b16 %v1352
        %v1747 = vunpack.c.l.b16 %v1353
        %v1748 = vunpack.c.h.b16 %v1353
        %v1749 = vunpack.c.l.b16 %v1354
        %v1750 = vunpack.c.h.b16 %v1354
        %v1751 = vunpack.c.l.b16 %v1355
        %v1752 = vunpack.c.h.b16 %v1355
        %v1753 = vunpack.c.l.b16 %v1356
        %v1754 = vunpack.c.h.b16 %v1356
        %v1755 = vunpack.c.l.b16 %v1357
        %v1756 = vunpack.c.h.b16 %v1357
        %v1757 = vunpack.c.l.b16 %v1358
        %v1758 = vunpack.c.h.b16 %v1358
        %v1759 = vunpack.c.l.b16 %v1359
        %v1760 = vunpack.c.h.b16 %v1359
        %v1761 = vunpack.c.l.b16 %v1360
        %v1762 = vunpack.c.h.b16 %v1360
        %v1763 = vunpack.c.l.b16 %v1361
        %v1764 = vunpack.c.h.b16 %v1361
        %v1765 = vunpack.c.l.b16 %v1362
        %v1766 = vunpack.c.h.b16 %v1362
        %v1767 = vunpack.c.l.b16 %v1363
        %v1768 = vunpack.c.h.b16 %v1363
        %v1769 = vunpack.c.l.b16 %v1364
        %v1770 = vunpack.c.h.b16 %v1364
        %v1771 = vunpack.c.l.b16 %v1365
        %v1772 = vunpack.c.h.b16 %v1365
        %v1773 = vunpack.c.l.b16 %v1366
        %v1774 = vunpack.c.h.b16 %v1366
        %v1775 = vunpack.c.l.b16 %v1367
        %v1776 = vunpack.c.h.b16 %v1367
        %v1777 = vpack.c.b16 %v1747, %v1745
        %v1778 = vpack.c.b16 %v1748, %v1746
        %v1779 = vpack.c.b16 %v1751, %v1749
        %v1780 = vpack.c.b16 %v1752, %v1750
        %v1781 = vpack.c.b16 %v1755, %v1753
        %v1782 = vpack.c.b16 %v1756, %v1754
        %v1783 = vpack.c.b16 %v1759, %v1757
        %v1784 = vpack.c.b16 %v1760, %v1758
        %v1785 = vpack.c.b16 %v1763, %v1761
        %v1786 = vpack.c.b16 %v1764, %v1762
        %v1787 = vpack.c.b16 %v1767, %v1765
        %v1788 = vpack.c.b16 %v1768, %v1766
        %v1789 = vpack.c.b16 %v1771, %v1769
        %v1790 = vpack.c.b16 %v1772, %v1770
        %v1791 = vpack.c.b16 %v1775, %v1773
        %v1792 = vpack.c.b16 %v1776, %v1774
        %1809 = vmatprep.subr.bf16.mxu0 %v1792
        %1810 = vmatpush1.bf16.xpose.msra.mxu0 %v1791
        %1811 = vmatprep.subr.bf16.mxu0 %v1790
        %1812 = vmatpush1.bf16.xpose.msra.mxu0 %v1789
        %1813 = vmatprep.subr.bf16.mxu0 %v1788
        %1814 = vmatpush1.bf16.xpose.msra.mxu0 %v1787
        %1815 = vmatprep.subr.bf16.mxu0 %v1786
        %1816 = vmatpush1.bf16.xpose.msra.mxu0 %v1785
        %1817 = vmatprep.subr.bf16.mxu0 %v1784
        %1818 = vmatpush1.bf16.xpose.msra.mxu0 %v1783
        %1819 = vmatprep.subr.bf16.mxu0 %v1782
        %1820 = vmatpush1.bf16.xpose.msra.mxu0 %v1781
        %1821 = vmatprep.subr.bf16.mxu0 %v1780
        %1822 = vmatpush1.bf16.xpose.msra.mxu0 %v1779
        %1823 = vmatprep.subr.bf16.mxu0 %v1778
        %1824 = vmatpush1.bf16.xpose.msra.mxu0 %v1777
        %1825 = vmatprep.subr.bf16.mxu0 0
        %1826 = vmatpush2.bf16.xpose.msra.mxu0 0
        %1827 = vmatprep.subr.bf16.mxu0 0
        %1828 = vmatpush2.bf16.xpose.msra.mxu0 0
        %1829 = vmatprep.subr.bf16.mxu0 0
        %1830 = vmatpush2.bf16.xpose.msra.mxu0 0
        %1831 = vmatprep.subr.bf16.mxu0 0
        %1832 = vmatpush2.bf16.xpose.msra.mxu0 0
        %1833 = vmatprep.subr.bf16.mxu0 0
        %1834 = vmatpush2.bf16.xpose.msra.mxu0 0
        %1835 = vmatprep.subr.bf16.mxu0 0
        %1836 = vmatpush2.bf16.xpose.msra.mxu0 0
        %1837 = vmatprep.subr.bf16.mxu0 0
        %1838 = vmatpush2.bf16.xpose.msra.mxu0 0
        %1839 = vmatprep.subr.bf16.mxu0 0
        %1840 = vmatpush2.bf16.xpose.msra.mxu0 0
        %1841 = vmatprep.mubr.bf16.mxu0 %v1722
        %1842 = vmatmul.mubr.bf16.gmra.mxu0 %v1721
        %v1843 = vpop.f32.mrf.mxu0
        %v1844 = vadd.f32 %v1695, %v1843
        %v1845 = vpop.f32.mrf.mxu0
        %v1846 = vpop.f32.mrf.mxu0
        %v1847 = vadd.f32 %v1698, %v1846
        %v1848 = vpop.f32.mrf.mxu0
        %1849 = vmatprep.mubr.bf16.mxu0 %v1724
        %1850 = vmatmul.mubr.bf16.gmra.mxu0 %v1723
        %v1851 = vpop.f32.mrf.mxu0
        %v1852 = vadd.f32 %v1703, %v1851
        %v1853 = vpop.f32.mrf.mxu0
        %v1854 = vpop.f32.mrf.mxu0
        %v1855 = vadd.f32 %v1706, %v1854
        %v1856 = vpop.f32.mrf.mxu0
        %1857 = vdwg.mxu0
        %s1858 = scalar_lea.vmem %s3, 64
        %v1859 = vld [vmem:[%s1858] sm:$0xff]
        %v1860 = vld [vmem:[%s1858 + $0x8] sm:$0xff]
        %v1861 = vld [vmem:[%s1858 + $0x10] sm:$0xff]
        %v1862 = vld [vmem:[%s1858 + $0x18] sm:$0xff]
        %v1863 = vld [vmem:[%s1351] sm:$0xee]
        %v1864 = vld [vmem:[%s1351 + $0x18] sm:$0xee]
        %v1865 = vld [vmem:[%s1351 + $0x30] sm:$0xee]
        %v1866 = vld [vmem:[%s1351 + $0x48] sm:$0xee]
        %v1867 = vld [vmem:[%s1351 + $0x60] sm:$0xee]
        %v1868 = vld [vmem:[%s1351 + $0x78] sm:$0xee]
        %v1869 = vld [vmem:[%s1351 + $0x90] sm:$0xee]
        %v1870 = vld [vmem:[%s1351 + $0xa8] sm:$0xee]
        %vm1887 = vcmask 1042432
        %vm1888 = vcmask 1046532
        %vm1889 = vmor %vm1887, %vm1888
        %v1890 = vrot.slane %v1863, 5
        %v1891 = vrot.slane %v1890, 4
        %v1892 = vrot.slane %v1353, 5
        %v1893 = vsel %vm1889, %v1891, %v1892
        %v1894 = vrot.slane %v1892, 4
        %v1895 = vrot.slane %v1373, 5
        %v1896 = vsel %vm1889, %v1894, %v1895
        %v1897 = vrot.slane %v1864, 5
        %v1898 = vrot.slane %v1897, 4
        %v1899 = vrot.slane %v1355, 5
        %v1900 = vsel %vm1889, %v1898, %v1899
        %v1901 = vrot.slane %v1899, 4
        %v1902 = vrot.slane %v1374, 5
        %v1903 = vsel %vm1889, %v1901, %v1902
        %v1904 = vrot.slane %v1865, 5
        %v1905 = vrot.slane %v1904, 4
        %v1906 = vrot.slane %v1357, 5
        %v1907 = vsel %vm1889, %v1905, %v1906
        %v1908 = vrot.slane %v1906, 4
        %v1909 = vrot.slane %v1375, 5
        %v1910 = vsel %vm1889, %v1908, %v1909
        %v1911 = vrot.slane %v1866, 5
        %v1912 = vrot.slane %v1911, 4
        %v1913 = vrot.slane %v1359, 5
        %v1914 = vsel %vm1889, %v1912, %v1913
        %v1915 = vrot.slane %v1913, 4
        %v1916 = vrot.slane %v1376, 5
        %v1917 = vsel %vm1889, %v1915, %v1916
        %v1918 = vrot.slane %v1867, 5
        %v1919 = vrot.slane %v1918, 4
        %v1920 = vrot.slane %v1361, 5
        %v1921 = vsel %vm1889, %v1919, %v1920
        %v1922 = vrot.slane %v1920, 4
        %v1923 = vrot.slane %v1377, 5
        %v1924 = vsel %vm1889, %v1922, %v1923
        %v1925 = vrot.slane %v1868, 5
        %v1926 = vrot.slane %v1925, 4
        %v1927 = vrot.slane %v1363, 5
        %v1928 = vsel %vm1889, %v1926, %v1927
        %v1929 = vrot.slane %v1927, 4
        %v1930 = vrot.slane %v1378, 5
        %v1931 = vsel %vm1889, %v1929, %v1930
        %v1932 = vrot.slane %v1869, 5
        %v1933 = vrot.slane %v1932, 4
        %v1934 = vrot.slane %v1365, 5
        %v1935 = vsel %vm1889, %v1933, %v1934
        %v1936 = vrot.slane %v1934, 4
        %v1937 = vrot.slane %v1379, 5
        %v1938 = vsel %vm1889, %v1936, %v1937
        %v1939 = vrot.slane %v1870, 5
        %v1940 = vrot.slane %v1939, 4
        %v1941 = vrot.slane %v1367, 5
        %v1942 = vsel %vm1889, %v1940, %v1941
        %v1943 = vrot.slane %v1941, 4
        %v1944 = vrot.slane %v1380, 5
        %v1945 = vsel %vm1889, %v1943, %v1944
        %v1950 = vunpack.c.l.b16 %v1859
        %v1951 = vunpack.c.h.b16 %v1859
        %v1952 = vunpack.c.l.b16 %v1860
        %v1953 = vunpack.c.h.b16 %v1860
        %v1954 = vunpack.c.l.b16 %v1861
        %v1955 = vunpack.c.h.b16 %v1861
        %v1956 = vunpack.c.l.b16 %v1862
        %v1957 = vunpack.c.h.b16 %v1862
        %v1958 = vpack.c.b16 %v1952, %v1950
        %v1959 = vpack.c.b16 %v1953, %v1951
        %v1960 = vpack.c.b16 %v1956, %v1954
        %v1961 = vpack.c.b16 %v1957, %v1955
        %v1966 = vunpack.c.l.b16 %v1893
        %v1967 = vunpack.c.h.b16 %v1893
        %v1968 = vunpack.c.l.b16 %v1896
        %v1969 = vunpack.c.h.b16 %v1896
        %v1970 = vunpack.c.l.b16 %v1900
        %v1971 = vunpack.c.h.b16 %v1900
        %v1972 = vunpack.c.l.b16 %v1903
        %v1973 = vunpack.c.h.b16 %v1903
        %v1974 = vunpack.c.l.b16 %v1907
        %v1975 = vunpack.c.h.b16 %v1907
        %v1976 = vunpack.c.l.b16 %v1910
        %v1977 = vunpack.c.h.b16 %v1910
        %v1978 = vunpack.c.l.b16 %v1914
        %v1979 = vunpack.c.h.b16 %v1914
        %v1980 = vunpack.c.l.b16 %v1917
        %v1981 = vunpack.c.h.b16 %v1917
        %v1982 = vunpack.c.l.b16 %v1921
        %v1983 = vunpack.c.h.b16 %v1921
        %v1984 = vunpack.c.l.b16 %v1924
        %v1985 = vunpack.c.h.b16 %v1924
        %v1986 = vunpack.c.l.b16 %v1928
        %v1987 = vunpack.c.h.b16 %v1928
        %v1988 = vunpack.c.l.b16 %v1931
        %v1989 = vunpack.c.h.b16 %v1931
        %v1990 = vunpack.c.l.b16 %v1935
        %v1991 = vunpack.c.h.b16 %v1935
        %v1992 = vunpack.c.l.b16 %v1938
        %v1993 = vunpack.c.h.b16 %v1938
        %v1994 = vunpack.c.l.b16 %v1942
        %v1995 = vunpack.c.h.b16 %v1942
        %v1996 = vunpack.c.l.b16 %v1945
        %v1997 = vunpack.c.h.b16 %v1945
        %v1998 = vpack.c.b16 %v1968, %v1966
        %v1999 = vpack.c.b16 %v1969, %v1967
        %v2000 = vpack.c.b16 %v1972, %v1970
        %v2001 = vpack.c.b16 %v1973, %v1971
        %v2002 = vpack.c.b16 %v1976, %v1974
        %v2003 = vpack.c.b16 %v1977, %v1975
        %v2004 = vpack.c.b16 %v1980, %v1978
        %v2005 = vpack.c.b16 %v1981, %v1979
        %v2006 = vpack.c.b16 %v1984, %v1982
        %v2007 = vpack.c.b16 %v1985, %v1983
        %v2008 = vpack.c.b16 %v1988, %v1986
        %v2009 = vpack.c.b16 %v1989, %v1987
        %v2010 = vpack.c.b16 %v1992, %v1990
        %v2011 = vpack.c.b16 %v1993, %v1991
        %v2012 = vpack.c.b16 %v1996, %v1994
        %v2013 = vpack.c.b16 %v1997, %v1995
        %2030 = vmatprep.subr.bf16.mxu0 %v2013
        %2031 = vmatpush1.bf16.xpose.msra.mxu0 %v2012
        %2032 = vmatprep.subr.bf16.mxu0 %v2011
        %2033 = vmatpush1.bf16.xpose.msra.mxu0 %v2010
        %2034 = vmatprep.subr.bf16.mxu0 %v2009
        %2035 = vmatpush1.bf16.xpose.msra.mxu0 %v2008
        %2036 = vmatprep.subr.bf16.mxu0 %v2007
        %2037 = vmatpush1.bf16.xpose.msra.mxu0 %v2006
        %2038 = vmatprep.subr.bf16.mxu0 %v2005
        %2039 = vmatpush1.bf16.xpose.msra.mxu0 %v2004
        %2040 = vmatprep.subr.bf16.mxu0 %v2003
        %2041 = vmatpush1.bf16.xpose.msra.mxu0 %v2002
        %2042 = vmatprep.subr.bf16.mxu0 %v2001
        %2043 = vmatpush1.bf16.xpose.msra.mxu0 %v2000
        %2044 = vmatprep.subr.bf16.mxu0 %v1999
        %2045 = vmatpush1.bf16.xpose.msra.mxu0 %v1998
        %2046 = vmatprep.subr.bf16.mxu0 0
        %2047 = vmatpush2.bf16.xpose.msra.mxu0 0
        %2048 = vmatprep.subr.bf16.mxu0 0
        %2049 = vmatpush2.bf16.xpose.msra.mxu0 0
        %2050 = vmatprep.subr.bf16.mxu0 0
        %2051 = vmatpush2.bf16.xpose.msra.mxu0 0
        %2052 = vmatprep.subr.bf16.mxu0 0
        %2053 = vmatpush2.bf16.xpose.msra.mxu0 0
        %2054 = vmatprep.subr.bf16.mxu0 0
        %2055 = vmatpush2.bf16.xpose.msra.mxu0 0
        %2056 = vmatprep.subr.bf16.mxu0 0
        %2057 = vmatpush2.bf16.xpose.msra.mxu0 0
        %2058 = vmatprep.subr.bf16.mxu0 0
        %2059 = vmatpush2.bf16.xpose.msra.mxu0 0
        %2060 = vmatprep.subr.bf16.mxu0 0
        %2061 = vmatpush2.bf16.xpose.msra.mxu0 0
        %2062 = vmatprep.mubr.bf16.mxu0 %v1959
        %2063 = vmatmul.mubr.bf16.gmra.mxu0 %v1958
        %v2064 = vpop.f32.mrf.mxu0
        %v2065 = vadd.f32 0.0, %v2064
        %v2066 = vpop.f32.mrf.mxu0
        %v2067 = vpop.f32.mrf.mxu0
        %v2068 = vadd.f32 0.0, %v2067
        %v2069 = vpop.f32.mrf.mxu0
        %2070 = vmatprep.mubr.bf16.mxu0 %v1961
        %2071 = vmatmul.mubr.bf16.gmra.mxu0 %v1960
        %v2072 = vpop.f32.mrf.mxu0
        %v2073 = vadd.f32 0.0, %v2072
        %v2074 = vpop.f32.mrf.mxu0
        %v2075 = vpop.f32.mrf.mxu0
        %v2076 = vadd.f32 0.0, %v2075
        %v2077 = vpop.f32.mrf.mxu0
        %2078 = vdwg.mxu0
        %v2079 = vadd.f32 %v1844, %v2065
        %v2080 = vadd.f32 %v1847, %v2068
        %v2081 = vadd.f32 %v1852, %v2073
        %v2082 = vadd.f32 %v1855, %v2076
        %s2083 = scalar_lea.vmem %s3, 96
        %v2084 = vld [vmem:[%s2083] sm:$0xff]
        %v2085 = vld [vmem:[%s2083 + $0x8] sm:$0xff]
        %v2086 = vld [vmem:[%s2083 + $0x10] sm:$0xff]
        %v2087 = vld [vmem:[%s2083 + $0x18] sm:$0xff]
        %s2088 = sadd.s32 %s1344, 1
        %s2089 = smul.u32 %s2088, 6
        %s2090 = smul.addr %s2089, 4
        %s2091 = scalar_lea.vmem [#allocation2], %s2090
        %v2092 = vld [vmem:[%s2091] sm:$0xff]
        %v2093 = vld [vmem:[%s2091 + $0x8] sm:$0xff]
        %v2094 = vld [vmem:[%s2091 + $0x18] sm:$0xff]
        %v2095 = vld [vmem:[%s2091 + $0x20] sm:$0xff]
        %v2096 = vld [vmem:[%s2091 + $0x30] sm:$0xff]
        %v2097 = vld [vmem:[%s2091 + $0x38] sm:$0xff]
        %v2098 = vld [vmem:[%s2091 + $0x48] sm:$0xff]
        %v2099 = vld [vmem:[%s2091 + $0x50] sm:$0xff]
        %v2100 = vld [vmem:[%s2091 + $0x60] sm:$0xff]
        %v2101 = vld [vmem:[%s2091 + $0x68] sm:$0xff]
        %v2102 = vld [vmem:[%s2091 + $0x78] sm:$0xff]
        %v2103 = vld [vmem:[%s2091 + $0x80] sm:$0xff]
        %v2104 = vld [vmem:[%s2091 + $0x90] sm:$0xff]
        %v2105 = vld [vmem:[%s2091 + $0x98] sm:$0xff]
        %v2106 = vld [vmem:[%s2091 + $0xa8] sm:$0xff]
        %v2107 = vld [vmem:[%s2091 + $0xb0] sm:$0xff]
        %v2112 = vunpack.c.l.b16 %v2084
        %v2113 = vunpack.c.h.b16 %v2084
        %v2114 = vunpack.c.l.b16 %v2085
        %v2115 = vunpack.c.h.b16 %v2085
        %v2116 = vunpack.c.l.b16 %v2086
        %v2117 = vunpack.c.h.b16 %v2086
        %v2118 = vunpack.c.l.b16 %v2087
        %v2119 = vunpack.c.h.b16 %v2087
        %v2120 = vpack.c.b16 %v2114, %v2112
        %v2121 = vpack.c.b16 %v2115, %v2113
        %v2122 = vpack.c.b16 %v2118, %v2116
        %v2123 = vpack.c.b16 %v2119, %v2117
        %v2144 = vunpack.c.l.b16 %v2092
        %v2145 = vunpack.c.h.b16 %v2092
        %v2146 = vunpack.c.l.b16 %v2093
        %v2147 = vunpack.c.h.b16 %v2093
        %v2148 = vunpack.c.l.b16 %v2094
        %v2149 = vunpack.c.h.b16 %v2094
        %v2150 = vunpack.c.l.b16 %v2095
        %v2151 = vunpack.c.h.b16 %v2095
        %v2152 = vunpack.c.l.b16 %v2096
        %v2153 = vunpack.c.h.b16 %v2096
        %v2154 = vunpack.c.l.b16 %v2097
        %v2155 = vunpack.c.h.b16 %v2097
        %v2156 = vunpack.c.l.b16 %v2098
        %v2157 = vunpack.c.h.b16 %v2098
        %v2158 = vunpack.c.l.b16 %v2099
        %v2159 = vunpack.c.h.b16 %v2099
        %v2160 = vunpack.c.l.b16 %v2100
        %v2161 = vunpack.c.h.b16 %v2100
        %v2162 = vunpack.c.l.b16 %v2101
        %v2163 = vunpack.c.h.b16 %v2101
        %v2164 = vunpack.c.l.b16 %v2102
        %v2165 = vunpack.c.h.b16 %v2102
        %v2166 = vunpack.c.l.b16 %v2103
        %v2167 = vunpack.c.h.b16 %v2103
        %v2168 = vunpack.c.l.b16 %v2104
        %v2169 = vunpack.c.h.b16 %v2104
        %v2170 = vunpack.c.l.b16 %v2105
        %v2171 = vunpack.c.h.b16 %v2105
        %v2172 = vunpack.c.l.b16 %v2106
        %v2173 = vunpack.c.h.b16 %v2106
        %v2174 = vunpack.c.l.b16 %v2107
        %v2175 = vunpack.c.h.b16 %v2107
        %v2176 = vpack.c.b16 %v2146, %v2144
        %v2177 = vpack.c.b16 %v2147, %v2145
        %v2178 = vpack.c.b16 %v2150, %v2148
        %v2179 = vpack.c.b16 %v2151, %v2149
        %v2180 = vpack.c.b16 %v2154, %v2152
        %v2181 = vpack.c.b16 %v2155, %v2153
        %v2182 = vpack.c.b16 %v2158, %v2156
        %v2183 = vpack.c.b16 %v2159, %v2157
        %v2184 = vpack.c.b16 %v2162, %v2160
        %v2185 = vpack.c.b16 %v2163, %v2161
        %v2186 = vpack.c.b16 %v2166, %v2164
        %v2187 = vpack.c.b16 %v2167, %v2165
        %v2188 = vpack.c.b16 %v2170, %v2168
        %v2189 = vpack.c.b16 %v2171, %v2169
        %v2190 = vpack.c.b16 %v2174, %v2172
        %v2191 = vpack.c.b16 %v2175, %v2173
        %2208 = vmatprep.subr.bf16.mxu0 %v2191
        %2209 = vmatpush1.bf16.xpose.msra.mxu0 %v2190
        %2210 = vmatprep.subr.bf16.mxu0 %v2189
        %2211 = vmatpush1.bf16.xpose.msra.mxu0 %v2188
        %2212 = vmatprep.subr.bf16.mxu0 %v2187
        %2213 = vmatpush1.bf16.xpose.msra.mxu0 %v2186
        %2214 = vmatprep.subr.bf16.mxu0 %v2185
        %2215 = vmatpush1.bf16.xpose.msra.mxu0 %v2184
        %2216 = vmatprep.subr.bf16.mxu0 %v2183
        %2217 = vmatpush1.bf16.xpose.msra.mxu0 %v2182
        %2218 = vmatprep.subr.bf16.mxu0 %v2181
        %2219 = vmatpush1.bf16.xpose.msra.mxu0 %v2180
        %2220 = vmatprep.subr.bf16.mxu0 %v2179
        %2221 = vmatpush1.bf16.xpose.msra.mxu0 %v2178
        %2222 = vmatprep.subr.bf16.mxu0 %v2177
        %2223 = vmatpush1.bf16.xpose.msra.mxu0 %v2176
        %2224 = vmatprep.subr.bf16.mxu0 0
        %2225 = vmatpush2.bf16.xpose.msra.mxu0 0
        %2226 = vmatprep.subr.bf16.mxu0 0
        %2227 = vmatpush2.bf16.xpose.msra.mxu0 0
        %2228 = vmatprep.subr.bf16.mxu0 0
        %2229 = vmatpush2.bf16.xpose.msra.mxu0 0
        %2230 = vmatprep.subr.bf16.mxu0 0
        %2231 = vmatpush2.bf16.xpose.msra.mxu0 0
        %2232 = vmatprep.subr.bf16.mxu0 0
        %2233 = vmatpush2.bf16.xpose.msra.mxu0 0
        %2234 = vmatprep.subr.bf16.mxu0 0
        %2235 = vmatpush2.bf16.xpose.msra.mxu0 0
        %2236 = vmatprep.subr.bf16.mxu0 0
        %2237 = vmatpush2.bf16.xpose.msra.mxu0 0
        %2238 = vmatprep.subr.bf16.mxu0 0
        %2239 = vmatpush2.bf16.xpose.msra.mxu0 0
        %2240 = vmatprep.mubr.bf16.mxu0 %v2121
        %2241 = vmatmul.mubr.bf16.gmra.mxu0 %v2120
        %v2242 = vpop.f32.mrf.mxu0
        %v2243 = vadd.f32 0.0, %v2242
        %v2244 = vpop.f32.mrf.mxu0
        %v2245 = vpop.f32.mrf.mxu0
        %v2246 = vadd.f32 0.0, %v2245
        %v2247 = vpop.f32.mrf.mxu0
        %2248 = vmatprep.mubr.bf16.mxu0 %v2123
        %2249 = vmatmul.mubr.bf16.gmra.mxu0 %v2122
        %v2250 = vpop.f32.mrf.mxu0
        %v2251 = vadd.f32 0.0, %v2250
        %v2252 = vpop.f32.mrf.mxu0
        %v2253 = vpop.f32.mrf.mxu0
        %v2254 = vadd.f32 0.0, %v2253
        %v2255 = vpop.f32.mrf.mxu0
        %2256 = vdwg.mxu0
        %v2257 = vadd.f32 %v2079, %v2243
        %v2258 = vadd.f32 %v2080, %v2246
        %v2259 = vadd.f32 %v2081, %v2251
        %v2260 = vadd.f32 %v2082, %v2254
        %s2261 = scalar_lea.vmem %s3, 128
        %v2262 = vld [vmem:[%s2261] sm:$0xff]
        %v2263 = vld [vmem:[%s2261 + $0x8] sm:$0xff]
        %v2264 = vld [vmem:[%s2261 + $0x10] sm:$0xff]
        %v2265 = vld [vmem:[%s2261 + $0x18] sm:$0xff]
        %v2266 = vld [vmem:[%s2091] sm:$0xff]
        %v2267 = vld [vmem:[%s2091 + $0x8] sm:$0xff]
        %v2268 = vld [vmem:[%s2091 + $0x10] sm:$0x11]
        %v2269 = vld [vmem:[%s2091 + $0x18] sm:$0xff]
        %v2270 = vld [vmem:[%s2091 + $0x20] sm:$0xff]
        %v2271 = vld [vmem:[%s2091 + $0x28] sm:$0x11]
        %v2272 = vld [vmem:[%s2091 + $0x30] sm:$0xff]
        %v2273 = vld [vmem:[%s2091 + $0x38] sm:$0xff]
        %v2274 = vld [vmem:[%s2091 + $0x40] sm:$0x11]
        %v2275 = vld [vmem:[%s2091 + $0x48] sm:$0xff]
        %v2276 = vld [vmem:[%s2091 + $0x50] sm:$0xff]
        %v2277 = vld [vmem:[%s2091 + $0x58] sm:$0x11]
        %v2278 = vld [vmem:[%s2091 + $0x60] sm:$0xff]
        %v2279 = vld [vmem:[%s2091 + $0x68] sm:$0xff]
        %v2280 = vld [vmem:[%s2091 + $0x70] sm:$0x11]
        %v2281 = vld [vmem:[%s2091 + $0x78] sm:$0xff]
        %v2282 = vld [vmem:[%s2091 + $0x80] sm:$0xff]
        %v2283 = vld [vmem:[%s2091 + $0x88] sm:$0x11]
        %v2284 = vld [vmem:[%s2091 + $0x90] sm:$0xff]
        %v2285 = vld [vmem:[%s2091 + $0x98] sm:$0xff]
        %v2286 = vld [vmem:[%s2091 + $0xa0] sm:$0x11]
        %v2287 = vld [vmem:[%s2091 + $0xa8] sm:$0xff]
        %v2288 = vld [vmem:[%s2091 + $0xb0] sm:$0xff]
        %v2289 = vld [vmem:[%s2091 + $0xb8] sm:$0x11]
        %v2291 = vshrl.u32 %v2266, 16
        %v2293 = vrot.slane %v2291, 4
        %v2294 = vshll.u32 %v2266, 16
        %v2296 = vrot.slane %v2294, 5
        %v2297 = vor.u32 %v2293, %v2296
        %v2298 = vrot.slane %v2297, 4
        %v2300 = vshll.u32 %v2267, 16
        %v2302 = vrot.slane %v2300, 5
        %v2303 = vsel %vm1383, %v2298, %v2302
        %v2304 = vshrl.u32 %v2267, 16
        %v2306 = vrot.slane %v2304, 4
        %v2307 = vor.u32 %v2306, %v2302
        %v2308 = vrot.slane %v2307, 4
        %v2310 = vshll.u32 %v2268, 16
        %v2312 = vrot.slane %v2310, 5
        %v2313 = vsel %vm1383, %v2308, %v2312
        %v2315 = vshrl.u32 %v2269, 16
        %v2317 = vrot.slane %v2315, 4
        %v2318 = vshll.u32 %v2269, 16
        %v2320 = vrot.slane %v2318, 5
        %v2321 = vor.u32 %v2317, %v2320
        %v2322 = vrot.slane %v2321, 4
        %v2324 = vshll.u32 %v2270, 16
        %v2326 = vrot.slane %v2324, 5
        %v2327 = vsel %vm1383, %v2322, %v2326
        %v2328 = vshrl.u32 %v2270, 16
        %v2330 = vrot.slane %v2328, 4
        %v2331 = vor.u32 %v2330, %v2326
        %v2332 = vrot.slane %v2331, 4
        %v2334 = vshll.u32 %v2271, 16
        %v2336 = vrot.slane %v2334, 5
        %v2337 = vsel %vm1383, %v2332, %v2336
        %v2339 = vshrl.u32 %v2272, 16
        %v2341 = vrot.slane %v2339, 4
        %v2342 = vshll.u32 %v2272, 16
        %v2344 = vrot.slane %v2342, 5
        %v2345 = vor.u32 %v2341, %v2344
        %v2346 = vrot.slane %v2345, 4
        %v2348 = vshll.u32 %v2273, 16
        %v2350 = vrot.slane %v2348, 5
        %v2351 = vsel %vm1383, %v2346, %v2350
        %v2352 = vshrl.u32 %v2273, 16
        %v2354 = vrot.slane %v2352, 4
        %v2355 = vor.u32 %v2354, %v2350
        %v2356 = vrot.slane %v2355, 4
        %v2358 = vshll.u32 %v2274, 16
        %v2360 = vrot.slane %v2358, 5
        %v2361 = vsel %vm1383, %v2356, %v2360
        %v2363 = vshrl.u32 %v2275, 16
        %v2365 = vrot.slane %v2363, 4
        %v2366 = vshll.u32 %v2275, 16
        %v2368 = vrot.slane %v2366, 5
        %v2369 = vor.u32 %v2365, %v2368
        %v2370 = vrot.slane %v2369, 4
        %v2372 = vshll.u32 %v2276, 16
        %v2374 = vrot.slane %v2372, 5
        %v2375 = vsel %vm1383, %v2370, %v2374
        %v2376 = vshrl.u32 %v2276, 16
        %v2378 = vrot.slane %v2376, 4
        %v2379 = vor.u32 %v2378, %v2374
        %v2380 = vrot.slane %v2379, 4
        %v2382 = vshll.u32 %v2277, 16
        %v2384 = vrot.slane %v2382, 5
        %v2385 = vsel %vm1383, %v2380, %v2384
        %v2387 = vshrl.u32 %v2278, 16
        %v2389 = vrot.slane %v2387, 4
        %v2390 = vshll.u32 %v2278, 16
        %v2392 = vrot.slane %v2390, 5
        %v2393 = vor.u32 %v2389, %v2392
        %v2394 = vrot.slane %v2393, 4
        %v2396 = vshll.u32 %v2279, 16
        %v2398 = vrot.slane %v2396, 5
        %v2399 = vsel %vm1383, %v2394, %v2398
        %v2400 = vshrl.u32 %v2279, 16
        %v2402 = vrot.slane %v2400, 4
        %v2403 = vor.u32 %v2402, %v2398
        %v2404 = vrot.slane %v2403, 4
        %v2406 = vshll.u32 %v2280, 16
        %v2408 = vrot.slane %v2406, 5
        %v2409 = vsel %vm1383, %v2404, %v2408
        %v2411 = vshrl.u32 %v2281, 16
        %v2413 = vrot.slane %v2411, 4
        %v2414 = vshll.u32 %v2281, 16
        %v2416 = vrot.slane %v2414, 5
        %v2417 = vor.u32 %v2413, %v2416
        %v2418 = vrot.slane %v2417, 4
        %v2420 = vshll.u32 %v2282, 16
        %v2422 = vrot.slane %v2420, 5
        %v2423 = vsel %vm1383, %v2418, %v2422
        %v2424 = vshrl.u32 %v2282, 16
        %v2426 = vrot.slane %v2424, 4
        %v2427 = vor.u32 %v2426, %v2422
        %v2428 = vrot.slane %v2427, 4
        %v2430 = vshll.u32 %v2283, 16
        %v2432 = vrot.slane %v2430, 5
        %v2433 = vsel %vm1383, %v2428, %v2432
        %v2435 = vshrl.u32 %v2284, 16
        %v2437 = vrot.slane %v2435, 4
        %v2438 = vshll.u32 %v2284, 16
        %v2440 = vrot.slane %v2438, 5
        %v2441 = vor.u32 %v2437, %v2440
        %v2442 = vrot.slane %v2441, 4
        %v2444 = vshll.u32 %v2285, 16
        %v2446 = vrot.slane %v2444, 5
        %v2447 = vsel %vm1383, %v2442, %v2446
        %v2448 = vshrl.u32 %v2285, 16
        %v2450 = vrot.slane %v2448, 4
        %v2451 = vor.u32 %v2450, %v2446
        %v2452 = vrot.slane %v2451, 4
        %v2454 = vshll.u32 %v2286, 16
        %v2456 = vrot.slane %v2454, 5
        %v2457 = vsel %vm1383, %v2452, %v2456
        %v2459 = vshrl.u32 %v2287, 16
        %v2461 = vrot.slane %v2459, 4
        %v2462 = vshll.u32 %v2287, 16
        %v2464 = vrot.slane %v2462, 5
        %v2465 = vor.u32 %v2461, %v2464
        %v2466 = vrot.slane %v2465, 4
        %v2468 = vshll.u32 %v2288, 16
        %v2470 = vrot.slane %v2468, 5
        %v2471 = vsel %vm1383, %v2466, %v2470
        %v2472 = vshrl.u32 %v2288, 16
        %v2474 = vrot.slane %v2472, 4
        %v2475 = vor.u32 %v2474, %v2470
        %v2476 = vrot.slane %v2475, 4
        %v2478 = vshll.u32 %v2289, 16
        %v2480 = vrot.slane %v2478, 5
        %v2481 = vsel %vm1383, %v2476, %v2480
        %v2486 = vunpack.c.l.b16 %v2262
        %v2487 = vunpack.c.h.b16 %v2262
        %v2488 = vunpack.c.l.b16 %v2263
        %v2489 = vunpack.c.h.b16 %v2263
        %v2490 = vunpack.c.l.b16 %v2264
        %v2491 = vunpack.c.h.b16 %v2264
        %v2492 = vunpack.c.l.b16 %v2265
        %v2493 = vunpack.c.h.b16 %v2265
        %v2494 = vpack.c.b16 %v2488, %v2486
        %v2495 = vpack.c.b16 %v2489, %v2487
        %v2496 = vpack.c.b16 %v2492, %v2490
        %v2497 = vpack.c.b16 %v2493, %v2491
        %v2502 = vunpack.c.l.b16 %v2303
        %v2503 = vunpack.c.h.b16 %v2303
        %v2504 = vunpack.c.l.b16 %v2313
        %v2505 = vunpack.c.h.b16 %v2313
        %v2506 = vunpack.c.l.b16 %v2327
        %v2507 = vunpack.c.h.b16 %v2327
        %v2508 = vunpack.c.l.b16 %v2337
        %v2509 = vunpack.c.h.b16 %v2337
        %v2510 = vunpack.c.l.b16 %v2351
        %v2511 = vunpack.c.h.b16 %v2351
        %v2512 = vunpack.c.l.b16 %v2361
        %v2513 = vunpack.c.h.b16 %v2361
        %v2514 = vunpack.c.l.b16 %v2375
        %v2515 = vunpack.c.h.b16 %v2375
        %v2516 = vunpack.c.l.b16 %v2385
        %v2517 = vunpack.c.h.b16 %v2385
        %v2518 = vunpack.c.l.b16 %v2399
        %v2519 = vunpack.c.h.b16 %v2399
        %v2520 = vunpack.c.l.b16 %v2409
        %v2521 = vunpack.c.h.b16 %v2409
        %v2522 = vunpack.c.l.b16 %v2423
        %v2523 = vunpack.c.h.b16 %v2423
        %v2524 = vunpack.c.l.b16 %v2433
        %v2525 = vunpack.c.h.b16 %v2433
        %v2526 = vunpack.c.l.b16 %v2447
        %v2527 = vunpack.c.h.b16 %v2447
        %v2528 = vunpack.c.l.b16 %v2457
        %v2529 = vunpack.c.h.b16 %v2457
        %v2530 = vunpack.c.l.b16 %v2471
        %v2531 = vunpack.c.h.b16 %v2471
        %v2532 = vunpack.c.l.b16 %v2481
        %v2533 = vunpack.c.h.b16 %v2481
        %v2534 = vpack.c.b16 %v2504, %v2502
        %v2535 = vpack.c.b16 %v2505, %v2503
        %v2536 = vpack.c.b16 %v2508, %v2506
        %v2537 = vpack.c.b16 %v2509, %v2507
        %v2538 = vpack.c.b16 %v2512, %v2510
        %v2539 = vpack.c.b16 %v2513, %v2511
        %v2540 = vpack.c.b16 %v2516, %v2514
        %v2541 = vpack.c.b16 %v2517, %v2515
        %v2542 = vpack.c.b16 %v2520, %v2518
        %v2543 = vpack.c.b16 %v2521, %v2519
        %v2544 = vpack.c.b16 %v2524, %v2522
        %v2545 = vpack.c.b16 %v2525, %v2523
        %v2546 = vpack.c.b16 %v2528, %v2526
        %v2547 = vpack.c.b16 %v2529, %v2527
        %v2548 = vpack.c.b16 %v2532, %v2530
        %v2549 = vpack.c.b16 %v2533, %v2531
        %2566 = vmatprep.subr.bf16.mxu0 %v2549
        %2567 = vmatpush1.bf16.xpose.msra.mxu0 %v2548
        %2568 = vmatprep.subr.bf16.mxu0 %v2547
        %2569 = vmatpush1.bf16.xpose.msra.mxu0 %v2546
        %2570 = vmatprep.subr.bf16.mxu0 %v2545
        %2571 = vmatpush1.bf16.xpose.msra.mxu0 %v2544
        %2572 = vmatprep.subr.bf16.mxu0 %v2543
        %2573 = vmatpush1.bf16.xpose.msra.mxu0 %v2542
        %2574 = vmatprep.subr.bf16.mxu0 %v2541
        %2575 = vmatpush1.bf16.xpose.msra.mxu0 %v2540
        %2576 = vmatprep.subr.bf16.mxu0 %v2539
        %2577 = vmatpush1.bf16.xpose.msra.mxu0 %v2538
        %2578 = vmatprep.subr.bf16.mxu0 %v2537
        %2579 = vmatpush1.bf16.xpose.msra.mxu0 %v2536
        %2580 = vmatprep.subr.bf16.mxu0 %v2535
        %2581 = vmatpush1.bf16.xpose.msra.mxu0 %v2534
        %2582 = vmatprep.subr.bf16.mxu0 0
        %2583 = vmatpush2.bf16.xpose.msra.mxu0 0
        %2584 = vmatprep.subr.bf16.mxu0 0
        %2585 = vmatpush2.bf16.xpose.msra.mxu0 0
        %2586 = vmatprep.subr.bf16.mxu0 0
        %2587 = vmatpush2.bf16.xpose.msra.mxu0 0
        %2588 = vmatprep.subr.bf16.mxu0 0
        %2589 = vmatpush2.bf16.xpose.msra.mxu0 0
        %2590 = vmatprep.subr.bf16.mxu0 0
        %2591 = vmatpush2.bf16.xpose.msra.mxu0 0
        %2592 = vmatprep.subr.bf16.mxu0 0
        %2593 = vmatpush2.bf16.xpose.msra.mxu0 0
        %2594 = vmatprep.subr.bf16.mxu0 0
        %2595 = vmatpush2.bf16.xpose.msra.mxu0 0
        %2596 = vmatprep.subr.bf16.mxu0 0
        %2597 = vmatpush2.bf16.xpose.msra.mxu0 0
        %2598 = vmatprep.mubr.bf16.mxu0 %v2495
        %2599 = vmatmul.mubr.bf16.gmra.mxu0 %v2494
        %v2600 = vpop.f32.mrf.mxu0
        %v2601 = vadd.f32 0.0, %v2600
        %v2602 = vpop.f32.mrf.mxu0
        %v2603 = vpop.f32.mrf.mxu0
        %v2604 = vadd.f32 0.0, %v2603
        %v2605 = vpop.f32.mrf.mxu0
        %2606 = vmatprep.mubr.bf16.mxu0 %v2497
        %2607 = vmatmul.mubr.bf16.gmra.mxu0 %v2496
        %v2608 = vpop.f32.mrf.mxu0
        %v2609 = vadd.f32 0.0, %v2608
        %v2610 = vpop.f32.mrf.mxu0
        %v2611 = vpop.f32.mrf.mxu0
        %v2612 = vadd.f32 0.0, %v2611
        %v2613 = vpop.f32.mrf.mxu0
        %2614 = vdwg.mxu0
        %v2615 = vadd.f32 %v2257, %v2601
        %v2616 = vadd.f32 %v2258, %v2604
        %v2617 = vadd.f32 %v2259, %v2609
        %v2618 = vadd.f32 %v2260, %v2612
        %s2619 = scalar_lea.vmem %s3, 160
        %v2620 = vld [vmem:[%s2619] sm:$0xff]
        %v2621 = vld [vmem:[%s2619 + $0x8] sm:$0xff]
        %v2622 = vld [vmem:[%s2619 + $0x10] sm:$0xff]
        %v2623 = vld [vmem:[%s2619 + $0x18] sm:$0xff]
        %v2624 = vld [vmem:[%s2091] sm:$0xee]
        %v2625 = vld [vmem:[%s2091 + $0x18] sm:$0xee]
        %v2626 = vld [vmem:[%s2091 + $0x30] sm:$0xee]
        %v2627 = vld [vmem:[%s2091 + $0x48] sm:$0xee]
        %v2628 = vld [vmem:[%s2091 + $0x60] sm:$0xee]
        %v2629 = vld [vmem:[%s2091 + $0x78] sm:$0xee]
        %v2630 = vld [vmem:[%s2091 + $0x90] sm:$0xee]
        %v2631 = vld [vmem:[%s2091 + $0xa8] sm:$0xee]
        %v2656 = vrot.slane %v2624, 5
        %v2657 = vrot.slane %v2656, 4
        %v2658 = vrot.slane %v2267, 5
        %v2659 = vsel %vm1889, %v2657, %v2658
        %v2660 = vrot.slane %v2658, 4
        %v2661 = vrot.slane %v2268, 5
        %v2662 = vsel %vm1889, %v2660, %v2661
        %v2663 = vrot.slane %v2625, 5
        %v2664 = vrot.slane %v2663, 4
        %v2665 = vrot.slane %v2270, 5
        %v2666 = vsel %vm1889, %v2664, %v2665
        %v2667 = vrot.slane %v2665, 4
        %v2668 = vrot.slane %v2271, 5
        %v2669 = vsel %vm1889, %v2667, %v2668
        %v2670 = vrot.slane %v2626, 5
        %v2671 = vrot.slane %v2670, 4
        %v2672 = vrot.slane %v2273, 5
        %v2673 = vsel %vm1889, %v2671, %v2672
        %v2674 = vrot.slane %v2672, 4
        %v2675 = vrot.slane %v2274, 5
        %v2676 = vsel %vm1889, %v2674, %v2675
        %v2677 = vrot.slane %v2627, 5
        %v2678 = vrot.slane %v2677, 4
        %v2679 = vrot.slane %v2276, 5
        %v2680 = vsel %vm1889, %v2678, %v2679
        %v2681 = vrot.slane %v2679, 4
        %v2682 = vrot.slane %v2277, 5
        %v2683 = vsel %vm1889, %v2681, %v2682
        %v2684 = vrot.slane %v2628, 5
        %v2685 = vrot.slane %v2684, 4
        %v2686 = vrot.slane %v2279, 5
        %v2687 = vsel %vm1889, %v2685, %v2686
        %v2688 = vrot.slane %v2686, 4
        %v2689 = vrot.slane %v2280, 5
        %v2690 = vsel %vm1889, %v2688, %v2689
        %v2691 = vrot.slane %v2629, 5
        %v2692 = vrot.slane %v2691, 4
        %v2693 = vrot.slane %v2282, 5
        %v2694 = vsel %vm1889, %v2692, %v2693
        %v2695 = vrot.slane %v2693, 4
        %v2696 = vrot.slane %v2283, 5
        %v2697 = vsel %vm1889, %v2695, %v2696
        %v2698 = vrot.slane %v2630, 5
        %v2699 = vrot.slane %v2698, 4
        %v2700 = vrot.slane %v2285, 5
        %v2701 = vsel %vm1889, %v2699, %v2700
        %v2702 = vrot.slane %v2700, 4
        %v2703 = vrot.slane %v2286, 5
        %v2704 = vsel %vm1889, %v2702, %v2703
        %v2705 = vrot.slane %v2631, 5
        %v2706 = vrot.slane %v2705, 4
        %v2707 = vrot.slane %v2288, 5
        %v2708 = vsel %vm1889, %v2706, %v2707
        %v2709 = vrot.slane %v2707, 4
        %v2710 = vrot.slane %v2289, 5
        %v2711 = vsel %vm1889, %v2709, %v2710
        %v2716 = vunpack.c.l.b16 %v2620
        %v2717 = vunpack.c.h.b16 %v2620
        %v2718 = vunpack.c.l.b16 %v2621
        %v2719 = vunpack.c.h.b16 %v2621
        %v2720 = vunpack.c.l.b16 %v2622
        %v2721 = vunpack.c.h.b16 %v2622
        %v2722 = vunpack.c.l.b16 %v2623
        %v2723 = vunpack.c.h.b16 %v2623
        %v2724 = vpack.c.b16 %v2718, %v2716
        %v2725 = vpack.c.b16 %v2719, %v2717
        %v2726 = vpack.c.b16 %v2722, %v2720
        %v2727 = vpack.c.b16 %v2723, %v2721
        %v2732 = vunpack.c.l.b16 %v2659
        %v2733 = vunpack.c.h.b16 %v2659
        %v2734 = vunpack.c.l.b16 %v2662
        %v2735 = vunpack.c.h.b16 %v2662
        %v2736 = vunpack.c.l.b16 %v2666
        %v2737 = vunpack.c.h.b16 %v2666
        %v2738 = vunpack.c.l.b16 %v2669
        %v2739 = vunpack.c.h.b16 %v2669
        %v2740 = vunpack.c.l.b16 %v2673
        %v2741 = vunpack.c.h.b16 %v2673
        %v2742 = vunpack.c.l.b16 %v2676
        %v2743 = vunpack.c.h.b16 %v2676
        %v2744 = vunpack.c.l.b16 %v2680
        %v2745 = vunpack.c.h.b16 %v2680
        %v2746 = vunpack.c.l.b16 %v2683
        %v2747 = vunpack.c.h.b16 %v2683
        %v2748 = vunpack.c.l.b16 %v2687
        %v2749 = vunpack.c.h.b16 %v2687
        %v2750 = vunpack.c.l.b16 %v2690
        %v2751 = vunpack.c.h.b16 %v2690
        %v2752 = vunpack.c.l.b16 %v2694
        %v2753 = vunpack.c.h.b16 %v2694
        %v2754 = vunpack.c.l.b16 %v2697
        %v2755 = vunpack.c.h.b16 %v2697
        %v2756 = vunpack.c.l.b16 %v2701
        %v2757 = vunpack.c.h.b16 %v2701
        %v2758 = vunpack.c.l.b16 %v2704
        %v2759 = vunpack.c.h.b16 %v2704
        %v2760 = vunpack.c.l.b16 %v2708
        %v2761 = vunpack.c.h.b16 %v2708
        %v2762 = vunpack.c.l.b16 %v2711
        %v2763 = vunpack.c.h.b16 %v2711
        %v2764 = vpack.c.b16 %v2734, %v2732
        %v2765 = vpack.c.b16 %v2735, %v2733
        %v2766 = vpack.c.b16 %v2738, %v2736
        %v2767 = vpack.c.b16 %v2739, %v2737
        %v2768 = vpack.c.b16 %v2742, %v2740
        %v2769 = vpack.c.b16 %v2743, %v2741
        %v2770 = vpack.c.b16 %v2746, %v2744
        %v2771 = vpack.c.b16 %v2747, %v2745
        %v2772 = vpack.c.b16 %v2750, %v2748
        %v2773 = vpack.c.b16 %v2751, %v2749
        %v2774 = vpack.c.b16 %v2754, %v2752
        %v2775 = vpack.c.b16 %v2755, %v2753
        %v2776 = vpack.c.b16 %v2758, %v2756
        %v2777 = vpack.c.b16 %v2759, %v2757
        %v2778 = vpack.c.b16 %v2762, %v2760
        %v2779 = vpack.c.b16 %v2763, %v2761
        %2796 = vmatprep.subr.bf16.mxu0 %v2779
        %2797 = vmatpush1.bf16.xpose.msra.mxu0 %v2778
        %2798 = vmatprep.subr.bf16.mxu0 %v2777
        %2799 = vmatpush1.bf16.xpose.msra.mxu0 %v2776
        %2800 = vmatprep.subr.bf16.mxu0 %v2775
        %2801 = vmatpush1.bf16.xpose.msra.mxu0 %v2774
        %2802 = vmatprep.subr.bf16.mxu0 %v2773
        %2803 = vmatpush1.bf16.xpose.msra.mxu0 %v2772
        %2804 = vmatprep.subr.bf16.mxu0 %v2771
        %2805 = vmatpush1.bf16.xpose.msra.mxu0 %v2770
        %2806 = vmatprep.subr.bf16.mxu0 %v2769
        %2807 = vmatpush1.bf16.xpose.msra.mxu0 %v2768
        %2808 = vmatprep.subr.bf16.mxu0 %v2767
        %2809 = vmatpush1.bf16.xpose.msra.mxu0 %v2766
        %2810 = vmatprep.subr.bf16.mxu0 %v2765
        %2811 = vmatpush1.bf16.xpose.msra.mxu0 %v2764
        %2812 = vmatprep.subr.bf16.mxu0 0
        %2813 = vmatpush2.bf16.xpose.msra.mxu0 0
        %2814 = vmatprep.subr.bf16.mxu0 0
        %2815 = vmatpush2.bf16.xpose.msra.mxu0 0
        %2816 = vmatprep.subr.bf16.mxu0 0
        %2817 = vmatpush2.bf16.xpose.msra.mxu0 0
        %2818 = vmatprep.subr.bf16.mxu0 0
        %2819 = vmatpush2.bf16.xpose.msra.mxu0 0
        %2820 = vmatprep.subr.bf16.mxu0 0
        %2821 = vmatpush2.bf16.xpose.msra.mxu0 0
        %2822 = vmatprep.subr.bf16.mxu0 0
        %2823 = vmatpush2.bf16.xpose.msra.mxu0 0
        %2824 = vmatprep.subr.bf16.mxu0 0
        %2825 = vmatpush2.bf16.xpose.msra.mxu0 0
        %2826 = vmatprep.subr.bf16.mxu0 0
        %2827 = vmatpush2.bf16.xpose.msra.mxu0 0
        %2828 = vmatprep.mubr.bf16.mxu0 %v2725
        %2829 = vmatmul.mubr.bf16.gmra.mxu0 %v2724
        %v2830 = vpop.f32.mrf.mxu0
        %v2831 = vadd.f32 0.0, %v2830
        %v2832 = vpop.f32.mrf.mxu0
        %v2833 = vpop.f32.mrf.mxu0
        %v2834 = vadd.f32 0.0, %v2833
        %v2835 = vpop.f32.mrf.mxu0
        %2836 = vmatprep.mubr.bf16.mxu0 %v2727
        %2837 = vmatmul.mubr.bf16.gmra.mxu0 %v2726
        %v2838 = vpop.f32.mrf.mxu0
        %v2839 = vadd.f32 0.0, %v2838
        %v2840 = vpop.f32.mrf.mxu0
        %v2841 = vpop.f32.mrf.mxu0
        %v2842 = vadd.f32 0.0, %v2841
        %v2843 = vpop.f32.mrf.mxu0
        %2844 = vdwg.mxu0
        %v2845 = vadd.f32 %v2615, %v2831
        %v2846 = vadd.f32 %v2616, %v2834
        %v2847 = vadd.f32 %v2617, %v2839
        %v2848 = vadd.f32 %v2618, %v2842
        %s2849 = scalar_lea.vmem %s3, 192
        %v2850 = vld [vmem:[%s2849] sm:$0xff]
        %v2851 = vld [vmem:[%s2849 + $0x8] sm:$0xff]
        %v2852 = vld [vmem:[%s2849 + $0x10] sm:$0xff]
        %v2853 = vld [vmem:[%s2849 + $0x18] sm:$0xff]
        %s2854 = sadd.s32 %s1344, 2
        %s2855 = smul.u32 %s2854, 6
        %s2856 = smul.addr %s2855, 4
        %s2857 = scalar_lea.vmem [#allocation2], %s2856
        %v2858 = vld [vmem:[%s2857] sm:$0xff]
        %v2859 = vld [vmem:[%s2857 + $0x8] sm:$0xff]
        %v2860 = vld [vmem:[%s2857 + $0x18] sm:$0xff]
        %v2861 = vld [vmem:[%s2857 + $0x20] sm:$0xff]
        %v2862 = vld [vmem:[%s2857 + $0x30] sm:$0xff]
        %v2863 = vld [vmem:[%s2857 + $0x38] sm:$0xff]
        %v2864 = vld [vmem:[%s2857 + $0x48] sm:$0xff]
        %v2865 = vld [vmem:[%s2857 + $0x50] sm:$0xff]
        %v2866 = vld [vmem:[%s2857 + $0x60] sm:$0xff]
        %v2867 = vld [vmem:[%s2857 + $0x68] sm:$0xff]
        %v2868 = vld [vmem:[%s2857 + $0x78] sm:$0xff]
        %v2869 = vld [vmem:[%s2857 + $0x80] sm:$0xff]
        %v2870 = vld [vmem:[%s2857 + $0x90] sm:$0xff]
        %v2871 = vld [vmem:[%s2857 + $0x98] sm:$0xff]
        %v2872 = vld [vmem:[%s2857 + $0xa8] sm:$0xff]
        %v2873 = vld [vmem:[%s2857 + $0xb0] sm:$0xff]
        %v2878 = vunpack.c.l.b16 %v2850
        %v2879 = vunpack.c.h.b16 %v2850
        %v2880 = vunpack.c.l.b16 %v2851
        %v2881 = vunpack.c.h.b16 %v2851
        %v2882 = vunpack.c.l.b16 %v2852
        %v2883 = vunpack.c.h.b16 %v2852
        %v2884 = vunpack.c.l.b16 %v2853
        %v2885 = vunpack.c.h.b16 %v2853
        %v2886 = vpack.c.b16 %v2880, %v2878
        %v2887 = vpack.c.b16 %v2881, %v2879
        %v2888 = vpack.c.b16 %v2884, %v2882
        %v2889 = vpack.c.b16 %v2885, %v2883
        %v2910 = vunpack.c.l.b16 %v2858
        %v2911 = vunpack.c.h.b16 %v2858
        %v2912 = vunpack.c.l.b16 %v2859
        %v2913 = vunpack.c.h.b16 %v2859
        %v2914 = vunpack.c.l.b16 %v2860
        %v2915 = vunpack.c.h.b16 %v2860
        %v2916 = vunpack.c.l.b16 %v2861
        %v2917 = vunpack.c.h.b16 %v2861
        %v2918 = vunpack.c.l.b16 %v2862
        %v2919 = vunpack.c.h.b16 %v2862
        %v2920 = vunpack.c.l.b16 %v2863
        %v2921 = vunpack.c.h.b16 %v2863
        %v2922 = vunpack.c.l.b16 %v2864
        %v2923 = vunpack.c.h.b16 %v2864
        %v2924 = vunpack.c.l.b16 %v2865
        %v2925 = vunpack.c.h.b16 %v2865
        %v2926 = vunpack.c.l.b16 %v2866
        %v2927 = vunpack.c.h.b16 %v2866
        %v2928 = vunpack.c.l.b16 %v2867
        %v2929 = vunpack.c.h.b16 %v2867
        %v2930 = vunpack.c.l.b16 %v2868
        %v2931 = vunpack.c.h.b16 %v2868
        %v2932 = vunpack.c.l.b16 %v2869
        %v2933 = vunpack.c.h.b16 %v2869
        %v2934 = vunpack.c.l.b16 %v2870
        %v2935 = vunpack.c.h.b16 %v2870
        %v2936 = vunpack.c.l.b16 %v2871
        %v2937 = vunpack.c.h.b16 %v2871
        %v2938 = vunpack.c.l.b16 %v2872
        %v2939 = vunpack.c.h.b16 %v2872
        %v2940 = vunpack.c.l.b16 %v2873
        %v2941 = vunpack.c.h.b16 %v2873
        %v2942 = vpack.c.b16 %v2912, %v2910
        %v2943 = vpack.c.b16 %v2913, %v2911
        %v2944 = vpack.c.b16 %v2916, %v2914
        %v2945 = vpack.c.b16 %v2917, %v2915
        %v2946 = vpack.c.b16 %v2920, %v2918
        %v2947 = vpack.c.b16 %v2921, %v2919
        %v2948 = vpack.c.b16 %v2924, %v2922
        %v2949 = vpack.c.b16 %v2925, %v2923
        %v2950 = vpack.c.b16 %v2928, %v2926
        %v2951 = vpack.c.b16 %v2929, %v2927
        %v2952 = vpack.c.b16 %v2932, %v2930
        %v2953 = vpack.c.b16 %v2933, %v2931
        %v2954 = vpack.c.b16 %v2936, %v2934
        %v2955 = vpack.c.b16 %v2937, %v2935
        %v2956 = vpack.c.b16 %v2940, %v2938
        %v2957 = vpack.c.b16 %v2941, %v2939
        %2974 = vmatprep.subr.bf16.mxu0 %v2957
        %2975 = vmatpush1.bf16.xpose.msra.mxu0 %v2956
        %2976 = vmatprep.subr.bf16.mxu0 %v2955
        %2977 = vmatpush1.bf16.xpose.msra.mxu0 %v2954
        %2978 = vmatprep.subr.bf16.mxu0 %v2953
        %2979 = vmatpush1.bf16.xpose.msra.mxu0 %v2952
        %2980 = vmatprep.subr.bf16.mxu0 %v2951
        %2981 = vmatpush1.bf16.xpose.msra.mxu0 %v2950
        %2982 = vmatprep.subr.bf16.mxu0 %v2949
        %2983 = vmatpush1.bf16.xpose.msra.mxu0 %v2948
        %2984 = vmatprep.subr.bf16.mxu0 %v2947
        %2985 = vmatpush1.bf16.xpose.msra.mxu0 %v2946
        %2986 = vmatprep.subr.bf16.mxu0 %v2945
        %2987 = vmatpush1.bf16.xpose.msra.mxu0 %v2944
        %2988 = vmatprep.subr.bf16.mxu0 %v2943
        %2989 = vmatpush1.bf16.xpose.msra.mxu0 %v2942
        %2990 = vmatprep.subr.bf16.mxu0 0
        %2991 = vmatpush2.bf16.xpose.msra.mxu0 0
        %2992 = vmatprep.subr.bf16.mxu0 0
        %2993 = vmatpush2.bf16.xpose.msra.mxu0 0
        %2994 = vmatprep.subr.bf16.mxu0 0
        %2995 = vmatpush2.bf16.xpose.msra.mxu0 0
        %2996 = vmatprep.subr.bf16.mxu0 0
        %2997 = vmatpush2.bf16.xpose.msra.mxu0 0
        %2998 = vmatprep.subr.bf16.mxu0 0
        %2999 = vmatpush2.bf16.xpose.msra.mxu0 0
        %3000 = vmatprep.subr.bf16.mxu0 0
        %3001 = vmatpush2.bf16.xpose.msra.mxu0 0
        %3002 = vmatprep.subr.bf16.mxu0 0
        %3003 = vmatpush2.bf16.xpose.msra.mxu0 0
        %3004 = vmatprep.subr.bf16.mxu0 0
        %3005 = vmatpush2.bf16.xpose.msra.mxu0 0
        %3006 = vmatprep.mubr.bf16.mxu0 %v2887
        %3007 = vmatmul.mubr.bf16.gmra.mxu0 %v2886
        %v3008 = vpop.f32.mrf.mxu0
        %v3009 = vadd.f32 0.0, %v3008
        %v3010 = vpop.f32.mrf.mxu0
        %v3011 = vpop.f32.mrf.mxu0
        %v3012 = vadd.f32 0.0, %v3011
        %v3013 = vpop.f32.mrf.mxu0
        %3014 = vmatprep.mubr.bf16.mxu0 %v2889
        %3015 = vmatmul.mubr.bf16.gmra.mxu0 %v2888
        %v3016 = vpop.f32.mrf.mxu0
        %v3017 = vadd.f32 0.0, %v3016
        %v3018 = vpop.f32.mrf.mxu0
        %v3019 = vpop.f32.mrf.mxu0
        %v3020 = vadd.f32 0.0, %v3019
        %v3021 = vpop.f32.mrf.mxu0
        %3022 = vdwg.mxu0
        %v3023 = vadd.f32 %v2845, %v3009
        %v3024 = vadd.f32 %v2846, %v3012
        %v3025 = vadd.f32 %v2847, %v3017
        %v3026 = vadd.f32 %v2848, %v3020
        %s3027 = scalar_lea.vmem %s3, 224
        %v3028 = vld [vmem:[%s3027] sm:$0xff]
        %v3029 = vld [vmem:[%s3027 + $0x8] sm:$0xff]
        %v3030 = vld [vmem:[%s3027 + $0x10] sm:$0xff]
        %v3031 = vld [vmem:[%s3027 + $0x18] sm:$0xff]
        %v3032 = vld [vmem:[%s2857] sm:$0xff]
        %v3033 = vld [vmem:[%s2857 + $0x8] sm:$0xff]
        %v3034 = vld [vmem:[%s2857 + $0x10] sm:$0x11]
        %v3035 = vld [vmem:[%s2857 + $0x18] sm:$0xff]
        %v3036 = vld [vmem:[%s2857 + $0x20] sm:$0xff]
        %v3037 = vld [vmem:[%s2857 + $0x28] sm:$0x11]
        %v3038 = vld [vmem:[%s2857 + $0x30] sm:$0xff]
        %v3039 = vld [vmem:[%s2857 + $0x38] sm:$0xff]
        %v3040 = vld [vmem:[%s2857 + $0x40] sm:$0x11]
        %v3041 = vld [vmem:[%s2857 + $0x48] sm:$0xff]
        %v3042 = vld [vmem:[%s2857 + $0x50] sm:$0xff]
        %v3043 = vld [vmem:[%s2857 + $0x58] sm:$0x11]
        %v3044 = vld [vmem:[%s2857 + $0x60] sm:$0xff]
        %v3045 = vld [vmem:[%s2857 + $0x68] sm:$0xff]
        %v3046 = vld [vmem:[%s2857 + $0x70] sm:$0x11]
        %v3047 = vld [vmem:[%s2857 + $0x78] sm:$0xff]
        %v3048 = vld [vmem:[%s2857 + $0x80] sm:$0xff]
        %v3049 = vld [vmem:[%s2857 + $0x88] sm:$0x11]
        %v3050 = vld [vmem:[%s2857 + $0x90] sm:$0xff]
        %v3051 = vld [vmem:[%s2857 + $0x98] sm:$0xff]
        %v3052 = vld [vmem:[%s2857 + $0xa0] sm:$0x11]
        %v3053 = vld [vmem:[%s2857 + $0xa8] sm:$0xff]
        %v3054 = vld [vmem:[%s2857 + $0xb0] sm:$0xff]
        %v3055 = vld [vmem:[%s2857 + $0xb8] sm:$0x11]
        %v3057 = vshrl.u32 %v3032, 16
        %v3059 = vrot.slane %v3057, 4
        %v3060 = vshll.u32 %v3032, 16
        %v3062 = vrot.slane %v3060, 5
        %v3063 = vor.u32 %v3059, %v3062
        %v3064 = vrot.slane %v3063, 4
        %v3066 = vshll.u32 %v3033, 16
        %v3068 = vrot.slane %v3066, 5
        %v3069 = vsel %vm1383, %v3064, %v3068
        %v3070 = vshrl.u32 %v3033, 16
        %v3072 = vrot.slane %v3070, 4
        %v3073 = vor.u32 %v3072, %v3068
        %v3074 = vrot.slane %v3073, 4
        %v3076 = vshll.u32 %v3034, 16
        %v3078 = vrot.slane %v3076, 5
        %v3079 = vsel %vm1383, %v3074, %v3078
        %v3081 = vshrl.u32 %v3035, 16
        %v3083 = vrot.slane %v3081, 4
        %v3084 = vshll.u32 %v3035, 16
        %v3086 = vrot.slane %v3084, 5
        %v3087 = vor.u32 %v3083, %v3086
        %v3088 = vrot.slane %v3087, 4
        %v3090 = vshll.u32 %v3036, 16
        %v3092 = vrot.slane %v3090, 5
        %v3093 = vsel %vm1383, %v3088, %v3092
        %v3094 = vshrl.u32 %v3036, 16
        %v3096 = vrot.slane %v3094, 4
        %v3097 = vor.u32 %v3096, %v3092
        %v3098 = vrot.slane %v3097, 4
        %v3100 = vshll.u32 %v3037, 16
        %v3102 = vrot.slane %v3100, 5
        %v3103 = vsel %vm1383, %v3098, %v3102
        %v3105 = vshrl.u32 %v3038, 16
        %v3107 = vrot.slane %v3105, 4
        %v3108 = vshll.u32 %v3038, 16
        %v3110 = vrot.slane %v3108, 5
        %v3111 = vor.u32 %v3107, %v3110
        %v3112 = vrot.slane %v3111, 4
        %v3114 = vshll.u32 %v3039, 16
        %v3116 = vrot.slane %v3114, 5
        %v3117 = vsel %vm1383, %v3112, %v3116
        %v3118 = vshrl.u32 %v3039, 16
        %v3120 = vrot.slane %v3118, 4
        %v3121 = vor.u32 %v3120, %v3116
        %v3122 = vrot.slane %v3121, 4
        %v3124 = vshll.u32 %v3040, 16
        %v3126 = vrot.slane %v3124, 5
        %v3127 = vsel %vm1383, %v3122, %v3126
        %v3129 = vshrl.u32 %v3041, 16
        %v3131 = vrot.slane %v3129, 4
        %v3132 = vshll.u32 %v3041, 16
        %v3134 = vrot.slane %v3132, 5
        %v3135 = vor.u32 %v3131, %v3134
        %v3136 = vrot.slane %v3135, 4
        %v3138 = vshll.u32 %v3042, 16
        %v3140 = vrot.slane %v3138, 5
        %v3141 = vsel %vm1383, %v3136, %v3140
        %v3142 = vshrl.u32 %v3042, 16
        %v3144 = vrot.slane %v3142, 4
        %v3145 = vor.u32 %v3144, %v3140
        %v3146 = vrot.slane %v3145, 4
        %v3148 = vshll.u32 %v3043, 16
        %v3150 = vrot.slane %v3148, 5
        %v3151 = vsel %vm1383, %v3146, %v3150
        %v3153 = vshrl.u32 %v3044, 16
        %v3155 = vrot.slane %v3153, 4
        %v3156 = vshll.u32 %v3044, 16
        %v3158 = vrot.slane %v3156, 5
        %v3159 = vor.u32 %v3155, %v3158
        %v3160 = vrot.slane %v3159, 4
        %v3162 = vshll.u32 %v3045, 16
        %v3164 = vrot.slane %v3162, 5
        %v3165 = vsel %vm1383, %v3160, %v3164
        %v3166 = vshrl.u32 %v3045, 16
        %v3168 = vrot.slane %v3166, 4
        %v3169 = vor.u32 %v3168, %v3164
        %v3170 = vrot.slane %v3169, 4
        %v3172 = vshll.u32 %v3046, 16
        %v3174 = vrot.slane %v3172, 5
        %v3175 = vsel %vm1383, %v3170, %v3174
        %v3177 = vshrl.u32 %v3047, 16
        %v3179 = vrot.slane %v3177, 4
        %v3180 = vshll.u32 %v3047, 16
        %v3182 = vrot.slane %v3180, 5
        %v3183 = vor.u32 %v3179, %v3182
        %v3184 = vrot.slane %v3183, 4
        %v3186 = vshll.u32 %v3048, 16
        %v3188 = vrot.slane %v3186, 5
        %v3189 = vsel %vm1383, %v3184, %v3188
        %v3190 = vshrl.u32 %v3048, 16
        %v3192 = vrot.slane %v3190, 4
        %v3193 = vor.u32 %v3192, %v3188
        %v3194 = vrot.slane %v3193, 4
        %v3196 = vshll.u32 %v3049, 16
        %v3198 = vrot.slane %v3196, 5
        %v3199 = vsel %vm1383, %v3194, %v3198
        %v3201 = vshrl.u32 %v3050, 16
        %v3203 = vrot.slane %v3201, 4
        %v3204 = vshll.u32 %v3050, 16
        %v3206 = vrot.slane %v3204, 5
        %v3207 = vor.u32 %v3203, %v3206
        %v3208 = vrot.slane %v3207, 4
        %v3210 = vshll.u32 %v3051, 16
        %v3212 = vrot.slane %v3210, 5
        %v3213 = vsel %vm1383, %v3208, %v3212
        %v3214 = vshrl.u32 %v3051, 16
        %v3216 = vrot.slane %v3214, 4
        %v3217 = vor.u32 %v3216, %v3212
        %v3218 = vrot.slane %v3217, 4
        %v3220 = vshll.u32 %v3052, 16
        %v3222 = vrot.slane %v3220, 5
        %v3223 = vsel %vm1383, %v3218, %v3222
        %v3225 = vshrl.u32 %v3053, 16
        %v3227 = vrot.slane %v3225, 4
        %v3228 = vshll.u32 %v3053, 16
        %v3230 = vrot.slane %v3228, 5
        %v3231 = vor.u32 %v3227, %v3230
        %v3232 = vrot.slane %v3231, 4
        %v3234 = vshll.u32 %v3054, 16
        %v3236 = vrot.slane %v3234, 5
        %v3237 = vsel %vm1383, %v3232, %v3236
        %v3238 = vshrl.u32 %v3054, 16
        %v3240 = vrot.slane %v3238, 4
        %v3241 = vor.u32 %v3240, %v3236
        %v3242 = vrot.slane %v3241, 4
        %v3244 = vshll.u32 %v3055, 16
        %v3246 = vrot.slane %v3244, 5
        %v3247 = vsel %vm1383, %v3242, %v3246
        %v3252 = vunpack.c.l.b16 %v3028
        %v3253 = vunpack.c.h.b16 %v3028
        %v3254 = vunpack.c.l.b16 %v3029
        %v3255 = vunpack.c.h.b16 %v3029
        %v3256 = vunpack.c.l.b16 %v3030
        %v3257 = vunpack.c.h.b16 %v3030
        %v3258 = vunpack.c.l.b16 %v3031
        %v3259 = vunpack.c.h.b16 %v3031
        %v3260 = vpack.c.b16 %v3254, %v3252
        %v3261 = vpack.c.b16 %v3255, %v3253
        %v3262 = vpack.c.b16 %v3258, %v3256
        %v3263 = vpack.c.b16 %v3259, %v3257
        %v3268 = vunpack.c.l.b16 %v3069
        %v3269 = vunpack.c.h.b16 %v3069
        %v3270 = vunpack.c.l.b16 %v3079
        %v3271 = vunpack.c.h.b16 %v3079
        %v3272 = vunpack.c.l.b16 %v3093
        %v3273 = vunpack.c.h.b16 %v3093
        %v3274 = vunpack.c.l.b16 %v3103
        %v3275 = vunpack.c.h.b16 %v3103
        %v3276 = vunpack.c.l.b16 %v3117
        %v3277 = vunpack.c.h.b16 %v3117
        %v3278 = vunpack.c.l.b16 %v3127
        %v3279 = vunpack.c.h.b16 %v3127
        %v3280 = vunpack.c.l.b16 %v3141
        %v3281 = vunpack.c.h.b16 %v3141
        %v3282 = vunpack.c.l.b16 %v3151
        %v3283 = vunpack.c.h.b16 %v3151
        %v3284 = vunpack.c.l.b16 %v3165
        %v3285 = vunpack.c.h.b16 %v3165
        %v3286 = vunpack.c.l.b16 %v3175
        %v3287 = vunpack.c.h.b16 %v3175
        %v3288 = vunpack.c.l.b16 %v3189
        %v3289 = vunpack.c.h.b16 %v3189
        %v3290 = vunpack.c.l.b16 %v3199
        %v3291 = vunpack.c.h.b16 %v3199
        %v3292 = vunpack.c.l.b16 %v3213
        %v3293 = vunpack.c.h.b16 %v3213
        %v3294 = vunpack.c.l.b16 %v3223
        %v3295 = vunpack.c.h.b16 %v3223
        %v3296 = vunpack.c.l.b16 %v3237
        %v3297 = vunpack.c.h.b16 %v3237
        %v3298 = vunpack.c.l.b16 %v3247
        %v3299 = vunpack.c.h.b16 %v3247
        %v3300 = vpack.c.b16 %v3270, %v3268
        %v3301 = vpack.c.b16 %v3271, %v3269
        %v3302 = vpack.c.b16 %v3274, %v3272
        %v3303 = vpack.c.b16 %v3275, %v3273
        %v3304 = vpack.c.b16 %v3278, %v3276
        %v3305 = vpack.c.b16 %v3279, %v3277
        %v3306 = vpack.c.b16 %v3282, %v3280
        %v3307 = vpack.c.b16 %v3283, %v3281
        %v3308 = vpack.c.b16 %v3286, %v3284
        %v3309 = vpack.c.b16 %v3287, %v3285
        %v3310 = vpack.c.b16 %v3290, %v3288
        %v3311 = vpack.c.b16 %v3291, %v3289
        %v3312 = vpack.c.b16 %v3294, %v3292
        %v3313 = vpack.c.b16 %v3295, %v3293
        %v3314 = vpack.c.b16 %v3298, %v3296
        %v3315 = vpack.c.b16 %v3299, %v3297
        %3332 = vmatprep.subr.bf16.mxu0 %v3315
        %3333 = vmatpush1.bf16.xpose.msra.mxu0 %v3314
        %3334 = vmatprep.subr.bf16.mxu0 %v3313
        %3335 = vmatpush1.bf16.xpose.msra.mxu0 %v3312
        %3336 = vmatprep.subr.bf16.mxu0 %v3311
        %3337 = vmatpush1.bf16.xpose.msra.mxu0 %v3310
        %3338 = vmatprep.subr.bf16.mxu0 %v3309
        %3339 = vmatpush1.bf16.xpose.msra.mxu0 %v3308
        %3340 = vmatprep.subr.bf16.mxu0 %v3307
        %3341 = vmatpush1.bf16.xpose.msra.mxu0 %v3306
        %3342 = vmatprep.subr.bf16.mxu0 %v3305
        %3343 = vmatpush1.bf16.xpose.msra.mxu0 %v3304
        %3344 = vmatprep.subr.bf16.mxu0 %v3303
        %3345 = vmatpush1.bf16.xpose.msra.mxu0 %v3302
        %3346 = vmatprep.subr.bf16.mxu0 %v3301
        %3347 = vmatpush1.bf16.xpose.msra.mxu0 %v3300
        %3348 = vmatprep.subr.bf16.mxu0 0
        %3349 = vmatpush2.bf16.xpose.msra.mxu0 0
        %3350 = vmatprep.subr.bf16.mxu0 0
        %3351 = vmatpush2.bf16.xpose.msra.mxu0 0
        %3352 = vmatprep.subr.bf16.mxu0 0
        %3353 = vmatpush2.bf16.xpose.msra.mxu0 0
        %3354 = vmatprep.subr.bf16.mxu0 0
        %3355 = vmatpush2.bf16.xpose.msra.mxu0 0
        %3356 = vmatprep.subr.bf16.mxu0 0
        %3357 = vmatpush2.bf16.xpose.msra.mxu0 0
        %3358 = vmatprep.subr.bf16.mxu0 0
        %3359 = vmatpush2.bf16.xpose.msra.mxu0 0
        %3360 = vmatprep.subr.bf16.mxu0 0
        %3361 = vmatpush2.bf16.xpose.msra.mxu0 0
        %3362 = vmatprep.subr.bf16.mxu0 0
        %3363 = vmatpush2.bf16.xpose.msra.mxu0 0
        %3364 = vmatprep.mubr.bf16.mxu0 %v3261
        %3365 = vmatmul.mubr.bf16.gmra.mxu0 %v3260
        %v3366 = vpop.f32.mrf.mxu0
        %v3367 = vadd.f32 0.0, %v3366
        %v3368 = vpop.f32.mrf.mxu0
        %v3369 = vpop.f32.mrf.mxu0
        %v3370 = vadd.f32 0.0, %v3369
        %v3371 = vpop.f32.mrf.mxu0
        %3372 = vmatprep.mubr.bf16.mxu0 %v3263
        %3373 = vmatmul.mubr.bf16.gmra.mxu0 %v3262
        %v3374 = vpop.f32.mrf.mxu0
        %v3375 = vadd.f32 0.0, %v3374
        %v3376 = vpop.f32.mrf.mxu0
        %v3377 = vpop.f32.mrf.mxu0
        %v3378 = vadd.f32 0.0, %v3377
        %v3379 = vpop.f32.mrf.mxu0
        %3380 = vdwg.mxu0
        %v3381 = vadd.f32 %v3023, %v3367
        %v3382 = vadd.f32 %v3024, %v3370
        %v3383 = vadd.f32 %v3025, %v3375
        %v3384 = vadd.f32 %v3026, %v3378
        %s3385 = scalar_lea.vmem %s3, 256
        %v3386 = vld [vmem:[%s3385] sm:$0xff]
        %v3387 = vld [vmem:[%s3385 + $0x8] sm:$0xff]
        %v3388 = vld [vmem:[%s3385 + $0x10] sm:$0xff]
        %v3389 = vld [vmem:[%s3385 + $0x18] sm:$0xff]
        %v3390 = vld [vmem:[%s2857] sm:$0xee]
        %v3391 = vld [vmem:[%s2857 + $0x18] sm:$0xee]
        %v3392 = vld [vmem:[%s2857 + $0x30] sm:$0xee]
        %v3393 = vld [vmem:[%s2857 + $0x48] sm:$0xee]
        %v3394 = vld [vmem:[%s2857 + $0x60] sm:$0xee]
        %v3395 = vld [vmem:[%s2857 + $0x78] sm:$0xee]
        %v3396 = vld [vmem:[%s2857 + $0x90] sm:$0xee]
        %v3397 = vld [vmem:[%s2857 + $0xa8] sm:$0xee]
        %v3422 = vrot.slane %v3390, 5
        %v3423 = vrot.slane %v3422, 4
        %v3424 = vrot.slane %v3033, 5
        %v3425 = vsel %vm1889, %v3423, %v3424
        %v3426 = vrot.slane %v3424, 4
        %v3427 = vrot.slane %v3034, 5
        %v3428 = vsel %vm1889, %v3426, %v3427
        %v3429 = vrot.slane %v3391, 5
        %v3430 = vrot.slane %v3429, 4
        %v3431 = vrot.slane %v3036, 5
        %v3432 = vsel %vm1889, %v3430, %v3431
        %v3433 = vrot.slane %v3431, 4
        %v3434 = vrot.slane %v3037, 5
        %v3435 = vsel %vm1889, %v3433, %v3434
        %v3436 = vrot.slane %v3392, 5
        %v3437 = vrot.slane %v3436, 4
        %v3438 = vrot.slane %v3039, 5
        %v3439 = vsel %vm1889, %v3437, %v3438
        %v3440 = vrot.slane %v3438, 4
        %v3441 = vrot.slane %v3040, 5
        %v3442 = vsel %vm1889, %v3440, %v3441
        %v3443 = vrot.slane %v3393, 5
        %v3444 = vrot.slane %v3443, 4
        %v3445 = vrot.slane %v3042, 5
        %v3446 = vsel %vm1889, %v3444, %v3445
        %v3447 = vrot.slane %v3445, 4
        %v3448 = vrot.slane %v3043, 5
        %v3449 = vsel %vm1889, %v3447, %v3448
        %v3450 = vrot.slane %v3394, 5
        %v3451 = vrot.slane %v3450, 4
        %v3452 = vrot.slane %v3045, 5
        %v3453 = vsel %vm1889, %v3451, %v3452
        %v3454 = vrot.slane %v3452, 4
        %v3455 = vrot.slane %v3046, 5
        %v3456 = vsel %vm1889, %v3454, %v3455
        %v3457 = vrot.slane %v3395, 5
        %v3458 = vrot.slane %v3457, 4
        %v3459 = vrot.slane %v3048, 5
        %v3460 = vsel %vm1889, %v3458, %v3459
        %v3461 = vrot.slane %v3459, 4
        %v3462 = vrot.slane %v3049, 5
        %v3463 = vsel %vm1889, %v3461, %v3462
        %v3464 = vrot.slane %v3396, 5
        %v3465 = vrot.slane %v3464, 4
        %v3466 = vrot.slane %v3051, 5
        %v3467 = vsel %vm1889, %v3465, %v3466
        %v3468 = vrot.slane %v3466, 4
        %v3469 = vrot.slane %v3052, 5
        %v3470 = vsel %vm1889, %v3468, %v3469
        %v3471 = vrot.slane %v3397, 5
        %v3472 = vrot.slane %v3471, 4
        %v3473 = vrot.slane %v3054, 5
        %v3474 = vsel %vm1889, %v3472, %v3473
        %v3475 = vrot.slane %v3473, 4
        %v3476 = vrot.slane %v3055, 5
        %v3477 = vsel %vm1889, %v3475, %v3476
        %v3482 = vunpack.c.l.b16 %v3386
        %v3483 = vunpack.c.h.b16 %v3386
        %v3484 = vunpack.c.l.b16 %v3387
        %v3485 = vunpack.c.h.b16 %v3387
        %v3486 = vunpack.c.l.b16 %v3388
        %v3487 = vunpack.c.h.b16 %v3388
        %v3488 = vunpack.c.l.b16 %v3389
        %v3489 = vunpack.c.h.b16 %v3389
        %v3490 = vpack.c.b16 %v3484, %v3482
        %v3491 = vpack.c.b16 %v3485, %v3483
        %v3492 = vpack.c.b16 %v3488, %v3486
        %v3493 = vpack.c.b16 %v3489, %v3487
        %v3498 = vunpack.c.l.b16 %v3425
        %v3499 = vunpack.c.h.b16 %v3425
        %v3500 = vunpack.c.l.b16 %v3428
        %v3501 = vunpack.c.h.b16 %v3428
        %v3502 = vunpack.c.l.b16 %v3432
        %v3503 = vunpack.c.h.b16 %v3432
        %v3504 = vunpack.c.l.b16 %v3435
        %v3505 = vunpack.c.h.b16 %v3435
        %v3506 = vunpack.c.l.b16 %v3439
        %v3507 = vunpack.c.h.b16 %v3439
        %v3508 = vunpack.c.l.b16 %v3442
        %v3509 = vunpack.c.h.b16 %v3442
        %v3510 = vunpack.c.l.b16 %v3446
        %v3511 = vunpack.c.h.b16 %v3446
        %v3512 = vunpack.c.l.b16 %v3449
        %v3513 = vunpack.c.h.b16 %v3449
        %v3514 = vunpack.c.l.b16 %v3453
        %v3515 = vunpack.c.h.b16 %v3453
        %v3516 = vunpack.c.l.b16 %v3456
        %v3517 = vunpack.c.h.b16 %v3456
        %v3518 = vunpack.c.l.b16 %v3460
        %v3519 = vunpack.c.h.b16 %v3460
        %v3520 = vunpack.c.l.b16 %v3463
        %v3521 = vunpack.c.h.b16 %v3463
        %v3522 = vunpack.c.l.b16 %v3467
        %v3523 = vunpack.c.h.b16 %v3467
        %v3524 = vunpack.c.l.b16 %v3470
        %v3525 = vunpack.c.h.b16 %v3470
        %v3526 = vunpack.c.l.b16 %v3474
        %v3527 = vunpack.c.h.b16 %v3474
        %v3528 = vunpack.c.l.b16 %v3477
        %v3529 = vunpack.c.h.b16 %v3477
        %v3530 = vpack.c.b16 %v3500, %v3498
        %v3531 = vpack.c.b16 %v3501, %v3499
        %v3532 = vpack.c.b16 %v3504, %v3502
        %v3533 = vpack.c.b16 %v3505, %v3503
        %v3534 = vpack.c.b16 %v3508, %v3506
        %v3535 = vpack.c.b16 %v3509, %v3507
        %v3536 = vpack.c.b16 %v3512, %v3510
        %v3537 = vpack.c.b16 %v3513, %v3511
        %v3538 = vpack.c.b16 %v3516, %v3514
        %v3539 = vpack.c.b16 %v3517, %v3515
        %v3540 = vpack.c.b16 %v3520, %v3518
        %v3541 = vpack.c.b16 %v3521, %v3519
        %v3542 = vpack.c.b16 %v3524, %v3522
        %v3543 = vpack.c.b16 %v3525, %v3523
        %v3544 = vpack.c.b16 %v3528, %v3526
        %v3545 = vpack.c.b16 %v3529, %v3527
        %3562 = vmatprep.subr.bf16.mxu0 %v3545
        %3563 = vmatpush1.bf16.xpose.msra.mxu0 %v3544
        %3564 = vmatprep.subr.bf16.mxu0 %v3543
        %3565 = vmatpush1.bf16.xpose.msra.mxu0 %v3542
        %3566 = vmatprep.subr.bf16.mxu0 %v3541
        %3567 = vmatpush1.bf16.xpose.msra.mxu0 %v3540
        %3568 = vmatprep.subr.bf16.mxu0 %v3539
        %3569 = vmatpush1.bf16.xpose.msra.mxu0 %v3538
        %3570 = vmatprep.subr.bf16.mxu0 %v3537
        %3571 = vmatpush1.bf16.xpose.msra.mxu0 %v3536
        %3572 = vmatprep.subr.bf16.mxu0 %v3535
        %3573 = vmatpush1.bf16.xpose.msra.mxu0 %v3534
        %3574 = vmatprep.subr.bf16.mxu0 %v3533
        %3575 = vmatpush1.bf16.xpose.msra.mxu0 %v3532
        %3576 = vmatprep.subr.bf16.mxu0 %v3531
        %3577 = vmatpush1.bf16.xpose.msra.mxu0 %v3530
        %3578 = vmatprep.subr.bf16.mxu0 0
        %3579 = vmatpush2.bf16.xpose.msra.mxu0 0
        %3580 = vmatprep.subr.bf16.mxu0 0
        %3581 = vmatpush2.bf16.xpose.msra.mxu0 0
        %3582 = vmatprep.subr.bf16.mxu0 0
        %3583 = vmatpush2.bf16.xpose.msra.mxu0 0
        %3584 = vmatprep.subr.bf16.mxu0 0
        %3585 = vmatpush2.bf16.xpose.msra.mxu0 0
        %3586 = vmatprep.subr.bf16.mxu0 0
        %3587 = vmatpush2.bf16.xpose.msra.mxu0 0
        %3588 = vmatprep.subr.bf16.mxu0 0
        %3589 = vmatpush2.bf16.xpose.msra.mxu0 0
        %3590 = vmatprep.subr.bf16.mxu0 0
        %3591 = vmatpush2.bf16.xpose.msra.mxu0 0
        %3592 = vmatprep.subr.bf16.mxu0 0
        %3593 = vmatpush2.bf16.xpose.msra.mxu0 0
        %3594 = vmatprep.mubr.bf16.mxu0 %v3491
        %3595 = vmatmul.mubr.bf16.gmra.mxu0 %v3490
        %v3596 = vpop.f32.mrf.mxu0
        %v3597 = vadd.f32 0.0, %v3596
        %v3598 = vpop.f32.mrf.mxu0
        %v3599 = vpop.f32.mrf.mxu0
        %v3600 = vadd.f32 0.0, %v3599
        %v3601 = vpop.f32.mrf.mxu0
        %3602 = vmatprep.mubr.bf16.mxu0 %v3493
        %3603 = vmatmul.mubr.bf16.gmra.mxu0 %v3492
        %v3604 = vpop.f32.mrf.mxu0
        %v3605 = vadd.f32 0.0, %v3604
        %v3606 = vpop.f32.mrf.mxu0
        %v3607 = vpop.f32.mrf.mxu0
        %v3608 = vadd.f32 0.0, %v3607
        %v3609 = vpop.f32.mrf.mxu0
        %3610 = vdwg.mxu0
        %v3611 = vadd.f32 %v3381, %v3597
        %v3612 = vadd.f32 %v3382, %v3600
        %v3613 = vadd.f32 %v3383, %v3605
        %v3614 = vadd.f32 %v3384, %v3608
        %v3615 = vld [vmem:[%s4] sm:$0xff]
        %v3616 = vld [vmem:[%s4 + $0x8] sm:$0xff]
        %v3617 = vld [vmem:[%s4 + $0x10] sm:$0xff]
        %v3618 = vld [vmem:[%s4 + $0x18] sm:$0xff]
        %3620 = vset.pattern.permute.xlu0 0
        %3621 = vperm.xlu0 %3620, %v3615
        %v3622 = vpop.permute.xlu0 %3621
        %3625 = vset.pattern.permute.xlu0 0
        %3626 = vperm.xlu0 %3625, %v3616
        %v3627 = vpop.permute.xlu0 %3626
        %3630 = vset.pattern.permute.xlu0 0
        %3631 = vperm.xlu0 %3630, %v3617
        %v3632 = vpop.permute.xlu0 %3631
        %3635 = vset.pattern.permute.xlu0 0
        %3636 = vperm.xlu0 %3635, %v3618
        %v3637 = vpop.permute.xlu0 %3636
        %v3639 = vadd.f32 %v3611, %v3622
        %v3640 = vadd.f32 %v3612, %v3627
        %v3641 = vadd.f32 %v3613, %v3632
        %v3642 = vadd.f32 %v3614, %v3637
        // Predicated region
        $region45: #{conv_vencoder_forward.6} parent=39 // pred_check
          %p3643 = pneg %p313
        $region46: #{conv_vencoder_forward.6} parent=39 // pred_check_branch
          %3645 = sbr.rel (%p3643) target = $region48
        $region47: #{conv_vencoder_forward.6} parent=39 // pred_region
          %vm3646 = vcmask 7168
          %3647 = vst.msk [vmem:[%s306] sm:$0xff] %vm3646, 0.0
          %3648 = vst.msk [vmem:[%s306 + $0x8] sm:$0xff] %vm3646, 0.0
          %3649 = vst.msk [vmem:[%s306 + $0x10] sm:$0xff] %vm3646, 0.0
          %3650 = vst.msk [vmem:[%s306 + $0x18] sm:$0xff] %vm3646, 0.0
          %3651 = vst.msk [vmem:[%s311] sm:$0xff] %vm3646, 0.0
          %3652 = vst.msk [vmem:[%s311 + $0x8] sm:$0xff] %vm3646, 0.0
          %3653 = vst.msk [vmem:[%s311 + $0x10] sm:$0xff] %vm3646, 0.0
          %3654 = vst.msk [vmem:[%s311 + $0x18] sm:$0xff] %vm3646, 0.0
        $region48: #{conv_vencoder_forward.6} parent=39 // pred_fallthru
          _
        %v3655 = vld [vmem:[%s306] sm:$0xff]
        %v3656 = vld [vmem:[%s306 + $0x8] sm:$0xff]
        %v3657 = vld [vmem:[%s306 + $0x10] sm:$0xff]
        %v3658 = vld [vmem:[%s306 + $0x18] sm:$0xff]
        %3659 = vadd.xlane.f32.xlu0 %v3639
        %v3660 = vpop.xlane.xlu0 %3659
        %3661 = vadd.xlane.f32.xlu0 %v3640
        %v3662 = vpop.xlane.xlu0 %3661
        %3663 = vadd.xlane.f32.xlu0 %v3641
        %v3664 = vpop.xlane.xlu0 %3663
        %3665 = vadd.xlane.f32.xlu0 %v3642
        %v3666 = vpop.xlane.xlu0 %3665
        %v3667 = vadd.f32 %v3655, %v3660
        %v3668 = vadd.f32 %v3656, %v3662
        %v3669 = vadd.f32 %v3657, %v3664
        %v3670 = vadd.f32 %v3658, %v3666
        %vm3671 = vcmask 7168
        %3672 = vst.msk [vmem:[%s306] sm:$0xff] %vm3671, %v3667
        %3673 = vst.msk [vmem:[%s306 + $0x8] sm:$0xff] %vm3671, %v3668
        %3674 = vst.msk [vmem:[%s306 + $0x10] sm:$0xff] %vm3671, %v3669
        %3675 = vst.msk [vmem:[%s306 + $0x18] sm:$0xff] %vm3671, %v3670
        %v3676 = vld [vmem:[%s311] sm:$0xff]
        %v3677 = vld [vmem:[%s311 + $0x8] sm:$0xff]
        %v3678 = vld [vmem:[%s311 + $0x10] sm:$0xff]
        %v3679 = vld [vmem:[%s311 + $0x18] sm:$0xff]
        %v3680 = vmul.f32 %v3639, %v3639
        %v3681 = vmul.f32 %v3640, %v3640
        %v3682 = vmul.f32 %v3641, %v3641
        %v3683 = vmul.f32 %v3642, %v3642
        %3684 = vadd.xlane.f32.xlu0 %v3680
        %v3685 = vpop.xlane.xlu0 %3684
        %3686 = vadd.xlane.f32.xlu0 %v3681
        %v3687 = vpop.xlane.xlu0 %3686
        %3688 = vadd.xlane.f32.xlu0 %v3682
        %v3689 = vpop.xlane.xlu0 %3688
        %3690 = vadd.xlane.f32.xlu0 %v3683
        %v3691 = vpop.xlane.xlu0 %3690
        %v3692 = vadd.f32 %v3676, %v3685
        %v3693 = vadd.f32 %v3677, %v3687
        %v3694 = vadd.f32 %v3678, %v3689
        %v3695 = vadd.f32 %v3679, %v3691
        %3696 = vst.msk [vmem:[%s311] sm:$0xff] %vm3671, %v3692
        %3697 = vst.msk [vmem:[%s311 + $0x8] sm:$0xff] %vm3671, %v3693
        %3698 = vst.msk [vmem:[%s311 + $0x10] sm:$0xff] %vm3671, %v3694
        %3699 = vst.msk [vmem:[%s311 + $0x18] sm:$0xff] %vm3671, %v3695
        %v3700 = vpack.c.bf16 %v3640, %v3639
        %v3701 = vpack.c.bf16 %v3642, %v3641
        %v3704 = vunpack.c.l.b16 %v3700
        %v3705 = vunpack.c.h.b16 %v3700
        %v3706 = vunpack.c.l.b16 %v3701
        %v3707 = vunpack.c.h.b16 %v3701
        %v3708 = vpack.c.b16 %v3704, %v3704
        %v3709 = vpack.c.b16 %v3705, %v3705
        %v3710 = vpack.c.b16 %v3706, %v3706
        %v3711 = vpack.c.b16 %v3707, %v3707
        %3716 = vst [vmem:[%s282] sm:$0xf] %v3708
        %3717 = vst [vmem:[%s282 + $0x4] sm:$0xf] %v3709
        %3718 = vst [vmem:[%s282 + $0x8] sm:$0xf] %v3710
        %3719 = vst [vmem:[%s282 + $0xc] sm:$0xf] %v3711
        %s3720 = sand.u32 %s151, 1
        %s3721 = sand.u32 %s151, 1
        %s3722 = smul.addr %s3721, 16
        %s3723 = scalar_lea.vmem [#allocation3], %s3722
        %p3724 = scmp.lt.s32.totalorder %s23, 1
        %s3725 = scalar_select %p3724, %s23, 1
        %s3726 = smul.addr %s3725, 4
        %s3727 = smul.addr %s3726, 8
        %s3728 = scalar_lea.vmem %s6, %s3727
        %p3729 = scmp.lt.s32.totalorder %s23, 1
        %s3730 = scalar_select %p3729, %s23, 1
        %s3731 = smul.addr %s3730, 4
        %s3732 = smul.addr %s3731, 8
        %s3733 = scalar_lea.vmem %s7, %s3732
        // Predicated region
        $region49: #{conv_vencoder_forward.6} parent=39 // pred_check
          %p3734 = pneg %p161
        $region50: #{conv_vencoder_forward.6} parent=39 // pred_check_branch
          %3736 = sbr.rel (%p3734) target = $region52
        $region51: #{conv_vencoder_forward.6} parent=39 // pred_region
          %s3737 = smul.addr %s23, 8
          %s3738 = sadd.s32 %s24, %s3737
          %s3739 = smul.addr %s3738, 4
          %s3740 = scalar_lea.vmem %s5, %s3739
          // Predicated region
          $region53: #{conv_vencoder_forward.6} parent=51 // pred_check
            _
          $region54: #{conv_vencoder_forward.6} parent=51 // pred_check_branch
            %3742 = sbr.rel (0) target = $region56
          $region55: #{conv_vencoder_forward.6} parent=51 // pred_region
            // Predicated region
            $region57: #{conv_vencoder_forward.6} parent=55 // pred_check
              _
            $region58: #{conv_vencoder_forward.6} parent=55 // pred_check_branch
              %3744 = sbr.rel target = $region60
            $region59: #{conv_vencoder_forward.6} parent=55 // pred_region
              // Predicated region
              $region72: #{conv_vencoder_forward.6} parent=59 // pred_check
                _
              $region73: #{conv_vencoder_forward.6} parent=59 // pred_check_branch
                %3766 = sbr.rel (0) target = $region75
              $region74: #{conv_vencoder_forward.6} parent=59 // pred_region
                loop: start=0, step=1, limit=1
                $region76: #{conv_vencoder_forward.6} parent=74 // loop_pre_header
                  _
                $region77: #{conv_vencoder_forward.6} parent=74 // loop_header
                  %s3768 = sphi 0, %s3772
                  %p3769 = scmp.ge.s32.totalorder %s3768, 1
                  %s3773 = sphi %s3723, %s3723
                  %s3774 = sphi %s3740, %s3740
                $region78: #{conv_vencoder_forward.6} parent=74 // loop_header_branch
                  %3771 = sbr.rel (%p3769) target = $region82
                $region79: #{conv_vencoder_forward.6} parent=74 // loop_body
                  _
                $region80: #{conv_vencoder_forward.6} parent=74 // loop_footer
                  %s3772 = sadd.s32 1, %s3768
                $region81: #{conv_vencoder_forward.6} parent=74 // loop_footer_branch
                  %3767 = sbr.rel target = $region77
                $region82: #{conv_vencoder_forward.6} parent=74 // loop_exit
                  _
                %s3776 = ssub.s32 16, 1
                loop: start=0, step=1, limit=1
                $region83: #{conv_vencoder_forward.6} parent=74 // loop_pre_header
                  _
                $region84: #{conv_vencoder_forward.6} parent=74 // loop_header
                  %s3778 = sphi 0, %s3782
                  %p3779 = scmp.ge.s32.totalorder %s3778, 1
                  %s3783 = sphi %s3723, %s3723
                  %s3784 = sphi %s3740, %s3740
                $region85: #{conv_vencoder_forward.6} parent=74 // loop_header_branch
                  %3781 = sbr.rel (%p3779) target = $region89
                $region86: #{conv_vencoder_forward.6} parent=74 // loop_body
                  %v3785 = vld [vmem:[%s3783] sm:%s3776]
                  %3786 = vst [vmem:[%s3784] sm:%s3776] %v3785
                  %v3787 = vld [vmem:[%s3783 + $0x4] sm:%s3776]
                  %3788 = vst [vmem:[%s3784 + $0x8] sm:%s3776] %v3787
                  %v3789 = vld [vmem:[%s3783 + $0x8] sm:%s3776]
                  %3790 = vst [vmem:[%s3784 + $0x10] sm:%s3776] %v3789
                  %v3791 = vld [vmem:[%s3783 + $0xc] sm:%s3776]
                  %3792 = vst [vmem:[%s3784 + $0x18] sm:%s3776] %v3791
                $region87: #{conv_vencoder_forward.6} parent=74 // loop_footer
                  %s3782 = sadd.s32 1, %s3778
                $region88: #{conv_vencoder_forward.6} parent=74 // loop_footer_branch
                  %3777 = sbr.rel target = $region84
                $region89: #{conv_vencoder_forward.6} parent=74 // loop_exit
                  _
              $region75: #{conv_vencoder_forward.6} parent=59 // pred_fallthru
                _
            $region60: #{conv_vencoder_forward.6} parent=55 // pred_fallthru
              _
            // Predicated region
            $region61: #{conv_vencoder_forward.6} parent=55 // pred_check
              _
            $region62: #{conv_vencoder_forward.6} parent=55 // pred_check_branch
              %3746 = sbr.rel (0) target = $region64
            $region63: #{conv_vencoder_forward.6} parent=55 // pred_region
              %s3748 = ssub.s32 16, 1
              loop: start=0, step=1, limit=1
              $region65: #{conv_vencoder_forward.6} parent=63 // loop_pre_header
                _
              $region66: #{conv_vencoder_forward.6} parent=63 // loop_header
                %s3750 = sphi 0, %s3754
                %p3751 = scmp.ge.s32.totalorder %s3750, 1
                %s3755 = sphi %s3723, %s3723
                %s3756 = sphi %s3740, %s3740
              $region67: #{conv_vencoder_forward.6} parent=63 // loop_header_branch
                %3753 = sbr.rel (%p3751) target = $region71
              $region68: #{conv_vencoder_forward.6} parent=63 // loop_body
                %v3757 = vld [vmem:[%s3755] sm:%s3748]
                %3758 = vst [vmem:[%s3756] sm:%s3748] %v3757
                %v3759 = vld [vmem:[%s3755 + $0x4] sm:%s3748]
                %3760 = vst [vmem:[%s3756 + $0x8] sm:%s3748] %v3759
                %v3761 = vld [vmem:[%s3755 + $0x8] sm:%s3748]
                %3762 = vst [vmem:[%s3756 + $0x10] sm:%s3748] %v3761
                %v3763 = vld [vmem:[%s3755 + $0xc] sm:%s3748]
                %3764 = vst [vmem:[%s3756 + $0x18] sm:%s3748] %v3763
              $region69: #{conv_vencoder_forward.6} parent=63 // loop_footer
                %s3754 = sadd.s32 1, %s3750
              $region70: #{conv_vencoder_forward.6} parent=63 // loop_footer_branch
                %3749 = sbr.rel target = $region66
              $region71: #{conv_vencoder_forward.6} parent=63 // loop_exit
                _
            $region64: #{conv_vencoder_forward.6} parent=55 // pred_fallthru
              _
          $region56: #{conv_vencoder_forward.6} parent=51 // pred_fallthru
            _
          %3793 = vnop
        $region52: #{conv_vencoder_forward.6} parent=39 // pred_fallthru
          _
        // Predicated region
        $region90: #{conv_vencoder_forward.6} parent=39 // pred_check
          %p3794 = pneg %p187
        $region91: #{conv_vencoder_forward.6} parent=39 // pred_check_branch
          %3796 = sbr.rel (%p3794) target = $region93
        $region92: #{conv_vencoder_forward.6} parent=39 // pred_region
          _
        $region93: #{conv_vencoder_forward.6} parent=39 // pred_fallthru
          _
        // Predicated region
        $region94: #{conv_vencoder_forward.6} parent=39 // pred_check
          %p3797 = pneg %p213
        $region95: #{conv_vencoder_forward.6} parent=39 // pred_check_branch
          %3799 = sbr.rel (%p3797) target = $region97
        $region96: #{conv_vencoder_forward.6} parent=39 // pred_region
          _
        $region97: #{conv_vencoder_forward.6} parent=39 // pred_fallthru
          _
      $region40: #{conv_vencoder_forward.6} parent=5 // pred_fallthru
        _
      %p3800 = scmp.le.s32.totalorder 2, %s14
      // Predicated region
      $region98: #{conv_vencoder_forward.6} parent=5 // pred_check
        %p3801 = pneg %p3800
      $region99: #{conv_vencoder_forward.6} parent=5 // pred_check_branch
        %3803 = sbr.rel (%p3801) target = $region101
      $region100: #{conv_vencoder_forward.6} parent=5 // pred_region
        %s3804 = ssub.s32 %s14, 2
        // Predicated region
        $region102: #{conv_vencoder_forward.6} parent=100 // pred_check
          %p3805 = pneg %p167
        $region103: #{conv_vencoder_forward.6} parent=100 // pred_check_branch
          %3807 = sbr.rel (%p3805) target = $region105
        $region104: #{conv_vencoder_forward.6} parent=100 // pred_region
          %s3808 = sand.u32 %s152, 1
          %s3809 = sand.u32 %s152, 1
          %s3810 = smul.addr %s3809, 16
          %s3811 = scalar_lea.vmem [#allocation3], %s3810
        $region105: #{conv_vencoder_forward.6} parent=100 // pred_fallthru
          _
        // Predicated region
        $region106: #{conv_vencoder_forward.6} parent=100 // pred_check
          %p3812 = pneg %p193
        $region107: #{conv_vencoder_forward.6} parent=100 // pred_check_branch
          %3814 = sbr.rel (%p3812) target = $region109
        $region108: #{conv_vencoder_forward.6} parent=100 // pred_region
          %p3815 = scmp.lt.s32.totalorder %s25, 1
          %s3816 = scalar_select %p3815, %s25, 1
          %s3817 = smul.addr %s3816, 4
          %s3818 = smul.addr %s3817, 8
          %s3819 = scalar_lea.vmem %s6, %s3818
        $region109: #{conv_vencoder_forward.6} parent=100 // pred_fallthru
          _
        // Predicated region
        $region110: #{conv_vencoder_forward.6} parent=100 // pred_check
          %p3820 = pneg %p219
        $region111: #{conv_vencoder_forward.6} parent=100 // pred_check_branch
          %3822 = sbr.rel (%p3820) target = $region113
        $region112: #{conv_vencoder_forward.6} parent=100 // pred_region
          %p3823 = scmp.lt.s32.totalorder %s25, 1
          %s3824 = scalar_select %p3823, %s25, 1
          %s3825 = smul.addr %s3824, 4
          %s3826 = smul.addr %s3825, 8
          %s3827 = scalar_lea.vmem %s7, %s3826
        $region113: #{conv_vencoder_forward.6} parent=100 // pred_fallthru
          _
      $region101: #{conv_vencoder_forward.6} parent=5 // pred_fallthru
        _
    $region6: #{conv_vencoder_forward.6} parent=1 // loop_footer
      %s18 = sadd.s32 1, %s14
    $region7: #{conv_vencoder_forward.6} parent=1 // loop_footer_branch
      %13 = sbr.rel target = $region3
    $region8: #{conv_vencoder_forward.6} parent=1 // loop_exit
      _

</llo_original>
